<compile_context>
chip_gen: v6e
topology: v6e:2x2x1
jax: 0.10.0
libtpu: 0.0.40
codegen_flags: <defaults>
</compile_context>

<pallas_src>
import jax
import jax.numpy as jnp
from jax import lax
from jax.experimental import pallas as pl
from jax.experimental.pallas import tpu as pltpu


C1, C2 = 5, 10           # conv output channels
K = 3                    # conv kernel size
H0 = 28                  # input spatial size
H1 = H0 - K + 1          # 26 after conv1
H2 = H1 - K + 1          # 24 after conv2
HP = H2 // 2             # 12 after 2x2 max-pool
NH = 128                 # fc1 width
NOUT = 10                # logits
BT = 8                   # batch tile (grid axis is batch, marked "parallel")


# ----------------------------------------------------------------------------
# Fused kernel: conv1 -> relu -> conv2 -> relu -> maxpool -> flatten -> fc1 ->
# relu -> fc2, for one batch tile, entirely in VMEM.
# ----------------------------------------------------------------------------
def _conv_nn_kernel(x_ref, w1_ref, b1_ref, w2_ref, b2_ref,
                    w1p_ref, fc1b_ref, fc2w_ref, fc2b_ref,
                    out_ref, a1_ref, a2_ref):
    Bt = x_ref.shape[0]
    f32 = jnp.float32

    # -------- conv1 (1->5, 3x3, valid) + ReLU : VPU tap accumulation --------
    def conv1_body(co, carry):
        acc = jnp.full((Bt, H1, H1), b1_ref[co], dtype=f32)
        for i in range(K):
            for j in range(K):
                acc = acc + w1_ref[co, i * K + j] * x_ref[:, i:i + H1, j:j + H1]
        a1_ref[co] = jnp.maximum(acc, 0.0)
        return carry
    lax.fori_loop(0, C1, conv1_body, 0)

    # -------- conv2 (5->10, 3x3, valid) + ReLU : VPU tap accumulation -------
    def conv2_body(co, carry):
        acc = jnp.full((Bt, H2, H2), b2_ref[co], dtype=f32)
        for ci in range(C1):
            for i in range(K):
                for j in range(K):
                    acc = acc + (w2_ref[co, ci * K * K + i * K + j]
                                 * a1_ref[ci, :, i:i + H2, j:j + H2])
        a2_ref[co] = jnp.maximum(acc, 0.0)
        return carry
    lax.fori_loop(0, C2, conv2_body, 0)

    # -------- maxpool 2x2 + flatten + fc1 (fused; MXU, bf16 x bf16 -> f32) ---
    # For each (channel c, pooled row ph) we build s[b, w] = max of the 2x2
    # window starting at column w (w = 0..H2-2).  Valid pooled values sit at
    # even w; the fc1 weight slab w1p has zeros at odd rows, so the selection
    # is folded into the matmul and no reshape / lane compaction is needed.
    def fc1_body(c, acc):
        for ph in range(HP):
            r0a = a2_ref[c, :, 2 * ph, 0:H2 - 1]
            r0b = a2_ref[c, :, 2 * ph, 1:H2]
            r1a = a2_ref[c, :, 2 * ph + 1, 0:H2 - 1]
            r1b = a2_ref[c, :, 2 * ph + 1, 1:H2]
            s = jnp.maximum(jnp.maximum(r0a, r0b), jnp.maximum(r1a, r1b))
            acc = acc + jnp.dot(s.astype(jnp.bfloat16), w1p_ref[c, ph],
                                preferred_element_type=jnp.float32)
        return acc
    acc1 = lax.fori_loop(0, C2, fc1_body, jnp.zeros((Bt, NH), jnp.float32))
    h1 = jnp.maximum(acc1 + fc1b_ref[...], 0.0)          # fc1 bias + ReLU (f32)

    # -------- fc2 (output N padded to 128 -> lane-dense HBM store) ----------
    out = jnp.dot(h1.astype(jnp.bfloat16), fc2w_ref[...],
                  preferred_element_type=jnp.float32) + fc2b_ref[...]
    out_ref[...] = out


# ----------------------------------------------------------------------------
# Wrapper: weight re-layout (one-time XLA glue) + single gridded pallas_call.
# ----------------------------------------------------------------------------
def conv_nn_forward(x, params):
    B = x.shape[0]
    x2 = x.reshape(B, H0, H0).astype(jnp.float32)         # (B,1,28,28) -> (B,28,28)

    Bp = ((B + BT - 1) // BT) * BT                         # pad batch to tile multiple
    if Bp != B:
        x2 = jnp.pad(x2, ((0, Bp - B), (0, 0), (0, 0)))
    grid = (Bp // BT,)

    # conv weights/biases -> SMEM scalar tables
    w1 = params["conv1_w"].reshape(C1, K * K).astype(jnp.float32)
    b1 = params["conv1_b"].astype(jnp.float32)
    w2 = params["conv2_w"].reshape(C2, C1 * K * K).astype(jnp.float32)
    b2 = params["conv2_b"].astype(jnp.float32)

    # fc1 weight rearranged for the fused pool+flatten+matmul:
    # w1p[c, ph, 2*pw, :] = fc1_w[c*144 + ph*12 + pw, :]; odd rows are zero.
    w1r = params["fc1_w"].reshape(C2, HP, HP, NH)
    w1p = jnp.zeros((C2, HP, H2 - 1, NH), jnp.float32).at[:, :, 0::2, :].set(w1r)
    w1p = w1p.astype(jnp.bfloat16)
    fc1b = params["fc1_b"].reshape(1, NH).astype(jnp.float32)

    # fc2: pad N from 10 to 128 so the only HBM store is lane-dense.
    fc2w = jnp.zeros((NH, NH), jnp.float32).at[:, :NOUT].set(params["fc2_w"])
    fc2w = fc2w.astype(jnp.bfloat16)
    fc2b = jnp.zeros((1, NH), jnp.float32).at[:, :NOUT].set(
        params["fc2_b"].reshape(1, NOUT))

    smem = pl.BlockSpec(memory_space=pltpu.MemorySpace.SMEM)

    def full(shape):
        return pl.BlockSpec(shape, lambda b, _s=shape: (0,) * len(_s))

    out = pl.pallas_call(
        _conv_nn_kernel,
        grid=grid,
        in_specs=[
            pl.BlockSpec((BT, H0, H0), lambda b: (b, 0, 0)),   # input batch tile
            smem, smem, smem, smem,                            # conv1/conv2 w & b
            full((C2, HP, H2 - 1, NH)),                        # fc1 weight (bf16)
            full((1, NH)),                                     # fc1 bias (f32)
            full((NH, NH)),                                    # fc2 weight (bf16, padded)
            full((1, NH)),                                     # fc2 bias (f32, padded)
        ],
        out_specs=pl.BlockSpec((BT, NH), lambda b: (b, 0)),
        out_shape=jax.ShapeDtypeStruct((Bp, NH), jnp.float32),
        scratch_shapes=[
            pltpu.VMEM((C1, BT, H1, H1), jnp.float32),         # conv1 activations
            pltpu.VMEM((C2, BT, H2, H2), jnp.float32),         # conv2 activations
        ],
        compiler_params=pltpu.CompilerParams(
            dimension_semantics=("parallel",),
            vmem_limit_bytes=32 * 1024 * 1024,
        ),
    )(x2, w1, b1, w2, b2, w1p, fc1b, fc2w, fc2b)

    return out[:B, :NOUT]


# ----------------------------------------------------------------------------
# Pure-JAX reference (for correctness check) and synthetic parameters.
# ----------------------------------------------------------------------------
def conv_nn_reference(x, params):
    dn = ("NCHW", "OIHW", "NCHW")
    y = lax.conv_general_dilated(x, params["conv1_w"], (1, 1), "VALID",
                                 dimension_numbers=dn)
    y = jnp.maximum(y + params["conv1_b"][None, :, None, None], 0.0)
    y = lax.conv_general_dilated(y, params["conv2_w"], (1, 1), "VALID",
                                 dimension_numbers=dn)
    y = jnp.maximum(y + params["conv2_b"][None, :, None, None], 0.0)
    y = lax.reduce_window(y, -jnp.inf, lax.max, (1, 1, 2, 2), (1, 1, 2, 2), "VALID")
    y = y.reshape(y.shape[0], -1)
    y = jnp.maximum(y @ params["fc1_w"] + params["fc1_b"], 0.0)
    return y @ params["fc2_w"] + params["fc2_b"]


def init_params(key):
    """Deterministic synthetic parameters with the shapes from Conv_NN.__init__."""
    ks = jax.random.split(key, 8)
    f32 = jnp.float32
    return {
        "conv1_w": 0.1 * jax.random.normal(ks[0], (C1, 1, K, K), f32),
        "conv1_b": 0.1 * jax.random.normal(ks[1], (C1,), f32),
        "conv2_w": 0.1 * jax.random.normal(ks[2], (C2, C1, K, K), f32),
        "conv2_b": 0.1 * jax.random.normal(ks[3], (C2,), f32),
        "fc1_w": 0.05 * jax.random.normal(ks[4], (C2 * HP * HP, NH), f32),  # torch W.T
        "fc1_b": 0.05 * jax.random.normal(ks[5], (NH,), f32),
        "fc2_w": 0.05 * jax.random.normal(ks[6], (NH, NOUT), f32),          # torch W.T
        "fc2_b": 0.05 * jax.random.normal(ks[7], (NOUT,), f32),
    }


if __name__ == "__main__":
    key = jax.random.PRNGKey(0)
    pkey, xkey = jax.random.split(key)
    params = init_params(pkey)

    # MNIST-shaped input: the module requires 28x28 (-> 1440 flattened features).
    x = jax.random.normal(xkey, (2, 1, 28, 28), jnp.float32)

    out = jax.jit(conv_nn_forward)(x, params)
    out = jax.block_until_ready(out)

    ref = conv_nn_reference(x, params)

    assert out.shape == (2, NOUT), out.shape
    assert out.dtype == jnp.float32
    assert bool(jnp.all(jnp.isfinite(out)))
    # bf16 MXU operands with f32 accumulation -> small, bounded deviation.
    assert bool(jnp.allclose(out, ref, rtol=2e-2, atol=2e-2)), \
        float(jnp.max(jnp.abs(out - ref)))
    print("KERNEL_OK")
</pallas_src>

<mosaic_0001>
module attributes {stable_mosaic.version = 11 : i64} {
  func.func @_conv_nn_kernel(%arg0: i32, %arg1: memref<8x28x28xf32, #tpu.memory_space<vmem>>, %arg2: memref<5x9xf32, #tpu.memory_space<smem>>, %arg3: memref<5xf32, #tpu.memory_space<smem>>, %arg4: memref<10x45xf32, #tpu.memory_space<smem>>, %arg5: memref<10xf32, #tpu.memory_space<smem>>, %arg6: memref<10x12x23x128xbf16, #tpu.memory_space<vmem>>, %arg7: memref<1x128xf32, #tpu.memory_space<vmem>>, %arg8: memref<128x128xbf16, #tpu.memory_space<vmem>>, %arg9: memref<1x128xf32, #tpu.memory_space<vmem>>, %arg10: memref<8x128xf32, #tpu.memory_space<vmem>>, %arg11: memref<5x8x26x26xf32, #tpu.memory_space<vmem>>, %arg12: memref<10x8x24x24xf32, #tpu.memory_space<vmem>>) attributes {dimension_semantics = [#tpu.dimension_semantics<parallel>], iteration_bounds = array<i64: 1>, scalar_prefetch = 0 : i64, scratch_operands = 2 : i64, tpu.core_type = #tpu.core_type<tc>, window_params = [{transform_indices = @transform_0, window_bounds = array<i64: 8, 28, 28>}, {transform_indices = @transform_1, window_bounds = array<i64: 5, 9>}, {transform_indices = @transform_2, window_bounds = array<i64: 5>}, {transform_indices = @transform_3, window_bounds = array<i64: 10, 45>}, {transform_indices = @transform_4, window_bounds = array<i64: 10>}, {pipeline_mode = #tpu.pipeline_mode<synchronous>, transform_indices = @transform_5, window_bounds = array<i64: 10, 12, 23, 128>}, {pipeline_mode = #tpu.pipeline_mode<synchronous>, transform_indices = @transform_6, window_bounds = array<i64: 1, 128>}, {pipeline_mode = #tpu.pipeline_mode<synchronous>, transform_indices = @transform_7, window_bounds = array<i64: 128, 128>}, {pipeline_mode = #tpu.pipeline_mode<synchronous>, transform_indices = @transform_8, window_bounds = array<i64: 1, 128>}, {transform_indices = @transform_9, window_bounds = array<i64: 8, 128>}]} {
    %c0_i32 = arith.constant 0 : i32
    %c5_i32 = arith.constant 5 : i32
    %0 = arith.addi %c0_i32, %c5_i32 : i32
    %c1_i32 = arith.constant 1 : i32
    scf.for %arg13 = %c0_i32 to %0 step %c1_i32  : i32 {
      %17 = arith.index_cast %arg13 : i32 to index
      %18 = memref.load %arg3[%17] : memref<5xf32, #tpu.memory_space<smem>>
      %19 = vector.broadcast %18 : f32 to vector<8x26x26xf32>
      %20 = arith.index_cast %arg13 : i32 to index
      %c0_17 = arith.constant 0 : index
      %21 = memref.load %arg2[%20, %c0_17] : memref<5x9xf32, #tpu.memory_space<smem>>
      %c0_18 = arith.constant 0 : index
      %c0_19 = arith.constant 0 : index
      %c0_20 = arith.constant 0 : index
      %22 = vector.load %arg1[%c0_18, %c0_19, %c0_20] : memref<8x28x28xf32, #tpu.memory_space<vmem>>, vector<8x26x26xf32>
      %23 = vector.broadcast %21 : f32 to vector<8x26x26xf32>
      %24 = arith.mulf %23, %22 : vector<8x26x26xf32>
      %25 = arith.addf %19, %24 : vector<8x26x26xf32>
      %26 = arith.index_cast %arg13 : i32 to index
      %c1 = arith.constant 1 : index
      %27 = memref.load %arg2[%26, %c1] : memref<5x9xf32, #tpu.memory_space<smem>>
      %c0_21 = arith.constant 0 : index
      %c0_22 = arith.constant 0 : index
      %c1_23 = arith.constant 1 : index
      %28 = vector.load %arg1[%c0_21, %c0_22, %c1_23] : memref<8x28x28xf32, #tpu.memory_space<vmem>>, vector<8x26x26xf32>
      %29 = vector.broadcast %27 : f32 to vector<8x26x26xf32>
      %30 = arith.mulf %29, %28 : vector<8x26x26xf32>
      %31 = arith.addf %25, %30 : vector<8x26x26xf32>
      %32 = arith.index_cast %arg13 : i32 to index
      %c2 = arith.constant 2 : index
      %33 = memref.load %arg2[%32, %c2] : memref<5x9xf32, #tpu.memory_space<smem>>
      %c0_24 = arith.constant 0 : index
      %c0_25 = arith.constant 0 : index
      %c2_26 = arith.constant 2 : index
      %34 = vector.load %arg1[%c0_24, %c0_25, %c2_26] : memref<8x28x28xf32, #tpu.memory_space<vmem>>, vector<8x26x26xf32>
      %35 = vector.broadcast %33 : f32 to vector<8x26x26xf32>
      %36 = arith.mulf %35, %34 : vector<8x26x26xf32>
      %37 = arith.addf %31, %36 : vector<8x26x26xf32>
      %38 = arith.index_cast %arg13 : i32 to index
      %c3 = arith.constant 3 : index
      %39 = memref.load %arg2[%38, %c3] : memref<5x9xf32, #tpu.memory_space<smem>>
      %c0_27 = arith.constant 0 : index
      %c1_28 = arith.constant 1 : index
      %c0_29 = arith.constant 0 : index
      %40 = vector.load %arg1[%c0_27, %c1_28, %c0_29] : memref<8x28x28xf32, #tpu.memory_space<vmem>>, vector<8x26x26xf32>
      %41 = vector.broadcast %39 : f32 to vector<8x26x26xf32>
      %42 = arith.mulf %41, %40 : vector<8x26x26xf32>
      %43 = arith.addf %37, %42 : vector<8x26x26xf32>
      %44 = arith.index_cast %arg13 : i32 to index
      %c4 = arith.constant 4 : index
      %45 = memref.load %arg2[%44, %c4] : memref<5x9xf32, #tpu.memory_space<smem>>
      %c0_30 = arith.constant 0 : index
      %c1_31 = arith.constant 1 : index
      %c1_32 = arith.constant 1 : index
      %46 = vector.load %arg1[%c0_30, %c1_31, %c1_32] : memref<8x28x28xf32, #tpu.memory_space<vmem>>, vector<8x26x26xf32>
      %47 = vector.broadcast %45 : f32 to vector<8x26x26xf32>
      %48 = arith.mulf %47, %46 : vector<8x26x26xf32>
      %49 = arith.addf %43, %48 : vector<8x26x26xf32>
      %50 = arith.index_cast %arg13 : i32 to index
      %c5 = arith.constant 5 : index
      %51 = memref.load %arg2[%50, %c5] : memref<5x9xf32, #tpu.memory_space<smem>>
      %c0_33 = arith.constant 0 : index
      %c1_34 = arith.constant 1 : index
      %c2_35 = arith.constant 2 : index
      %52 = vector.load %arg1[%c0_33, %c1_34, %c2_35] : memref<8x28x28xf32, #tpu.memory_space<vmem>>, vector<8x26x26xf32>
      %53 = vector.broadcast %51 : f32 to vector<8x26x26xf32>
      %54 = arith.mulf %53, %52 : vector<8x26x26xf32>
      %55 = arith.addf %49, %54 : vector<8x26x26xf32>
      %56 = arith.index_cast %arg13 : i32 to index
      %c6 = arith.constant 6 : index
      %57 = memref.load %arg2[%56, %c6] : memref<5x9xf32, #tpu.memory_space<smem>>
      %c0_36 = arith.constant 0 : index
      %c2_37 = arith.constant 2 : index
      %c0_38 = arith.constant 0 : index
      %58 = vector.load %arg1[%c0_36, %c2_37, %c0_38] : memref<8x28x28xf32, #tpu.memory_space<vmem>>, vector<8x26x26xf32>
      %59 = vector.broadcast %57 : f32 to vector<8x26x26xf32>
      %60 = arith.mulf %59, %58 : vector<8x26x26xf32>
      %61 = arith.addf %55, %60 : vector<8x26x26xf32>
      %62 = arith.index_cast %arg13 : i32 to index
      %c7 = arith.constant 7 : index
      %63 = memref.load %arg2[%62, %c7] : memref<5x9xf32, #tpu.memory_space<smem>>
      %c0_39 = arith.constant 0 : index
      %c2_40 = arith.constant 2 : index
      %c1_41 = arith.constant 1 : index
      %64 = vector.load %arg1[%c0_39, %c2_40, %c1_41] : memref<8x28x28xf32, #tpu.memory_space<vmem>>, vector<8x26x26xf32>
      %65 = vector.broadcast %63 : f32 to vector<8x26x26xf32>
      %66 = arith.mulf %65, %64 : vector<8x26x26xf32>
      %67 = arith.addf %61, %66 : vector<8x26x26xf32>
      %68 = arith.index_cast %arg13 : i32 to index
      %c8 = arith.constant 8 : index
      %69 = memref.load %arg2[%68, %c8] : memref<5x9xf32, #tpu.memory_space<smem>>
      %c0_42 = arith.constant 0 : index
      %c2_43 = arith.constant 2 : index
      %c2_44 = arith.constant 2 : index
      %70 = vector.load %arg1[%c0_42, %c2_43, %c2_44] : memref<8x28x28xf32, #tpu.memory_space<vmem>>, vector<8x26x26xf32>
      %71 = vector.broadcast %69 : f32 to vector<8x26x26xf32>
      %72 = arith.mulf %71, %70 : vector<8x26x26xf32>
      %73 = arith.addf %67, %72 : vector<8x26x26xf32>
      %cst_45 = arith.constant 0.000000e+00 : f32
      %74 = vector.broadcast %cst_45 : f32 to vector<8x26x26xf32>
      %75 = arith.maximumf %73, %74 : vector<8x26x26xf32>
      %76 = arith.index_cast %arg13 : i32 to index
      %c0_46 = arith.constant 0 : index
      %c0_47 = arith.constant 0 : index
      %c0_48 = arith.constant 0 : index
      %77 = vector.load %arg11[%76, %c0_46, %c0_47, %c0_48] : memref<5x8x26x26xf32, #tpu.memory_space<vmem>>, vector<1x8x26x26xf32>
      %78 = vector.shape_cast %77 : vector<1x8x26x26xf32> to vector<8x26x26xf32>
      %79 = vector.shape_cast %75 : vector<8x26x26xf32> to vector<1x8x26x26xf32>
      tpu.vector_store %arg11[%76, %c0_46, %c0_47, %c0_48], %79 {strides = array<i32>} : memref<5x8x26x26xf32, #tpu.memory_space<vmem>>, vector<1x8x26x26xf32>,
    }
    %c5_i32_0 = arith.constant 5 : i32
    %c0_i32_1 = arith.constant 0 : i32
    %c10_i32 = arith.constant 10 : i32
    %1 = arith.addi %c0_i32_1, %c10_i32 : i32
    %c1_i32_2 = arith.constant 1 : i32
    scf.for %arg13 = %c0_i32_1 to %1 step %c1_i32_2  : i32 {
      %17 = arith.index_cast %arg13 : i32 to index
      %18 = memref.load %arg5[%17] : memref<10xf32, #tpu.memory_space<smem>>
      %19 = vector.broadcast %18 : f32 to vector<8x24x24xf32>
      %20 = arith.index_cast %arg13 : i32 to index
      %c0_17 = arith.constant 0 : index
      %21 = memref.load %arg4[%20, %c0_17] : memref<10x45xf32, #tpu.memory_space<smem>>
      %c0_18 = arith.constant 0 : index
      %c0_19 = arith.constant 0 : index
      %c0_20 = arith.constant 0 : index
      %c0_21 = arith.constant 0 : index
      %22 = vector.load %arg11[%c0_18, %c0_19, %c0_20, %c0_21] : memref<5x8x26x26xf32, #tpu.memory_space<vmem>>, vector<1x8x24x24xf32>
      %23 = vector.shape_cast %22 : vector<1x8x24x24xf32> to vector<8x24x24xf32>
      %24 = vector.broadcast %21 : f32 to vector<8x24x24xf32>
      %25 = arith.mulf %24, %23 : vector<8x24x24xf32>
      %26 = arith.addf %19, %25 : vector<8x24x24xf32>
      %27 = arith.index_cast %arg13 : i32 to index
      %c1 = arith.constant 1 : index
      %28 = memref.load %arg4[%27, %c1] : memref<10x45xf32, #tpu.memory_space<smem>>
      %c0_22 = arith.constant 0 : index
      %c0_23 = arith.constant 0 : index
      %c0_24 = arith.constant 0 : index
      %c1_25 = arith.constant 1 : index
      %29 = vector.load %arg11[%c0_22, %c0_23, %c0_24, %c1_25] : memref<5x8x26x26xf32, #tpu.memory_space<vmem>>, vector<1x8x24x24xf32>
      %30 = vector.shape_cast %29 : vector<1x8x24x24xf32> to vector<8x24x24xf32>
      %31 = vector.broadcast %28 : f32 to vector<8x24x24xf32>
      %32 = arith.mulf %31, %30 : vector<8x24x24xf32>
      %33 = arith.addf %26, %32 : vector<8x24x24xf32>
      %34 = arith.index_cast %arg13 : i32 to index
      %c2 = arith.constant 2 : index
      %35 = memref.load %arg4[%34, %c2] : memref<10x45xf32, #tpu.memory_space<smem>>
      %c0_26 = arith.constant 0 : index
      %c0_27 = arith.constant 0 : index
      %c0_28 = arith.constant 0 : index
      %c2_29 = arith.constant 2 : index
      %36 = vector.load %arg11[%c0_26, %c0_27, %c0_28, %c2_29] : memref<5x8x26x26xf32, #tpu.memory_space<vmem>>, vector<1x8x24x24xf32>
      %37 = vector.shape_cast %36 : vector<1x8x24x24xf32> to vector<8x24x24xf32>
      %38 = vector.broadcast %35 : f32 to vector<8x24x24xf32>
      %39 = arith.mulf %38, %37 : vector<8x24x24xf32>
      %40 = arith.addf %33, %39 : vector<8x24x24xf32>
      %41 = arith.index_cast %arg13 : i32 to index
      %c3 = arith.constant 3 : index
      %42 = memref.load %arg4[%41, %c3] : memref<10x45xf32, #tpu.memory_space<smem>>
      %c0_30 = arith.constant 0 : index
      %c0_31 = arith.constant 0 : index
      %c1_32 = arith.constant 1 : index
      %c0_33 = arith.constant 0 : index
      %43 = vector.load %arg11[%c0_30, %c0_31, %c1_32, %c0_33] : memref<5x8x26x26xf32, #tpu.memory_space<vmem>>, vector<1x8x24x24xf32>
      %44 = vector.shape_cast %43 : vector<1x8x24x24xf32> to vector<8x24x24xf32>
      %45 = vector.broadcast %42 : f32 to vector<8x24x24xf32>
      %46 = arith.mulf %45, %44 : vector<8x24x24xf32>
      %47 = arith.addf %40, %46 : vector<8x24x24xf32>
      %48 = arith.index_cast %arg13 : i32 to index
      %c4 = arith.constant 4 : index
      %49 = memref.load %arg4[%48, %c4] : memref<10x45xf32, #tpu.memory_space<smem>>
      %c0_34 = arith.constant 0 : index
      %c0_35 = arith.constant 0 : index
      %c1_36 = arith.constant 1 : index
      %c1_37 = arith.constant 1 : index
      %50 = vector.load %arg11[%c0_34, %c0_35, %c1_36, %c1_37] : memref<5x8x26x26xf32, #tpu.memory_space<vmem>>, vector<1x8x24x24xf32>
      %51 = vector.shape_cast %50 : vector<1x8x24x24xf32> to vector<8x24x24xf32>
      %52 = vector.broadcast %49 : f32 to vector<8x24x24xf32>
      %53 = arith.mulf %52, %51 : vector<8x24x24xf32>
      %54 = arith.addf %47, %53 : vector<8x24x24xf32>
      %55 = arith.index_cast %arg13 : i32 to index
      %c5 = arith.constant 5 : index
      %56 = memref.load %arg4[%55, %c5] : memref<10x45xf32, #tpu.memory_space<smem>>
      %c0_38 = arith.constant 0 : index
      %c0_39 = arith.constant 0 : index
      %c1_40 = arith.constant 1 : index
      %c2_41 = arith.constant 2 : index
      %57 = vector.load %arg11[%c0_38, %c0_39, %c1_40, %c2_41] : memref<5x8x26x26xf32, #tpu.memory_space<vmem>>, vector<1x8x24x24xf32>
      %58 = vector.shape_cast %57 : vector<1x8x24x24xf32> to vector<8x24x24xf32>
      %59 = vector.broadcast %56 : f32 to vector<8x24x24xf32>
      %60 = arith.mulf %59, %58 : vector<8x24x24xf32>
      %61 = arith.addf %54, %60 : vector<8x24x24xf32>
      %62 = arith.index_cast %arg13 : i32 to index
      %c6 = arith.constant 6 : index
      %63 = memref.load %arg4[%62, %c6] : memref<10x45xf32, #tpu.memory_space<smem>>
      %c0_42 = arith.constant 0 : index
      %c0_43 = arith.constant 0 : index
      %c2_44 = arith.constant 2 : index
      %c0_45 = arith.constant 0 : index
      %64 = vector.load %arg11[%c0_42, %c0_43, %c2_44, %c0_45] : memref<5x8x26x26xf32, #tpu.memory_space<vmem>>, vector<1x8x24x24xf32>
      %65 = vector.shape_cast %64 : vector<1x8x24x24xf32> to vector<8x24x24xf32>
      %66 = vector.broadcast %63 : f32 to vector<8x24x24xf32>
      %67 = arith.mulf %66, %65 : vector<8x24x24xf32>
      %68 = arith.addf %61, %67 : vector<8x24x24xf32>
      %69 = arith.index_cast %arg13 : i32 to index
      %c7 = arith.constant 7 : index
      %70 = memref.load %arg4[%69, %c7] : memref<10x45xf32, #tpu.memory_space<smem>>
      %c0_46 = arith.constant 0 : index
      %c0_47 = arith.constant 0 : index
      %c2_48 = arith.constant 2 : index
      %c1_49 = arith.constant 1 : index
      %71 = vector.load %arg11[%c0_46, %c0_47, %c2_48, %c1_49] : memref<5x8x26x26xf32, #tpu.memory_space<vmem>>, vector<1x8x24x24xf32>
      %72 = vector.shape_cast %71 : vector<1x8x24x24xf32> to vector<8x24x24xf32>
      %73 = vector.broadcast %70 : f32 to vector<8x24x24xf32>
      %74 = arith.mulf %73, %72 : vector<8x24x24xf32>
      %75 = arith.addf %68, %74 : vector<8x24x24xf32>
      %76 = arith.index_cast %arg13 : i32 to index
      %c8 = arith.constant 8 : index
      %77 = memref.load %arg4[%76, %c8] : memref<10x45xf32, #tpu.memory_space<smem>>
      %c0_50 = arith.constant 0 : index
      %c0_51 = arith.constant 0 : index
      %c2_52 = arith.constant 2 : index
      %c2_53 = arith.constant 2 : index
      %78 = vector.load %arg11[%c0_50, %c0_51, %c2_52, %c2_53] : memref<5x8x26x26xf32, #tpu.memory_space<vmem>>, vector<1x8x24x24xf32>
      %79 = vector.shape_cast %78 : vector<1x8x24x24xf32> to vector<8x24x24xf32>
      %80 = vector.broadcast %77 : f32 to vector<8x24x24xf32>
      %81 = arith.mulf %80, %79 : vector<8x24x24xf32>
      %82 = arith.addf %75, %81 : vector<8x24x24xf32>
      %83 = arith.index_cast %arg13 : i32 to index
      %c9 = arith.constant 9 : index
      %84 = memref.load %arg4[%83, %c9] : memref<10x45xf32, #tpu.memory_space<smem>>
      %c1_54 = arith.constant 1 : index
      %c0_55 = arith.constant 0 : index
      %c0_56 = arith.constant 0 : index
      %c0_57 = arith.constant 0 : index
      %85 = vector.load %arg11[%c1_54, %c0_55, %c0_56, %c0_57] : memref<5x8x26x26xf32, #tpu.memory_space<vmem>>, vector<1x8x24x24xf32>
      %86 = vector.shape_cast %85 : vector<1x8x24x24xf32> to vector<8x24x24xf32>
      %87 = vector.broadcast %84 : f32 to vector<8x24x24xf32>
      %88 = arith.mulf %87, %86 : vector<8x24x24xf32>
      %89 = arith.addf %82, %88 : vector<8x24x24xf32>
      %90 = arith.index_cast %arg13 : i32 to index
      %c10 = arith.constant 10 : index
      %91 = memref.load %arg4[%90, %c10] : memref<10x45xf32, #tpu.memory_space<smem>>
      %c1_58 = arith.constant 1 : index
      %c0_59 = arith.constant 0 : index
      %c0_60 = arith.constant 0 : index
      %c1_61 = arith.constant 1 : index
      %92 = vector.load %arg11[%c1_58, %c0_59, %c0_60, %c1_61] : memref<5x8x26x26xf32, #tpu.memory_space<vmem>>, vector<1x8x24x24xf32>
      %93 = vector.shape_cast %92 : vector<1x8x24x24xf32> to vector<8x24x24xf32>
      %94 = vector.broadcast %91 : f32 to vector<8x24x24xf32>
      %95 = arith.mulf %94, %93 : vector<8x24x24xf32>
      %96 = arith.addf %89, %95 : vector<8x24x24xf32>
      %97 = arith.index_cast %arg13 : i32 to index
      %c11 = arith.constant 11 : index
      %98 = memref.load %arg4[%97, %c11] : memref<10x45xf32, #tpu.memory_space<smem>>
      %c1_62 = arith.constant 1 : index
      %c0_63 = arith.constant 0 : index
      %c0_64 = arith.constant 0 : index
      %c2_65 = arith.constant 2 : index
      %99 = vector.load %arg11[%c1_62, %c0_63, %c0_64, %c2_65] : memref<5x8x26x26xf32, #tpu.memory_space<vmem>>, vector<1x8x24x24xf32>
      %100 = vector.shape_cast %99 : vector<1x8x24x24xf32> to vector<8x24x24xf32>
      %101 = vector.broadcast %98 : f32 to vector<8x24x24xf32>
      %102 = arith.mulf %101, %100 : vector<8x24x24xf32>
      %103 = arith.addf %96, %102 : vector<8x24x24xf32>
      %104 = arith.index_cast %arg13 : i32 to index
      %c12 = arith.constant 12 : index
      %105 = memref.load %arg4[%104, %c12] : memref<10x45xf32, #tpu.memory_space<smem>>
      %c1_66 = arith.constant 1 : index
      %c0_67 = arith.constant 0 : index
      %c1_68 = arith.constant 1 : index
      %c0_69 = arith.constant 0 : index
      %106 = vector.load %arg11[%c1_66, %c0_67, %c1_68, %c0_69] : memref<5x8x26x26xf32, #tpu.memory_space<vmem>>, vector<1x8x24x24xf32>
      %107 = vector.shape_cast %106 : vector<1x8x24x24xf32> to vector<8x24x24xf32>
      %108 = vector.broadcast %105 : f32 to vector<8x24x24xf32>
      %109 = arith.mulf %108, %107 : vector<8x24x24xf32>
      %110 = arith.addf %103, %109 : vector<8x24x24xf32>
      %111 = arith.index_cast %arg13 : i32 to index
      %c13 = arith.constant 13 : index
      %112 = memref.load %arg4[%111, %c13] : memref<10x45xf32, #tpu.memory_space<smem>>
      %c1_70 = arith.constant 1 : index
      %c0_71 = arith.constant 0 : index
      %c1_72 = arith.constant 1 : index
      %c1_73 = arith.constant 1 : index
      %113 = vector.load %arg11[%c1_70, %c0_71, %c1_72, %c1_73] : memref<5x8x26x26xf32, #tpu.memory_space<vmem>>, vector<1x8x24x24xf32>
      %114 = vector.shape_cast %113 : vector<1x8x24x24xf32> to vector<8x24x24xf32>
      %115 = vector.broadcast %112 : f32 to vector<8x24x24xf32>
      %116 = arith.mulf %115, %114 : vector<8x24x24xf32>
      %117 = arith.addf %110, %116 : vector<8x24x24xf32>
      %118 = arith.index_cast %arg13 : i32 to index
      %c14 = arith.constant 14 : index
      %119 = memref.load %arg4[%118, %c14] : memref<10x45xf32, #tpu.memory_space<smem>>
      %c1_74 = arith.constant 1 : index
      %c0_75 = arith.constant 0 : index
      %c1_76 = arith.constant 1 : index
      %c2_77 = arith.constant 2 : index
      %120 = vector.load %arg11[%c1_74, %c0_75, %c1_76, %c2_77] : memref<5x8x26x26xf32, #tpu.memory_space<vmem>>, vector<1x8x24x24xf32>
      %121 = vector.shape_cast %120 : vector<1x8x24x24xf32> to vector<8x24x24xf32>
      %122 = vector.broadcast %119 : f32 to vector<8x24x24xf32>
      %123 = arith.mulf %122, %121 : vector<8x24x24xf32>
      %124 = arith.addf %117, %123 : vector<8x24x24xf32>
      %125 = arith.index_cast %arg13 : i32 to index
      %c15 = arith.constant 15 : index
      %126 = memref.load %arg4[%125, %c15] : memref<10x45xf32, #tpu.memory_space<smem>>
      %c1_78 = arith.constant 1 : index
      %c0_79 = arith.constant 0 : index
      %c2_80 = arith.constant 2 : index
      %c0_81 = arith.constant 0 : index
      %127 = vector.load %arg11[%c1_78, %c0_79, %c2_80, %c0_81] : memref<5x8x26x26xf32, #tpu.memory_space<vmem>>, vector<1x8x24x24xf32>
      %128 = vector.shape_cast %127 : vector<1x8x24x24xf32> to vector<8x24x24xf32>
      %129 = vector.broadcast %126 : f32 to vector<8x24x24xf32>
      %130 = arith.mulf %129, %128 : vector<8x24x24xf32>
      %131 = arith.addf %124, %130 : vector<8x24x24xf32>
      %132 = arith.index_cast %arg13 : i32 to index
      %c16 = arith.constant 16 : index
      %133 = memref.load %arg4[%132, %c16] : memref<10x45xf32, #tpu.memory_space<smem>>
      %c1_82 = arith.constant 1 : index
      %c0_83 = arith.constant 0 : index
      %c2_84 = arith.constant 2 : index
      %c1_85 = arith.constant 1 : index
      %134 = vector.load %arg11[%c1_82, %c0_83, %c2_84, %c1_85] : memref<5x8x26x26xf32, #tpu.memory_space<vmem>>, vector<1x8x24x24xf32>
      %135 = vector.shape_cast %134 : vector<1x8x24x24xf32> to vector<8x24x24xf32>
      %136 = vector.broadcast %133 : f32 to vector<8x24x24xf32>
      %137 = arith.mulf %136, %135 : vector<8x24x24xf32>
      %138 = arith.addf %131, %137 : vector<8x24x24xf32>
      %139 = arith.index_cast %arg13 : i32 to index
      %c17 = arith.constant 17 : index
      %140 = memref.load %arg4[%139, %c17] : memref<10x45xf32, #tpu.memory_space<smem>>
      %c1_86 = arith.constant 1 : index
      %c0_87 = arith.constant 0 : index
      %c2_88 = arith.constant 2 : index
      %c2_89 = arith.constant 2 : index
      %141 = vector.load %arg11[%c1_86, %c0_87, %c2_88, %c2_89] : memref<5x8x26x26xf32, #tpu.memory_space<vmem>>, vector<1x8x24x24xf32>
      %142 = vector.shape_cast %141 : vector<1x8x24x24xf32> to vector<8x24x24xf32>
      %143 = vector.broadcast %140 : f32 to vector<8x24x24xf32>
      %144 = arith.mulf %143, %142 : vector<8x24x24xf32>
      %145 = arith.addf %138, %144 : vector<8x24x24xf32>
      %146 = arith.index_cast %arg13 : i32 to index
      %c18 = arith.constant 18 : index
      %147 = memref.load %arg4[%146, %c18] : memref<10x45xf32, #tpu.memory_space<smem>>
      %c2_90 = arith.constant 2 : index
      %c0_91 = arith.constant 0 : index
      %c0_92 = arith.constant 0 : index
      %c0_93 = arith.constant 0 : index
      %148 = vector.load %arg11[%c2_90, %c0_91, %c0_92, %c0_93] : memref<5x8x26x26xf32, #tpu.memory_space<vmem>>, vector<1x8x24x24xf32>
      %149 = vector.shape_cast %148 : vector<1x8x24x24xf32> to vector<8x24x24xf32>
      %150 = vector.broadcast %147 : f32 to vector<8x24x24xf32>
      %151 = arith.mulf %150, %149 : vector<8x24x24xf32>
      %152 = arith.addf %145, %151 : vector<8x24x24xf32>
      %153 = arith.index_cast %arg13 : i32 to index
      %c19 = arith.constant 19 : index
      %154 = memref.load %arg4[%153, %c19] : memref<10x45xf32, #tpu.memory_space<smem>>
      %c2_94 = arith.constant 2 : index
      %c0_95 = arith.constant 0 : index
      %c0_96 = arith.constant 0 : index
      %c1_97 = arith.constant 1 : index
      %155 = vector.load %arg11[%c2_94, %c0_95, %c0_96, %c1_97] : memref<5x8x26x26xf32, #tpu.memory_space<vmem>>, vector<1x8x24x24xf32>
      %156 = vector.shape_cast %155 : vector<1x8x24x24xf32> to vector<8x24x24xf32>
      %157 = vector.broadcast %154 : f32 to vector<8x24x24xf32>
      %158 = arith.mulf %157, %156 : vector<8x24x24xf32>
      %159 = arith.addf %152, %158 : vector<8x24x24xf32>
      %160 = arith.index_cast %arg13 : i32 to index
      %c20 = arith.constant 20 : index
      %161 = memref.load %arg4[%160, %c20] : memref<10x45xf32, #tpu.memory_space<smem>>
      %c2_98 = arith.constant 2 : index
      %c0_99 = arith.constant 0 : index
      %c0_100 = arith.constant 0 : index
      %c2_101 = arith.constant 2 : index
      %162 = vector.load %arg11[%c2_98, %c0_99, %c0_100, %c2_101] : memref<5x8x26x26xf32, #tpu.memory_space<vmem>>, vector<1x8x24x24xf32>
      %163 = vector.shape_cast %162 : vector<1x8x24x24xf32> to vector<8x24x24xf32>
      %164 = vector.broadcast %161 : f32 to vector<8x24x24xf32>
      %165 = arith.mulf %164, %163 : vector<8x24x24xf32>
      %166 = arith.addf %159, %165 : vector<8x24x24xf32>
      %167 = arith.index_cast %arg13 : i32 to index
      %c21 = arith.constant 21 : index
      %168 = memref.load %arg4[%167, %c21] : memref<10x45xf32, #tpu.memory_space<smem>>
      %c2_102 = arith.constant 2 : index
      %c0_103 = arith.constant 0 : index
      %c1_104 = arith.constant 1 : index
      %c0_105 = arith.constant 0 : index
      %169 = vector.load %arg11[%c2_102, %c0_103, %c1_104, %c0_105] : memref<5x8x26x26xf32, #tpu.memory_space<vmem>>, vector<1x8x24x24xf32>
      %170 = vector.shape_cast %169 : vector<1x8x24x24xf32> to vector<8x24x24xf32>
      %171 = vector.broadcast %168 : f32 to vector<8x24x24xf32>
      %172 = arith.mulf %171, %170 : vector<8x24x24xf32>
      %173 = arith.addf %166, %172 : vector<8x24x24xf32>
      %174 = arith.index_cast %arg13 : i32 to index
      %c22 = arith.constant 22 : index
      %175 = memref.load %arg4[%174, %c22] : memref<10x45xf32, #tpu.memory_space<smem>>
      %c2_106 = arith.constant 2 : index
      %c0_107 = arith.constant 0 : index
      %c1_108 = arith.constant 1 : index
      %c1_109 = arith.constant 1 : index
      %176 = vector.load %arg11[%c2_106, %c0_107, %c1_108, %c1_109] : memref<5x8x26x26xf32, #tpu.memory_space<vmem>>, vector<1x8x24x24xf32>
      %177 = vector.shape_cast %176 : vector<1x8x24x24xf32> to vector<8x24x24xf32>
      %178 = vector.broadcast %175 : f32 to vector<8x24x24xf32>
      %179 = arith.mulf %178, %177 : vector<8x24x24xf32>
      %180 = arith.addf %173, %179 : vector<8x24x24xf32>
      %181 = arith.index_cast %arg13 : i32 to index
      %c23 = arith.constant 23 : index
      %182 = memref.load %arg4[%181, %c23] : memref<10x45xf32, #tpu.memory_space<smem>>
      %c2_110 = arith.constant 2 : index
      %c0_111 = arith.constant 0 : index
      %c1_112 = arith.constant 1 : index
      %c2_113 = arith.constant 2 : index
      %183 = vector.load %arg11[%c2_110, %c0_111, %c1_112, %c2_113] : memref<5x8x26x26xf32, #tpu.memory_space<vmem>>, vector<1x8x24x24xf32>
      %184 = vector.shape_cast %183 : vector<1x8x24x24xf32> to vector<8x24x24xf32>
      %185 = vector.broadcast %182 : f32 to vector<8x24x24xf32>
      %186 = arith.mulf %185, %184 : vector<8x24x24xf32>
      %187 = arith.addf %180, %186 : vector<8x24x24xf32>
      %188 = arith.index_cast %arg13 : i32 to index
      %c24 = arith.constant 24 : index
      %189 = memref.load %arg4[%188, %c24] : memref<10x45xf32, #tpu.memory_space<smem>>
      %c2_114 = arith.constant 2 : index
      %c0_115 = arith.constant 0 : index
      %c2_116 = arith.constant 2 : index
      %c0_117 = arith.constant 0 : index
      %190 = vector.load %arg11[%c2_114, %c0_115, %c2_116, %c0_117] : memref<5x8x26x26xf32, #tpu.memory_space<vmem>>, vector<1x8x24x24xf32>
      %191 = vector.shape_cast %190 : vector<1x8x24x24xf32> to vector<8x24x24xf32>
      %192 = vector.broadcast %189 : f32 to vector<8x24x24xf32>
      %193 = arith.mulf %192, %191 : vector<8x24x24xf32>
      %194 = arith.addf %187, %193 : vector<8x24x24xf32>
      %195 = arith.index_cast %arg13 : i32 to index
      %c25 = arith.constant 25 : index
      %196 = memref.load %arg4[%195, %c25] : memref<10x45xf32, #tpu.memory_space<smem>>
      %c2_118 = arith.constant 2 : index
      %c0_119 = arith.constant 0 : index
      %c2_120 = arith.constant 2 : index
      %c1_121 = arith.constant 1 : index
      %197 = vector.load %arg11[%c2_118, %c0_119, %c2_120, %c1_121] : memref<5x8x26x26xf32, #tpu.memory_space<vmem>>, vector<1x8x24x24xf32>
      %198 = vector.shape_cast %197 : vector<1x8x24x24xf32> to vector<8x24x24xf32>
      %199 = vector.broadcast %196 : f32 to vector<8x24x24xf32>
      %200 = arith.mulf %199, %198 : vector<8x24x24xf32>
      %201 = arith.addf %194, %200 : vector<8x24x24xf32>
      %202 = arith.index_cast %arg13 : i32 to index
      %c26 = arith.constant 26 : index
      %203 = memref.load %arg4[%202, %c26] : memref<10x45xf32, #tpu.memory_space<smem>>
      %c2_122 = arith.constant 2 : index
      %c0_123 = arith.constant 0 : index
      %c2_124 = arith.constant 2 : index
      %c2_125 = arith.constant 2 : index
      %204 = vector.load %arg11[%c2_122, %c0_123, %c2_124, %c2_125] : memref<5x8x26x26xf32, #tpu.memory_space<vmem>>, vector<1x8x24x24xf32>
      %205 = vector.shape_cast %204 : vector<1x8x24x24xf32> to vector<8x24x24xf32>
      %206 = vector.broadcast %203 : f32 to vector<8x24x24xf32>
      %207 = arith.mulf %206, %205 : vector<8x24x24xf32>
      %208 = arith.addf %201, %207 : vector<8x24x24xf32>
      %209 = arith.index_cast %arg13 : i32 to index
      %c27 = arith.constant 27 : index
      %210 = memref.load %arg4[%209, %c27] : memref<10x45xf32, #tpu.memory_space<smem>>
      %c3_126 = arith.constant 3 : index
      %c0_127 = arith.constant 0 : index
      %c0_128 = arith.constant 0 : index
      %c0_129 = arith.constant 0 : index
      %211 = vector.load %arg11[%c3_126, %c0_127, %c0_128, %c0_129] : memref<5x8x26x26xf32, #tpu.memory_space<vmem>>, vector<1x8x24x24xf32>
      %212 = vector.shape_cast %211 : vector<1x8x24x24xf32> to vector<8x24x24xf32>
      %213 = vector.broadcast %210 : f32 to vector<8x24x24xf32>
      %214 = arith.mulf %213, %212 : vector<8x24x24xf32>
      %215 = arith.addf %208, %214 : vector<8x24x24xf32>
      %216 = arith.index_cast %arg13 : i32 to index
      %c28 = arith.constant 28 : index
      %217 = memref.load %arg4[%216, %c28] : memref<10x45xf32, #tpu.memory_space<smem>>
      %c3_130 = arith.constant 3 : index
      %c0_131 = arith.constant 0 : index
      %c0_132 = arith.constant 0 : index
      %c1_133 = arith.constant 1 : index
      %218 = vector.load %arg11[%c3_130, %c0_131, %c0_132, %c1_133] : memref<5x8x26x26xf32, #tpu.memory_space<vmem>>, vector<1x8x24x24xf32>
      %219 = vector.shape_cast %218 : vector<1x8x24x24xf32> to vector<8x24x24xf32>
      %220 = vector.broadcast %217 : f32 to vector<8x24x24xf32>
      %221 = arith.mulf %220, %219 : vector<8x24x24xf32>
      %222 = arith.addf %215, %221 : vector<8x24x24xf32>
      %223 = arith.index_cast %arg13 : i32 to index
      %c29 = arith.constant 29 : index
      %224 = memref.load %arg4[%223, %c29] : memref<10x45xf32, #tpu.memory_space<smem>>
      %c3_134 = arith.constant 3 : index
      %c0_135 = arith.constant 0 : index
      %c0_136 = arith.constant 0 : index
      %c2_137 = arith.constant 2 : index
      %225 = vector.load %arg11[%c3_134, %c0_135, %c0_136, %c2_137] : memref<5x8x26x26xf32, #tpu.memory_space<vmem>>, vector<1x8x24x24xf32>
      %226 = vector.shape_cast %225 : vector<1x8x24x24xf32> to vector<8x24x24xf32>
      %227 = vector.broadcast %224 : f32 to vector<8x24x24xf32>
      %228 = arith.mulf %227, %226 : vector<8x24x24xf32>
      %229 = arith.addf %222, %228 : vector<8x24x24xf32>
      %230 = arith.index_cast %arg13 : i32 to index
      %c30 = arith.constant 30 : index
      %231 = memref.load %arg4[%230, %c30] : memref<10x45xf32, #tpu.memory_space<smem>>
      %c3_138 = arith.constant 3 : index
      %c0_139 = arith.constant 0 : index
      %c1_140 = arith.constant 1 : index
      %c0_141 = arith.constant 0 : index
      %232 = vector.load %arg11[%c3_138, %c0_139, %c1_140, %c0_141] : memref<5x8x26x26xf32, #tpu.memory_space<vmem>>, vector<1x8x24x24xf32>
      %233 = vector.shape_cast %232 : vector<1x8x24x24xf32> to vector<8x24x24xf32>
      %234 = vector.broadcast %231 : f32 to vector<8x24x24xf32>
      %235 = arith.mulf %234, %233 : vector<8x24x24xf32>
      %236 = arith.addf %229, %235 : vector<8x24x24xf32>
      %237 = arith.index_cast %arg13 : i32 to index
      %c31 = arith.constant 31 : index
      %238 = memref.load %arg4[%237, %c31] : memref<10x45xf32, #tpu.memory_space<smem>>
      %c3_142 = arith.constant 3 : index
      %c0_143 = arith.constant 0 : index
      %c1_144 = arith.constant 1 : index
      %c1_145 = arith.constant 1 : index
      %239 = vector.load %arg11[%c3_142, %c0_143, %c1_144, %c1_145] : memref<5x8x26x26xf32, #tpu.memory_space<vmem>>, vector<1x8x24x24xf32>
      %240 = vector.shape_cast %239 : vector<1x8x24x24xf32> to vector<8x24x24xf32>
      %241 = vector.broadcast %238 : f32 to vector<8x24x24xf32>
      %242 = arith.mulf %241, %240 : vector<8x24x24xf32>
      %243 = arith.addf %236, %242 : vector<8x24x24xf32>
      %244 = arith.index_cast %arg13 : i32 to index
      %c32 = arith.constant 32 : index
      %245 = memref.load %arg4[%244, %c32] : memref<10x45xf32, #tpu.memory_space<smem>>
      %c3_146 = arith.constant 3 : index
      %c0_147 = arith.constant 0 : index
      %c1_148 = arith.constant 1 : index
      %c2_149 = arith.constant 2 : index
      %246 = vector.load %arg11[%c3_146, %c0_147, %c1_148, %c2_149] : memref<5x8x26x26xf32, #tpu.memory_space<vmem>>, vector<1x8x24x24xf32>
      %247 = vector.shape_cast %246 : vector<1x8x24x24xf32> to vector<8x24x24xf32>
      %248 = vector.broadcast %245 : f32 to vector<8x24x24xf32>
      %249 = arith.mulf %248, %247 : vector<8x24x24xf32>
      %250 = arith.addf %243, %249 : vector<8x24x24xf32>
      %251 = arith.index_cast %arg13 : i32 to index
      %c33 = arith.constant 33 : index
      %252 = memref.load %arg4[%251, %c33] : memref<10x45xf32, #tpu.memory_space<smem>>
      %c3_150 = arith.constant 3 : index
      %c0_151 = arith.constant 0 : index
      %c2_152 = arith.constant 2 : index
      %c0_153 = arith.constant 0 : index
      %253 = vector.load %arg11[%c3_150, %c0_151, %c2_152, %c0_153] : memref<5x8x26x26xf32, #tpu.memory_space<vmem>>, vector<1x8x24x24xf32>
      %254 = vector.shape_cast %253 : vector<1x8x24x24xf32> to vector<8x24x24xf32>
      %255 = vector.broadcast %252 : f32 to vector<8x24x24xf32>
      %256 = arith.mulf %255, %254 : vector<8x24x24xf32>
      %257 = arith.addf %250, %256 : vector<8x24x24xf32>
      %258 = arith.index_cast %arg13 : i32 to index
      %c34 = arith.constant 34 : index
      %259 = memref.load %arg4[%258, %c34] : memref<10x45xf32, #tpu.memory_space<smem>>
      %c3_154 = arith.constant 3 : index
      %c0_155 = arith.constant 0 : index
      %c2_156 = arith.constant 2 : index
      %c1_157 = arith.constant 1 : index
      %260 = vector.load %arg11[%c3_154, %c0_155, %c2_156, %c1_157] : memref<5x8x26x26xf32, #tpu.memory_space<vmem>>, vector<1x8x24x24xf32>
      %261 = vector.shape_cast %260 : vector<1x8x24x24xf32> to vector<8x24x24xf32>
      %262 = vector.broadcast %259 : f32 to vector<8x24x24xf32>
      %263 = arith.mulf %262, %261 : vector<8x24x24xf32>
      %264 = arith.addf %257, %263 : vector<8x24x24xf32>
      %265 = arith.index_cast %arg13 : i32 to index
      %c35 = arith.constant 35 : index
      %266 = memref.load %arg4[%265, %c35] : memref<10x45xf32, #tpu.memory_space<smem>>
      %c3_158 = arith.constant 3 : index
      %c0_159 = arith.constant 0 : index
      %c2_160 = arith.constant 2 : index
      %c2_161 = arith.constant 2 : index
      %267 = vector.load %arg11[%c3_158, %c0_159, %c2_160, %c2_161] : memref<5x8x26x26xf32, #tpu.memory_space<vmem>>, vector<1x8x24x24xf32>
      %268 = vector.shape_cast %267 : vector<1x8x24x24xf32> to vector<8x24x24xf32>
      %269 = vector.broadcast %266 : f32 to vector<8x24x24xf32>
      %270 = arith.mulf %269, %268 : vector<8x24x24xf32>
      %271 = arith.addf %264, %270 : vector<8x24x24xf32>
      %272 = arith.index_cast %arg13 : i32 to index
      %c36 = arith.constant 36 : index
      %273 = memref.load %arg4[%272, %c36] : memref<10x45xf32, #tpu.memory_space<smem>>
      %c4_162 = arith.constant 4 : index
      %c0_163 = arith.constant 0 : index
      %c0_164 = arith.constant 0 : index
      %c0_165 = arith.constant 0 : index
      %274 = vector.load %arg11[%c4_162, %c0_163, %c0_164, %c0_165] : memref<5x8x26x26xf32, #tpu.memory_space<vmem>>, vector<1x8x24x24xf32>
      %275 = vector.shape_cast %274 : vector<1x8x24x24xf32> to vector<8x24x24xf32>
      %276 = vector.broadcast %273 : f32 to vector<8x24x24xf32>
      %277 = arith.mulf %276, %275 : vector<8x24x24xf32>
      %278 = arith.addf %271, %277 : vector<8x24x24xf32>
      %279 = arith.index_cast %arg13 : i32 to index
      %c37 = arith.constant 37 : index
      %280 = memref.load %arg4[%279, %c37] : memref<10x45xf32, #tpu.memory_space<smem>>
      %c4_166 = arith.constant 4 : index
      %c0_167 = arith.constant 0 : index
      %c0_168 = arith.constant 0 : index
      %c1_169 = arith.constant 1 : index
      %281 = vector.load %arg11[%c4_166, %c0_167, %c0_168, %c1_169] : memref<5x8x26x26xf32, #tpu.memory_space<vmem>>, vector<1x8x24x24xf32>
      %282 = vector.shape_cast %281 : vector<1x8x24x24xf32> to vector<8x24x24xf32>
      %283 = vector.broadcast %280 : f32 to vector<8x24x24xf32>
      %284 = arith.mulf %283, %282 : vector<8x24x24xf32>
      %285 = arith.addf %278, %284 : vector<8x24x24xf32>
      %286 = arith.index_cast %arg13 : i32 to index
      %c38 = arith.constant 38 : index
      %287 = memref.load %arg4[%286, %c38] : memref<10x45xf32, #tpu.memory_space<smem>>
      %c4_170 = arith.constant 4 : index
      %c0_171 = arith.constant 0 : index
      %c0_172 = arith.constant 0 : index
      %c2_173 = arith.constant 2 : index
      %288 = vector.load %arg11[%c4_170, %c0_171, %c0_172, %c2_173] : memref<5x8x26x26xf32, #tpu.memory_space<vmem>>, vector<1x8x24x24xf32>
      %289 = vector.shape_cast %288 : vector<1x8x24x24xf32> to vector<8x24x24xf32>
      %290 = vector.broadcast %287 : f32 to vector<8x24x24xf32>
      %291 = arith.mulf %290, %289 : vector<8x24x24xf32>
      %292 = arith.addf %285, %291 : vector<8x24x24xf32>
      %293 = arith.index_cast %arg13 : i32 to index
      %c39 = arith.constant 39 : index
      %294 = memref.load %arg4[%293, %c39] : memref<10x45xf32, #tpu.memory_space<smem>>
      %c4_174 = arith.constant 4 : index
      %c0_175 = arith.constant 0 : index
      %c1_176 = arith.constant 1 : index
      %c0_177 = arith.constant 0 : index
      %295 = vector.load %arg11[%c4_174, %c0_175, %c1_176, %c0_177] : memref<5x8x26x26xf32, #tpu.memory_space<vmem>>, vector<1x8x24x24xf32>
      %296 = vector.shape_cast %295 : vector<1x8x24x24xf32> to vector<8x24x24xf32>
      %297 = vector.broadcast %294 : f32 to vector<8x24x24xf32>
      %298 = arith.mulf %297, %296 : vector<8x24x24xf32>
      %299 = arith.addf %292, %298 : vector<8x24x24xf32>
      %300 = arith.index_cast %arg13 : i32 to index
      %c40 = arith.constant 40 : index
      %301 = memref.load %arg4[%300, %c40] : memref<10x45xf32, #tpu.memory_space<smem>>
      %c4_178 = arith.constant 4 : index
      %c0_179 = arith.constant 0 : index
      %c1_180 = arith.constant 1 : index
      %c1_181 = arith.constant 1 : index
      %302 = vector.load %arg11[%c4_178, %c0_179, %c1_180, %c1_181] : memref<5x8x26x26xf32, #tpu.memory_space<vmem>>, vector<1x8x24x24xf32>
      %303 = vector.shape_cast %302 : vector<1x8x24x24xf32> to vector<8x24x24xf32>
      %304 = vector.broadcast %301 : f32 to vector<8x24x24xf32>
      %305 = arith.mulf %304, %303 : vector<8x24x24xf32>
      %306 = arith.addf %299, %305 : vector<8x24x24xf32>
      %307 = arith.index_cast %arg13 : i32 to index
      %c41 = arith.constant 41 : index
      %308 = memref.load %arg4[%307, %c41] : memref<10x45xf32, #tpu.memory_space<smem>>
      %c4_182 = arith.constant 4 : index
      %c0_183 = arith.constant 0 : index
      %c1_184 = arith.constant 1 : index
      %c2_185 = arith.constant 2 : index
      %309 = vector.load %arg11[%c4_182, %c0_183, %c1_184, %c2_185] : memref<5x8x26x26xf32, #tpu.memory_space<vmem>>, vector<1x8x24x24xf32>
      %310 = vector.shape_cast %309 : vector<1x8x24x24xf32> to vector<8x24x24xf32>
      %311 = vector.broadcast %308 : f32 to vector<8x24x24xf32>
      %312 = arith.mulf %311, %310 : vector<8x24x24xf32>
      %313 = arith.addf %306, %312 : vector<8x24x24xf32>
      %314 = arith.index_cast %arg13 : i32 to index
      %c42 = arith.constant 42 : index
      %315 = memref.load %arg4[%314, %c42] : memref<10x45xf32, #tpu.memory_space<smem>>
      %c4_186 = arith.constant 4 : index
      %c0_187 = arith.constant 0 : index
      %c2_188 = arith.constant 2 : index
      %c0_189 = arith.constant 0 : index
      %316 = vector.load %arg11[%c4_186, %c0_187, %c2_188, %c0_189] : memref<5x8x26x26xf32, #tpu.memory_space<vmem>>, vector<1x8x24x24xf32>
      %317 = vector.shape_cast %316 : vector<1x8x24x24xf32> to vector<8x24x24xf32>
      %318 = vector.broadcast %315 : f32 to vector<8x24x24xf32>
      %319 = arith.mulf %318, %317 : vector<8x24x24xf32>
      %320 = arith.addf %313, %319 : vector<8x24x24xf32>
      %321 = arith.index_cast %arg13 : i32 to index
      %c43 = arith.constant 43 : index
      %322 = memref.load %arg4[%321, %c43] : memref<10x45xf32, #tpu.memory_space<smem>>
      %c4_190 = arith.constant 4 : index
      %c0_191 = arith.constant 0 : index
      %c2_192 = arith.constant 2 : index
      %c1_193 = arith.constant 1 : index
      %323 = vector.load %arg11[%c4_190, %c0_191, %c2_192, %c1_193] : memref<5x8x26x26xf32, #tpu.memory_space<vmem>>, vector<1x8x24x24xf32>
      %324 = vector.shape_cast %323 : vector<1x8x24x24xf32> to vector<8x24x24xf32>
      %325 = vector.broadcast %322 : f32 to vector<8x24x24xf32>
      %326 = arith.mulf %325, %324 : vector<8x24x24xf32>
      %327 = arith.addf %320, %326 : vector<8x24x24xf32>
      %328 = arith.index_cast %arg13 : i32 to index
      %c44 = arith.constant 44 : index
      %329 = memref.load %arg4[%328, %c44] : memref<10x45xf32, #tpu.memory_space<smem>>
      %c4_194 = arith.constant 4 : index
      %c0_195 = arith.constant 0 : index
      %c2_196 = arith.constant 2 : index
      %c2_197 = arith.constant 2 : index
      %330 = vector.load %arg11[%c4_194, %c0_195, %c2_196, %c2_197] : memref<5x8x26x26xf32, #tpu.memory_space<vmem>>, vector<1x8x24x24xf32>
      %331 = vector.shape_cast %330 : vector<1x8x24x24xf32> to vector<8x24x24xf32>
      %332 = vector.broadcast %329 : f32 to vector<8x24x24xf32>
      %333 = arith.mulf %332, %331 : vector<8x24x24xf32>
      %334 = arith.addf %327, %333 : vector<8x24x24xf32>
      %cst_198 = arith.constant 0.000000e+00 : f32
      %335 = vector.broadcast %cst_198 : f32 to vector<8x24x24xf32>
      %336 = arith.maximumf %334, %335 : vector<8x24x24xf32>
      %337 = arith.index_cast %arg13 : i32 to index
      %c0_199 = arith.constant 0 : index
      %c0_200 = arith.constant 0 : index
      %c0_201 = arith.constant 0 : index
      %338 = vector.load %arg12[%337, %c0_199, %c0_200, %c0_201] : memref<10x8x24x24xf32, #tpu.memory_space<vmem>>, vector<1x8x24x24xf32>
      %339 = vector.shape_cast %338 : vector<1x8x24x24xf32> to vector<8x24x24xf32>
      %340 = vector.shape_cast %336 : vector<8x24x24xf32> to vector<1x8x24x24xf32>
      tpu.vector_store %arg12[%337, %c0_199, %c0_200, %c0_201], %340 {strides = array<i32>} : memref<10x8x24x24xf32, #tpu.memory_space<vmem>>, vector<1x8x24x24xf32>,
    }
    %c10_i32_3 = arith.constant 10 : i32
    %cst = arith.constant 0.000000e+00 : f32
    %2 = vector.broadcast %cst : f32 to vector<8x128xf32>
    %c0_i32_4 = arith.constant 0 : i32
    %c10_i32_5 = arith.constant 10 : i32
    %3 = arith.addi %c0_i32_4, %c10_i32_5 : i32
    %c1_i32_6 = arith.constant 1 : i32
    %4 = scf.for %arg13 = %c0_i32_4 to %3 step %c1_i32_6 iter_args(%arg14 = %2) -> (vector<8x128xf32>)  : i32 {
      %17 = arith.index_cast %arg13 : i32 to index
      %c0_17 = arith.constant 0 : index
      %c0_18 = arith.constant 0 : index
      %c0_19 = arith.constant 0 : index
      %18 = vector.load %arg12[%17, %c0_17, %c0_18, %c0_19] : memref<10x8x24x24xf32, #tpu.memory_space<vmem>>, vector<1x8x1x23xf32>
      %19 = vector.shape_cast %18 : vector<1x8x1x23xf32> to vector<8x23xf32>
      %20 = arith.index_cast %arg13 : i32 to index
      %c0_20 = arith.constant 0 : index
      %c0_21 = arith.constant 0 : index
      %c1 = arith.constant 1 : index
      %21 = vector.load %arg12[%20, %c0_20, %c0_21, %c1] : memref<10x8x24x24xf32, #tpu.memory_space<vmem>>, vector<1x8x1x23xf32>
      %22 = vector.shape_cast %21 : vector<1x8x1x23xf32> to vector<8x23xf32>
      %23 = arith.index_cast %arg13 : i32 to index
      %c0_22 = arith.constant 0 : index
      %c1_23 = arith.constant 1 : index
      %c0_24 = arith.constant 0 : index
      %24 = vector.load %arg12[%23, %c0_22, %c1_23, %c0_24] : memref<10x8x24x24xf32, #tpu.memory_space<vmem>>, vector<1x8x1x23xf32>
      %25 = vector.shape_cast %24 : vector<1x8x1x23xf32> to vector<8x23xf32>
      %26 = arith.index_cast %arg13 : i32 to index
      %c0_25 = arith.constant 0 : index
      %c1_26 = arith.constant 1 : index
      %c1_27 = arith.constant 1 : index
      %27 = vector.load %arg12[%26, %c0_25, %c1_26, %c1_27] : memref<10x8x24x24xf32, #tpu.memory_space<vmem>>, vector<1x8x1x23xf32>
      %28 = vector.shape_cast %27 : vector<1x8x1x23xf32> to vector<8x23xf32>
      %29 = arith.maximumf %19, %22 : vector<8x23xf32>
      %30 = arith.maximumf %25, %28 : vector<8x23xf32>
      %31 = arith.maximumf %29, %30 : vector<8x23xf32>
      %32 = arith.truncf %31 : vector<8x23xf32> to vector<8x23xbf16>
      %33 = arith.index_cast %arg13 : i32 to index
      %c0_28 = arith.constant 0 : index
      %c0_29 = arith.constant 0 : index
      %c0_30 = arith.constant 0 : index
      %34 = vector.load %arg6[%33, %c0_28, %c0_29, %c0_30] : memref<10x12x23x128xbf16, #tpu.memory_space<vmem>>, vector<1x1x23x128xbf16>
      %35 = vector.shape_cast %34 : vector<1x1x23x128xbf16> to vector<23x128xbf16>
      %cst_31 = arith.constant dense<0.000000e+00> : vector<8x128xf32>
      %36 = tpu.matmul %32, %35, %cst_31 {dimension_numbers = #tpu.dot_dimension_numbers<[1], [0], [0], [1], [0, 0, 1, 1], [], []>} : vector<8x23xbf16>, vector<23x128xbf16>, vector<8x128xf32> -> vector<8x128xf32>
      %37 = arith.addf %arg14, %36 : vector<8x128xf32>
      %38 = arith.index_cast %arg13 : i32 to index
      %c0_32 = arith.constant 0 : index
      %c2 = arith.constant 2 : index
      %c0_33 = arith.constant 0 : index
      %39 = vector.load %arg12[%38, %c0_32, %c2, %c0_33] : memref<10x8x24x24xf32, #tpu.memory_space<vmem>>, vector<1x8x1x23xf32>
      %40 = vector.shape_cast %39 : vector<1x8x1x23xf32> to vector<8x23xf32>
      %41 = arith.index_cast %arg13 : i32 to index
      %c0_34 = arith.constant 0 : index
      %c2_35 = arith.constant 2 : index
      %c1_36 = arith.constant 1 : index
      %42 = vector.load %arg12[%41, %c0_34, %c2_35, %c1_36] : memref<10x8x24x24xf32, #tpu.memory_space<vmem>>, vector<1x8x1x23xf32>
      %43 = vector.shape_cast %42 : vector<1x8x1x23xf32> to vector<8x23xf32>
      %44 = arith.index_cast %arg13 : i32 to index
      %c0_37 = arith.constant 0 : index
      %c3 = arith.constant 3 : index
      %c0_38 = arith.constant 0 : index
      %45 = vector.load %arg12[%44, %c0_37, %c3, %c0_38] : memref<10x8x24x24xf32, #tpu.memory_space<vmem>>, vector<1x8x1x23xf32>
      %46 = vector.shape_cast %45 : vector<1x8x1x23xf32> to vector<8x23xf32>
      %47 = arith.index_cast %arg13 : i32 to index
      %c0_39 = arith.constant 0 : index
      %c3_40 = arith.constant 3 : index
      %c1_41 = arith.constant 1 : index
      %48 = vector.load %arg12[%47, %c0_39, %c3_40, %c1_41] : memref<10x8x24x24xf32, #tpu.memory_space<vmem>>, vector<1x8x1x23xf32>
      %49 = vector.shape_cast %48 : vector<1x8x1x23xf32> to vector<8x23xf32>
      %50 = arith.maximumf %40, %43 : vector<8x23xf32>
      %51 = arith.maximumf %46, %49 : vector<8x23xf32>
      %52 = arith.maximumf %50, %51 : vector<8x23xf32>
      %53 = arith.truncf %52 : vector<8x23xf32> to vector<8x23xbf16>
      %54 = arith.index_cast %arg13 : i32 to index
      %c1_42 = arith.constant 1 : index
      %c0_43 = arith.constant 0 : index
      %c0_44 = arith.constant 0 : index
      %55 = vector.load %arg6[%54, %c1_42, %c0_43, %c0_44] : memref<10x12x23x128xbf16, #tpu.memory_space<vmem>>, vector<1x1x23x128xbf16>
      %56 = vector.shape_cast %55 : vector<1x1x23x128xbf16> to vector<23x128xbf16>
      %cst_45 = arith.constant dense<0.000000e+00> : vector<8x128xf32>
      %57 = tpu.matmul %53, %56, %cst_45 {dimension_numbers = #tpu.dot_dimension_numbers<[1], [0], [0], [1], [0, 0, 1, 1], [], []>} : vector<8x23xbf16>, vector<23x128xbf16>, vector<8x128xf32> -> vector<8x128xf32>
      %58 = arith.addf %37, %57 : vector<8x128xf32>
      %59 = arith.index_cast %arg13 : i32 to index
      %c0_46 = arith.constant 0 : index
      %c4 = arith.constant 4 : index
      %c0_47 = arith.constant 0 : index
      %60 = vector.load %arg12[%59, %c0_46, %c4, %c0_47] : memref<10x8x24x24xf32, #tpu.memory_space<vmem>>, vector<1x8x1x23xf32>
      %61 = vector.shape_cast %60 : vector<1x8x1x23xf32> to vector<8x23xf32>
      %62 = arith.index_cast %arg13 : i32 to index
      %c0_48 = arith.constant 0 : index
      %c4_49 = arith.constant 4 : index
      %c1_50 = arith.constant 1 : index
      %63 = vector.load %arg12[%62, %c0_48, %c4_49, %c1_50] : memref<10x8x24x24xf32, #tpu.memory_space<vmem>>, vector<1x8x1x23xf32>
      %64 = vector.shape_cast %63 : vector<1x8x1x23xf32> to vector<8x23xf32>
      %65 = arith.index_cast %arg13 : i32 to index
      %c0_51 = arith.constant 0 : index
      %c5 = arith.constant 5 : index
      %c0_52 = arith.constant 0 : index
      %66 = vector.load %arg12[%65, %c0_51, %c5, %c0_52] : memref<10x8x24x24xf32, #tpu.memory_space<vmem>>, vector<1x8x1x23xf32>
      %67 = vector.shape_cast %66 : vector<1x8x1x23xf32> to vector<8x23xf32>
      %68 = arith.index_cast %arg13 : i32 to index
      %c0_53 = arith.constant 0 : index
      %c5_54 = arith.constant 5 : index
      %c1_55 = arith.constant 1 : index
      %69 = vector.load %arg12[%68, %c0_53, %c5_54, %c1_55] : memref<10x8x24x24xf32, #tpu.memory_space<vmem>>, vector<1x8x1x23xf32>
      %70 = vector.shape_cast %69 : vector<1x8x1x23xf32> to vector<8x23xf32>
      %71 = arith.maximumf %61, %64 : vector<8x23xf32>
      %72 = arith.maximumf %67, %70 : vector<8x23xf32>
      %73 = arith.maximumf %71, %72 : vector<8x23xf32>
      %74 = arith.truncf %73 : vector<8x23xf32> to vector<8x23xbf16>
      %75 = arith.index_cast %arg13 : i32 to index
      %c2_56 = arith.constant 2 : index
      %c0_57 = arith.constant 0 : index
      %c0_58 = arith.constant 0 : index
      %76 = vector.load %arg6[%75, %c2_56, %c0_57, %c0_58] : memref<10x12x23x128xbf16, #tpu.memory_space<vmem>>, vector<1x1x23x128xbf16>
      %77 = vector.shape_cast %76 : vector<1x1x23x128xbf16> to vector<23x128xbf16>
      %cst_59 = arith.constant dense<0.000000e+00> : vector<8x128xf32>
      %78 = tpu.matmul %74, %77, %cst_59 {dimension_numbers = #tpu.dot_dimension_numbers<[1], [0], [0], [1], [0, 0, 1, 1], [], []>} : vector<8x23xbf16>, vector<23x128xbf16>, vector<8x128xf32> -> vector<8x128xf32>
      %79 = arith.addf %58, %78 : vector<8x128xf32>
      %80 = arith.index_cast %arg13 : i32 to index
      %c0_60 = arith.constant 0 : index
      %c6 = arith.constant 6 : index
      %c0_61 = arith.constant 0 : index
      %81 = vector.load %arg12[%80, %c0_60, %c6, %c0_61] : memref<10x8x24x24xf32, #tpu.memory_space<vmem>>, vector<1x8x1x23xf32>
      %82 = vector.shape_cast %81 : vector<1x8x1x23xf32> to vector<8x23xf32>
      %83 = arith.index_cast %arg13 : i32 to index
      %c0_62 = arith.constant 0 : index
      %c6_63 = arith.constant 6 : index
      %c1_64 = arith.constant 1 : index
      %84 = vector.load %arg12[%83, %c0_62, %c6_63, %c1_64] : memref<10x8x24x24xf32, #tpu.memory_space<vmem>>, vector<1x8x1x23xf32>
      %85 = vector.shape_cast %84 : vector<1x8x1x23xf32> to vector<8x23xf32>
      %86 = arith.index_cast %arg13 : i32 to index
      %c0_65 = arith.constant 0 : index
      %c7 = arith.constant 7 : index
      %c0_66 = arith.constant 0 : index
      %87 = vector.load %arg12[%86, %c0_65, %c7, %c0_66] : memref<10x8x24x24xf32, #tpu.memory_space<vmem>>, vector<1x8x1x23xf32>
      %88 = vector.shape_cast %87 : vector<1x8x1x23xf32> to vector<8x23xf32>
      %89 = arith.index_cast %arg13 : i32 to index
      %c0_67 = arith.constant 0 : index
      %c7_68 = arith.constant 7 : index
      %c1_69 = arith.constant 1 : index
      %90 = vector.load %arg12[%89, %c0_67, %c7_68, %c1_69] : memref<10x8x24x24xf32, #tpu.memory_space<vmem>>, vector<1x8x1x23xf32>
      %91 = vector.shape_cast %90 : vector<1x8x1x23xf32> to vector<8x23xf32>
      %92 = arith.maximumf %82, %85 : vector<8x23xf32>
      %93 = arith.maximumf %88, %91 : vector<8x23xf32>
      %94 = arith.maximumf %92, %93 : vector<8x23xf32>
      %95 = arith.truncf %94 : vector<8x23xf32> to vector<8x23xbf16>
      %96 = arith.index_cast %arg13 : i32 to index
      %c3_70 = arith.constant 3 : index
      %c0_71 = arith.constant 0 : index
      %c0_72 = arith.constant 0 : index
      %97 = vector.load %arg6[%96, %c3_70, %c0_71, %c0_72] : memref<10x12x23x128xbf16, #tpu.memory_space<vmem>>, vector<1x1x23x128xbf16>
      %98 = vector.shape_cast %97 : vector<1x1x23x128xbf16> to vector<23x128xbf16>
      %cst_73 = arith.constant dense<0.000000e+00> : vector<8x128xf32>
      %99 = tpu.matmul %95, %98, %cst_73 {dimension_numbers = #tpu.dot_dimension_numbers<[1], [0], [0], [1], [0, 0, 1, 1], [], []>} : vector<8x23xbf16>, vector<23x128xbf16>, vector<8x128xf32> -> vector<8x128xf32>
      %100 = arith.addf %79, %99 : vector<8x128xf32>
      %101 = arith.index_cast %arg13 : i32 to index
      %c0_74 = arith.constant 0 : index
      %c8 = arith.constant 8 : index
      %c0_75 = arith.constant 0 : index
      %102 = vector.load %arg12[%101, %c0_74, %c8, %c0_75] : memref<10x8x24x24xf32, #tpu.memory_space<vmem>>, vector<1x8x1x23xf32>
      %103 = vector.shape_cast %102 : vector<1x8x1x23xf32> to vector<8x23xf32>
      %104 = arith.index_cast %arg13 : i32 to index
      %c0_76 = arith.constant 0 : index
      %c8_77 = arith.constant 8 : index
      %c1_78 = arith.constant 1 : index
      %105 = vector.load %arg12[%104, %c0_76, %c8_77, %c1_78] : memref<10x8x24x24xf32, #tpu.memory_space<vmem>>, vector<1x8x1x23xf32>
      %106 = vector.shape_cast %105 : vector<1x8x1x23xf32> to vector<8x23xf32>
      %107 = arith.index_cast %arg13 : i32 to index
      %c0_79 = arith.constant 0 : index
      %c9 = arith.constant 9 : index
      %c0_80 = arith.constant 0 : index
      %108 = vector.load %arg12[%107, %c0_79, %c9, %c0_80] : memref<10x8x24x24xf32, #tpu.memory_space<vmem>>, vector<1x8x1x23xf32>
      %109 = vector.shape_cast %108 : vector<1x8x1x23xf32> to vector<8x23xf32>
      %110 = arith.index_cast %arg13 : i32 to index
      %c0_81 = arith.constant 0 : index
      %c9_82 = arith.constant 9 : index
      %c1_83 = arith.constant 1 : index
      %111 = vector.load %arg12[%110, %c0_81, %c9_82, %c1_83] : memref<10x8x24x24xf32, #tpu.memory_space<vmem>>, vector<1x8x1x23xf32>
      %112 = vector.shape_cast %111 : vector<1x8x1x23xf32> to vector<8x23xf32>
      %113 = arith.maximumf %103, %106 : vector<8x23xf32>
      %114 = arith.maximumf %109, %112 : vector<8x23xf32>
      %115 = arith.maximumf %113, %114 : vector<8x23xf32>
      %116 = arith.truncf %115 : vector<8x23xf32> to vector<8x23xbf16>
      %117 = arith.index_cast %arg13 : i32 to index
      %c4_84 = arith.constant 4 : index
      %c0_85 = arith.constant 0 : index
      %c0_86 = arith.constant 0 : index
      %118 = vector.load %arg6[%117, %c4_84, %c0_85, %c0_86] : memref<10x12x23x128xbf16, #tpu.memory_space<vmem>>, vector<1x1x23x128xbf16>
      %119 = vector.shape_cast %118 : vector<1x1x23x128xbf16> to vector<23x128xbf16>
      %cst_87 = arith.constant dense<0.000000e+00> : vector<8x128xf32>
      %120 = tpu.matmul %116, %119, %cst_87 {dimension_numbers = #tpu.dot_dimension_numbers<[1], [0], [0], [1], [0, 0, 1, 1], [], []>} : vector<8x23xbf16>, vector<23x128xbf16>, vector<8x128xf32> -> vector<8x128xf32>
      %121 = arith.addf %100, %120 : vector<8x128xf32>
      %122 = arith.index_cast %arg13 : i32 to index
      %c0_88 = arith.constant 0 : index
      %c10 = arith.constant 10 : index
      %c0_89 = arith.constant 0 : index
      %123 = vector.load %arg12[%122, %c0_88, %c10, %c0_89] : memref<10x8x24x24xf32, #tpu.memory_space<vmem>>, vector<1x8x1x23xf32>
      %124 = vector.shape_cast %123 : vector<1x8x1x23xf32> to vector<8x23xf32>
      %125 = arith.index_cast %arg13 : i32 to index
      %c0_90 = arith.constant 0 : index
      %c10_91 = arith.constant 10 : index
      %c1_92 = arith.constant 1 : index
      %126 = vector.load %arg12[%125, %c0_90, %c10_91, %c1_92] : memref<10x8x24x24xf32, #tpu.memory_space<vmem>>, vector<1x8x1x23xf32>
      %127 = vector.shape_cast %126 : vector<1x8x1x23xf32> to vector<8x23xf32>
      %128 = arith.index_cast %arg13 : i32 to index
      %c0_93 = arith.constant 0 : index
      %c11 = arith.constant 11 : index
      %c0_94 = arith.constant 0 : index
      %129 = vector.load %arg12[%128, %c0_93, %c11, %c0_94] : memref<10x8x24x24xf32, #tpu.memory_space<vmem>>, vector<1x8x1x23xf32>
      %130 = vector.shape_cast %129 : vector<1x8x1x23xf32> to vector<8x23xf32>
      %131 = arith.index_cast %arg13 : i32 to index
      %c0_95 = arith.constant 0 : index
      %c11_96 = arith.constant 11 : index
      %c1_97 = arith.constant 1 : index
      %132 = vector.load %arg12[%131, %c0_95, %c11_96, %c1_97] : memref<10x8x24x24xf32, #tpu.memory_space<vmem>>, vector<1x8x1x23xf32>
      %133 = vector.shape_cast %132 : vector<1x8x1x23xf32> to vector<8x23xf32>
      %134 = arith.maximumf %124, %127 : vector<8x23xf32>
      %135 = arith.maximumf %130, %133 : vector<8x23xf32>
      %136 = arith.maximumf %134, %135 : vector<8x23xf32>
      %137 = arith.truncf %136 : vector<8x23xf32> to vector<8x23xbf16>
      %138 = arith.index_cast %arg13 : i32 to index
      %c5_98 = arith.constant 5 : index
      %c0_99 = arith.constant 0 : index
      %c0_100 = arith.constant 0 : index
      %139 = vector.load %arg6[%138, %c5_98, %c0_99, %c0_100] : memref<10x12x23x128xbf16, #tpu.memory_space<vmem>>, vector<1x1x23x128xbf16>
      %140 = vector.shape_cast %139 : vector<1x1x23x128xbf16> to vector<23x128xbf16>
      %cst_101 = arith.constant dense<0.000000e+00> : vector<8x128xf32>
      %141 = tpu.matmul %137, %140, %cst_101 {dimension_numbers = #tpu.dot_dimension_numbers<[1], [0], [0], [1], [0, 0, 1, 1], [], []>} : vector<8x23xbf16>, vector<23x128xbf16>, vector<8x128xf32> -> vector<8x128xf32>
      %142 = arith.addf %121, %141 : vector<8x128xf32>
      %143 = arith.index_cast %arg13 : i32 to index
      %c0_102 = arith.constant 0 : index
      %c12 = arith.constant 12 : index
      %c0_103 = arith.constant 0 : index
      %144 = vector.load %arg12[%143, %c0_102, %c12, %c0_103] : memref<10x8x24x24xf32, #tpu.memory_space<vmem>>, vector<1x8x1x23xf32>
      %145 = vector.shape_cast %144 : vector<1x8x1x23xf32> to vector<8x23xf32>
      %146 = arith.index_cast %arg13 : i32 to index
      %c0_104 = arith.constant 0 : index
      %c12_105 = arith.constant 12 : index
      %c1_106 = arith.constant 1 : index
      %147 = vector.load %arg12[%146, %c0_104, %c12_105, %c1_106] : memref<10x8x24x24xf32, #tpu.memory_space<vmem>>, vector<1x8x1x23xf32>
      %148 = vector.shape_cast %147 : vector<1x8x1x23xf32> to vector<8x23xf32>
      %149 = arith.index_cast %arg13 : i32 to index
      %c0_107 = arith.constant 0 : index
      %c13 = arith.constant 13 : index
      %c0_108 = arith.constant 0 : index
      %150 = vector.load %arg12[%149, %c0_107, %c13, %c0_108] : memref<10x8x24x24xf32, #tpu.memory_space<vmem>>, vector<1x8x1x23xf32>
      %151 = vector.shape_cast %150 : vector<1x8x1x23xf32> to vector<8x23xf32>
      %152 = arith.index_cast %arg13 : i32 to index
      %c0_109 = arith.constant 0 : index
      %c13_110 = arith.constant 13 : index
      %c1_111 = arith.constant 1 : index
      %153 = vector.load %arg12[%152, %c0_109, %c13_110, %c1_111] : memref<10x8x24x24xf32, #tpu.memory_space<vmem>>, vector<1x8x1x23xf32>
      %154 = vector.shape_cast %153 : vector<1x8x1x23xf32> to vector<8x23xf32>
      %155 = arith.maximumf %145, %148 : vector<8x23xf32>
      %156 = arith.maximumf %151, %154 : vector<8x23xf32>
      %157 = arith.maximumf %155, %156 : vector<8x23xf32>
      %158 = arith.truncf %157 : vector<8x23xf32> to vector<8x23xbf16>
      %159 = arith.index_cast %arg13 : i32 to index
      %c6_112 = arith.constant 6 : index
      %c0_113 = arith.constant 0 : index
      %c0_114 = arith.constant 0 : index
      %160 = vector.load %arg6[%159, %c6_112, %c0_113, %c0_114] : memref<10x12x23x128xbf16, #tpu.memory_space<vmem>>, vector<1x1x23x128xbf16>
      %161 = vector.shape_cast %160 : vector<1x1x23x128xbf16> to vector<23x128xbf16>
      %cst_115 = arith.constant dense<0.000000e+00> : vector<8x128xf32>
      %162 = tpu.matmul %158, %161, %cst_115 {dimension_numbers = #tpu.dot_dimension_numbers<[1], [0], [0], [1], [0, 0, 1, 1], [], []>} : vector<8x23xbf16>, vector<23x128xbf16>, vector<8x128xf32> -> vector<8x128xf32>
      %163 = arith.addf %142, %162 : vector<8x128xf32>
      %164 = arith.index_cast %arg13 : i32 to index
      %c0_116 = arith.constant 0 : index
      %c14 = arith.constant 14 : index
      %c0_117 = arith.constant 0 : index
      %165 = vector.load %arg12[%164, %c0_116, %c14, %c0_117] : memref<10x8x24x24xf32, #tpu.memory_space<vmem>>, vector<1x8x1x23xf32>
      %166 = vector.shape_cast %165 : vector<1x8x1x23xf32> to vector<8x23xf32>
      %167 = arith.index_cast %arg13 : i32 to index
      %c0_118 = arith.constant 0 : index
      %c14_119 = arith.constant 14 : index
      %c1_120 = arith.constant 1 : index
      %168 = vector.load %arg12[%167, %c0_118, %c14_119, %c1_120] : memref<10x8x24x24xf32, #tpu.memory_space<vmem>>, vector<1x8x1x23xf32>
      %169 = vector.shape_cast %168 : vector<1x8x1x23xf32> to vector<8x23xf32>
      %170 = arith.index_cast %arg13 : i32 to index
      %c0_121 = arith.constant 0 : index
      %c15 = arith.constant 15 : index
      %c0_122 = arith.constant 0 : index
      %171 = vector.load %arg12[%170, %c0_121, %c15, %c0_122] : memref<10x8x24x24xf32, #tpu.memory_space<vmem>>, vector<1x8x1x23xf32>
      %172 = vector.shape_cast %171 : vector<1x8x1x23xf32> to vector<8x23xf32>
      %173 = arith.index_cast %arg13 : i32 to index
      %c0_123 = arith.constant 0 : index
      %c15_124 = arith.constant 15 : index
      %c1_125 = arith.constant 1 : index
      %174 = vector.load %arg12[%173, %c0_123, %c15_124, %c1_125] : memref<10x8x24x24xf32, #tpu.memory_space<vmem>>, vector<1x8x1x23xf32>
      %175 = vector.shape_cast %174 : vector<1x8x1x23xf32> to vector<8x23xf32>
      %176 = arith.maximumf %166, %169 : vector<8x23xf32>
      %177 = arith.maximumf %172, %175 : vector<8x23xf32>
      %178 = arith.maximumf %176, %177 : vector<8x23xf32>
      %179 = arith.truncf %178 : vector<8x23xf32> to vector<8x23xbf16>
      %180 = arith.index_cast %arg13 : i32 to index
      %c7_126 = arith.constant 7 : index
      %c0_127 = arith.constant 0 : index
      %c0_128 = arith.constant 0 : index
      %181 = vector.load %arg6[%180, %c7_126, %c0_127, %c0_128] : memref<10x12x23x128xbf16, #tpu.memory_space<vmem>>, vector<1x1x23x128xbf16>
      %182 = vector.shape_cast %181 : vector<1x1x23x128xbf16> to vector<23x128xbf16>
      %cst_129 = arith.constant dense<0.000000e+00> : vector<8x128xf32>
      %183 = tpu.matmul %179, %182, %cst_129 {dimension_numbers = #tpu.dot_dimension_numbers<[1], [0], [0], [1], [0, 0, 1, 1], [], []>} : vector<8x23xbf16>, vector<23x128xbf16>, vector<8x128xf32> -> vector<8x128xf32>
      %184 = arith.addf %163, %183 : vector<8x128xf32>
      %185 = arith.index_cast %arg13 : i32 to index
      %c0_130 = arith.constant 0 : index
      %c16 = arith.constant 16 : index
      %c0_131 = arith.constant 0 : index
      %186 = vector.load %arg12[%185, %c0_130, %c16, %c0_131] : memref<10x8x24x24xf32, #tpu.memory_space<vmem>>, vector<1x8x1x23xf32>
      %187 = vector.shape_cast %186 : vector<1x8x1x23xf32> to vector<8x23xf32>
      %188 = arith.index_cast %arg13 : i32 to index
      %c0_132 = arith.constant 0 : index
      %c16_133 = arith.constant 16 : index
      %c1_134 = arith.constant 1 : index
      %189 = vector.load %arg12[%188, %c0_132, %c16_133, %c1_134] : memref<10x8x24x24xf32, #tpu.memory_space<vmem>>, vector<1x8x1x23xf32>
      %190 = vector.shape_cast %189 : vector<1x8x1x23xf32> to vector<8x23xf32>
      %191 = arith.index_cast %arg13 : i32 to index
      %c0_135 = arith.constant 0 : index
      %c17 = arith.constant 17 : index
      %c0_136 = arith.constant 0 : index
      %192 = vector.load %arg12[%191, %c0_135, %c17, %c0_136] : memref<10x8x24x24xf32, #tpu.memory_space<vmem>>, vector<1x8x1x23xf32>
      %193 = vector.shape_cast %192 : vector<1x8x1x23xf32> to vector<8x23xf32>
      %194 = arith.index_cast %arg13 : i32 to index
      %c0_137 = arith.constant 0 : index
      %c17_138 = arith.constant 17 : index
      %c1_139 = arith.constant 1 : index
      %195 = vector.load %arg12[%194, %c0_137, %c17_138, %c1_139] : memref<10x8x24x24xf32, #tpu.memory_space<vmem>>, vector<1x8x1x23xf32>
      %196 = vector.shape_cast %195 : vector<1x8x1x23xf32> to vector<8x23xf32>
      %197 = arith.maximumf %187, %190 : vector<8x23xf32>
      %198 = arith.maximumf %193, %196 : vector<8x23xf32>
      %199 = arith.maximumf %197, %198 : vector<8x23xf32>
      %200 = arith.truncf %199 : vector<8x23xf32> to vector<8x23xbf16>
      %201 = arith.index_cast %arg13 : i32 to index
      %c8_140 = arith.constant 8 : index
      %c0_141 = arith.constant 0 : index
      %c0_142 = arith.constant 0 : index
      %202 = vector.load %arg6[%201, %c8_140, %c0_141, %c0_142] : memref<10x12x23x128xbf16, #tpu.memory_space<vmem>>, vector<1x1x23x128xbf16>
      %203 = vector.shape_cast %202 : vector<1x1x23x128xbf16> to vector<23x128xbf16>
      %cst_143 = arith.constant dense<0.000000e+00> : vector<8x128xf32>
      %204 = tpu.matmul %200, %203, %cst_143 {dimension_numbers = #tpu.dot_dimension_numbers<[1], [0], [0], [1], [0, 0, 1, 1], [], []>} : vector<8x23xbf16>, vector<23x128xbf16>, vector<8x128xf32> -> vector<8x128xf32>
      %205 = arith.addf %184, %204 : vector<8x128xf32>
      %206 = arith.index_cast %arg13 : i32 to index
      %c0_144 = arith.constant 0 : index
      %c18 = arith.constant 18 : index
      %c0_145 = arith.constant 0 : index
      %207 = vector.load %arg12[%206, %c0_144, %c18, %c0_145] : memref<10x8x24x24xf32, #tpu.memory_space<vmem>>, vector<1x8x1x23xf32>
      %208 = vector.shape_cast %207 : vector<1x8x1x23xf32> to vector<8x23xf32>
      %209 = arith.index_cast %arg13 : i32 to index
      %c0_146 = arith.constant 0 : index
      %c18_147 = arith.constant 18 : index
      %c1_148 = arith.constant 1 : index
      %210 = vector.load %arg12[%209, %c0_146, %c18_147, %c1_148] : memref<10x8x24x24xf32, #tpu.memory_space<vmem>>, vector<1x8x1x23xf32>
      %211 = vector.shape_cast %210 : vector<1x8x1x23xf32> to vector<8x23xf32>
      %212 = arith.index_cast %arg13 : i32 to index
      %c0_149 = arith.constant 0 : index
      %c19 = arith.constant 19 : index
      %c0_150 = arith.constant 0 : index
      %213 = vector.load %arg12[%212, %c0_149, %c19, %c0_150] : memref<10x8x24x24xf32, #tpu.memory_space<vmem>>, vector<1x8x1x23xf32>
      %214 = vector.shape_cast %213 : vector<1x8x1x23xf32> to vector<8x23xf32>
      %215 = arith.index_cast %arg13 : i32 to index
      %c0_151 = arith.constant 0 : index
      %c19_152 = arith.constant 19 : index
      %c1_153 = arith.constant 1 : index
      %216 = vector.load %arg12[%215, %c0_151, %c19_152, %c1_153] : memref<10x8x24x24xf32, #tpu.memory_space<vmem>>, vector<1x8x1x23xf32>
      %217 = vector.shape_cast %216 : vector<1x8x1x23xf32> to vector<8x23xf32>
      %218 = arith.maximumf %208, %211 : vector<8x23xf32>
      %219 = arith.maximumf %214, %217 : vector<8x23xf32>
      %220 = arith.maximumf %218, %219 : vector<8x23xf32>
      %221 = arith.truncf %220 : vector<8x23xf32> to vector<8x23xbf16>
      %222 = arith.index_cast %arg13 : i32 to index
      %c9_154 = arith.constant 9 : index
      %c0_155 = arith.constant 0 : index
      %c0_156 = arith.constant 0 : index
      %223 = vector.load %arg6[%222, %c9_154, %c0_155, %c0_156] : memref<10x12x23x128xbf16, #tpu.memory_space<vmem>>, vector<1x1x23x128xbf16>
      %224 = vector.shape_cast %223 : vector<1x1x23x128xbf16> to vector<23x128xbf16>
      %cst_157 = arith.constant dense<0.000000e+00> : vector<8x128xf32>
      %225 = tpu.matmul %221, %224, %cst_157 {dimension_numbers = #tpu.dot_dimension_numbers<[1], [0], [0], [1], [0, 0, 1, 1], [], []>} : vector<8x23xbf16>, vector<23x128xbf16>, vector<8x128xf32> -> vector<8x128xf32>
      %226 = arith.addf %205, %225 : vector<8x128xf32>
      %227 = arith.index_cast %arg13 : i32 to index
      %c0_158 = arith.constant 0 : index
      %c20 = arith.constant 20 : index
      %c0_159 = arith.constant 0 : index
      %228 = vector.load %arg12[%227, %c0_158, %c20, %c0_159] : memref<10x8x24x24xf32, #tpu.memory_space<vmem>>, vector<1x8x1x23xf32>
      %229 = vector.shape_cast %228 : vector<1x8x1x23xf32> to vector<8x23xf32>
      %230 = arith.index_cast %arg13 : i32 to index
      %c0_160 = arith.constant 0 : index
      %c20_161 = arith.constant 20 : index
      %c1_162 = arith.constant 1 : index
      %231 = vector.load %arg12[%230, %c0_160, %c20_161, %c1_162] : memref<10x8x24x24xf32, #tpu.memory_space<vmem>>, vector<1x8x1x23xf32>
      %232 = vector.shape_cast %231 : vector<1x8x1x23xf32> to vector<8x23xf32>
      %233 = arith.index_cast %arg13 : i32 to index
      %c0_163 = arith.constant 0 : index
      %c21 = arith.constant 21 : index
      %c0_164 = arith.constant 0 : index
      %234 = vector.load %arg12[%233, %c0_163, %c21, %c0_164] : memref<10x8x24x24xf32, #tpu.memory_space<vmem>>, vector<1x8x1x23xf32>
      %235 = vector.shape_cast %234 : vector<1x8x1x23xf32> to vector<8x23xf32>
      %236 = arith.index_cast %arg13 : i32 to index
      %c0_165 = arith.constant 0 : index
      %c21_166 = arith.constant 21 : index
      %c1_167 = arith.constant 1 : index
      %237 = vector.load %arg12[%236, %c0_165, %c21_166, %c1_167] : memref<10x8x24x24xf32, #tpu.memory_space<vmem>>, vector<1x8x1x23xf32>
      %238 = vector.shape_cast %237 : vector<1x8x1x23xf32> to vector<8x23xf32>
      %239 = arith.maximumf %229, %232 : vector<8x23xf32>
      %240 = arith.maximumf %235, %238 : vector<8x23xf32>
      %241 = arith.maximumf %239, %240 : vector<8x23xf32>
      %242 = arith.truncf %241 : vector<8x23xf32> to vector<8x23xbf16>
      %243 = arith.index_cast %arg13 : i32 to index
      %c10_168 = arith.constant 10 : index
      %c0_169 = arith.constant 0 : index
      %c0_170 = arith.constant 0 : index
      %244 = vector.load %arg6[%243, %c10_168, %c0_169, %c0_170] : memref<10x12x23x128xbf16, #tpu.memory_space<vmem>>, vector<1x1x23x128xbf16>
      %245 = vector.shape_cast %244 : vector<1x1x23x128xbf16> to vector<23x128xbf16>
      %cst_171 = arith.constant dense<0.000000e+00> : vector<8x128xf32>
      %246 = tpu.matmul %242, %245, %cst_171 {dimension_numbers = #tpu.dot_dimension_numbers<[1], [0], [0], [1], [0, 0, 1, 1], [], []>} : vector<8x23xbf16>, vector<23x128xbf16>, vector<8x128xf32> -> vector<8x128xf32>
      %247 = arith.addf %226, %246 : vector<8x128xf32>
      %248 = arith.index_cast %arg13 : i32 to index
      %c0_172 = arith.constant 0 : index
      %c22 = arith.constant 22 : index
      %c0_173 = arith.constant 0 : index
      %249 = vector.load %arg12[%248, %c0_172, %c22, %c0_173] : memref<10x8x24x24xf32, #tpu.memory_space<vmem>>, vector<1x8x1x23xf32>
      %250 = vector.shape_cast %249 : vector<1x8x1x23xf32> to vector<8x23xf32>
      %251 = arith.index_cast %arg13 : i32 to index
      %c0_174 = arith.constant 0 : index
      %c22_175 = arith.constant 22 : index
      %c1_176 = arith.constant 1 : index
      %252 = vector.load %arg12[%251, %c0_174, %c22_175, %c1_176] : memref<10x8x24x24xf32, #tpu.memory_space<vmem>>, vector<1x8x1x23xf32>
      %253 = vector.shape_cast %252 : vector<1x8x1x23xf32> to vector<8x23xf32>
      %254 = arith.index_cast %arg13 : i32 to index
      %c0_177 = arith.constant 0 : index
      %c23 = arith.constant 23 : index
      %c0_178 = arith.constant 0 : index
      %255 = vector.load %arg12[%254, %c0_177, %c23, %c0_178] : memref<10x8x24x24xf32, #tpu.memory_space<vmem>>, vector<1x8x1x23xf32>
      %256 = vector.shape_cast %255 : vector<1x8x1x23xf32> to vector<8x23xf32>
      %257 = arith.index_cast %arg13 : i32 to index
      %c0_179 = arith.constant 0 : index
      %c23_180 = arith.constant 23 : index
      %c1_181 = arith.constant 1 : index
      %258 = vector.load %arg12[%257, %c0_179, %c23_180, %c1_181] : memref<10x8x24x24xf32, #tpu.memory_space<vmem>>, vector<1x8x1x23xf32>
      %259 = vector.shape_cast %258 : vector<1x8x1x23xf32> to vector<8x23xf32>
      %260 = arith.maximumf %250, %253 : vector<8x23xf32>
      %261 = arith.maximumf %256, %259 : vector<8x23xf32>
      %262 = arith.maximumf %260, %261 : vector<8x23xf32>
      %263 = arith.truncf %262 : vector<8x23xf32> to vector<8x23xbf16>
      %264 = arith.index_cast %arg13 : i32 to index
      %c11_182 = arith.constant 11 : index
      %c0_183 = arith.constant 0 : index
      %c0_184 = arith.constant 0 : index
      %265 = vector.load %arg6[%264, %c11_182, %c0_183, %c0_184] : memref<10x12x23x128xbf16, #tpu.memory_space<vmem>>, vector<1x1x23x128xbf16>
      %266 = vector.shape_cast %265 : vector<1x1x23x128xbf16> to vector<23x128xbf16>
      %cst_185 = arith.constant dense<0.000000e+00> : vector<8x128xf32>
      %267 = tpu.matmul %263, %266, %cst_185 {dimension_numbers = #tpu.dot_dimension_numbers<[1], [0], [0], [1], [0, 0, 1, 1], [], []>} : vector<8x23xbf16>, vector<23x128xbf16>, vector<8x128xf32> -> vector<8x128xf32>
      %268 = arith.addf %247, %267 : vector<8x128xf32>
      scf.yield %268 : vector<8x128xf32>
    }
    %c10_i32_7 = arith.constant 10 : i32
    %c0 = arith.constant 0 : index
    %c0_8 = arith.constant 0 : index
    %5 = vector.load %arg7[%c0, %c0_8] : memref<1x128xf32, #tpu.memory_space<vmem>>, vector<1x128xf32>
    %6 = vector.broadcast %5 : vector<1x128xf32> to vector<8x128xf32>
    %7 = arith.addf %4, %6 : vector<8x128xf32>
    %cst_9 = arith.constant 0.000000e+00 : f32
    %8 = vector.broadcast %cst_9 : f32 to vector<8x128xf32>
    %9 = arith.maximumf %7, %8 : vector<8x128xf32>
    %10 = arith.truncf %9 : vector<8x128xf32> to vector<8x128xbf16>
    %c0_10 = arith.constant 0 : index
    %c0_11 = arith.constant 0 : index
    %11 = vector.load %arg8[%c0_10, %c0_11] : memref<128x128xbf16, #tpu.memory_space<vmem>>, vector<128x128xbf16>
    %cst_12 = arith.constant dense<0.000000e+00> : vector<8x128xf32>
    %12 = tpu.matmul %10, %11, %cst_12 {dimension_numbers = #tpu.dot_dimension_numbers<[1], [0], [0], [1], [0, 0, 1, 1], [], []>} : vector<8x128xbf16>, vector<128x128xbf16>, vector<8x128xf32> -> vector<8x128xf32>
    %c0_13 = arith.constant 0 : index
    %c0_14 = arith.constant 0 : index
    %13 = vector.load %arg9[%c0_13, %c0_14] : memref<1x128xf32, #tpu.memory_space<vmem>>, vector<1x128xf32>
    %14 = vector.broadcast %13 : vector<1x128xf32> to vector<8x128xf32>
    %15 = arith.addf %12, %14 : vector<8x128xf32>
    %c0_15 = arith.constant 0 : index
    %c0_16 = arith.constant 0 : index
    %16 = vector.load %arg10[%c0_15, %c0_16] : memref<8x128xf32, #tpu.memory_space<vmem>>, vector<8x128xf32>
    tpu.vector_store %arg10[%c0_15, %c0_16], %15 {strides = array<i32>} : memref<8x128xf32, #tpu.memory_space<vmem>>, vector<8x128xf32>,
    return
  }
  func.func @transform_0(%arg0: i32) -> (i32, i32, i32) {
    %c0_i32 = arith.constant 0 : i32
    %c0_i32_0 = arith.constant 0 : i32
    %c0_i32_1 = arith.constant 0 : i32
    return %arg0, %c0_i32, %c0_i32_0 : i32, i32, i32
  }
  func.func @transform_1(%arg0: i32) -> (i32, i32) {
    %c0_i32 = arith.constant 0 : i32
    %c0_i32_0 = arith.constant 0 : i32
    %c0_i32_1 = arith.constant 0 : i32
    return %c0_i32, %c0_i32_0 : i32, i32
  }
  func.func @transform_2(%arg0: i32) -> i32 {
    %c0_i32 = arith.constant 0 : i32
    %c0_i32_0 = arith.constant 0 : i32
    return %c0_i32 : i32
  }
  func.func @transform_3(%arg0: i32) -> (i32, i32) {
    %c0_i32 = arith.constant 0 : i32
    %c0_i32_0 = arith.constant 0 : i32
    %c0_i32_1 = arith.constant 0 : i32
    return %c0_i32, %c0_i32_0 : i32, i32
  }
  func.func @transform_4(%arg0: i32) -> i32 {
    %c0_i32 = arith.constant 0 : i32
    %c0_i32_0 = arith.constant 0 : i32
    return %c0_i32 : i32
  }
  func.func @transform_5(%arg0: i32) -> (i32, i32, i32, i32) {
    %c0_i32 = arith.constant 0 : i32
    %c0_i32_0 = arith.constant 0 : i32
    %c0_i32_1 = arith.constant 0 : i32
    %c0_i32_2 = arith.constant 0 : i32
    %c0_i32_3 = arith.constant 0 : i32
    return %c0_i32, %c0_i32_0, %c0_i32_1, %c0_i32_2 : i32, i32, i32, i32
  }
  func.func @transform_6(%arg0: i32) -> (i32, i32) {
    %c0_i32 = arith.constant 0 : i32
    %c0_i32_0 = arith.constant 0 : i32
    %c0_i32_1 = arith.constant 0 : i32
    return %c0_i32, %c0_i32_0 : i32, i32
  }
  func.func @transform_7(%arg0: i32) -> (i32, i32) {
    %c0_i32 = arith.constant 0 : i32
    %c0_i32_0 = arith.constant 0 : i32
    %c0_i32_1 = arith.constant 0 : i32
    return %c0_i32, %c0_i32_0 : i32, i32
  }
  func.func @transform_8(%arg0: i32) -> (i32, i32) {
    %c0_i32 = arith.constant 0 : i32
    %c0_i32_0 = arith.constant 0 : i32
    %c0_i32_1 = arith.constant 0 : i32
    return %c0_i32, %c0_i32_0 : i32, i32
  }
  func.func @transform_9(%arg0: i32) -> (i32, i32) {
    %c0_i32 = arith.constant 0 : i32
    %c0_i32_0 = arith.constant 0 : i32
    return %arg0, %c0_i32 : i32, i32
  }
}

</mosaic_0001>

<llo_original>
// kernel: conv_nn_forward.1
$region0: #{conv_nn_forward.1}
  #allocation0 [shape = 'u32[]', space=smem, size = 0x4, offset = 0x4, fixed_abs, tag = 'smem constant byte address 0x4 - core index']
  #allocation1 [shape = 'u32[144,128]{1,0:T(1,128)}', space=vmem, size = 0x12000, scoped, tag = 'internal scratch']
  #allocation2 [shape = 'f32[5,8,26,26]{3,2,1,0:T(8,128)}', space=vmem, size = 0xa0000, scoped, tag = 'scratch operand']
  #allocation3 [shape = 'f32[10,8,24,24]{3,2,1,0:T(8,128)}', space=vmem, size = 0xf0000, scoped, tag = 'scratch operand']
  %s0 = inlined_call_operand.vmem [shape: f32[8,28,28], index: 0, kind: input, shape index: {}]
  %s1 = inlined_call_operand.vmem [shape: f32[5,9], index: 1, kind: input, shape index: {}]
  %s2 = inlined_call_operand.vmem [shape: f32[5], index: 2, kind: input, shape index: {}]
  %s3 = inlined_call_operand.vmem [shape: f32[10,45], index: 3, kind: input, shape index: {}]
  %s4 = inlined_call_operand.vmem [shape: f32[10], index: 4, kind: input, shape index: {}]
  %s5 = inlined_call_operand.vmem [shape: bf16[10,12,23,128], index: 5, kind: input, shape index: {}]
  %s6 = inlined_call_operand.vmem [shape: f32[1,128], index: 6, kind: input, shape index: {}]
  %s7 = inlined_call_operand.vmem [shape: bf16[128,128], index: 7, kind: input, shape index: {}]
  %s8 = inlined_call_operand.vmem [shape: f32[1,128], index: 8, kind: input, shape index: {}]
  %s9 = inlined_call_operand.vmem [shape: f32[8,128], index: 9, kind: output, shape index: {}]
  %s10 = sld [smem:[#allocation0]]
  $region83: #{conv_nn_forward.1} parent=0
    _
  %s12 = ssub.s32 1, %s10
  %s13 = scalar_select 0, %s12, %s10
  $region1: #{conv_nn_forward.1} parent=0
    #allocation4 [shape = 'u8[4096]{0}', space=smem, size = 0x1000, scoped, tag = 'input window, operand 1, single buffered']
    #allocation5 [shape = 's32[1]{0}', space=sflag, size = 0x4, scoped, tag = 'scoped memory for conv_nn_forward.1']
    #allocation6 [shape = 'u8[512]{0}', space=smem, size = 0x200, scoped, tag = 'input window, operand 2, single buffered']
    #allocation7 [shape = 's32[1]{0}', space=sflag, size = 0x4, scoped, tag = 'scoped memory for conv_nn_forward.1']
    #allocation8 [shape = 'u8[8192]{0}', space=smem, size = 0x2000, scoped, tag = 'input window, operand 3, single buffered']
    #allocation9 [shape = 'u8[512]{0}', space=smem, size = 0x200, scoped, tag = 'input window, operand 4, single buffered']
    #allocation10 [shape = 's32[1]{0}', space=sflag, size = 0x4, scoped, tag = 'scoped memory for conv_nn_forward.1']
    %14 = vsyncpa [#allocation5], 0
    %15 = vsyncpa [#allocation7], 0
    %16 = vsyncpa [#allocation10], 0
    // Predicated region
    $region2: #{conv_nn_forward.1} parent=1 // pred_check
      _
    $region3: #{conv_nn_forward.1} parent=1 // pred_check_branch
      %18 = sbr.rel (0) target = $region5
    $region4: #{conv_nn_forward.1} parent=1 // pred_region
      _
    $region5: #{conv_nn_forward.1} parent=1 // pred_fallthru
      _
    // Predicated region
    $region6: #{conv_nn_forward.1} parent=1 // pred_check
      _
    $region7: #{conv_nn_forward.1} parent=1 // pred_check_branch
      %20 = sbr.rel (0) target = $region9
    $region8: #{conv_nn_forward.1} parent=1 // pred_region
      %s22 = ssub.s32 128, 128
      %23 = vsyncadd [#allocation5], %s22
      %s25 = sshll.u32 %s1, 4
      %s26 = int_to_ptr.vmem [resolvable:$true] %s25
      %28 = dma.vmem_to_smem %s26, 128, [#allocation4], [#allocation5]
    $region9: #{conv_nn_forward.1} parent=1 // pred_fallthru
      _
    // Predicated region
    $region10: #{conv_nn_forward.1} parent=1 // pred_check
      _
    $region11: #{conv_nn_forward.1} parent=1 // pred_check_branch
      %30 = sbr.rel (0) target = $region13
    $region12: #{conv_nn_forward.1} parent=1 // pred_region
      %s32 = ssub.s32 16, 16
      %33 = vsyncadd [#allocation7], %s32
      %s35 = sshll.u32 %s2, 4
      %s36 = int_to_ptr.vmem [resolvable:$true] %s35
      %38 = dma.vmem_to_smem %s36, 16, [#allocation6], [#allocation7]
    $region13: #{conv_nn_forward.1} parent=1 // pred_fallthru
      _
    // Predicated region
    $region14: #{conv_nn_forward.1} parent=1 // pred_check
      _
    $region15: #{conv_nn_forward.1} parent=1 // pred_check_branch
      %40 = sbr.rel (0) target = $region17
    $region16: #{conv_nn_forward.1} parent=1 // pred_region
      %s42 = ssub.s32 256, 256
      %43 = vsyncadd [#allocation7], %s42
      %s44 = sshll.u32 %s3, 4
      %s45 = int_to_ptr.vmem [resolvable:$true] %s44
      %50 = dma.vmem_to_smem %s45, 256, [#allocation8], [#allocation7], 128, 128, 8
    $region17: #{conv_nn_forward.1} parent=1 // pred_fallthru
      _
    // Predicated region
    $region18: #{conv_nn_forward.1} parent=1 // pred_check
      _
    $region19: #{conv_nn_forward.1} parent=1 // pred_check_branch
      %52 = sbr.rel (0) target = $region21
    $region20: #{conv_nn_forward.1} parent=1 // pred_region
      %s54 = ssub.s32 16, 16
      %55 = vsyncadd [#allocation10], %s54
      %s57 = sshll.u32 %s4, 4
      %s58 = int_to_ptr.vmem [resolvable:$true] %s57
      %60 = dma.vmem_to_smem %s58, 16, [#allocation9], [#allocation10]
    $region21: #{conv_nn_forward.1} parent=1 // pred_fallthru
      _
    // Predicated region
    $region22: #{conv_nn_forward.1} parent=1 // pred_check
      _
    $region23: #{conv_nn_forward.1} parent=1 // pred_check_branch
      %62 = sbr.rel (0) target = $region25
    $region24: #{conv_nn_forward.1} parent=1 // pred_region
      _
    $region25: #{conv_nn_forward.1} parent=1 // pred_fallthru
      _
    // Predicated region
    $region26: #{conv_nn_forward.1} parent=1 // pred_check
      _
    $region27: #{conv_nn_forward.1} parent=1 // pred_check_branch
      %64 = sbr.rel (0) target = $region29
    $region28: #{conv_nn_forward.1} parent=1 // pred_region
      _
    $region29: #{conv_nn_forward.1} parent=1 // pred_fallthru
      _
    // Predicated region
    $region30: #{conv_nn_forward.1} parent=1 // pred_check
      _
    $region31: #{conv_nn_forward.1} parent=1 // pred_check_branch
      %66 = sbr.rel (0) target = $region33
    $region32: #{conv_nn_forward.1} parent=1 // pred_region
      _
    $region33: #{conv_nn_forward.1} parent=1 // pred_fallthru
      _
    // Predicated region
    $region34: #{conv_nn_forward.1} parent=1 // pred_check
      _
    $region35: #{conv_nn_forward.1} parent=1 // pred_check_branch
      %68 = sbr.rel (0) target = $region37
    $region36: #{conv_nn_forward.1} parent=1 // pred_region
      _
    $region37: #{conv_nn_forward.1} parent=1 // pred_fallthru
      _
    // Predicated region
    $region38: #{conv_nn_forward.1} parent=1 // pred_check
      _
    $region39: #{conv_nn_forward.1} parent=1 // pred_check_branch
      %70 = sbr.rel (0) target = $region41
    $region40: #{conv_nn_forward.1} parent=1 // pred_region
      %71 = dma.done [#allocation5], 128
    $region41: #{conv_nn_forward.1} parent=1 // pred_fallthru
      _
    // Predicated region
    $region42: #{conv_nn_forward.1} parent=1 // pred_check
      _
    $region43: #{conv_nn_forward.1} parent=1 // pred_check_branch
      %73 = sbr.rel (0) target = $region45
    $region44: #{conv_nn_forward.1} parent=1 // pred_region
      %74 = dma.done [#allocation7], 16
    $region45: #{conv_nn_forward.1} parent=1 // pred_fallthru
      _
    // Predicated region
    $region46: #{conv_nn_forward.1} parent=1 // pred_check
      _
    $region47: #{conv_nn_forward.1} parent=1 // pred_check_branch
      %76 = sbr.rel (0) target = $region49
    $region48: #{conv_nn_forward.1} parent=1 // pred_region
      %77 = dma.done [#allocation7], 256
    $region49: #{conv_nn_forward.1} parent=1 // pred_fallthru
      _
    // Predicated region
    $region50: #{conv_nn_forward.1} parent=1 // pred_check
      _
    $region51: #{conv_nn_forward.1} parent=1 // pred_check_branch
      %79 = sbr.rel (0) target = $region53
    $region52: #{conv_nn_forward.1} parent=1 // pred_region
      %80 = dma.done [#allocation10], 16
    $region53: #{conv_nn_forward.1} parent=1 // pred_fallthru
      _
    %81 = sfence
    loop: start=0, step=1, limit=5
    $region54: #{conv_nn_forward.1} parent=1 // loop_pre_header
      _
    $region55: #{conv_nn_forward.1} parent=1 // loop_header
      %s84 = sphi 0, %s88
      %p85 = scmp.ge.s32.totalorder %s84, 5
    $region56: #{conv_nn_forward.1} parent=1 // loop_header_branch
      %87 = sbr.rel (%p85) target = $region60
    $region57: #{conv_nn_forward.1} parent=1 // loop_body
      %s89 = sld [smem:[#allocation6 + %s84]]
      %v90 = vstv %s89
      %s91 = smul.u32 %s84, 128
      %s92 = sld [smem:[#allocation4 + %s91]]
      %v93 = vld [vmem:[%s0] sm:$0xff]
      %v94 = vld [vmem:[%s0 + $0x8] sm:$0xff]
      %v95 = vld [vmem:[%s0 + $0x10] sm:$0xff]
      %v96 = vld [vmem:[%s0 + $0x18] sm:$0x3]
      %v97 = vld [vmem:[%s0 + $0x20] sm:$0xff]
      %v98 = vld [vmem:[%s0 + $0x28] sm:$0xff]
      %v99 = vld [vmem:[%s0 + $0x30] sm:$0xff]
      %v100 = vld [vmem:[%s0 + $0x38] sm:$0x3]
      %v101 = vld [vmem:[%s0 + $0x40] sm:$0xff]
      %v102 = vld [vmem:[%s0 + $0x48] sm:$0xff]
      %v103 = vld [vmem:[%s0 + $0x50] sm:$0xff]
      %v104 = vld [vmem:[%s0 + $0x58] sm:$0x3]
      %v105 = vld [vmem:[%s0 + $0x60] sm:$0xff]
      %v106 = vld [vmem:[%s0 + $0x68] sm:$0xff]
      %v107 = vld [vmem:[%s0 + $0x70] sm:$0xff]
      %v108 = vld [vmem:[%s0 + $0x78] sm:$0x3]
      %v109 = vld [vmem:[%s0 + $0x80] sm:$0xff]
      %v110 = vld [vmem:[%s0 + $0x88] sm:$0xff]
      %v111 = vld [vmem:[%s0 + $0x90] sm:$0xff]
      %v112 = vld [vmem:[%s0 + $0x98] sm:$0x3]
      %v113 = vld [vmem:[%s0 + $0xa0] sm:$0xff]
      %v114 = vld [vmem:[%s0 + $0xa8] sm:$0xff]
      %v115 = vld [vmem:[%s0 + $0xb0] sm:$0xff]
      %v116 = vld [vmem:[%s0 + $0xb8] sm:$0x3]
      %v117 = vld [vmem:[%s0 + $0xc0] sm:$0xff]
      %v118 = vld [vmem:[%s0 + $0xc8] sm:$0xff]
      %v119 = vld [vmem:[%s0 + $0xd0] sm:$0xff]
      %v120 = vld [vmem:[%s0 + $0xd8] sm:$0x3]
      %v121 = vld [vmem:[%s0 + $0xe0] sm:$0xff]
      %v122 = vld [vmem:[%s0 + $0xe8] sm:$0xff]
      %v123 = vld [vmem:[%s0 + $0xf0] sm:$0xff]
      %v124 = vld [vmem:[%s0 + $0xf8] sm:$0x3]
      %v125 = vstv %s92
      %v126 = vmul.f32 %v125, %v93
      %v127 = vmul.f32 %v125, %v94
      %v128 = vmul.f32 %v125, %v95
      %v129 = vmul.f32 %v125, %v96
      %v130 = vmul.f32 %v125, %v97
      %v131 = vmul.f32 %v125, %v98
      %v132 = vmul.f32 %v125, %v99
      %v133 = vmul.f32 %v125, %v100
      %v134 = vmul.f32 %v125, %v101
      %v135 = vmul.f32 %v125, %v102
      %v136 = vmul.f32 %v125, %v103
      %v137 = vmul.f32 %v125, %v104
      %v138 = vmul.f32 %v125, %v105
      %v139 = vmul.f32 %v125, %v106
      %v140 = vmul.f32 %v125, %v107
      %v141 = vmul.f32 %v125, %v108
      %v142 = vmul.f32 %v125, %v109
      %v143 = vmul.f32 %v125, %v110
      %v144 = vmul.f32 %v125, %v111
      %v145 = vmul.f32 %v125, %v112
      %v146 = vmul.f32 %v125, %v113
      %v147 = vmul.f32 %v125, %v114
      %v148 = vmul.f32 %v125, %v115
      %v149 = vmul.f32 %v125, %v116
      %v150 = vmul.f32 %v125, %v117
      %v151 = vmul.f32 %v125, %v118
      %v152 = vmul.f32 %v125, %v119
      %v153 = vmul.f32 %v125, %v120
      %v154 = vmul.f32 %v125, %v121
      %v155 = vmul.f32 %v125, %v122
      %v156 = vmul.f32 %v125, %v123
      %v157 = vmul.f32 %v125, %v124
      %v158 = vadd.f32 %v90, %v126
      %v159 = vadd.f32 %v90, %v127
      %v160 = vadd.f32 %v90, %v128
      %v161 = vadd.f32 %v90, %v129
      %v162 = vadd.f32 %v90, %v130
      %v163 = vadd.f32 %v90, %v131
      %v164 = vadd.f32 %v90, %v132
      %v165 = vadd.f32 %v90, %v133
      %v166 = vadd.f32 %v90, %v134
      %v167 = vadd.f32 %v90, %v135
      %v168 = vadd.f32 %v90, %v136
      %v169 = vadd.f32 %v90, %v137
      %v170 = vadd.f32 %v90, %v138
      %v171 = vadd.f32 %v90, %v139
      %v172 = vadd.f32 %v90, %v140
      %v173 = vadd.f32 %v90, %v141
      %v174 = vadd.f32 %v90, %v142
      %v175 = vadd.f32 %v90, %v143
      %v176 = vadd.f32 %v90, %v144
      %v177 = vadd.f32 %v90, %v145
      %v178 = vadd.f32 %v90, %v146
      %v179 = vadd.f32 %v90, %v147
      %v180 = vadd.f32 %v90, %v148
      %v181 = vadd.f32 %v90, %v149
      %v182 = vadd.f32 %v90, %v150
      %v183 = vadd.f32 %v90, %v151
      %v184 = vadd.f32 %v90, %v152
      %v185 = vadd.f32 %v90, %v153
      %v186 = vadd.f32 %v90, %v154
      %v187 = vadd.f32 %v90, %v155
      %v188 = vadd.f32 %v90, %v156
      %v189 = vadd.f32 %v90, %v157
      %s190 = sadd.s32 %s91, 1
      %s191 = sld [smem:[#allocation4 + %s190]]
      %v192 = vstv %s191
      %v193 = vmul.f32 %v192, %v93
      %v194 = vmul.f32 %v192, %v94
      %v195 = vmul.f32 %v192, %v95
      %v196 = vmul.f32 %v192, %v96
      %v197 = vmul.f32 %v192, %v97
      %v198 = vmul.f32 %v192, %v98
      %v199 = vmul.f32 %v192, %v99
      %v200 = vmul.f32 %v192, %v100
      %v201 = vmul.f32 %v192, %v101
      %v202 = vmul.f32 %v192, %v102
      %v203 = vmul.f32 %v192, %v103
      %v204 = vmul.f32 %v192, %v104
      %v205 = vmul.f32 %v192, %v105
      %v206 = vmul.f32 %v192, %v106
      %v207 = vmul.f32 %v192, %v107
      %v208 = vmul.f32 %v192, %v108
      %v209 = vmul.f32 %v192, %v109
      %v210 = vmul.f32 %v192, %v110
      %v211 = vmul.f32 %v192, %v111
      %v212 = vmul.f32 %v192, %v112
      %v213 = vmul.f32 %v192, %v113
      %v214 = vmul.f32 %v192, %v114
      %v215 = vmul.f32 %v192, %v115
      %v216 = vmul.f32 %v192, %v116
      %v217 = vmul.f32 %v192, %v117
      %v218 = vmul.f32 %v192, %v118
      %v219 = vmul.f32 %v192, %v119
      %v220 = vmul.f32 %v192, %v120
      %v221 = vmul.f32 %v192, %v121
      %v222 = vmul.f32 %v192, %v122
      %v223 = vmul.f32 %v192, %v123
      %v224 = vmul.f32 %v192, %v124
      %257 = vrot.lane.b32.xlu0 %v193, 127
      %v258 = vpop.permute.xlu0 %257
      %259 = vrot.lane.b32.xlu0 %v194, 127
      %v260 = vpop.permute.xlu0 %259
      %261 = vrot.lane.b32.xlu0 %v195, 127
      %v262 = vpop.permute.xlu0 %261
      %263 = vrot.lane.b32.xlu0 %v196, 127
      %v264 = vpop.permute.xlu0 %263
      %265 = vrot.lane.b32.xlu0 %v197, 127
      %v266 = vpop.permute.xlu0 %265
      %267 = vrot.lane.b32.xlu0 %v198, 127
      %v268 = vpop.permute.xlu0 %267
      %269 = vrot.lane.b32.xlu0 %v199, 127
      %v270 = vpop.permute.xlu0 %269
      %271 = vrot.lane.b32.xlu0 %v200, 127
      %v272 = vpop.permute.xlu0 %271
      %273 = vrot.lane.b32.xlu0 %v201, 127
      %v274 = vpop.permute.xlu0 %273
      %275 = vrot.lane.b32.xlu0 %v202, 127
      %v276 = vpop.permute.xlu0 %275
      %277 = vrot.lane.b32.xlu0 %v203, 127
      %v278 = vpop.permute.xlu0 %277
      %279 = vrot.lane.b32.xlu0 %v204, 127
      %v280 = vpop.permute.xlu0 %279
      %281 = vrot.lane.b32.xlu0 %v205, 127
      %v282 = vpop.permute.xlu0 %281
      %283 = vrot.lane.b32.xlu0 %v206, 127
      %v284 = vpop.permute.xlu0 %283
      %285 = vrot.lane.b32.xlu0 %v207, 127
      %v286 = vpop.permute.xlu0 %285
      %287 = vrot.lane.b32.xlu0 %v208, 127
      %v288 = vpop.permute.xlu0 %287
      %289 = vrot.lane.b32.xlu0 %v209, 127
      %v290 = vpop.permute.xlu0 %289
      %291 = vrot.lane.b32.xlu0 %v210, 127
      %v292 = vpop.permute.xlu0 %291
      %293 = vrot.lane.b32.xlu0 %v211, 127
      %v294 = vpop.permute.xlu0 %293
      %295 = vrot.lane.b32.xlu0 %v212, 127
      %v296 = vpop.permute.xlu0 %295
      %297 = vrot.lane.b32.xlu0 %v213, 127
      %v298 = vpop.permute.xlu0 %297
      %299 = vrot.lane.b32.xlu0 %v214, 127
      %v300 = vpop.permute.xlu0 %299
      %301 = vrot.lane.b32.xlu0 %v215, 127
      %v302 = vpop.permute.xlu0 %301
      %303 = vrot.lane.b32.xlu0 %v216, 127
      %v304 = vpop.permute.xlu0 %303
      %305 = vrot.lane.b32.xlu0 %v217, 127
      %v306 = vpop.permute.xlu0 %305
      %307 = vrot.lane.b32.xlu0 %v218, 127
      %v308 = vpop.permute.xlu0 %307
      %309 = vrot.lane.b32.xlu0 %v219, 127
      %v310 = vpop.permute.xlu0 %309
      %311 = vrot.lane.b32.xlu0 %v220, 127
      %v312 = vpop.permute.xlu0 %311
      %313 = vrot.lane.b32.xlu0 %v221, 127
      %v314 = vpop.permute.xlu0 %313
      %315 = vrot.lane.b32.xlu0 %v222, 127
      %v316 = vpop.permute.xlu0 %315
      %317 = vrot.lane.b32.xlu0 %v223, 127
      %v318 = vpop.permute.xlu0 %317
      %319 = vrot.lane.b32.xlu0 %v224, 127
      %v320 = vpop.permute.xlu0 %319
      %v353 = vadd.f32 %v158, %v258
      %v354 = vadd.f32 %v159, %v260
      %v355 = vadd.f32 %v160, %v262
      %v356 = vadd.f32 %v161, %v264
      %v357 = vadd.f32 %v162, %v266
      %v358 = vadd.f32 %v163, %v268
      %v359 = vadd.f32 %v164, %v270
      %v360 = vadd.f32 %v165, %v272
      %v361 = vadd.f32 %v166, %v274
      %v362 = vadd.f32 %v167, %v276
      %v363 = vadd.f32 %v168, %v278
      %v364 = vadd.f32 %v169, %v280
      %v365 = vadd.f32 %v170, %v282
      %v366 = vadd.f32 %v171, %v284
      %v367 = vadd.f32 %v172, %v286
      %v368 = vadd.f32 %v173, %v288
      %v369 = vadd.f32 %v174, %v290
      %v370 = vadd.f32 %v175, %v292
      %v371 = vadd.f32 %v176, %v294
      %v372 = vadd.f32 %v177, %v296
      %v373 = vadd.f32 %v178, %v298
      %v374 = vadd.f32 %v179, %v300
      %v375 = vadd.f32 %v180, %v302
      %v376 = vadd.f32 %v181, %v304
      %v377 = vadd.f32 %v182, %v306
      %v378 = vadd.f32 %v183, %v308
      %v379 = vadd.f32 %v184, %v310
      %v380 = vadd.f32 %v185, %v312
      %v381 = vadd.f32 %v186, %v314
      %v382 = vadd.f32 %v187, %v316
      %v383 = vadd.f32 %v188, %v318
      %v384 = vadd.f32 %v189, %v320
      %s385 = sadd.s32 %s91, 2
      %s386 = sld [smem:[#allocation4 + %s385]]
      %v387 = vstv %s386
      %v388 = vmul.f32 %v387, %v93
      %v389 = vmul.f32 %v387, %v94
      %v390 = vmul.f32 %v387, %v95
      %v391 = vmul.f32 %v387, %v96
      %v392 = vmul.f32 %v387, %v97
      %v393 = vmul.f32 %v387, %v98
      %v394 = vmul.f32 %v387, %v99
      %v395 = vmul.f32 %v387, %v100
      %v396 = vmul.f32 %v387, %v101
      %v397 = vmul.f32 %v387, %v102
      %v398 = vmul.f32 %v387, %v103
      %v399 = vmul.f32 %v387, %v104
      %v400 = vmul.f32 %v387, %v105
      %v401 = vmul.f32 %v387, %v106
      %v402 = vmul.f32 %v387, %v107
      %v403 = vmul.f32 %v387, %v108
      %v404 = vmul.f32 %v387, %v109
      %v405 = vmul.f32 %v387, %v110
      %v406 = vmul.f32 %v387, %v111
      %v407 = vmul.f32 %v387, %v112
      %v408 = vmul.f32 %v387, %v113
      %v409 = vmul.f32 %v387, %v114
      %v410 = vmul.f32 %v387, %v115
      %v411 = vmul.f32 %v387, %v116
      %v412 = vmul.f32 %v387, %v117
      %v413 = vmul.f32 %v387, %v118
      %v414 = vmul.f32 %v387, %v119
      %v415 = vmul.f32 %v387, %v120
      %v416 = vmul.f32 %v387, %v121
      %v417 = vmul.f32 %v387, %v122
      %v418 = vmul.f32 %v387, %v123
      %v419 = vmul.f32 %v387, %v124
      %452 = vrot.lane.b32.xlu0 %v388, 126
      %v453 = vpop.permute.xlu0 %452
      %454 = vrot.lane.b32.xlu0 %v389, 126
      %v455 = vpop.permute.xlu0 %454
      %456 = vrot.lane.b32.xlu0 %v390, 126
      %v457 = vpop.permute.xlu0 %456
      %458 = vrot.lane.b32.xlu0 %v391, 126
      %v459 = vpop.permute.xlu0 %458
      %460 = vrot.lane.b32.xlu0 %v392, 126
      %v461 = vpop.permute.xlu0 %460
      %462 = vrot.lane.b32.xlu0 %v393, 126
      %v463 = vpop.permute.xlu0 %462
      %464 = vrot.lane.b32.xlu0 %v394, 126
      %v465 = vpop.permute.xlu0 %464
      %466 = vrot.lane.b32.xlu0 %v395, 126
      %v467 = vpop.permute.xlu0 %466
      %468 = vrot.lane.b32.xlu0 %v396, 126
      %v469 = vpop.permute.xlu0 %468
      %470 = vrot.lane.b32.xlu0 %v397, 126
      %v471 = vpop.permute.xlu0 %470
      %472 = vrot.lane.b32.xlu0 %v398, 126
      %v473 = vpop.permute.xlu0 %472
      %474 = vrot.lane.b32.xlu0 %v399, 126
      %v475 = vpop.permute.xlu0 %474
      %476 = vrot.lane.b32.xlu0 %v400, 126
      %v477 = vpop.permute.xlu0 %476
      %478 = vrot.lane.b32.xlu0 %v401, 126
      %v479 = vpop.permute.xlu0 %478
      %480 = vrot.lane.b32.xlu0 %v402, 126
      %v481 = vpop.permute.xlu0 %480
      %482 = vrot.lane.b32.xlu0 %v403, 126
      %v483 = vpop.permute.xlu0 %482
      %484 = vrot.lane.b32.xlu0 %v404, 126
      %v485 = vpop.permute.xlu0 %484
      %486 = vrot.lane.b32.xlu0 %v405, 126
      %v487 = vpop.permute.xlu0 %486
      %488 = vrot.lane.b32.xlu0 %v406, 126
      %v489 = vpop.permute.xlu0 %488
      %490 = vrot.lane.b32.xlu0 %v407, 126
      %v491 = vpop.permute.xlu0 %490
      %492 = vrot.lane.b32.xlu0 %v408, 126
      %v493 = vpop.permute.xlu0 %492
      %494 = vrot.lane.b32.xlu0 %v409, 126
      %v495 = vpop.permute.xlu0 %494
      %496 = vrot.lane.b32.xlu0 %v410, 126
      %v497 = vpop.permute.xlu0 %496
      %498 = vrot.lane.b32.xlu0 %v411, 126
      %v499 = vpop.permute.xlu0 %498
      %500 = vrot.lane.b32.xlu0 %v412, 126
      %v501 = vpop.permute.xlu0 %500
      %502 = vrot.lane.b32.xlu0 %v413, 126
      %v503 = vpop.permute.xlu0 %502
      %504 = vrot.lane.b32.xlu0 %v414, 126
      %v505 = vpop.permute.xlu0 %504
      %506 = vrot.lane.b32.xlu0 %v415, 126
      %v507 = vpop.permute.xlu0 %506
      %508 = vrot.lane.b32.xlu0 %v416, 126
      %v509 = vpop.permute.xlu0 %508
      %510 = vrot.lane.b32.xlu0 %v417, 126
      %v511 = vpop.permute.xlu0 %510
      %512 = vrot.lane.b32.xlu0 %v418, 126
      %v513 = vpop.permute.xlu0 %512
      %514 = vrot.lane.b32.xlu0 %v419, 126
      %v515 = vpop.permute.xlu0 %514
      %v548 = vadd.f32 %v353, %v453
      %v549 = vadd.f32 %v354, %v455
      %v550 = vadd.f32 %v355, %v457
      %v551 = vadd.f32 %v356, %v459
      %v552 = vadd.f32 %v357, %v461
      %v553 = vadd.f32 %v358, %v463
      %v554 = vadd.f32 %v359, %v465
      %v555 = vadd.f32 %v360, %v467
      %v556 = vadd.f32 %v361, %v469
      %v557 = vadd.f32 %v362, %v471
      %v558 = vadd.f32 %v363, %v473
      %v559 = vadd.f32 %v364, %v475
      %v560 = vadd.f32 %v365, %v477
      %v561 = vadd.f32 %v366, %v479
      %v562 = vadd.f32 %v367, %v481
      %v563 = vadd.f32 %v368, %v483
      %v564 = vadd.f32 %v369, %v485
      %v565 = vadd.f32 %v370, %v487
      %v566 = vadd.f32 %v371, %v489
      %v567 = vadd.f32 %v372, %v491
      %v568 = vadd.f32 %v373, %v493
      %v569 = vadd.f32 %v374, %v495
      %v570 = vadd.f32 %v375, %v497
      %v571 = vadd.f32 %v376, %v499
      %v572 = vadd.f32 %v377, %v501
      %v573 = vadd.f32 %v378, %v503
      %v574 = vadd.f32 %v379, %v505
      %v575 = vadd.f32 %v380, %v507
      %v576 = vadd.f32 %v381, %v509
      %v577 = vadd.f32 %v382, %v511
      %v578 = vadd.f32 %v383, %v513
      %v579 = vadd.f32 %v384, %v515
      %s580 = sadd.s32 %s91, 3
      %s581 = sld [smem:[#allocation4 + %s580]]
      %v582 = vld [vmem:[%s0 + $0x1] sm:$0xff]
      %v583 = vld [vmem:[%s0 + $0x9] sm:$0xff]
      %v584 = vld [vmem:[%s0 + $0x11] sm:$0xff]
      %v585 = vld [vmem:[%s0 + $0x19] sm:$0x3]
      %v586 = vld [vmem:[%s0 + $0x21] sm:$0xff]
      %v587 = vld [vmem:[%s0 + $0x29] sm:$0xff]
      %v588 = vld [vmem:[%s0 + $0x31] sm:$0xff]
      %v589 = vld [vmem:[%s0 + $0x39] sm:$0x3]
      %v590 = vld [vmem:[%s0 + $0x41] sm:$0xff]
      %v591 = vld [vmem:[%s0 + $0x49] sm:$0xff]
      %v592 = vld [vmem:[%s0 + $0x51] sm:$0xff]
      %v593 = vld [vmem:[%s0 + $0x59] sm:$0x3]
      %v594 = vld [vmem:[%s0 + $0x61] sm:$0xff]
      %v595 = vld [vmem:[%s0 + $0x69] sm:$0xff]
      %v596 = vld [vmem:[%s0 + $0x71] sm:$0xff]
      %v597 = vld [vmem:[%s0 + $0x79] sm:$0x3]
      %v598 = vld [vmem:[%s0 + $0x81] sm:$0xff]
      %v599 = vld [vmem:[%s0 + $0x89] sm:$0xff]
      %v600 = vld [vmem:[%s0 + $0x91] sm:$0xff]
      %v601 = vld [vmem:[%s0 + $0x99] sm:$0x3]
      %v602 = vld [vmem:[%s0 + $0xa1] sm:$0xff]
      %v603 = vld [vmem:[%s0 + $0xa9] sm:$0xff]
      %v604 = vld [vmem:[%s0 + $0xb1] sm:$0xff]
      %v605 = vld [vmem:[%s0 + $0xb9] sm:$0x3]
      %v606 = vld [vmem:[%s0 + $0xc1] sm:$0xff]
      %v607 = vld [vmem:[%s0 + $0xc9] sm:$0xff]
      %v608 = vld [vmem:[%s0 + $0xd1] sm:$0xff]
      %v609 = vld [vmem:[%s0 + $0xd9] sm:$0x3]
      %v610 = vld [vmem:[%s0 + $0xe1] sm:$0xff]
      %v611 = vld [vmem:[%s0 + $0xe9] sm:$0xff]
      %v612 = vld [vmem:[%s0 + $0xf1] sm:$0xff]
      %v613 = vld [vmem:[%s0 + $0xf9] sm:$0x3]
      %v614 = vstv %s581
      %v615 = vmul.f32 %v614, %v582
      %v616 = vmul.f32 %v614, %v583
      %v617 = vmul.f32 %v614, %v584
      %v618 = vmul.f32 %v614, %v585
      %v619 = vmul.f32 %v614, %v586
      %v620 = vmul.f32 %v614, %v587
      %v621 = vmul.f32 %v614, %v588
      %v622 = vmul.f32 %v614, %v589
      %v623 = vmul.f32 %v614, %v590
      %v624 = vmul.f32 %v614, %v591
      %v625 = vmul.f32 %v614, %v592
      %v626 = vmul.f32 %v614, %v593
      %v627 = vmul.f32 %v614, %v594
      %v628 = vmul.f32 %v614, %v595
      %v629 = vmul.f32 %v614, %v596
      %v630 = vmul.f32 %v614, %v597
      %v631 = vmul.f32 %v614, %v598
      %v632 = vmul.f32 %v614, %v599
      %v633 = vmul.f32 %v614, %v600
      %v634 = vmul.f32 %v614, %v601
      %v635 = vmul.f32 %v614, %v602
      %v636 = vmul.f32 %v614, %v603
      %v637 = vmul.f32 %v614, %v604
      %v638 = vmul.f32 %v614, %v605
      %v639 = vmul.f32 %v614, %v606
      %v640 = vmul.f32 %v614, %v607
      %v641 = vmul.f32 %v614, %v608
      %v642 = vmul.f32 %v614, %v609
      %v643 = vmul.f32 %v614, %v610
      %v644 = vmul.f32 %v614, %v611
      %v645 = vmul.f32 %v614, %v612
      %v646 = vmul.f32 %v614, %v613
      %v647 = vadd.f32 %v548, %v615
      %v648 = vadd.f32 %v549, %v616
      %v649 = vadd.f32 %v550, %v617
      %v650 = vadd.f32 %v551, %v618
      %v651 = vadd.f32 %v552, %v619
      %v652 = vadd.f32 %v553, %v620
      %v653 = vadd.f32 %v554, %v621
      %v654 = vadd.f32 %v555, %v622
      %v655 = vadd.f32 %v556, %v623
      %v656 = vadd.f32 %v557, %v624
      %v657 = vadd.f32 %v558, %v625
      %v658 = vadd.f32 %v559, %v626
      %v659 = vadd.f32 %v560, %v627
      %v660 = vadd.f32 %v561, %v628
      %v661 = vadd.f32 %v562, %v629
      %v662 = vadd.f32 %v563, %v630
      %v663 = vadd.f32 %v564, %v631
      %v664 = vadd.f32 %v565, %v632
      %v665 = vadd.f32 %v566, %v633
      %v666 = vadd.f32 %v567, %v634
      %v667 = vadd.f32 %v568, %v635
      %v668 = vadd.f32 %v569, %v636
      %v669 = vadd.f32 %v570, %v637
      %v670 = vadd.f32 %v571, %v638
      %v671 = vadd.f32 %v572, %v639
      %v672 = vadd.f32 %v573, %v640
      %v673 = vadd.f32 %v574, %v641
      %v674 = vadd.f32 %v575, %v642
      %v675 = vadd.f32 %v576, %v643
      %v676 = vadd.f32 %v577, %v644
      %v677 = vadd.f32 %v578, %v645
      %v678 = vadd.f32 %v579, %v646
      %s679 = sadd.s32 %s91, 4
      %s680 = sld [smem:[#allocation4 + %s679]]
      %v681 = vstv %s680
      %v682 = vmul.f32 %v681, %v582
      %v683 = vmul.f32 %v681, %v583
      %v684 = vmul.f32 %v681, %v584
      %v685 = vmul.f32 %v681, %v585
      %v686 = vmul.f32 %v681, %v586
      %v687 = vmul.f32 %v681, %v587
      %v688 = vmul.f32 %v681, %v588
      %v689 = vmul.f32 %v681, %v589
      %v690 = vmul.f32 %v681, %v590
      %v691 = vmul.f32 %v681, %v591
      %v692 = vmul.f32 %v681, %v592
      %v693 = vmul.f32 %v681, %v593
      %v694 = vmul.f32 %v681, %v594
      %v695 = vmul.f32 %v681, %v595
      %v696 = vmul.f32 %v681, %v596
      %v697 = vmul.f32 %v681, %v597
      %v698 = vmul.f32 %v681, %v598
      %v699 = vmul.f32 %v681, %v599
      %v700 = vmul.f32 %v681, %v600
      %v701 = vmul.f32 %v681, %v601
      %v702 = vmul.f32 %v681, %v602
      %v703 = vmul.f32 %v681, %v603
      %v704 = vmul.f32 %v681, %v604
      %v705 = vmul.f32 %v681, %v605
      %v706 = vmul.f32 %v681, %v606
      %v707 = vmul.f32 %v681, %v607
      %v708 = vmul.f32 %v681, %v608
      %v709 = vmul.f32 %v681, %v609
      %v710 = vmul.f32 %v681, %v610
      %v711 = vmul.f32 %v681, %v611
      %v712 = vmul.f32 %v681, %v612
      %v713 = vmul.f32 %v681, %v613
      %746 = vrot.lane.b32.xlu0 %v682, 127
      %v747 = vpop.permute.xlu0 %746
      %748 = vrot.lane.b32.xlu0 %v683, 127
      %v749 = vpop.permute.xlu0 %748
      %750 = vrot.lane.b32.xlu0 %v684, 127
      %v751 = vpop.permute.xlu0 %750
      %752 = vrot.lane.b32.xlu0 %v685, 127
      %v753 = vpop.permute.xlu0 %752
      %754 = vrot.lane.b32.xlu0 %v686, 127
      %v755 = vpop.permute.xlu0 %754
      %756 = vrot.lane.b32.xlu0 %v687, 127
      %v757 = vpop.permute.xlu0 %756
      %758 = vrot.lane.b32.xlu0 %v688, 127
      %v759 = vpop.permute.xlu0 %758
      %760 = vrot.lane.b32.xlu0 %v689, 127
      %v761 = vpop.permute.xlu0 %760
      %762 = vrot.lane.b32.xlu0 %v690, 127
      %v763 = vpop.permute.xlu0 %762
      %764 = vrot.lane.b32.xlu0 %v691, 127
      %v765 = vpop.permute.xlu0 %764
      %766 = vrot.lane.b32.xlu0 %v692, 127
      %v767 = vpop.permute.xlu0 %766
      %768 = vrot.lane.b32.xlu0 %v693, 127
      %v769 = vpop.permute.xlu0 %768
      %770 = vrot.lane.b32.xlu0 %v694, 127
      %v771 = vpop.permute.xlu0 %770
      %772 = vrot.lane.b32.xlu0 %v695, 127
      %v773 = vpop.permute.xlu0 %772
      %774 = vrot.lane.b32.xlu0 %v696, 127
      %v775 = vpop.permute.xlu0 %774
      %776 = vrot.lane.b32.xlu0 %v697, 127
      %v777 = vpop.permute.xlu0 %776
      %778 = vrot.lane.b32.xlu0 %v698, 127
      %v779 = vpop.permute.xlu0 %778
      %780 = vrot.lane.b32.xlu0 %v699, 127
      %v781 = vpop.permute.xlu0 %780
      %782 = vrot.lane.b32.xlu0 %v700, 127
      %v783 = vpop.permute.xlu0 %782
      %784 = vrot.lane.b32.xlu0 %v701, 127
      %v785 = vpop.permute.xlu0 %784
      %786 = vrot.lane.b32.xlu0 %v702, 127
      %v787 = vpop.permute.xlu0 %786
      %788 = vrot.lane.b32.xlu0 %v703, 127
      %v789 = vpop.permute.xlu0 %788
      %790 = vrot.lane.b32.xlu0 %v704, 127
      %v791 = vpop.permute.xlu0 %790
      %792 = vrot.lane.b32.xlu0 %v705, 127
      %v793 = vpop.permute.xlu0 %792
      %794 = vrot.lane.b32.xlu0 %v706, 127
      %v795 = vpop.permute.xlu0 %794
      %796 = vrot.lane.b32.xlu0 %v707, 127
      %v797 = vpop.permute.xlu0 %796
      %798 = vrot.lane.b32.xlu0 %v708, 127
      %v799 = vpop.permute.xlu0 %798
      %800 = vrot.lane.b32.xlu0 %v709, 127
      %v801 = vpop.permute.xlu0 %800
      %802 = vrot.lane.b32.xlu0 %v710, 127
      %v803 = vpop.permute.xlu0 %802
      %804 = vrot.lane.b32.xlu0 %v711, 127
      %v805 = vpop.permute.xlu0 %804
      %806 = vrot.lane.b32.xlu0 %v712, 127
      %v807 = vpop.permute.xlu0 %806
      %808 = vrot.lane.b32.xlu0 %v713, 127
      %v809 = vpop.permute.xlu0 %808
      %v842 = vadd.f32 %v647, %v747
      %v843 = vadd.f32 %v648, %v749
      %v844 = vadd.f32 %v649, %v751
      %v845 = vadd.f32 %v650, %v753
      %v846 = vadd.f32 %v651, %v755
      %v847 = vadd.f32 %v652, %v757
      %v848 = vadd.f32 %v653, %v759
      %v849 = vadd.f32 %v654, %v761
      %v850 = vadd.f32 %v655, %v763
      %v851 = vadd.f32 %v656, %v765
      %v852 = vadd.f32 %v657, %v767
      %v853 = vadd.f32 %v658, %v769
      %v854 = vadd.f32 %v659, %v771
      %v855 = vadd.f32 %v660, %v773
      %v856 = vadd.f32 %v661, %v775
      %v857 = vadd.f32 %v662, %v777
      %v858 = vadd.f32 %v663, %v779
      %v859 = vadd.f32 %v664, %v781
      %v860 = vadd.f32 %v665, %v783
      %v861 = vadd.f32 %v666, %v785
      %v862 = vadd.f32 %v667, %v787
      %v863 = vadd.f32 %v668, %v789
      %v864 = vadd.f32 %v669, %v791
      %v865 = vadd.f32 %v670, %v793
      %v866 = vadd.f32 %v671, %v795
      %v867 = vadd.f32 %v672, %v797
      %v868 = vadd.f32 %v673, %v799
      %v869 = vadd.f32 %v674, %v801
      %v870 = vadd.f32 %v675, %v803
      %v871 = vadd.f32 %v676, %v805
      %v872 = vadd.f32 %v677, %v807
      %v873 = vadd.f32 %v678, %v809
      %s874 = sadd.s32 %s91, 5
      %s875 = sld [smem:[#allocation4 + %s874]]
      %v876 = vstv %s875
      %v877 = vmul.f32 %v876, %v582
      %v878 = vmul.f32 %v876, %v583
      %v879 = vmul.f32 %v876, %v584
      %v880 = vmul.f32 %v876, %v585
      %v881 = vmul.f32 %v876, %v586
      %v882 = vmul.f32 %v876, %v587
      %v883 = vmul.f32 %v876, %v588
      %v884 = vmul.f32 %v876, %v589
      %v885 = vmul.f32 %v876, %v590
      %v886 = vmul.f32 %v876, %v591
      %v887 = vmul.f32 %v876, %v592
      %v888 = vmul.f32 %v876, %v593
      %v889 = vmul.f32 %v876, %v594
      %v890 = vmul.f32 %v876, %v595
      %v891 = vmul.f32 %v876, %v596
      %v892 = vmul.f32 %v876, %v597
      %v893 = vmul.f32 %v876, %v598
      %v894 = vmul.f32 %v876, %v599
      %v895 = vmul.f32 %v876, %v600
      %v896 = vmul.f32 %v876, %v601
      %v897 = vmul.f32 %v876, %v602
      %v898 = vmul.f32 %v876, %v603
      %v899 = vmul.f32 %v876, %v604
      %v900 = vmul.f32 %v876, %v605
      %v901 = vmul.f32 %v876, %v606
      %v902 = vmul.f32 %v876, %v607
      %v903 = vmul.f32 %v876, %v608
      %v904 = vmul.f32 %v876, %v609
      %v905 = vmul.f32 %v876, %v610
      %v906 = vmul.f32 %v876, %v611
      %v907 = vmul.f32 %v876, %v612
      %v908 = vmul.f32 %v876, %v613
      %941 = vrot.lane.b32.xlu0 %v877, 126
      %v942 = vpop.permute.xlu0 %941
      %943 = vrot.lane.b32.xlu0 %v878, 126
      %v944 = vpop.permute.xlu0 %943
      %945 = vrot.lane.b32.xlu0 %v879, 126
      %v946 = vpop.permute.xlu0 %945
      %947 = vrot.lane.b32.xlu0 %v880, 126
      %v948 = vpop.permute.xlu0 %947
      %949 = vrot.lane.b32.xlu0 %v881, 126
      %v950 = vpop.permute.xlu0 %949
      %951 = vrot.lane.b32.xlu0 %v882, 126
      %v952 = vpop.permute.xlu0 %951
      %953 = vrot.lane.b32.xlu0 %v883, 126
      %v954 = vpop.permute.xlu0 %953
      %955 = vrot.lane.b32.xlu0 %v884, 126
      %v956 = vpop.permute.xlu0 %955
      %957 = vrot.lane.b32.xlu0 %v885, 126
      %v958 = vpop.permute.xlu0 %957
      %959 = vrot.lane.b32.xlu0 %v886, 126
      %v960 = vpop.permute.xlu0 %959
      %961 = vrot.lane.b32.xlu0 %v887, 126
      %v962 = vpop.permute.xlu0 %961
      %963 = vrot.lane.b32.xlu0 %v888, 126
      %v964 = vpop.permute.xlu0 %963
      %965 = vrot.lane.b32.xlu0 %v889, 126
      %v966 = vpop.permute.xlu0 %965
      %967 = vrot.lane.b32.xlu0 %v890, 126
      %v968 = vpop.permute.xlu0 %967
      %969 = vrot.lane.b32.xlu0 %v891, 126
      %v970 = vpop.permute.xlu0 %969
      %971 = vrot.lane.b32.xlu0 %v892, 126
      %v972 = vpop.permute.xlu0 %971
      %973 = vrot.lane.b32.xlu0 %v893, 126
      %v974 = vpop.permute.xlu0 %973
      %975 = vrot.lane.b32.xlu0 %v894, 126
      %v976 = vpop.permute.xlu0 %975
      %977 = vrot.lane.b32.xlu0 %v895, 126
      %v978 = vpop.permute.xlu0 %977
      %979 = vrot.lane.b32.xlu0 %v896, 126
      %v980 = vpop.permute.xlu0 %979
      %981 = vrot.lane.b32.xlu0 %v897, 126
      %v982 = vpop.permute.xlu0 %981
      %983 = vrot.lane.b32.xlu0 %v898, 126
      %v984 = vpop.permute.xlu0 %983
      %985 = vrot.lane.b32.xlu0 %v899, 126
      %v986 = vpop.permute.xlu0 %985
      %987 = vrot.lane.b32.xlu0 %v900, 126
      %v988 = vpop.permute.xlu0 %987
      %989 = vrot.lane.b32.xlu0 %v901, 126
      %v990 = vpop.permute.xlu0 %989
      %991 = vrot.lane.b32.xlu0 %v902, 126
      %v992 = vpop.permute.xlu0 %991
      %993 = vrot.lane.b32.xlu0 %v903, 126
      %v994 = vpop.permute.xlu0 %993
      %995 = vrot.lane.b32.xlu0 %v904, 126
      %v996 = vpop.permute.xlu0 %995
      %997 = vrot.lane.b32.xlu0 %v905, 126
      %v998 = vpop.permute.xlu0 %997
      %999 = vrot.lane.b32.xlu0 %v906, 126
      %v1000 = vpop.permute.xlu0 %999
      %1001 = vrot.lane.b32.xlu0 %v907, 126
      %v1002 = vpop.permute.xlu0 %1001
      %1003 = vrot.lane.b32.xlu0 %v908, 126
      %v1004 = vpop.permute.xlu0 %1003
      %v1037 = vadd.f32 %v842, %v942
      %v1038 = vadd.f32 %v843, %v944
      %v1039 = vadd.f32 %v844, %v946
      %v1040 = vadd.f32 %v845, %v948
      %v1041 = vadd.f32 %v846, %v950
      %v1042 = vadd.f32 %v847, %v952
      %v1043 = vadd.f32 %v848, %v954
      %v1044 = vadd.f32 %v849, %v956
      %v1045 = vadd.f32 %v850, %v958
      %v1046 = vadd.f32 %v851, %v960
      %v1047 = vadd.f32 %v852, %v962
      %v1048 = vadd.f32 %v853, %v964
      %v1049 = vadd.f32 %v854, %v966
      %v1050 = vadd.f32 %v855, %v968
      %v1051 = vadd.f32 %v856, %v970
      %v1052 = vadd.f32 %v857, %v972
      %v1053 = vadd.f32 %v858, %v974
      %v1054 = vadd.f32 %v859, %v976
      %v1055 = vadd.f32 %v860, %v978
      %v1056 = vadd.f32 %v861, %v980
      %v1057 = vadd.f32 %v862, %v982
      %v1058 = vadd.f32 %v863, %v984
      %v1059 = vadd.f32 %v864, %v986
      %v1060 = vadd.f32 %v865, %v988
      %v1061 = vadd.f32 %v866, %v990
      %v1062 = vadd.f32 %v867, %v992
      %v1063 = vadd.f32 %v868, %v994
      %v1064 = vadd.f32 %v869, %v996
      %v1065 = vadd.f32 %v870, %v998
      %v1066 = vadd.f32 %v871, %v1000
      %v1067 = vadd.f32 %v872, %v1002
      %v1068 = vadd.f32 %v873, %v1004
      %s1069 = sadd.s32 %s91, 6
      %s1070 = sld [smem:[#allocation4 + %s1069]]
      %v1071 = vld [vmem:[%s0 + $0x2] sm:$0xff]
      %v1072 = vld [vmem:[%s0 + $0xa] sm:$0xff]
      %v1073 = vld [vmem:[%s0 + $0x12] sm:$0xff]
      %v1074 = vld [vmem:[%s0 + $0x1a] sm:$0x3]
      %v1075 = vld [vmem:[%s0 + $0x22] sm:$0xff]
      %v1076 = vld [vmem:[%s0 + $0x2a] sm:$0xff]
      %v1077 = vld [vmem:[%s0 + $0x32] sm:$0xff]
      %v1078 = vld [vmem:[%s0 + $0x3a] sm:$0x3]
      %v1079 = vld [vmem:[%s0 + $0x42] sm:$0xff]
      %v1080 = vld [vmem:[%s0 + $0x4a] sm:$0xff]
      %v1081 = vld [vmem:[%s0 + $0x52] sm:$0xff]
      %v1082 = vld [vmem:[%s0 + $0x5a] sm:$0x3]
      %v1083 = vld [vmem:[%s0 + $0x62] sm:$0xff]
      %v1084 = vld [vmem:[%s0 + $0x6a] sm:$0xff]
      %v1085 = vld [vmem:[%s0 + $0x72] sm:$0xff]
      %v1086 = vld [vmem:[%s0 + $0x7a] sm:$0x3]
      %v1087 = vld [vmem:[%s0 + $0x82] sm:$0xff]
      %v1088 = vld [vmem:[%s0 + $0x8a] sm:$0xff]
      %v1089 = vld [vmem:[%s0 + $0x92] sm:$0xff]
      %v1090 = vld [vmem:[%s0 + $0x9a] sm:$0x3]
      %v1091 = vld [vmem:[%s0 + $0xa2] sm:$0xff]
      %v1092 = vld [vmem:[%s0 + $0xaa] sm:$0xff]
      %v1093 = vld [vmem:[%s0 + $0xb2] sm:$0xff]
      %v1094 = vld [vmem:[%s0 + $0xba] sm:$0x3]
      %v1095 = vld [vmem:[%s0 + $0xc2] sm:$0xff]
      %v1096 = vld [vmem:[%s0 + $0xca] sm:$0xff]
      %v1097 = vld [vmem:[%s0 + $0xd2] sm:$0xff]
      %v1098 = vld [vmem:[%s0 + $0xda] sm:$0x3]
      %v1099 = vld [vmem:[%s0 + $0xe2] sm:$0xff]
      %v1100 = vld [vmem:[%s0 + $0xea] sm:$0xff]
      %v1101 = vld [vmem:[%s0 + $0xf2] sm:$0xff]
      %v1102 = vld [vmem:[%s0 + $0xfa] sm:$0x3]
      %v1103 = vstv %s1070
      %v1104 = vmul.f32 %v1103, %v1071
      %v1105 = vmul.f32 %v1103, %v1072
      %v1106 = vmul.f32 %v1103, %v1073
      %v1107 = vmul.f32 %v1103, %v1074
      %v1108 = vmul.f32 %v1103, %v1075
      %v1109 = vmul.f32 %v1103, %v1076
      %v1110 = vmul.f32 %v1103, %v1077
      %v1111 = vmul.f32 %v1103, %v1078
      %v1112 = vmul.f32 %v1103, %v1079
      %v1113 = vmul.f32 %v1103, %v1080
      %v1114 = vmul.f32 %v1103, %v1081
      %v1115 = vmul.f32 %v1103, %v1082
      %v1116 = vmul.f32 %v1103, %v1083
      %v1117 = vmul.f32 %v1103, %v1084
      %v1118 = vmul.f32 %v1103, %v1085
      %v1119 = vmul.f32 %v1103, %v1086
      %v1120 = vmul.f32 %v1103, %v1087
      %v1121 = vmul.f32 %v1103, %v1088
      %v1122 = vmul.f32 %v1103, %v1089
      %v1123 = vmul.f32 %v1103, %v1090
      %v1124 = vmul.f32 %v1103, %v1091
      %v1125 = vmul.f32 %v1103, %v1092
      %v1126 = vmul.f32 %v1103, %v1093
      %v1127 = vmul.f32 %v1103, %v1094
      %v1128 = vmul.f32 %v1103, %v1095
      %v1129 = vmul.f32 %v1103, %v1096
      %v1130 = vmul.f32 %v1103, %v1097
      %v1131 = vmul.f32 %v1103, %v1098
      %v1132 = vmul.f32 %v1103, %v1099
      %v1133 = vmul.f32 %v1103, %v1100
      %v1134 = vmul.f32 %v1103, %v1101
      %v1135 = vmul.f32 %v1103, %v1102
      %v1136 = vadd.f32 %v1037, %v1104
      %v1137 = vadd.f32 %v1038, %v1105
      %v1138 = vadd.f32 %v1039, %v1106
      %v1139 = vadd.f32 %v1040, %v1107
      %v1140 = vadd.f32 %v1041, %v1108
      %v1141 = vadd.f32 %v1042, %v1109
      %v1142 = vadd.f32 %v1043, %v1110
      %v1143 = vadd.f32 %v1044, %v1111
      %v1144 = vadd.f32 %v1045, %v1112
      %v1145 = vadd.f32 %v1046, %v1113
      %v1146 = vadd.f32 %v1047, %v1114
      %v1147 = vadd.f32 %v1048, %v1115
      %v1148 = vadd.f32 %v1049, %v1116
      %v1149 = vadd.f32 %v1050, %v1117
      %v1150 = vadd.f32 %v1051, %v1118
      %v1151 = vadd.f32 %v1052, %v1119
      %v1152 = vadd.f32 %v1053, %v1120
      %v1153 = vadd.f32 %v1054, %v1121
      %v1154 = vadd.f32 %v1055, %v1122
      %v1155 = vadd.f32 %v1056, %v1123
      %v1156 = vadd.f32 %v1057, %v1124
      %v1157 = vadd.f32 %v1058, %v1125
      %v1158 = vadd.f32 %v1059, %v1126
      %v1159 = vadd.f32 %v1060, %v1127
      %v1160 = vadd.f32 %v1061, %v1128
      %v1161 = vadd.f32 %v1062, %v1129
      %v1162 = vadd.f32 %v1063, %v1130
      %v1163 = vadd.f32 %v1064, %v1131
      %v1164 = vadd.f32 %v1065, %v1132
      %v1165 = vadd.f32 %v1066, %v1133
      %v1166 = vadd.f32 %v1067, %v1134
      %v1167 = vadd.f32 %v1068, %v1135
      %s1168 = sadd.s32 %s91, 7
      %s1169 = sld [smem:[#allocation4 + %s1168]]
      %v1170 = vstv %s1169
      %v1171 = vmul.f32 %v1170, %v1071
      %v1172 = vmul.f32 %v1170, %v1072
      %v1173 = vmul.f32 %v1170, %v1073
      %v1174 = vmul.f32 %v1170, %v1074
      %v1175 = vmul.f32 %v1170, %v1075
      %v1176 = vmul.f32 %v1170, %v1076
      %v1177 = vmul.f32 %v1170, %v1077
      %v1178 = vmul.f32 %v1170, %v1078
      %v1179 = vmul.f32 %v1170, %v1079
      %v1180 = vmul.f32 %v1170, %v1080
      %v1181 = vmul.f32 %v1170, %v1081
      %v1182 = vmul.f32 %v1170, %v1082
      %v1183 = vmul.f32 %v1170, %v1083
      %v1184 = vmul.f32 %v1170, %v1084
      %v1185 = vmul.f32 %v1170, %v1085
      %v1186 = vmul.f32 %v1170, %v1086
      %v1187 = vmul.f32 %v1170, %v1087
      %v1188 = vmul.f32 %v1170, %v1088
      %v1189 = vmul.f32 %v1170, %v1089
      %v1190 = vmul.f32 %v1170, %v1090
      %v1191 = vmul.f32 %v1170, %v1091
      %v1192 = vmul.f32 %v1170, %v1092
      %v1193 = vmul.f32 %v1170, %v1093
      %v1194 = vmul.f32 %v1170, %v1094
      %v1195 = vmul.f32 %v1170, %v1095
      %v1196 = vmul.f32 %v1170, %v1096
      %v1197 = vmul.f32 %v1170, %v1097
      %v1198 = vmul.f32 %v1170, %v1098
      %v1199 = vmul.f32 %v1170, %v1099
      %v1200 = vmul.f32 %v1170, %v1100
      %v1201 = vmul.f32 %v1170, %v1101
      %v1202 = vmul.f32 %v1170, %v1102
      %1235 = vrot.lane.b32.xlu0 %v1171, 127
      %v1236 = vpop.permute.xlu0 %1235
      %1237 = vrot.lane.b32.xlu0 %v1172, 127
      %v1238 = vpop.permute.xlu0 %1237
      %1239 = vrot.lane.b32.xlu0 %v1173, 127
      %v1240 = vpop.permute.xlu0 %1239
      %1241 = vrot.lane.b32.xlu0 %v1174, 127
      %v1242 = vpop.permute.xlu0 %1241
      %1243 = vrot.lane.b32.xlu0 %v1175, 127
      %v1244 = vpop.permute.xlu0 %1243
      %1245 = vrot.lane.b32.xlu0 %v1176, 127
      %v1246 = vpop.permute.xlu0 %1245
      %1247 = vrot.lane.b32.xlu0 %v1177, 127
      %v1248 = vpop.permute.xlu0 %1247
      %1249 = vrot.lane.b32.xlu0 %v1178, 127
      %v1250 = vpop.permute.xlu0 %1249
      %1251 = vrot.lane.b32.xlu0 %v1179, 127
      %v1252 = vpop.permute.xlu0 %1251
      %1253 = vrot.lane.b32.xlu0 %v1180, 127
      %v1254 = vpop.permute.xlu0 %1253
      %1255 = vrot.lane.b32.xlu0 %v1181, 127
      %v1256 = vpop.permute.xlu0 %1255
      %1257 = vrot.lane.b32.xlu0 %v1182, 127
      %v1258 = vpop.permute.xlu0 %1257
      %1259 = vrot.lane.b32.xlu0 %v1183, 127
      %v1260 = vpop.permute.xlu0 %1259
      %1261 = vrot.lane.b32.xlu0 %v1184, 127
      %v1262 = vpop.permute.xlu0 %1261
      %1263 = vrot.lane.b32.xlu0 %v1185, 127
      %v1264 = vpop.permute.xlu0 %1263
      %1265 = vrot.lane.b32.xlu0 %v1186, 127
      %v1266 = vpop.permute.xlu0 %1265
      %1267 = vrot.lane.b32.xlu0 %v1187, 127
      %v1268 = vpop.permute.xlu0 %1267
      %1269 = vrot.lane.b32.xlu0 %v1188, 127
      %v1270 = vpop.permute.xlu0 %1269
      %1271 = vrot.lane.b32.xlu0 %v1189, 127
      %v1272 = vpop.permute.xlu0 %1271
      %1273 = vrot.lane.b32.xlu0 %v1190, 127
      %v1274 = vpop.permute.xlu0 %1273
      %1275 = vrot.lane.b32.xlu0 %v1191, 127
      %v1276 = vpop.permute.xlu0 %1275
      %1277 = vrot.lane.b32.xlu0 %v1192, 127
      %v1278 = vpop.permute.xlu0 %1277
      %1279 = vrot.lane.b32.xlu0 %v1193, 127
      %v1280 = vpop.permute.xlu0 %1279
      %1281 = vrot.lane.b32.xlu0 %v1194, 127
      %v1282 = vpop.permute.xlu0 %1281
      %1283 = vrot.lane.b32.xlu0 %v1195, 127
      %v1284 = vpop.permute.xlu0 %1283
      %1285 = vrot.lane.b32.xlu0 %v1196, 127
      %v1286 = vpop.permute.xlu0 %1285
      %1287 = vrot.lane.b32.xlu0 %v1197, 127
      %v1288 = vpop.permute.xlu0 %1287
      %1289 = vrot.lane.b32.xlu0 %v1198, 127
      %v1290 = vpop.permute.xlu0 %1289
      %1291 = vrot.lane.b32.xlu0 %v1199, 127
      %v1292 = vpop.permute.xlu0 %1291
      %1293 = vrot.lane.b32.xlu0 %v1200, 127
      %v1294 = vpop.permute.xlu0 %1293
      %1295 = vrot.lane.b32.xlu0 %v1201, 127
      %v1296 = vpop.permute.xlu0 %1295
      %1297 = vrot.lane.b32.xlu0 %v1202, 127
      %v1298 = vpop.permute.xlu0 %1297
      %v1331 = vadd.f32 %v1136, %v1236
      %v1332 = vadd.f32 %v1137, %v1238
      %v1333 = vadd.f32 %v1138, %v1240
      %v1334 = vadd.f32 %v1139, %v1242
      %v1335 = vadd.f32 %v1140, %v1244
      %v1336 = vadd.f32 %v1141, %v1246
      %v1337 = vadd.f32 %v1142, %v1248
      %v1338 = vadd.f32 %v1143, %v1250
      %v1339 = vadd.f32 %v1144, %v1252
      %v1340 = vadd.f32 %v1145, %v1254
      %v1341 = vadd.f32 %v1146, %v1256
      %v1342 = vadd.f32 %v1147, %v1258
      %v1343 = vadd.f32 %v1148, %v1260
      %v1344 = vadd.f32 %v1149, %v1262
      %v1345 = vadd.f32 %v1150, %v1264
      %v1346 = vadd.f32 %v1151, %v1266
      %v1347 = vadd.f32 %v1152, %v1268
      %v1348 = vadd.f32 %v1153, %v1270
      %v1349 = vadd.f32 %v1154, %v1272
      %v1350 = vadd.f32 %v1155, %v1274
      %v1351 = vadd.f32 %v1156, %v1276
      %v1352 = vadd.f32 %v1157, %v1278
      %v1353 = vadd.f32 %v1158, %v1280
      %v1354 = vadd.f32 %v1159, %v1282
      %v1355 = vadd.f32 %v1160, %v1284
      %v1356 = vadd.f32 %v1161, %v1286
      %v1357 = vadd.f32 %v1162, %v1288
      %v1358 = vadd.f32 %v1163, %v1290
      %v1359 = vadd.f32 %v1164, %v1292
      %v1360 = vadd.f32 %v1165, %v1294
      %v1361 = vadd.f32 %v1166, %v1296
      %v1362 = vadd.f32 %v1167, %v1298
      %s1363 = sadd.s32 %s91, 8
      %s1364 = sld [smem:[#allocation4 + %s1363]]
      %v1365 = vstv %s1364
      %v1366 = vmul.f32 %v1365, %v1071
      %v1367 = vmul.f32 %v1365, %v1072
      %v1368 = vmul.f32 %v1365, %v1073
      %v1369 = vmul.f32 %v1365, %v1074
      %v1370 = vmul.f32 %v1365, %v1075
      %v1371 = vmul.f32 %v1365, %v1076
      %v1372 = vmul.f32 %v1365, %v1077
      %v1373 = vmul.f32 %v1365, %v1078
      %v1374 = vmul.f32 %v1365, %v1079
      %v1375 = vmul.f32 %v1365, %v1080
      %v1376 = vmul.f32 %v1365, %v1081
      %v1377 = vmul.f32 %v1365, %v1082
      %v1378 = vmul.f32 %v1365, %v1083
      %v1379 = vmul.f32 %v1365, %v1084
      %v1380 = vmul.f32 %v1365, %v1085
      %v1381 = vmul.f32 %v1365, %v1086
      %v1382 = vmul.f32 %v1365, %v1087
      %v1383 = vmul.f32 %v1365, %v1088
      %v1384 = vmul.f32 %v1365, %v1089
      %v1385 = vmul.f32 %v1365, %v1090
      %v1386 = vmul.f32 %v1365, %v1091
      %v1387 = vmul.f32 %v1365, %v1092
      %v1388 = vmul.f32 %v1365, %v1093
      %v1389 = vmul.f32 %v1365, %v1094
      %v1390 = vmul.f32 %v1365, %v1095
      %v1391 = vmul.f32 %v1365, %v1096
      %v1392 = vmul.f32 %v1365, %v1097
      %v1393 = vmul.f32 %v1365, %v1098
      %v1394 = vmul.f32 %v1365, %v1099
      %v1395 = vmul.f32 %v1365, %v1100
      %v1396 = vmul.f32 %v1365, %v1101
      %v1397 = vmul.f32 %v1365, %v1102
      %1430 = vrot.lane.b32.xlu0 %v1366, 126
      %v1431 = vpop.permute.xlu0 %1430
      %1432 = vrot.lane.b32.xlu0 %v1367, 126
      %v1433 = vpop.permute.xlu0 %1432
      %1434 = vrot.lane.b32.xlu0 %v1368, 126
      %v1435 = vpop.permute.xlu0 %1434
      %1436 = vrot.lane.b32.xlu0 %v1369, 126
      %v1437 = vpop.permute.xlu0 %1436
      %1438 = vrot.lane.b32.xlu0 %v1370, 126
      %v1439 = vpop.permute.xlu0 %1438
      %1440 = vrot.lane.b32.xlu0 %v1371, 126
      %v1441 = vpop.permute.xlu0 %1440
      %1442 = vrot.lane.b32.xlu0 %v1372, 126
      %v1443 = vpop.permute.xlu0 %1442
      %1444 = vrot.lane.b32.xlu0 %v1373, 126
      %v1445 = vpop.permute.xlu0 %1444
      %1446 = vrot.lane.b32.xlu0 %v1374, 126
      %v1447 = vpop.permute.xlu0 %1446
      %1448 = vrot.lane.b32.xlu0 %v1375, 126
      %v1449 = vpop.permute.xlu0 %1448
      %1450 = vrot.lane.b32.xlu0 %v1376, 126
      %v1451 = vpop.permute.xlu0 %1450
      %1452 = vrot.lane.b32.xlu0 %v1377, 126
      %v1453 = vpop.permute.xlu0 %1452
      %1454 = vrot.lane.b32.xlu0 %v1378, 126
      %v1455 = vpop.permute.xlu0 %1454
      %1456 = vrot.lane.b32.xlu0 %v1379, 126
      %v1457 = vpop.permute.xlu0 %1456
      %1458 = vrot.lane.b32.xlu0 %v1380, 126
      %v1459 = vpop.permute.xlu0 %1458
      %1460 = vrot.lane.b32.xlu0 %v1381, 126
      %v1461 = vpop.permute.xlu0 %1460
      %1462 = vrot.lane.b32.xlu0 %v1382, 126
      %v1463 = vpop.permute.xlu0 %1462
      %1464 = vrot.lane.b32.xlu0 %v1383, 126
      %v1465 = vpop.permute.xlu0 %1464
      %1466 = vrot.lane.b32.xlu0 %v1384, 126
      %v1467 = vpop.permute.xlu0 %1466
      %1468 = vrot.lane.b32.xlu0 %v1385, 126
      %v1469 = vpop.permute.xlu0 %1468
      %1470 = vrot.lane.b32.xlu0 %v1386, 126
      %v1471 = vpop.permute.xlu0 %1470
      %1472 = vrot.lane.b32.xlu0 %v1387, 126
      %v1473 = vpop.permute.xlu0 %1472
      %1474 = vrot.lane.b32.xlu0 %v1388, 126
      %v1475 = vpop.permute.xlu0 %1474
      %1476 = vrot.lane.b32.xlu0 %v1389, 126
      %v1477 = vpop.permute.xlu0 %1476
      %1478 = vrot.lane.b32.xlu0 %v1390, 126
      %v1479 = vpop.permute.xlu0 %1478
      %1480 = vrot.lane.b32.xlu0 %v1391, 126
      %v1481 = vpop.permute.xlu0 %1480
      %1482 = vrot.lane.b32.xlu0 %v1392, 126
      %v1483 = vpop.permute.xlu0 %1482
      %1484 = vrot.lane.b32.xlu0 %v1393, 126
      %v1485 = vpop.permute.xlu0 %1484
      %1486 = vrot.lane.b32.xlu0 %v1394, 126
      %v1487 = vpop.permute.xlu0 %1486
      %1488 = vrot.lane.b32.xlu0 %v1395, 126
      %v1489 = vpop.permute.xlu0 %1488
      %1490 = vrot.lane.b32.xlu0 %v1396, 126
      %v1491 = vpop.permute.xlu0 %1490
      %1492 = vrot.lane.b32.xlu0 %v1397, 126
      %v1493 = vpop.permute.xlu0 %1492
      %v1526 = vadd.f32 %v1331, %v1431
      %v1527 = vadd.f32 %v1332, %v1433
      %v1528 = vadd.f32 %v1333, %v1435
      %v1529 = vadd.f32 %v1334, %v1437
      %v1530 = vadd.f32 %v1335, %v1439
      %v1531 = vadd.f32 %v1336, %v1441
      %v1532 = vadd.f32 %v1337, %v1443
      %v1533 = vadd.f32 %v1338, %v1445
      %v1534 = vadd.f32 %v1339, %v1447
      %v1535 = vadd.f32 %v1340, %v1449
      %v1536 = vadd.f32 %v1341, %v1451
      %v1537 = vadd.f32 %v1342, %v1453
      %v1538 = vadd.f32 %v1343, %v1455
      %v1539 = vadd.f32 %v1344, %v1457
      %v1540 = vadd.f32 %v1345, %v1459
      %v1541 = vadd.f32 %v1346, %v1461
      %v1542 = vadd.f32 %v1347, %v1463
      %v1543 = vadd.f32 %v1348, %v1465
      %v1544 = vadd.f32 %v1349, %v1467
      %v1545 = vadd.f32 %v1350, %v1469
      %v1546 = vadd.f32 %v1351, %v1471
      %v1547 = vadd.f32 %v1352, %v1473
      %v1548 = vadd.f32 %v1353, %v1475
      %v1549 = vadd.f32 %v1354, %v1477
      %v1550 = vadd.f32 %v1355, %v1479
      %v1551 = vadd.f32 %v1356, %v1481
      %v1552 = vadd.f32 %v1357, %v1483
      %v1553 = vadd.f32 %v1358, %v1485
      %v1554 = vadd.f32 %v1359, %v1487
      %v1555 = vadd.f32 %v1360, %v1489
      %v1556 = vadd.f32 %v1361, %v1491
      %v1557 = vadd.f32 %v1362, %v1493
      %v1558 = vmax.f32 %v1526, 0.0
      %v1559 = vmax.f32 %v1527, 0.0
      %v1560 = vmax.f32 %v1528, 0.0
      %v1561 = vmax.f32 %v1529, 0.0
      %v1562 = vmax.f32 %v1530, 0.0
      %v1563 = vmax.f32 %v1531, 0.0
      %v1564 = vmax.f32 %v1532, 0.0
      %v1565 = vmax.f32 %v1533, 0.0
      %v1566 = vmax.f32 %v1534, 0.0
      %v1567 = vmax.f32 %v1535, 0.0
      %v1568 = vmax.f32 %v1536, 0.0
      %v1569 = vmax.f32 %v1537, 0.0
      %v1570 = vmax.f32 %v1538, 0.0
      %v1571 = vmax.f32 %v1539, 0.0
      %v1572 = vmax.f32 %v1540, 0.0
      %v1573 = vmax.f32 %v1541, 0.0
      %v1574 = vmax.f32 %v1542, 0.0
      %v1575 = vmax.f32 %v1543, 0.0
      %v1576 = vmax.f32 %v1544, 0.0
      %v1577 = vmax.f32 %v1545, 0.0
      %v1578 = vmax.f32 %v1546, 0.0
      %v1579 = vmax.f32 %v1547, 0.0
      %v1580 = vmax.f32 %v1548, 0.0
      %v1581 = vmax.f32 %v1549, 0.0
      %v1582 = vmax.f32 %v1550, 0.0
      %v1583 = vmax.f32 %v1551, 0.0
      %v1584 = vmax.f32 %v1552, 0.0
      %v1585 = vmax.f32 %v1553, 0.0
      %v1586 = vmax.f32 %v1554, 0.0
      %v1587 = vmax.f32 %v1555, 0.0
      %v1588 = vmax.f32 %v1556, 0.0
      %v1589 = vmax.f32 %v1557, 0.0
      %s1590 = smul.u32 %s84, 256
      %s1591 = scalar_lea.vmem [#allocation2], %s1590
      %vm1592 = vcmask 211968
      %1593 = vst.msk [vmem:[%s1591] sm:$0xff] %vm1592, %v1558
      %1594 = vst.msk [vmem:[%s1591 + $0x8] sm:$0xff] %vm1592, %v1559
      %1595 = vst.msk [vmem:[%s1591 + $0x10] sm:$0xff] %vm1592, %v1560
      %vm1596 = vcmask 205824
      %1597 = vst.msk [vmem:[%s1591 + $0x18] sm:$0x3] %vm1596, %v1561
      %1598 = vst.msk [vmem:[%s1591 + $0x20] sm:$0xff] %vm1592, %v1562
      %1599 = vst.msk [vmem:[%s1591 + $0x28] sm:$0xff] %vm1592, %v1563
      %1600 = vst.msk [vmem:[%s1591 + $0x30] sm:$0xff] %vm1592, %v1564
      %1601 = vst.msk [vmem:[%s1591 + $0x38] sm:$0x3] %vm1596, %v1565
      %1602 = vst.msk [vmem:[%s1591 + $0x40] sm:$0xff] %vm1592, %v1566
      %1603 = vst.msk [vmem:[%s1591 + $0x48] sm:$0xff] %vm1592, %v1567
      %1604 = vst.msk [vmem:[%s1591 + $0x50] sm:$0xff] %vm1592, %v1568
      %1605 = vst.msk [vmem:[%s1591 + $0x58] sm:$0x3] %vm1596, %v1569
      %1606 = vst.msk [vmem:[%s1591 + $0x60] sm:$0xff] %vm1592, %v1570
      %1607 = vst.msk [vmem:[%s1591 + $0x68] sm:$0xff] %vm1592, %v1571
      %1608 = vst.msk [vmem:[%s1591 + $0x70] sm:$0xff] %vm1592, %v1572
      %1609 = vst.msk [vmem:[%s1591 + $0x78] sm:$0x3] %vm1596, %v1573
      %1610 = vst.msk [vmem:[%s1591 + $0x80] sm:$0xff] %vm1592, %v1574
      %1611 = vst.msk [vmem:[%s1591 + $0x88] sm:$0xff] %vm1592, %v1575
      %1612 = vst.msk [vmem:[%s1591 + $0x90] sm:$0xff] %vm1592, %v1576
      %1613 = vst.msk [vmem:[%s1591 + $0x98] sm:$0x3] %vm1596, %v1577
      %1614 = vst.msk [vmem:[%s1591 + $0xa0] sm:$0xff] %vm1592, %v1578
      %1615 = vst.msk [vmem:[%s1591 + $0xa8] sm:$0xff] %vm1592, %v1579
      %1616 = vst.msk [vmem:[%s1591 + $0xb0] sm:$0xff] %vm1592, %v1580
      %1617 = vst.msk [vmem:[%s1591 + $0xb8] sm:$0x3] %vm1596, %v1581
      %1618 = vst.msk [vmem:[%s1591 + $0xc0] sm:$0xff] %vm1592, %v1582
      %1619 = vst.msk [vmem:[%s1591 + $0xc8] sm:$0xff] %vm1592, %v1583
      %1620 = vst.msk [vmem:[%s1591 + $0xd0] sm:$0xff] %vm1592, %v1584
      %1621 = vst.msk [vmem:[%s1591 + $0xd8] sm:$0x3] %vm1596, %v1585
      %1622 = vst.msk [vmem:[%s1591 + $0xe0] sm:$0xff] %vm1592, %v1586
      %1623 = vst.msk [vmem:[%s1591 + $0xe8] sm:$0xff] %vm1592, %v1587
      %1624 = vst.msk [vmem:[%s1591 + $0xf0] sm:$0xff] %vm1592, %v1588
      %1625 = vst.msk [vmem:[%s1591 + $0xf8] sm:$0x3] %vm1596, %v1589
    $region58: #{conv_nn_forward.1} parent=1 // loop_footer
      %s88 = sadd.s32 1, %s84
    $region59: #{conv_nn_forward.1} parent=1 // loop_footer_branch
      %83 = sbr.rel target = $region55
    $region60: #{conv_nn_forward.1} parent=1 // loop_exit
      _
    loop: start=0, step=1, limit=10
    $region61: #{conv_nn_forward.1} parent=1 // loop_pre_header
      _
    $region62: #{conv_nn_forward.1} parent=1 // loop_header
      %s1627 = sphi 0, %s1631
      %p1628 = scmp.ge.s32.totalorder %s1627, 10
    $region63: #{conv_nn_forward.1} parent=1 // loop_header_branch
      %1630 = sbr.rel (%p1628) target = $region67
    $region64: #{conv_nn_forward.1} parent=1 // loop_body
      %s1632 = sld [smem:[#allocation9 + %s1627]]
      %v1633 = vstv %s1632
      %s1634 = smul.u32 %s1627, 128
      %s1635 = sld [smem:[#allocation8 + %s1634]]
      %v1636 = vld [vmem:[#allocation2] sm:$0xff]
      %v1637 = vld [vmem:[#allocation2 + $0x8] sm:$0xff]
      %v1638 = vld [vmem:[#allocation2 + $0x10] sm:$0xff]
      %v1639 = vld [vmem:[#allocation2 + $0x20] sm:$0xff]
      %v1640 = vld [vmem:[#allocation2 + $0x28] sm:$0xff]
      %v1641 = vld [vmem:[#allocation2 + $0x30] sm:$0xff]
      %v1642 = vld [vmem:[#allocation2 + $0x40] sm:$0xff]
      %v1643 = vld [vmem:[#allocation2 + $0x48] sm:$0xff]
      %v1644 = vld [vmem:[#allocation2 + $0x50] sm:$0xff]
      %v1645 = vld [vmem:[#allocation2 + $0x60] sm:$0xff]
      %v1646 = vld [vmem:[#allocation2 + $0x68] sm:$0xff]
      %v1647 = vld [vmem:[#allocation2 + $0x70] sm:$0xff]
      %v1648 = vld [vmem:[#allocation2 + $0x80] sm:$0xff]
      %v1649 = vld [vmem:[#allocation2 + $0x88] sm:$0xff]
      %v1650 = vld [vmem:[#allocation2 + $0x90] sm:$0xff]
      %v1651 = vld [vmem:[#allocation2 + $0xa0] sm:$0xff]
      %v1652 = vld [vmem:[#allocation2 + $0xa8] sm:$0xff]
      %v1653 = vld [vmem:[#allocation2 + $0xb0] sm:$0xff]
      %v1654 = vld [vmem:[#allocation2 + $0xc0] sm:$0xff]
      %v1655 = vld [vmem:[#allocation2 + $0xc8] sm:$0xff]
      %v1656 = vld [vmem:[#allocation2 + $0xd0] sm:$0xff]
      %v1657 = vld [vmem:[#allocation2 + $0xe0] sm:$0xff]
      %v1658 = vld [vmem:[#allocation2 + $0xe8] sm:$0xff]
      %v1659 = vld [vmem:[#allocation2 + $0xf0] sm:$0xff]
      %v1660 = vstv %s1635
      %v1661 = vmul.f32 %v1660, %v1636
      %v1662 = vmul.f32 %v1660, %v1637
      %v1663 = vmul.f32 %v1660, %v1638
      %v1664 = vmul.f32 %v1660, %v1639
      %v1665 = vmul.f32 %v1660, %v1640
      %v1666 = vmul.f32 %v1660, %v1641
      %v1667 = vmul.f32 %v1660, %v1642
      %v1668 = vmul.f32 %v1660, %v1643
      %v1669 = vmul.f32 %v1660, %v1644
      %v1670 = vmul.f32 %v1660, %v1645
      %v1671 = vmul.f32 %v1660, %v1646
      %v1672 = vmul.f32 %v1660, %v1647
      %v1673 = vmul.f32 %v1660, %v1648
      %v1674 = vmul.f32 %v1660, %v1649
      %v1675 = vmul.f32 %v1660, %v1650
      %v1676 = vmul.f32 %v1660, %v1651
      %v1677 = vmul.f32 %v1660, %v1652
      %v1678 = vmul.f32 %v1660, %v1653
      %v1679 = vmul.f32 %v1660, %v1654
      %v1680 = vmul.f32 %v1660, %v1655
      %v1681 = vmul.f32 %v1660, %v1656
      %v1682 = vmul.f32 %v1660, %v1657
      %v1683 = vmul.f32 %v1660, %v1658
      %v1684 = vmul.f32 %v1660, %v1659
      %v1685 = vadd.f32 %v1633, %v1661
      %v1686 = vadd.f32 %v1633, %v1662
      %v1687 = vadd.f32 %v1633, %v1663
      %v1688 = vadd.f32 %v1633, %v1664
      %v1689 = vadd.f32 %v1633, %v1665
      %v1690 = vadd.f32 %v1633, %v1666
      %v1691 = vadd.f32 %v1633, %v1667
      %v1692 = vadd.f32 %v1633, %v1668
      %v1693 = vadd.f32 %v1633, %v1669
      %v1694 = vadd.f32 %v1633, %v1670
      %v1695 = vadd.f32 %v1633, %v1671
      %v1696 = vadd.f32 %v1633, %v1672
      %v1697 = vadd.f32 %v1633, %v1673
      %v1698 = vadd.f32 %v1633, %v1674
      %v1699 = vadd.f32 %v1633, %v1675
      %v1700 = vadd.f32 %v1633, %v1676
      %v1701 = vadd.f32 %v1633, %v1677
      %v1702 = vadd.f32 %v1633, %v1678
      %v1703 = vadd.f32 %v1633, %v1679
      %v1704 = vadd.f32 %v1633, %v1680
      %v1705 = vadd.f32 %v1633, %v1681
      %v1706 = vadd.f32 %v1633, %v1682
      %v1707 = vadd.f32 %v1633, %v1683
      %v1708 = vadd.f32 %v1633, %v1684
      %s1709 = sadd.s32 %s1634, 1
      %s1710 = sld [smem:[#allocation8 + %s1709]]
      %v1711 = vstv %s1710
      %v1712 = vmul.f32 %v1711, %v1636
      %v1713 = vmul.f32 %v1711, %v1637
      %v1714 = vmul.f32 %v1711, %v1638
      %v1715 = vmul.f32 %v1711, %v1639
      %v1716 = vmul.f32 %v1711, %v1640
      %v1717 = vmul.f32 %v1711, %v1641
      %v1718 = vmul.f32 %v1711, %v1642
      %v1719 = vmul.f32 %v1711, %v1643
      %v1720 = vmul.f32 %v1711, %v1644
      %v1721 = vmul.f32 %v1711, %v1645
      %v1722 = vmul.f32 %v1711, %v1646
      %v1723 = vmul.f32 %v1711, %v1647
      %v1724 = vmul.f32 %v1711, %v1648
      %v1725 = vmul.f32 %v1711, %v1649
      %v1726 = vmul.f32 %v1711, %v1650
      %v1727 = vmul.f32 %v1711, %v1651
      %v1728 = vmul.f32 %v1711, %v1652
      %v1729 = vmul.f32 %v1711, %v1653
      %v1730 = vmul.f32 %v1711, %v1654
      %v1731 = vmul.f32 %v1711, %v1655
      %v1732 = vmul.f32 %v1711, %v1656
      %v1733 = vmul.f32 %v1711, %v1657
      %v1734 = vmul.f32 %v1711, %v1658
      %v1735 = vmul.f32 %v1711, %v1659
      %1760 = vrot.lane.b32.xlu0 %v1712, 127
      %v1761 = vpop.permute.xlu0 %1760
      %1762 = vrot.lane.b32.xlu0 %v1713, 127
      %v1763 = vpop.permute.xlu0 %1762
      %1764 = vrot.lane.b32.xlu0 %v1714, 127
      %v1765 = vpop.permute.xlu0 %1764
      %1766 = vrot.lane.b32.xlu0 %v1715, 127
      %v1767 = vpop.permute.xlu0 %1766
      %1768 = vrot.lane.b32.xlu0 %v1716, 127
      %v1769 = vpop.permute.xlu0 %1768
      %1770 = vrot.lane.b32.xlu0 %v1717, 127
      %v1771 = vpop.permute.xlu0 %1770
      %1772 = vrot.lane.b32.xlu0 %v1718, 127
      %v1773 = vpop.permute.xlu0 %1772
      %1774 = vrot.lane.b32.xlu0 %v1719, 127
      %v1775 = vpop.permute.xlu0 %1774
      %1776 = vrot.lane.b32.xlu0 %v1720, 127
      %v1777 = vpop.permute.xlu0 %1776
      %1778 = vrot.lane.b32.xlu0 %v1721, 127
      %v1779 = vpop.permute.xlu0 %1778
      %1780 = vrot.lane.b32.xlu0 %v1722, 127
      %v1781 = vpop.permute.xlu0 %1780
      %1782 = vrot.lane.b32.xlu0 %v1723, 127
      %v1783 = vpop.permute.xlu0 %1782
      %1784 = vrot.lane.b32.xlu0 %v1724, 127
      %v1785 = vpop.permute.xlu0 %1784
      %1786 = vrot.lane.b32.xlu0 %v1725, 127
      %v1787 = vpop.permute.xlu0 %1786
      %1788 = vrot.lane.b32.xlu0 %v1726, 127
      %v1789 = vpop.permute.xlu0 %1788
      %1790 = vrot.lane.b32.xlu0 %v1727, 127
      %v1791 = vpop.permute.xlu0 %1790
      %1792 = vrot.lane.b32.xlu0 %v1728, 127
      %v1793 = vpop.permute.xlu0 %1792
      %1794 = vrot.lane.b32.xlu0 %v1729, 127
      %v1795 = vpop.permute.xlu0 %1794
      %1796 = vrot.lane.b32.xlu0 %v1730, 127
      %v1797 = vpop.permute.xlu0 %1796
      %1798 = vrot.lane.b32.xlu0 %v1731, 127
      %v1799 = vpop.permute.xlu0 %1798
      %1800 = vrot.lane.b32.xlu0 %v1732, 127
      %v1801 = vpop.permute.xlu0 %1800
      %1802 = vrot.lane.b32.xlu0 %v1733, 127
      %v1803 = vpop.permute.xlu0 %1802
      %1804 = vrot.lane.b32.xlu0 %v1734, 127
      %v1805 = vpop.permute.xlu0 %1804
      %1806 = vrot.lane.b32.xlu0 %v1735, 127
      %v1807 = vpop.permute.xlu0 %1806
      %v1832 = vadd.f32 %v1685, %v1761
      %v1833 = vadd.f32 %v1686, %v1763
      %v1834 = vadd.f32 %v1687, %v1765
      %v1835 = vadd.f32 %v1688, %v1767
      %v1836 = vadd.f32 %v1689, %v1769
      %v1837 = vadd.f32 %v1690, %v1771
      %v1838 = vadd.f32 %v1691, %v1773
      %v1839 = vadd.f32 %v1692, %v1775
      %v1840 = vadd.f32 %v1693, %v1777
      %v1841 = vadd.f32 %v1694, %v1779
      %v1842 = vadd.f32 %v1695, %v1781
      %v1843 = vadd.f32 %v1696, %v1783
      %v1844 = vadd.f32 %v1697, %v1785
      %v1845 = vadd.f32 %v1698, %v1787
      %v1846 = vadd.f32 %v1699, %v1789
      %v1847 = vadd.f32 %v1700, %v1791
      %v1848 = vadd.f32 %v1701, %v1793
      %v1849 = vadd.f32 %v1702, %v1795
      %v1850 = vadd.f32 %v1703, %v1797
      %v1851 = vadd.f32 %v1704, %v1799
      %v1852 = vadd.f32 %v1705, %v1801
      %v1853 = vadd.f32 %v1706, %v1803
      %v1854 = vadd.f32 %v1707, %v1805
      %v1855 = vadd.f32 %v1708, %v1807
      %s1856 = sadd.s32 %s1634, 2
      %s1857 = sld [smem:[#allocation8 + %s1856]]
      %v1858 = vstv %s1857
      %v1859 = vmul.f32 %v1858, %v1636
      %v1860 = vmul.f32 %v1858, %v1637
      %v1861 = vmul.f32 %v1858, %v1638
      %v1862 = vmul.f32 %v1858, %v1639
      %v1863 = vmul.f32 %v1858, %v1640
      %v1864 = vmul.f32 %v1858, %v1641
      %v1865 = vmul.f32 %v1858, %v1642
      %v1866 = vmul.f32 %v1858, %v1643
      %v1867 = vmul.f32 %v1858, %v1644
      %v1868 = vmul.f32 %v1858, %v1645
      %v1869 = vmul.f32 %v1858, %v1646
      %v1870 = vmul.f32 %v1858, %v1647
      %v1871 = vmul.f32 %v1858, %v1648
      %v1872 = vmul.f32 %v1858, %v1649
      %v1873 = vmul.f32 %v1858, %v1650
      %v1874 = vmul.f32 %v1858, %v1651
      %v1875 = vmul.f32 %v1858, %v1652
      %v1876 = vmul.f32 %v1858, %v1653
      %v1877 = vmul.f32 %v1858, %v1654
      %v1878 = vmul.f32 %v1858, %v1655
      %v1879 = vmul.f32 %v1858, %v1656
      %v1880 = vmul.f32 %v1858, %v1657
      %v1881 = vmul.f32 %v1858, %v1658
      %v1882 = vmul.f32 %v1858, %v1659
      %1907 = vrot.lane.b32.xlu0 %v1859, 126
      %v1908 = vpop.permute.xlu0 %1907
      %1909 = vrot.lane.b32.xlu0 %v1860, 126
      %v1910 = vpop.permute.xlu0 %1909
      %1911 = vrot.lane.b32.xlu0 %v1861, 126
      %v1912 = vpop.permute.xlu0 %1911
      %1913 = vrot.lane.b32.xlu0 %v1862, 126
      %v1914 = vpop.permute.xlu0 %1913
      %1915 = vrot.lane.b32.xlu0 %v1863, 126
      %v1916 = vpop.permute.xlu0 %1915
      %1917 = vrot.lane.b32.xlu0 %v1864, 126
      %v1918 = vpop.permute.xlu0 %1917
      %1919 = vrot.lane.b32.xlu0 %v1865, 126
      %v1920 = vpop.permute.xlu0 %1919
      %1921 = vrot.lane.b32.xlu0 %v1866, 126
      %v1922 = vpop.permute.xlu0 %1921
      %1923 = vrot.lane.b32.xlu0 %v1867, 126
      %v1924 = vpop.permute.xlu0 %1923
      %1925 = vrot.lane.b32.xlu0 %v1868, 126
      %v1926 = vpop.permute.xlu0 %1925
      %1927 = vrot.lane.b32.xlu0 %v1869, 126
      %v1928 = vpop.permute.xlu0 %1927
      %1929 = vrot.lane.b32.xlu0 %v1870, 126
      %v1930 = vpop.permute.xlu0 %1929
      %1931 = vrot.lane.b32.xlu0 %v1871, 126
      %v1932 = vpop.permute.xlu0 %1931
      %1933 = vrot.lane.b32.xlu0 %v1872, 126
      %v1934 = vpop.permute.xlu0 %1933
      %1935 = vrot.lane.b32.xlu0 %v1873, 126
      %v1936 = vpop.permute.xlu0 %1935
      %1937 = vrot.lane.b32.xlu0 %v1874, 126
      %v1938 = vpop.permute.xlu0 %1937
      %1939 = vrot.lane.b32.xlu0 %v1875, 126
      %v1940 = vpop.permute.xlu0 %1939
      %1941 = vrot.lane.b32.xlu0 %v1876, 126
      %v1942 = vpop.permute.xlu0 %1941
      %1943 = vrot.lane.b32.xlu0 %v1877, 126
      %v1944 = vpop.permute.xlu0 %1943
      %1945 = vrot.lane.b32.xlu0 %v1878, 126
      %v1946 = vpop.permute.xlu0 %1945
      %1947 = vrot.lane.b32.xlu0 %v1879, 126
      %v1948 = vpop.permute.xlu0 %1947
      %1949 = vrot.lane.b32.xlu0 %v1880, 126
      %v1950 = vpop.permute.xlu0 %1949
      %1951 = vrot.lane.b32.xlu0 %v1881, 126
      %v1952 = vpop.permute.xlu0 %1951
      %1953 = vrot.lane.b32.xlu0 %v1882, 126
      %v1954 = vpop.permute.xlu0 %1953
      %v1979 = vadd.f32 %v1832, %v1908
      %v1980 = vadd.f32 %v1833, %v1910
      %v1981 = vadd.f32 %v1834, %v1912
      %v1982 = vadd.f32 %v1835, %v1914
      %v1983 = vadd.f32 %v1836, %v1916
      %v1984 = vadd.f32 %v1837, %v1918
      %v1985 = vadd.f32 %v1838, %v1920
      %v1986 = vadd.f32 %v1839, %v1922
      %v1987 = vadd.f32 %v1840, %v1924
      %v1988 = vadd.f32 %v1841, %v1926
      %v1989 = vadd.f32 %v1842, %v1928
      %v1990 = vadd.f32 %v1843, %v1930
      %v1991 = vadd.f32 %v1844, %v1932
      %v1992 = vadd.f32 %v1845, %v1934
      %v1993 = vadd.f32 %v1846, %v1936
      %v1994 = vadd.f32 %v1847, %v1938
      %v1995 = vadd.f32 %v1848, %v1940
      %v1996 = vadd.f32 %v1849, %v1942
      %v1997 = vadd.f32 %v1850, %v1944
      %v1998 = vadd.f32 %v1851, %v1946
      %v1999 = vadd.f32 %v1852, %v1948
      %v2000 = vadd.f32 %v1853, %v1950
      %v2001 = vadd.f32 %v1854, %v1952
      %v2002 = vadd.f32 %v1855, %v1954
      %s2003 = sadd.s32 %s1634, 3
      %s2004 = sld [smem:[#allocation8 + %s2003]]
      %v2005 = vld [vmem:[#allocation2 + $0x1] sm:$0xff]
      %v2006 = vld [vmem:[#allocation2 + $0x9] sm:$0xff]
      %v2007 = vld [vmem:[#allocation2 + $0x11] sm:$0xff]
      %v2008 = vld [vmem:[#allocation2 + $0x21] sm:$0xff]
      %v2009 = vld [vmem:[#allocation2 + $0x29] sm:$0xff]
      %v2010 = vld [vmem:[#allocation2 + $0x31] sm:$0xff]
      %v2011 = vld [vmem:[#allocation2 + $0x41] sm:$0xff]
      %v2012 = vld [vmem:[#allocation2 + $0x49] sm:$0xff]
      %v2013 = vld [vmem:[#allocation2 + $0x51] sm:$0xff]
      %v2014 = vld [vmem:[#allocation2 + $0x61] sm:$0xff]
      %v2015 = vld [vmem:[#allocation2 + $0x69] sm:$0xff]
      %v2016 = vld [vmem:[#allocation2 + $0x71] sm:$0xff]
      %v2017 = vld [vmem:[#allocation2 + $0x81] sm:$0xff]
      %v2018 = vld [vmem:[#allocation2 + $0x89] sm:$0xff]
      %v2019 = vld [vmem:[#allocation2 + $0x91] sm:$0xff]
      %v2020 = vld [vmem:[#allocation2 + $0xa1] sm:$0xff]
      %v2021 = vld [vmem:[#allocation2 + $0xa9] sm:$0xff]
      %v2022 = vld [vmem:[#allocation2 + $0xb1] sm:$0xff]
      %v2023 = vld [vmem:[#allocation2 + $0xc1] sm:$0xff]
      %v2024 = vld [vmem:[#allocation2 + $0xc9] sm:$0xff]
      %v2025 = vld [vmem:[#allocation2 + $0xd1] sm:$0xff]
      %v2026 = vld [vmem:[#allocation2 + $0xe1] sm:$0xff]
      %v2027 = vld [vmem:[#allocation2 + $0xe9] sm:$0xff]
      %v2028 = vld [vmem:[#allocation2 + $0xf1] sm:$0xff]
      %v2029 = vstv %s2004
      %v2030 = vmul.f32 %v2029, %v2005
      %v2031 = vmul.f32 %v2029, %v2006
      %v2032 = vmul.f32 %v2029, %v2007
      %v2033 = vmul.f32 %v2029, %v2008
      %v2034 = vmul.f32 %v2029, %v2009
      %v2035 = vmul.f32 %v2029, %v2010
      %v2036 = vmul.f32 %v2029, %v2011
      %v2037 = vmul.f32 %v2029, %v2012
      %v2038 = vmul.f32 %v2029, %v2013
      %v2039 = vmul.f32 %v2029, %v2014
      %v2040 = vmul.f32 %v2029, %v2015
      %v2041 = vmul.f32 %v2029, %v2016
      %v2042 = vmul.f32 %v2029, %v2017
      %v2043 = vmul.f32 %v2029, %v2018
      %v2044 = vmul.f32 %v2029, %v2019
      %v2045 = vmul.f32 %v2029, %v2020
      %v2046 = vmul.f32 %v2029, %v2021
      %v2047 = vmul.f32 %v2029, %v2022
      %v2048 = vmul.f32 %v2029, %v2023
      %v2049 = vmul.f32 %v2029, %v2024
      %v2050 = vmul.f32 %v2029, %v2025
      %v2051 = vmul.f32 %v2029, %v2026
      %v2052 = vmul.f32 %v2029, %v2027
      %v2053 = vmul.f32 %v2029, %v2028
      %v2054 = vadd.f32 %v1979, %v2030
      %v2055 = vadd.f32 %v1980, %v2031
      %v2056 = vadd.f32 %v1981, %v2032
      %v2057 = vadd.f32 %v1982, %v2033
      %v2058 = vadd.f32 %v1983, %v2034
      %v2059 = vadd.f32 %v1984, %v2035
      %v2060 = vadd.f32 %v1985, %v2036
      %v2061 = vadd.f32 %v1986, %v2037
      %v2062 = vadd.f32 %v1987, %v2038
      %v2063 = vadd.f32 %v1988, %v2039
      %v2064 = vadd.f32 %v1989, %v2040
      %v2065 = vadd.f32 %v1990, %v2041
      %v2066 = vadd.f32 %v1991, %v2042
      %v2067 = vadd.f32 %v1992, %v2043
      %v2068 = vadd.f32 %v1993, %v2044
      %v2069 = vadd.f32 %v1994, %v2045
      %v2070 = vadd.f32 %v1995, %v2046
      %v2071 = vadd.f32 %v1996, %v2047
      %v2072 = vadd.f32 %v1997, %v2048
      %v2073 = vadd.f32 %v1998, %v2049
      %v2074 = vadd.f32 %v1999, %v2050
      %v2075 = vadd.f32 %v2000, %v2051
      %v2076 = vadd.f32 %v2001, %v2052
      %v2077 = vadd.f32 %v2002, %v2053
      %s2078 = sadd.s32 %s1634, 4
      %s2079 = sld [smem:[#allocation8 + %s2078]]
      %v2080 = vstv %s2079
      %v2081 = vmul.f32 %v2080, %v2005
      %v2082 = vmul.f32 %v2080, %v2006
      %v2083 = vmul.f32 %v2080, %v2007
      %v2084 = vmul.f32 %v2080, %v2008
      %v2085 = vmul.f32 %v2080, %v2009
      %v2086 = vmul.f32 %v2080, %v2010
      %v2087 = vmul.f32 %v2080, %v2011
      %v2088 = vmul.f32 %v2080, %v2012
      %v2089 = vmul.f32 %v2080, %v2013
      %v2090 = vmul.f32 %v2080, %v2014
      %v2091 = vmul.f32 %v2080, %v2015
      %v2092 = vmul.f32 %v2080, %v2016
      %v2093 = vmul.f32 %v2080, %v2017
      %v2094 = vmul.f32 %v2080, %v2018
      %v2095 = vmul.f32 %v2080, %v2019
      %v2096 = vmul.f32 %v2080, %v2020
      %v2097 = vmul.f32 %v2080, %v2021
      %v2098 = vmul.f32 %v2080, %v2022
      %v2099 = vmul.f32 %v2080, %v2023
      %v2100 = vmul.f32 %v2080, %v2024
      %v2101 = vmul.f32 %v2080, %v2025
      %v2102 = vmul.f32 %v2080, %v2026
      %v2103 = vmul.f32 %v2080, %v2027
      %v2104 = vmul.f32 %v2080, %v2028
      %2129 = vrot.lane.b32.xlu0 %v2081, 127
      %v2130 = vpop.permute.xlu0 %2129
      %2131 = vrot.lane.b32.xlu0 %v2082, 127
      %v2132 = vpop.permute.xlu0 %2131
      %2133 = vrot.lane.b32.xlu0 %v2083, 127
      %v2134 = vpop.permute.xlu0 %2133
      %2135 = vrot.lane.b32.xlu0 %v2084, 127
      %v2136 = vpop.permute.xlu0 %2135
      %2137 = vrot.lane.b32.xlu0 %v2085, 127
      %v2138 = vpop.permute.xlu0 %2137
      %2139 = vrot.lane.b32.xlu0 %v2086, 127
      %v2140 = vpop.permute.xlu0 %2139
      %2141 = vrot.lane.b32.xlu0 %v2087, 127
      %v2142 = vpop.permute.xlu0 %2141
      %2143 = vrot.lane.b32.xlu0 %v2088, 127
      %v2144 = vpop.permute.xlu0 %2143
      %2145 = vrot.lane.b32.xlu0 %v2089, 127
      %v2146 = vpop.permute.xlu0 %2145
      %2147 = vrot.lane.b32.xlu0 %v2090, 127
      %v2148 = vpop.permute.xlu0 %2147
      %2149 = vrot.lane.b32.xlu0 %v2091, 127
      %v2150 = vpop.permute.xlu0 %2149
      %2151 = vrot.lane.b32.xlu0 %v2092, 127
      %v2152 = vpop.permute.xlu0 %2151
      %2153 = vrot.lane.b32.xlu0 %v2093, 127
      %v2154 = vpop.permute.xlu0 %2153
      %2155 = vrot.lane.b32.xlu0 %v2094, 127
      %v2156 = vpop.permute.xlu0 %2155
      %2157 = vrot.lane.b32.xlu0 %v2095, 127
      %v2158 = vpop.permute.xlu0 %2157
      %2159 = vrot.lane.b32.xlu0 %v2096, 127
      %v2160 = vpop.permute.xlu0 %2159
      %2161 = vrot.lane.b32.xlu0 %v2097, 127
      %v2162 = vpop.permute.xlu0 %2161
      %2163 = vrot.lane.b32.xlu0 %v2098, 127
      %v2164 = vpop.permute.xlu0 %2163
      %2165 = vrot.lane.b32.xlu0 %v2099, 127
      %v2166 = vpop.permute.xlu0 %2165
      %2167 = vrot.lane.b32.xlu0 %v2100, 127
      %v2168 = vpop.permute.xlu0 %2167
      %2169 = vrot.lane.b32.xlu0 %v2101, 127
      %v2170 = vpop.permute.xlu0 %2169
      %2171 = vrot.lane.b32.xlu0 %v2102, 127
      %v2172 = vpop.permute.xlu0 %2171
      %2173 = vrot.lane.b32.xlu0 %v2103, 127
      %v2174 = vpop.permute.xlu0 %2173
      %2175 = vrot.lane.b32.xlu0 %v2104, 127
      %v2176 = vpop.permute.xlu0 %2175
      %v2201 = vadd.f32 %v2054, %v2130
      %v2202 = vadd.f32 %v2055, %v2132
      %v2203 = vadd.f32 %v2056, %v2134
      %v2204 = vadd.f32 %v2057, %v2136
      %v2205 = vadd.f32 %v2058, %v2138
      %v2206 = vadd.f32 %v2059, %v2140
      %v2207 = vadd.f32 %v2060, %v2142
      %v2208 = vadd.f32 %v2061, %v2144
      %v2209 = vadd.f32 %v2062, %v2146
      %v2210 = vadd.f32 %v2063, %v2148
      %v2211 = vadd.f32 %v2064, %v2150
      %v2212 = vadd.f32 %v2065, %v2152
      %v2213 = vadd.f32 %v2066, %v2154
      %v2214 = vadd.f32 %v2067, %v2156
      %v2215 = vadd.f32 %v2068, %v2158
      %v2216 = vadd.f32 %v2069, %v2160
      %v2217 = vadd.f32 %v2070, %v2162
      %v2218 = vadd.f32 %v2071, %v2164
      %v2219 = vadd.f32 %v2072, %v2166
      %v2220 = vadd.f32 %v2073, %v2168
      %v2221 = vadd.f32 %v2074, %v2170
      %v2222 = vadd.f32 %v2075, %v2172
      %v2223 = vadd.f32 %v2076, %v2174
      %v2224 = vadd.f32 %v2077, %v2176
      %s2225 = sadd.s32 %s1634, 5
      %s2226 = sld [smem:[#allocation8 + %s2225]]
      %v2227 = vstv %s2226
      %v2228 = vmul.f32 %v2227, %v2005
      %v2229 = vmul.f32 %v2227, %v2006
      %v2230 = vmul.f32 %v2227, %v2007
      %v2231 = vmul.f32 %v2227, %v2008
      %v2232 = vmul.f32 %v2227, %v2009
      %v2233 = vmul.f32 %v2227, %v2010
      %v2234 = vmul.f32 %v2227, %v2011
      %v2235 = vmul.f32 %v2227, %v2012
      %v2236 = vmul.f32 %v2227, %v2013
      %v2237 = vmul.f32 %v2227, %v2014
      %v2238 = vmul.f32 %v2227, %v2015
      %v2239 = vmul.f32 %v2227, %v2016
      %v2240 = vmul.f32 %v2227, %v2017
      %v2241 = vmul.f32 %v2227, %v2018
      %v2242 = vmul.f32 %v2227, %v2019
      %v2243 = vmul.f32 %v2227, %v2020
      %v2244 = vmul.f32 %v2227, %v2021
      %v2245 = vmul.f32 %v2227, %v2022
      %v2246 = vmul.f32 %v2227, %v2023
      %v2247 = vmul.f32 %v2227, %v2024
      %v2248 = vmul.f32 %v2227, %v2025
      %v2249 = vmul.f32 %v2227, %v2026
      %v2250 = vmul.f32 %v2227, %v2027
      %v2251 = vmul.f32 %v2227, %v2028
      %2276 = vrot.lane.b32.xlu0 %v2228, 126
      %v2277 = vpop.permute.xlu0 %2276
      %2278 = vrot.lane.b32.xlu0 %v2229, 126
      %v2279 = vpop.permute.xlu0 %2278
      %2280 = vrot.lane.b32.xlu0 %v2230, 126
      %v2281 = vpop.permute.xlu0 %2280
      %2282 = vrot.lane.b32.xlu0 %v2231, 126
      %v2283 = vpop.permute.xlu0 %2282
      %2284 = vrot.lane.b32.xlu0 %v2232, 126
      %v2285 = vpop.permute.xlu0 %2284
      %2286 = vrot.lane.b32.xlu0 %v2233, 126
      %v2287 = vpop.permute.xlu0 %2286
      %2288 = vrot.lane.b32.xlu0 %v2234, 126
      %v2289 = vpop.permute.xlu0 %2288
      %2290 = vrot.lane.b32.xlu0 %v2235, 126
      %v2291 = vpop.permute.xlu0 %2290
      %2292 = vrot.lane.b32.xlu0 %v2236, 126
      %v2293 = vpop.permute.xlu0 %2292
      %2294 = vrot.lane.b32.xlu0 %v2237, 126
      %v2295 = vpop.permute.xlu0 %2294
      %2296 = vrot.lane.b32.xlu0 %v2238, 126
      %v2297 = vpop.permute.xlu0 %2296
      %2298 = vrot.lane.b32.xlu0 %v2239, 126
      %v2299 = vpop.permute.xlu0 %2298
      %2300 = vrot.lane.b32.xlu0 %v2240, 126
      %v2301 = vpop.permute.xlu0 %2300
      %2302 = vrot.lane.b32.xlu0 %v2241, 126
      %v2303 = vpop.permute.xlu0 %2302
      %2304 = vrot.lane.b32.xlu0 %v2242, 126
      %v2305 = vpop.permute.xlu0 %2304
      %2306 = vrot.lane.b32.xlu0 %v2243, 126
      %v2307 = vpop.permute.xlu0 %2306
      %2308 = vrot.lane.b32.xlu0 %v2244, 126
      %v2309 = vpop.permute.xlu0 %2308
      %2310 = vrot.lane.b32.xlu0 %v2245, 126
      %v2311 = vpop.permute.xlu0 %2310
      %2312 = vrot.lane.b32.xlu0 %v2246, 126
      %v2313 = vpop.permute.xlu0 %2312
      %2314 = vrot.lane.b32.xlu0 %v2247, 126
      %v2315 = vpop.permute.xlu0 %2314
      %2316 = vrot.lane.b32.xlu0 %v2248, 126
      %v2317 = vpop.permute.xlu0 %2316
      %2318 = vrot.lane.b32.xlu0 %v2249, 126
      %v2319 = vpop.permute.xlu0 %2318
      %2320 = vrot.lane.b32.xlu0 %v2250, 126
      %v2321 = vpop.permute.xlu0 %2320
      %2322 = vrot.lane.b32.xlu0 %v2251, 126
      %v2323 = vpop.permute.xlu0 %2322
      %v2348 = vadd.f32 %v2201, %v2277
      %v2349 = vadd.f32 %v2202, %v2279
      %v2350 = vadd.f32 %v2203, %v2281
      %v2351 = vadd.f32 %v2204, %v2283
      %v2352 = vadd.f32 %v2205, %v2285
      %v2353 = vadd.f32 %v2206, %v2287
      %v2354 = vadd.f32 %v2207, %v2289
      %v2355 = vadd.f32 %v2208, %v2291
      %v2356 = vadd.f32 %v2209, %v2293
      %v2357 = vadd.f32 %v2210, %v2295
      %v2358 = vadd.f32 %v2211, %v2297
      %v2359 = vadd.f32 %v2212, %v2299
      %v2360 = vadd.f32 %v2213, %v2301
      %v2361 = vadd.f32 %v2214, %v2303
      %v2362 = vadd.f32 %v2215, %v2305
      %v2363 = vadd.f32 %v2216, %v2307
      %v2364 = vadd.f32 %v2217, %v2309
      %v2365 = vadd.f32 %v2218, %v2311
      %v2366 = vadd.f32 %v2219, %v2313
      %v2367 = vadd.f32 %v2220, %v2315
      %v2368 = vadd.f32 %v2221, %v2317
      %v2369 = vadd.f32 %v2222, %v2319
      %v2370 = vadd.f32 %v2223, %v2321
      %v2371 = vadd.f32 %v2224, %v2323
      %s2372 = sadd.s32 %s1634, 6
      %s2373 = sld [smem:[#allocation8 + %s2372]]
      %v2374 = vld [vmem:[#allocation2 + $0x2] sm:$0xff]
      %v2375 = vld [vmem:[#allocation2 + $0xa] sm:$0xff]
      %v2376 = vld [vmem:[#allocation2 + $0x12] sm:$0xff]
      %v2377 = vld [vmem:[#allocation2 + $0x22] sm:$0xff]
      %v2378 = vld [vmem:[#allocation2 + $0x2a] sm:$0xff]
      %v2379 = vld [vmem:[#allocation2 + $0x32] sm:$0xff]
      %v2380 = vld [vmem:[#allocation2 + $0x42] sm:$0xff]
      %v2381 = vld [vmem:[#allocation2 + $0x4a] sm:$0xff]
      %v2382 = vld [vmem:[#allocation2 + $0x52] sm:$0xff]
      %v2383 = vld [vmem:[#allocation2 + $0x62] sm:$0xff]
      %v2384 = vld [vmem:[#allocation2 + $0x6a] sm:$0xff]
      %v2385 = vld [vmem:[#allocation2 + $0x72] sm:$0xff]
      %v2386 = vld [vmem:[#allocation2 + $0x82] sm:$0xff]
      %v2387 = vld [vmem:[#allocation2 + $0x8a] sm:$0xff]
      %v2388 = vld [vmem:[#allocation2 + $0x92] sm:$0xff]
      %v2389 = vld [vmem:[#allocation2 + $0xa2] sm:$0xff]
      %v2390 = vld [vmem:[#allocation2 + $0xaa] sm:$0xff]
      %v2391 = vld [vmem:[#allocation2 + $0xb2] sm:$0xff]
      %v2392 = vld [vmem:[#allocation2 + $0xc2] sm:$0xff]
      %v2393 = vld [vmem:[#allocation2 + $0xca] sm:$0xff]
      %v2394 = vld [vmem:[#allocation2 + $0xd2] sm:$0xff]
      %v2395 = vld [vmem:[#allocation2 + $0xe2] sm:$0xff]
      %v2396 = vld [vmem:[#allocation2 + $0xea] sm:$0xff]
      %v2397 = vld [vmem:[#allocation2 + $0xf2] sm:$0xff]
      %v2398 = vstv %s2373
      %v2399 = vmul.f32 %v2398, %v2374
      %v2400 = vmul.f32 %v2398, %v2375
      %v2401 = vmul.f32 %v2398, %v2376
      %v2402 = vmul.f32 %v2398, %v2377
      %v2403 = vmul.f32 %v2398, %v2378
      %v2404 = vmul.f32 %v2398, %v2379
      %v2405 = vmul.f32 %v2398, %v2380
      %v2406 = vmul.f32 %v2398, %v2381
      %v2407 = vmul.f32 %v2398, %v2382
      %v2408 = vmul.f32 %v2398, %v2383
      %v2409 = vmul.f32 %v2398, %v2384
      %v2410 = vmul.f32 %v2398, %v2385
      %v2411 = vmul.f32 %v2398, %v2386
      %v2412 = vmul.f32 %v2398, %v2387
      %v2413 = vmul.f32 %v2398, %v2388
      %v2414 = vmul.f32 %v2398, %v2389
      %v2415 = vmul.f32 %v2398, %v2390
      %v2416 = vmul.f32 %v2398, %v2391
      %v2417 = vmul.f32 %v2398, %v2392
      %v2418 = vmul.f32 %v2398, %v2393
      %v2419 = vmul.f32 %v2398, %v2394
      %v2420 = vmul.f32 %v2398, %v2395
      %v2421 = vmul.f32 %v2398, %v2396
      %v2422 = vmul.f32 %v2398, %v2397
      %v2423 = vadd.f32 %v2348, %v2399
      %v2424 = vadd.f32 %v2349, %v2400
      %v2425 = vadd.f32 %v2350, %v2401
      %v2426 = vadd.f32 %v2351, %v2402
      %v2427 = vadd.f32 %v2352, %v2403
      %v2428 = vadd.f32 %v2353, %v2404
      %v2429 = vadd.f32 %v2354, %v2405
      %v2430 = vadd.f32 %v2355, %v2406
      %v2431 = vadd.f32 %v2356, %v2407
      %v2432 = vadd.f32 %v2357, %v2408
      %v2433 = vadd.f32 %v2358, %v2409
      %v2434 = vadd.f32 %v2359, %v2410
      %v2435 = vadd.f32 %v2360, %v2411
      %v2436 = vadd.f32 %v2361, %v2412
      %v2437 = vadd.f32 %v2362, %v2413
      %v2438 = vadd.f32 %v2363, %v2414
      %v2439 = vadd.f32 %v2364, %v2415
      %v2440 = vadd.f32 %v2365, %v2416
      %v2441 = vadd.f32 %v2366, %v2417
      %v2442 = vadd.f32 %v2367, %v2418
      %v2443 = vadd.f32 %v2368, %v2419
      %v2444 = vadd.f32 %v2369, %v2420
      %v2445 = vadd.f32 %v2370, %v2421
      %v2446 = vadd.f32 %v2371, %v2422
      %s2447 = sadd.s32 %s1634, 7
      %s2448 = sld [smem:[#allocation8 + %s2447]]
      %v2449 = vstv %s2448
      %v2450 = vmul.f32 %v2449, %v2374
      %v2451 = vmul.f32 %v2449, %v2375
      %v2452 = vmul.f32 %v2449, %v2376
      %v2453 = vmul.f32 %v2449, %v2377
      %v2454 = vmul.f32 %v2449, %v2378
      %v2455 = vmul.f32 %v2449, %v2379
      %v2456 = vmul.f32 %v2449, %v2380
      %v2457 = vmul.f32 %v2449, %v2381
      %v2458 = vmul.f32 %v2449, %v2382
      %v2459 = vmul.f32 %v2449, %v2383
      %v2460 = vmul.f32 %v2449, %v2384
      %v2461 = vmul.f32 %v2449, %v2385
      %v2462 = vmul.f32 %v2449, %v2386
      %v2463 = vmul.f32 %v2449, %v2387
      %v2464 = vmul.f32 %v2449, %v2388
      %v2465 = vmul.f32 %v2449, %v2389
      %v2466 = vmul.f32 %v2449, %v2390
      %v2467 = vmul.f32 %v2449, %v2391
      %v2468 = vmul.f32 %v2449, %v2392
      %v2469 = vmul.f32 %v2449, %v2393
      %v2470 = vmul.f32 %v2449, %v2394
      %v2471 = vmul.f32 %v2449, %v2395
      %v2472 = vmul.f32 %v2449, %v2396
      %v2473 = vmul.f32 %v2449, %v2397
      %2498 = vrot.lane.b32.xlu0 %v2450, 127
      %v2499 = vpop.permute.xlu0 %2498
      %2500 = vrot.lane.b32.xlu0 %v2451, 127
      %v2501 = vpop.permute.xlu0 %2500
      %2502 = vrot.lane.b32.xlu0 %v2452, 127
      %v2503 = vpop.permute.xlu0 %2502
      %2504 = vrot.lane.b32.xlu0 %v2453, 127
      %v2505 = vpop.permute.xlu0 %2504
      %2506 = vrot.lane.b32.xlu0 %v2454, 127
      %v2507 = vpop.permute.xlu0 %2506
      %2508 = vrot.lane.b32.xlu0 %v2455, 127
      %v2509 = vpop.permute.xlu0 %2508
      %2510 = vrot.lane.b32.xlu0 %v2456, 127
      %v2511 = vpop.permute.xlu0 %2510
      %2512 = vrot.lane.b32.xlu0 %v2457, 127
      %v2513 = vpop.permute.xlu0 %2512
      %2514 = vrot.lane.b32.xlu0 %v2458, 127
      %v2515 = vpop.permute.xlu0 %2514
      %2516 = vrot.lane.b32.xlu0 %v2459, 127
      %v2517 = vpop.permute.xlu0 %2516
      %2518 = vrot.lane.b32.xlu0 %v2460, 127
      %v2519 = vpop.permute.xlu0 %2518
      %2520 = vrot.lane.b32.xlu0 %v2461, 127
      %v2521 = vpop.permute.xlu0 %2520
      %2522 = vrot.lane.b32.xlu0 %v2462, 127
      %v2523 = vpop.permute.xlu0 %2522
      %2524 = vrot.lane.b32.xlu0 %v2463, 127
      %v2525 = vpop.permute.xlu0 %2524
      %2526 = vrot.lane.b32.xlu0 %v2464, 127
      %v2527 = vpop.permute.xlu0 %2526
      %2528 = vrot.lane.b32.xlu0 %v2465, 127
      %v2529 = vpop.permute.xlu0 %2528
      %2530 = vrot.lane.b32.xlu0 %v2466, 127
      %v2531 = vpop.permute.xlu0 %2530
      %2532 = vrot.lane.b32.xlu0 %v2467, 127
      %v2533 = vpop.permute.xlu0 %2532
      %2534 = vrot.lane.b32.xlu0 %v2468, 127
      %v2535 = vpop.permute.xlu0 %2534
      %2536 = vrot.lane.b32.xlu0 %v2469, 127
      %v2537 = vpop.permute.xlu0 %2536
      %2538 = vrot.lane.b32.xlu0 %v2470, 127
      %v2539 = vpop.permute.xlu0 %2538
      %2540 = vrot.lane.b32.xlu0 %v2471, 127
      %v2541 = vpop.permute.xlu0 %2540
      %2542 = vrot.lane.b32.xlu0 %v2472, 127
      %v2543 = vpop.permute.xlu0 %2542
      %2544 = vrot.lane.b32.xlu0 %v2473, 127
      %v2545 = vpop.permute.xlu0 %2544
      %v2570 = vadd.f32 %v2423, %v2499
      %v2571 = vadd.f32 %v2424, %v2501
      %v2572 = vadd.f32 %v2425, %v2503
      %v2573 = vadd.f32 %v2426, %v2505
      %v2574 = vadd.f32 %v2427, %v2507
      %v2575 = vadd.f32 %v2428, %v2509
      %v2576 = vadd.f32 %v2429, %v2511
      %v2577 = vadd.f32 %v2430, %v2513
      %v2578 = vadd.f32 %v2431, %v2515
      %v2579 = vadd.f32 %v2432, %v2517
      %v2580 = vadd.f32 %v2433, %v2519
      %v2581 = vadd.f32 %v2434, %v2521
      %v2582 = vadd.f32 %v2435, %v2523
      %v2583 = vadd.f32 %v2436, %v2525
      %v2584 = vadd.f32 %v2437, %v2527
      %v2585 = vadd.f32 %v2438, %v2529
      %v2586 = vadd.f32 %v2439, %v2531
      %v2587 = vadd.f32 %v2440, %v2533
      %v2588 = vadd.f32 %v2441, %v2535
      %v2589 = vadd.f32 %v2442, %v2537
      %v2590 = vadd.f32 %v2443, %v2539
      %v2591 = vadd.f32 %v2444, %v2541
      %v2592 = vadd.f32 %v2445, %v2543
      %v2593 = vadd.f32 %v2446, %v2545
      %s2594 = sadd.s32 %s1634, 8
      %s2595 = sld [smem:[#allocation8 + %s2594]]
      %v2596 = vstv %s2595
      %v2597 = vmul.f32 %v2596, %v2374
      %v2598 = vmul.f32 %v2596, %v2375
      %v2599 = vmul.f32 %v2596, %v2376
      %v2600 = vmul.f32 %v2596, %v2377
      %v2601 = vmul.f32 %v2596, %v2378
      %v2602 = vmul.f32 %v2596, %v2379
      %v2603 = vmul.f32 %v2596, %v2380
      %v2604 = vmul.f32 %v2596, %v2381
      %v2605 = vmul.f32 %v2596, %v2382
      %v2606 = vmul.f32 %v2596, %v2383
      %v2607 = vmul.f32 %v2596, %v2384
      %v2608 = vmul.f32 %v2596, %v2385
      %v2609 = vmul.f32 %v2596, %v2386
      %v2610 = vmul.f32 %v2596, %v2387
      %v2611 = vmul.f32 %v2596, %v2388
      %v2612 = vmul.f32 %v2596, %v2389
      %v2613 = vmul.f32 %v2596, %v2390
      %v2614 = vmul.f32 %v2596, %v2391
      %v2615 = vmul.f32 %v2596, %v2392
      %v2616 = vmul.f32 %v2596, %v2393
      %v2617 = vmul.f32 %v2596, %v2394
      %v2618 = vmul.f32 %v2596, %v2395
      %v2619 = vmul.f32 %v2596, %v2396
      %v2620 = vmul.f32 %v2596, %v2397
      %2645 = vrot.lane.b32.xlu0 %v2597, 126
      %v2646 = vpop.permute.xlu0 %2645
      %2647 = vrot.lane.b32.xlu0 %v2598, 126
      %v2648 = vpop.permute.xlu0 %2647
      %2649 = vrot.lane.b32.xlu0 %v2599, 126
      %v2650 = vpop.permute.xlu0 %2649
      %2651 = vrot.lane.b32.xlu0 %v2600, 126
      %v2652 = vpop.permute.xlu0 %2651
      %2653 = vrot.lane.b32.xlu0 %v2601, 126
      %v2654 = vpop.permute.xlu0 %2653
      %2655 = vrot.lane.b32.xlu0 %v2602, 126
      %v2656 = vpop.permute.xlu0 %2655
      %2657 = vrot.lane.b32.xlu0 %v2603, 126
      %v2658 = vpop.permute.xlu0 %2657
      %2659 = vrot.lane.b32.xlu0 %v2604, 126
      %v2660 = vpop.permute.xlu0 %2659
      %2661 = vrot.lane.b32.xlu0 %v2605, 126
      %v2662 = vpop.permute.xlu0 %2661
      %2663 = vrot.lane.b32.xlu0 %v2606, 126
      %v2664 = vpop.permute.xlu0 %2663
      %2665 = vrot.lane.b32.xlu0 %v2607, 126
      %v2666 = vpop.permute.xlu0 %2665
      %2667 = vrot.lane.b32.xlu0 %v2608, 126
      %v2668 = vpop.permute.xlu0 %2667
      %2669 = vrot.lane.b32.xlu0 %v2609, 126
      %v2670 = vpop.permute.xlu0 %2669
      %2671 = vrot.lane.b32.xlu0 %v2610, 126
      %v2672 = vpop.permute.xlu0 %2671
      %2673 = vrot.lane.b32.xlu0 %v2611, 126
      %v2674 = vpop.permute.xlu0 %2673
      %2675 = vrot.lane.b32.xlu0 %v2612, 126
      %v2676 = vpop.permute.xlu0 %2675
      %2677 = vrot.lane.b32.xlu0 %v2613, 126
      %v2678 = vpop.permute.xlu0 %2677
      %2679 = vrot.lane.b32.xlu0 %v2614, 126
      %v2680 = vpop.permute.xlu0 %2679
      %2681 = vrot.lane.b32.xlu0 %v2615, 126
      %v2682 = vpop.permute.xlu0 %2681
      %2683 = vrot.lane.b32.xlu0 %v2616, 126
      %v2684 = vpop.permute.xlu0 %2683
      %2685 = vrot.lane.b32.xlu0 %v2617, 126
      %v2686 = vpop.permute.xlu0 %2685
      %2687 = vrot.lane.b32.xlu0 %v2618, 126
      %v2688 = vpop.permute.xlu0 %2687
      %2689 = vrot.lane.b32.xlu0 %v2619, 126
      %v2690 = vpop.permute.xlu0 %2689
      %2691 = vrot.lane.b32.xlu0 %v2620, 126
      %v2692 = vpop.permute.xlu0 %2691
      %v2717 = vadd.f32 %v2570, %v2646
      %v2718 = vadd.f32 %v2571, %v2648
      %v2719 = vadd.f32 %v2572, %v2650
      %v2720 = vadd.f32 %v2573, %v2652
      %v2721 = vadd.f32 %v2574, %v2654
      %v2722 = vadd.f32 %v2575, %v2656
      %v2723 = vadd.f32 %v2576, %v2658
      %v2724 = vadd.f32 %v2577, %v2660
      %v2725 = vadd.f32 %v2578, %v2662
      %v2726 = vadd.f32 %v2579, %v2664
      %v2727 = vadd.f32 %v2580, %v2666
      %v2728 = vadd.f32 %v2581, %v2668
      %v2729 = vadd.f32 %v2582, %v2670
      %v2730 = vadd.f32 %v2583, %v2672
      %v2731 = vadd.f32 %v2584, %v2674
      %v2732 = vadd.f32 %v2585, %v2676
      %v2733 = vadd.f32 %v2586, %v2678
      %v2734 = vadd.f32 %v2587, %v2680
      %v2735 = vadd.f32 %v2588, %v2682
      %v2736 = vadd.f32 %v2589, %v2684
      %v2737 = vadd.f32 %v2590, %v2686
      %v2738 = vadd.f32 %v2591, %v2688
      %v2739 = vadd.f32 %v2592, %v2690
      %v2740 = vadd.f32 %v2593, %v2692
      %s2741 = sadd.s32 %s1634, 9
      %s2742 = sld [smem:[#allocation8 + %s2741]]
      %s2743 = scalar_lea.vmem [#allocation2], 256
      %v2744 = vld [vmem:[%s2743] sm:$0xff]
      %v2745 = vld [vmem:[%s2743 + $0x8] sm:$0xff]
      %v2746 = vld [vmem:[%s2743 + $0x10] sm:$0xff]
      %v2747 = vld [vmem:[%s2743 + $0x20] sm:$0xff]
      %v2748 = vld [vmem:[%s2743 + $0x28] sm:$0xff]
      %v2749 = vld [vmem:[%s2743 + $0x30] sm:$0xff]
      %v2750 = vld [vmem:[%s2743 + $0x40] sm:$0xff]
      %v2751 = vld [vmem:[%s2743 + $0x48] sm:$0xff]
      %v2752 = vld [vmem:[%s2743 + $0x50] sm:$0xff]
      %v2753 = vld [vmem:[%s2743 + $0x60] sm:$0xff]
      %v2754 = vld [vmem:[%s2743 + $0x68] sm:$0xff]
      %v2755 = vld [vmem:[%s2743 + $0x70] sm:$0xff]
      %v2756 = vld [vmem:[%s2743 + $0x80] sm:$0xff]
      %v2757 = vld [vmem:[%s2743 + $0x88] sm:$0xff]
      %v2758 = vld [vmem:[%s2743 + $0x90] sm:$0xff]
      %v2759 = vld [vmem:[%s2743 + $0xa0] sm:$0xff]
      %v2760 = vld [vmem:[%s2743 + $0xa8] sm:$0xff]
      %v2761 = vld [vmem:[%s2743 + $0xb0] sm:$0xff]
      %v2762 = vld [vmem:[%s2743 + $0xc0] sm:$0xff]
      %v2763 = vld [vmem:[%s2743 + $0xc8] sm:$0xff]
      %v2764 = vld [vmem:[%s2743 + $0xd0] sm:$0xff]
      %v2765 = vld [vmem:[%s2743 + $0xe0] sm:$0xff]
      %v2766 = vld [vmem:[%s2743 + $0xe8] sm:$0xff]
      %v2767 = vld [vmem:[%s2743 + $0xf0] sm:$0xff]
      %v2768 = vstv %s2742
      %v2769 = vmul.f32 %v2768, %v2744
      %v2770 = vmul.f32 %v2768, %v2745
      %v2771 = vmul.f32 %v2768, %v2746
      %v2772 = vmul.f32 %v2768, %v2747
      %v2773 = vmul.f32 %v2768, %v2748
      %v2774 = vmul.f32 %v2768, %v2749
      %v2775 = vmul.f32 %v2768, %v2750
      %v2776 = vmul.f32 %v2768, %v2751
      %v2777 = vmul.f32 %v2768, %v2752
      %v2778 = vmul.f32 %v2768, %v2753
      %v2779 = vmul.f32 %v2768, %v2754
      %v2780 = vmul.f32 %v2768, %v2755
      %v2781 = vmul.f32 %v2768, %v2756
      %v2782 = vmul.f32 %v2768, %v2757
      %v2783 = vmul.f32 %v2768, %v2758
      %v2784 = vmul.f32 %v2768, %v2759
      %v2785 = vmul.f32 %v2768, %v2760
      %v2786 = vmul.f32 %v2768, %v2761
      %v2787 = vmul.f32 %v2768, %v2762
      %v2788 = vmul.f32 %v2768, %v2763
      %v2789 = vmul.f32 %v2768, %v2764
      %v2790 = vmul.f32 %v2768, %v2765
      %v2791 = vmul.f32 %v2768, %v2766
      %v2792 = vmul.f32 %v2768, %v2767
      %v2793 = vadd.f32 %v2717, %v2769
      %v2794 = vadd.f32 %v2718, %v2770
      %v2795 = vadd.f32 %v2719, %v2771
      %v2796 = vadd.f32 %v2720, %v2772
      %v2797 = vadd.f32 %v2721, %v2773
      %v2798 = vadd.f32 %v2722, %v2774
      %v2799 = vadd.f32 %v2723, %v2775
      %v2800 = vadd.f32 %v2724, %v2776
      %v2801 = vadd.f32 %v2725, %v2777
      %v2802 = vadd.f32 %v2726, %v2778
      %v2803 = vadd.f32 %v2727, %v2779
      %v2804 = vadd.f32 %v2728, %v2780
      %v2805 = vadd.f32 %v2729, %v2781
      %v2806 = vadd.f32 %v2730, %v2782
      %v2807 = vadd.f32 %v2731, %v2783
      %v2808 = vadd.f32 %v2732, %v2784
      %v2809 = vadd.f32 %v2733, %v2785
      %v2810 = vadd.f32 %v2734, %v2786
      %v2811 = vadd.f32 %v2735, %v2787
      %v2812 = vadd.f32 %v2736, %v2788
      %v2813 = vadd.f32 %v2737, %v2789
      %v2814 = vadd.f32 %v2738, %v2790
      %v2815 = vadd.f32 %v2739, %v2791
      %v2816 = vadd.f32 %v2740, %v2792
      %s2817 = sadd.s32 %s1634, 10
      %s2818 = sld [smem:[#allocation8 + %s2817]]
      %v2819 = vstv %s2818
      %v2820 = vmul.f32 %v2819, %v2744
      %v2821 = vmul.f32 %v2819, %v2745
      %v2822 = vmul.f32 %v2819, %v2746
      %v2823 = vmul.f32 %v2819, %v2747
      %v2824 = vmul.f32 %v2819, %v2748
      %v2825 = vmul.f32 %v2819, %v2749
      %v2826 = vmul.f32 %v2819, %v2750
      %v2827 = vmul.f32 %v2819, %v2751
      %v2828 = vmul.f32 %v2819, %v2752
      %v2829 = vmul.f32 %v2819, %v2753
      %v2830 = vmul.f32 %v2819, %v2754
      %v2831 = vmul.f32 %v2819, %v2755
      %v2832 = vmul.f32 %v2819, %v2756
      %v2833 = vmul.f32 %v2819, %v2757
      %v2834 = vmul.f32 %v2819, %v2758
      %v2835 = vmul.f32 %v2819, %v2759
      %v2836 = vmul.f32 %v2819, %v2760
      %v2837 = vmul.f32 %v2819, %v2761
      %v2838 = vmul.f32 %v2819, %v2762
      %v2839 = vmul.f32 %v2819, %v2763
      %v2840 = vmul.f32 %v2819, %v2764
      %v2841 = vmul.f32 %v2819, %v2765
      %v2842 = vmul.f32 %v2819, %v2766
      %v2843 = vmul.f32 %v2819, %v2767
      %2868 = vrot.lane.b32.xlu0 %v2820, 127
      %v2869 = vpop.permute.xlu0 %2868
      %2870 = vrot.lane.b32.xlu0 %v2821, 127
      %v2871 = vpop.permute.xlu0 %2870
      %2872 = vrot.lane.b32.xlu0 %v2822, 127
      %v2873 = vpop.permute.xlu0 %2872
      %2874 = vrot.lane.b32.xlu0 %v2823, 127
      %v2875 = vpop.permute.xlu0 %2874
      %2876 = vrot.lane.b32.xlu0 %v2824, 127
      %v2877 = vpop.permute.xlu0 %2876
      %2878 = vrot.lane.b32.xlu0 %v2825, 127
      %v2879 = vpop.permute.xlu0 %2878
      %2880 = vrot.lane.b32.xlu0 %v2826, 127
      %v2881 = vpop.permute.xlu0 %2880
      %2882 = vrot.lane.b32.xlu0 %v2827, 127
      %v2883 = vpop.permute.xlu0 %2882
      %2884 = vrot.lane.b32.xlu0 %v2828, 127
      %v2885 = vpop.permute.xlu0 %2884
      %2886 = vrot.lane.b32.xlu0 %v2829, 127
      %v2887 = vpop.permute.xlu0 %2886
      %2888 = vrot.lane.b32.xlu0 %v2830, 127
      %v2889 = vpop.permute.xlu0 %2888
      %2890 = vrot.lane.b32.xlu0 %v2831, 127
      %v2891 = vpop.permute.xlu0 %2890
      %2892 = vrot.lane.b32.xlu0 %v2832, 127
      %v2893 = vpop.permute.xlu0 %2892
      %2894 = vrot.lane.b32.xlu0 %v2833, 127
      %v2895 = vpop.permute.xlu0 %2894
      %2896 = vrot.lane.b32.xlu0 %v2834, 127
      %v2897 = vpop.permute.xlu0 %2896
      %2898 = vrot.lane.b32.xlu0 %v2835, 127
      %v2899 = vpop.permute.xlu0 %2898
      %2900 = vrot.lane.b32.xlu0 %v2836, 127
      %v2901 = vpop.permute.xlu0 %2900
      %2902 = vrot.lane.b32.xlu0 %v2837, 127
      %v2903 = vpop.permute.xlu0 %2902
      %2904 = vrot.lane.b32.xlu0 %v2838, 127
      %v2905 = vpop.permute.xlu0 %2904
      %2906 = vrot.lane.b32.xlu0 %v2839, 127
      %v2907 = vpop.permute.xlu0 %2906
      %2908 = vrot.lane.b32.xlu0 %v2840, 127
      %v2909 = vpop.permute.xlu0 %2908
      %2910 = vrot.lane.b32.xlu0 %v2841, 127
      %v2911 = vpop.permute.xlu0 %2910
      %2912 = vrot.lane.b32.xlu0 %v2842, 127
      %v2913 = vpop.permute.xlu0 %2912
      %2914 = vrot.lane.b32.xlu0 %v2843, 127
      %v2915 = vpop.permute.xlu0 %2914
      %v2940 = vadd.f32 %v2793, %v2869
      %v2941 = vadd.f32 %v2794, %v2871
      %v2942 = vadd.f32 %v2795, %v2873
      %v2943 = vadd.f32 %v2796, %v2875
      %v2944 = vadd.f32 %v2797, %v2877
      %v2945 = vadd.f32 %v2798, %v2879
      %v2946 = vadd.f32 %v2799, %v2881
      %v2947 = vadd.f32 %v2800, %v2883
      %v2948 = vadd.f32 %v2801, %v2885
      %v2949 = vadd.f32 %v2802, %v2887
      %v2950 = vadd.f32 %v2803, %v2889
      %v2951 = vadd.f32 %v2804, %v2891
      %v2952 = vadd.f32 %v2805, %v2893
      %v2953 = vadd.f32 %v2806, %v2895
      %v2954 = vadd.f32 %v2807, %v2897
      %v2955 = vadd.f32 %v2808, %v2899
      %v2956 = vadd.f32 %v2809, %v2901
      %v2957 = vadd.f32 %v2810, %v2903
      %v2958 = vadd.f32 %v2811, %v2905
      %v2959 = vadd.f32 %v2812, %v2907
      %v2960 = vadd.f32 %v2813, %v2909
      %v2961 = vadd.f32 %v2814, %v2911
      %v2962 = vadd.f32 %v2815, %v2913
      %v2963 = vadd.f32 %v2816, %v2915
      %s2964 = sadd.s32 %s1634, 11
      %s2965 = sld [smem:[#allocation8 + %s2964]]
      %v2966 = vstv %s2965
      %v2967 = vmul.f32 %v2966, %v2744
      %v2968 = vmul.f32 %v2966, %v2745
      %v2969 = vmul.f32 %v2966, %v2746
      %v2970 = vmul.f32 %v2966, %v2747
      %v2971 = vmul.f32 %v2966, %v2748
      %v2972 = vmul.f32 %v2966, %v2749
      %v2973 = vmul.f32 %v2966, %v2750
      %v2974 = vmul.f32 %v2966, %v2751
      %v2975 = vmul.f32 %v2966, %v2752
      %v2976 = vmul.f32 %v2966, %v2753
      %v2977 = vmul.f32 %v2966, %v2754
      %v2978 = vmul.f32 %v2966, %v2755
      %v2979 = vmul.f32 %v2966, %v2756
      %v2980 = vmul.f32 %v2966, %v2757
      %v2981 = vmul.f32 %v2966, %v2758
      %v2982 = vmul.f32 %v2966, %v2759
      %v2983 = vmul.f32 %v2966, %v2760
      %v2984 = vmul.f32 %v2966, %v2761
      %v2985 = vmul.f32 %v2966, %v2762
      %v2986 = vmul.f32 %v2966, %v2763
      %v2987 = vmul.f32 %v2966, %v2764
      %v2988 = vmul.f32 %v2966, %v2765
      %v2989 = vmul.f32 %v2966, %v2766
      %v2990 = vmul.f32 %v2966, %v2767
      %3015 = vrot.lane.b32.xlu0 %v2967, 126
      %v3016 = vpop.permute.xlu0 %3015
      %3017 = vrot.lane.b32.xlu0 %v2968, 126
      %v3018 = vpop.permute.xlu0 %3017
      %3019 = vrot.lane.b32.xlu0 %v2969, 126
      %v3020 = vpop.permute.xlu0 %3019
      %3021 = vrot.lane.b32.xlu0 %v2970, 126
      %v3022 = vpop.permute.xlu0 %3021
      %3023 = vrot.lane.b32.xlu0 %v2971, 126
      %v3024 = vpop.permute.xlu0 %3023
      %3025 = vrot.lane.b32.xlu0 %v2972, 126
      %v3026 = vpop.permute.xlu0 %3025
      %3027 = vrot.lane.b32.xlu0 %v2973, 126
      %v3028 = vpop.permute.xlu0 %3027
      %3029 = vrot.lane.b32.xlu0 %v2974, 126
      %v3030 = vpop.permute.xlu0 %3029
      %3031 = vrot.lane.b32.xlu0 %v2975, 126
      %v3032 = vpop.permute.xlu0 %3031
      %3033 = vrot.lane.b32.xlu0 %v2976, 126
      %v3034 = vpop.permute.xlu0 %3033
      %3035 = vrot.lane.b32.xlu0 %v2977, 126
      %v3036 = vpop.permute.xlu0 %3035
      %3037 = vrot.lane.b32.xlu0 %v2978, 126
      %v3038 = vpop.permute.xlu0 %3037
      %3039 = vrot.lane.b32.xlu0 %v2979, 126
      %v3040 = vpop.permute.xlu0 %3039
      %3041 = vrot.lane.b32.xlu0 %v2980, 126
      %v3042 = vpop.permute.xlu0 %3041
      %3043 = vrot.lane.b32.xlu0 %v2981, 126
      %v3044 = vpop.permute.xlu0 %3043
      %3045 = vrot.lane.b32.xlu0 %v2982, 126
      %v3046 = vpop.permute.xlu0 %3045
      %3047 = vrot.lane.b32.xlu0 %v2983, 126
      %v3048 = vpop.permute.xlu0 %3047
      %3049 = vrot.lane.b32.xlu0 %v2984, 126
      %v3050 = vpop.permute.xlu0 %3049
      %3051 = vrot.lane.b32.xlu0 %v2985, 126
      %v3052 = vpop.permute.xlu0 %3051
      %3053 = vrot.lane.b32.xlu0 %v2986, 126
      %v3054 = vpop.permute.xlu0 %3053
      %3055 = vrot.lane.b32.xlu0 %v2987, 126
      %v3056 = vpop.permute.xlu0 %3055
      %3057 = vrot.lane.b32.xlu0 %v2988, 126
      %v3058 = vpop.permute.xlu0 %3057
      %3059 = vrot.lane.b32.xlu0 %v2989, 126
      %v3060 = vpop.permute.xlu0 %3059
      %3061 = vrot.lane.b32.xlu0 %v2990, 126
      %v3062 = vpop.permute.xlu0 %3061
      %v3087 = vadd.f32 %v2940, %v3016
      %v3088 = vadd.f32 %v2941, %v3018
      %v3089 = vadd.f32 %v2942, %v3020
      %v3090 = vadd.f32 %v2943, %v3022
      %v3091 = vadd.f32 %v2944, %v3024
      %v3092 = vadd.f32 %v2945, %v3026
      %v3093 = vadd.f32 %v2946, %v3028
      %v3094 = vadd.f32 %v2947, %v3030
      %v3095 = vadd.f32 %v2948, %v3032
      %v3096 = vadd.f32 %v2949, %v3034
      %v3097 = vadd.f32 %v2950, %v3036
      %v3098 = vadd.f32 %v2951, %v3038
      %v3099 = vadd.f32 %v2952, %v3040
      %v3100 = vadd.f32 %v2953, %v3042
      %v3101 = vadd.f32 %v2954, %v3044
      %v3102 = vadd.f32 %v2955, %v3046
      %v3103 = vadd.f32 %v2956, %v3048
      %v3104 = vadd.f32 %v2957, %v3050
      %v3105 = vadd.f32 %v2958, %v3052
      %v3106 = vadd.f32 %v2959, %v3054
      %v3107 = vadd.f32 %v2960, %v3056
      %v3108 = vadd.f32 %v2961, %v3058
      %v3109 = vadd.f32 %v2962, %v3060
      %v3110 = vadd.f32 %v2963, %v3062
      %s3111 = sadd.s32 %s1634, 12
      %s3112 = sld [smem:[#allocation8 + %s3111]]
      %v3113 = vld [vmem:[%s2743 + $0x1] sm:$0xff]
      %v3114 = vld [vmem:[%s2743 + $0x9] sm:$0xff]
      %v3115 = vld [vmem:[%s2743 + $0x11] sm:$0xff]
      %v3116 = vld [vmem:[%s2743 + $0x21] sm:$0xff]
      %v3117 = vld [vmem:[%s2743 + $0x29] sm:$0xff]
      %v3118 = vld [vmem:[%s2743 + $0x31] sm:$0xff]
      %v3119 = vld [vmem:[%s2743 + $0x41] sm:$0xff]
      %v3120 = vld [vmem:[%s2743 + $0x49] sm:$0xff]
      %v3121 = vld [vmem:[%s2743 + $0x51] sm:$0xff]
      %v3122 = vld [vmem:[%s2743 + $0x61] sm:$0xff]
      %v3123 = vld [vmem:[%s2743 + $0x69] sm:$0xff]
      %v3124 = vld [vmem:[%s2743 + $0x71] sm:$0xff]
      %v3125 = vld [vmem:[%s2743 + $0x81] sm:$0xff]
      %v3126 = vld [vmem:[%s2743 + $0x89] sm:$0xff]
      %v3127 = vld [vmem:[%s2743 + $0x91] sm:$0xff]
      %v3128 = vld [vmem:[%s2743 + $0xa1] sm:$0xff]
      %v3129 = vld [vmem:[%s2743 + $0xa9] sm:$0xff]
      %v3130 = vld [vmem:[%s2743 + $0xb1] sm:$0xff]
      %v3131 = vld [vmem:[%s2743 + $0xc1] sm:$0xff]
      %v3132 = vld [vmem:[%s2743 + $0xc9] sm:$0xff]
      %v3133 = vld [vmem:[%s2743 + $0xd1] sm:$0xff]
      %v3134 = vld [vmem:[%s2743 + $0xe1] sm:$0xff]
      %v3135 = vld [vmem:[%s2743 + $0xe9] sm:$0xff]
      %v3136 = vld [vmem:[%s2743 + $0xf1] sm:$0xff]
      %v3137 = vstv %s3112
      %v3138 = vmul.f32 %v3137, %v3113
      %v3139 = vmul.f32 %v3137, %v3114
      %v3140 = vmul.f32 %v3137, %v3115
      %v3141 = vmul.f32 %v3137, %v3116
      %v3142 = vmul.f32 %v3137, %v3117
      %v3143 = vmul.f32 %v3137, %v3118
      %v3144 = vmul.f32 %v3137, %v3119
      %v3145 = vmul.f32 %v3137, %v3120
      %v3146 = vmul.f32 %v3137, %v3121
      %v3147 = vmul.f32 %v3137, %v3122
      %v3148 = vmul.f32 %v3137, %v3123
      %v3149 = vmul.f32 %v3137, %v3124
      %v3150 = vmul.f32 %v3137, %v3125
      %v3151 = vmul.f32 %v3137, %v3126
      %v3152 = vmul.f32 %v3137, %v3127
      %v3153 = vmul.f32 %v3137, %v3128
      %v3154 = vmul.f32 %v3137, %v3129
      %v3155 = vmul.f32 %v3137, %v3130
      %v3156 = vmul.f32 %v3137, %v3131
      %v3157 = vmul.f32 %v3137, %v3132
      %v3158 = vmul.f32 %v3137, %v3133
      %v3159 = vmul.f32 %v3137, %v3134
      %v3160 = vmul.f32 %v3137, %v3135
      %v3161 = vmul.f32 %v3137, %v3136
      %v3162 = vadd.f32 %v3087, %v3138
      %v3163 = vadd.f32 %v3088, %v3139
      %v3164 = vadd.f32 %v3089, %v3140
      %v3165 = vadd.f32 %v3090, %v3141
      %v3166 = vadd.f32 %v3091, %v3142
      %v3167 = vadd.f32 %v3092, %v3143
      %v3168 = vadd.f32 %v3093, %v3144
      %v3169 = vadd.f32 %v3094, %v3145
      %v3170 = vadd.f32 %v3095, %v3146
      %v3171 = vadd.f32 %v3096, %v3147
      %v3172 = vadd.f32 %v3097, %v3148
      %v3173 = vadd.f32 %v3098, %v3149
      %v3174 = vadd.f32 %v3099, %v3150
      %v3175 = vadd.f32 %v3100, %v3151
      %v3176 = vadd.f32 %v3101, %v3152
      %v3177 = vadd.f32 %v3102, %v3153
      %v3178 = vadd.f32 %v3103, %v3154
      %v3179 = vadd.f32 %v3104, %v3155
      %v3180 = vadd.f32 %v3105, %v3156
      %v3181 = vadd.f32 %v3106, %v3157
      %v3182 = vadd.f32 %v3107, %v3158
      %v3183 = vadd.f32 %v3108, %v3159
      %v3184 = vadd.f32 %v3109, %v3160
      %v3185 = vadd.f32 %v3110, %v3161
      %s3186 = sadd.s32 %s1634, 13
      %s3187 = sld [smem:[#allocation8 + %s3186]]
      %v3188 = vstv %s3187
      %v3189 = vmul.f32 %v3188, %v3113
      %v3190 = vmul.f32 %v3188, %v3114
      %v3191 = vmul.f32 %v3188, %v3115
      %v3192 = vmul.f32 %v3188, %v3116
      %v3193 = vmul.f32 %v3188, %v3117
      %v3194 = vmul.f32 %v3188, %v3118
      %v3195 = vmul.f32 %v3188, %v3119
      %v3196 = vmul.f32 %v3188, %v3120
      %v3197 = vmul.f32 %v3188, %v3121
      %v3198 = vmul.f32 %v3188, %v3122
      %v3199 = vmul.f32 %v3188, %v3123
      %v3200 = vmul.f32 %v3188, %v3124
      %v3201 = vmul.f32 %v3188, %v3125
      %v3202 = vmul.f32 %v3188, %v3126
      %v3203 = vmul.f32 %v3188, %v3127
      %v3204 = vmul.f32 %v3188, %v3128
      %v3205 = vmul.f32 %v3188, %v3129
      %v3206 = vmul.f32 %v3188, %v3130
      %v3207 = vmul.f32 %v3188, %v3131
      %v3208 = vmul.f32 %v3188, %v3132
      %v3209 = vmul.f32 %v3188, %v3133
      %v3210 = vmul.f32 %v3188, %v3134
      %v3211 = vmul.f32 %v3188, %v3135
      %v3212 = vmul.f32 %v3188, %v3136
      %3237 = vrot.lane.b32.xlu0 %v3189, 127
      %v3238 = vpop.permute.xlu0 %3237
      %3239 = vrot.lane.b32.xlu0 %v3190, 127
      %v3240 = vpop.permute.xlu0 %3239
      %3241 = vrot.lane.b32.xlu0 %v3191, 127
      %v3242 = vpop.permute.xlu0 %3241
      %3243 = vrot.lane.b32.xlu0 %v3192, 127
      %v3244 = vpop.permute.xlu0 %3243
      %3245 = vrot.lane.b32.xlu0 %v3193, 127
      %v3246 = vpop.permute.xlu0 %3245
      %3247 = vrot.lane.b32.xlu0 %v3194, 127
      %v3248 = vpop.permute.xlu0 %3247
      %3249 = vrot.lane.b32.xlu0 %v3195, 127
      %v3250 = vpop.permute.xlu0 %3249
      %3251 = vrot.lane.b32.xlu0 %v3196, 127
      %v3252 = vpop.permute.xlu0 %3251
      %3253 = vrot.lane.b32.xlu0 %v3197, 127
      %v3254 = vpop.permute.xlu0 %3253
      %3255 = vrot.lane.b32.xlu0 %v3198, 127
      %v3256 = vpop.permute.xlu0 %3255
      %3257 = vrot.lane.b32.xlu0 %v3199, 127
      %v3258 = vpop.permute.xlu0 %3257
      %3259 = vrot.lane.b32.xlu0 %v3200, 127
      %v3260 = vpop.permute.xlu0 %3259
      %3261 = vrot.lane.b32.xlu0 %v3201, 127
      %v3262 = vpop.permute.xlu0 %3261
      %3263 = vrot.lane.b32.xlu0 %v3202, 127
      %v3264 = vpop.permute.xlu0 %3263
      %3265 = vrot.lane.b32.xlu0 %v3203, 127
      %v3266 = vpop.permute.xlu0 %3265
      %3267 = vrot.lane.b32.xlu0 %v3204, 127
      %v3268 = vpop.permute.xlu0 %3267
      %3269 = vrot.lane.b32.xlu0 %v3205, 127
      %v3270 = vpop.permute.xlu0 %3269
      %3271 = vrot.lane.b32.xlu0 %v3206, 127
      %v3272 = vpop.permute.xlu0 %3271
      %3273 = vrot.lane.b32.xlu0 %v3207, 127
      %v3274 = vpop.permute.xlu0 %3273
      %3275 = vrot.lane.b32.xlu0 %v3208, 127
      %v3276 = vpop.permute.xlu0 %3275
      %3277 = vrot.lane.b32.xlu0 %v3209, 127
      %v3278 = vpop.permute.xlu0 %3277
      %3279 = vrot.lane.b32.xlu0 %v3210, 127
      %v3280 = vpop.permute.xlu0 %3279
      %3281 = vrot.lane.b32.xlu0 %v3211, 127
      %v3282 = vpop.permute.xlu0 %3281
      %3283 = vrot.lane.b32.xlu0 %v3212, 127
      %v3284 = vpop.permute.xlu0 %3283
      %v3309 = vadd.f32 %v3162, %v3238
      %v3310 = vadd.f32 %v3163, %v3240
      %v3311 = vadd.f32 %v3164, %v3242
      %v3312 = vadd.f32 %v3165, %v3244
      %v3313 = vadd.f32 %v3166, %v3246
      %v3314 = vadd.f32 %v3167, %v3248
      %v3315 = vadd.f32 %v3168, %v3250
      %v3316 = vadd.f32 %v3169, %v3252
      %v3317 = vadd.f32 %v3170, %v3254
      %v3318 = vadd.f32 %v3171, %v3256
      %v3319 = vadd.f32 %v3172, %v3258
      %v3320 = vadd.f32 %v3173, %v3260
      %v3321 = vadd.f32 %v3174, %v3262
      %v3322 = vadd.f32 %v3175, %v3264
      %v3323 = vadd.f32 %v3176, %v3266
      %v3324 = vadd.f32 %v3177, %v3268
      %v3325 = vadd.f32 %v3178, %v3270
      %v3326 = vadd.f32 %v3179, %v3272
      %v3327 = vadd.f32 %v3180, %v3274
      %v3328 = vadd.f32 %v3181, %v3276
      %v3329 = vadd.f32 %v3182, %v3278
      %v3330 = vadd.f32 %v3183, %v3280
      %v3331 = vadd.f32 %v3184, %v3282
      %v3332 = vadd.f32 %v3185, %v3284
      %s3333 = sadd.s32 %s1634, 14
      %s3334 = sld [smem:[#allocation8 + %s3333]]
      %v3335 = vstv %s3334
      %v3336 = vmul.f32 %v3335, %v3113
      %v3337 = vmul.f32 %v3335, %v3114
      %v3338 = vmul.f32 %v3335, %v3115
      %v3339 = vmul.f32 %v3335, %v3116
      %v3340 = vmul.f32 %v3335, %v3117
      %v3341 = vmul.f32 %v3335, %v3118
      %v3342 = vmul.f32 %v3335, %v3119
      %v3343 = vmul.f32 %v3335, %v3120
      %v3344 = vmul.f32 %v3335, %v3121
      %v3345 = vmul.f32 %v3335, %v3122
      %v3346 = vmul.f32 %v3335, %v3123
      %v3347 = vmul.f32 %v3335, %v3124
      %v3348 = vmul.f32 %v3335, %v3125
      %v3349 = vmul.f32 %v3335, %v3126
      %v3350 = vmul.f32 %v3335, %v3127
      %v3351 = vmul.f32 %v3335, %v3128
      %v3352 = vmul.f32 %v3335, %v3129
      %v3353 = vmul.f32 %v3335, %v3130
      %v3354 = vmul.f32 %v3335, %v3131
      %v3355 = vmul.f32 %v3335, %v3132
      %v3356 = vmul.f32 %v3335, %v3133
      %v3357 = vmul.f32 %v3335, %v3134
      %v3358 = vmul.f32 %v3335, %v3135
      %v3359 = vmul.f32 %v3335, %v3136
      %3384 = vrot.lane.b32.xlu0 %v3336, 126
      %v3385 = vpop.permute.xlu0 %3384
      %3386 = vrot.lane.b32.xlu0 %v3337, 126
      %v3387 = vpop.permute.xlu0 %3386
      %3388 = vrot.lane.b32.xlu0 %v3338, 126
      %v3389 = vpop.permute.xlu0 %3388
      %3390 = vrot.lane.b32.xlu0 %v3339, 126
      %v3391 = vpop.permute.xlu0 %3390
      %3392 = vrot.lane.b32.xlu0 %v3340, 126
      %v3393 = vpop.permute.xlu0 %3392
      %3394 = vrot.lane.b32.xlu0 %v3341, 126
      %v3395 = vpop.permute.xlu0 %3394
      %3396 = vrot.lane.b32.xlu0 %v3342, 126
      %v3397 = vpop.permute.xlu0 %3396
      %3398 = vrot.lane.b32.xlu0 %v3343, 126
      %v3399 = vpop.permute.xlu0 %3398
      %3400 = vrot.lane.b32.xlu0 %v3344, 126
      %v3401 = vpop.permute.xlu0 %3400
      %3402 = vrot.lane.b32.xlu0 %v3345, 126
      %v3403 = vpop.permute.xlu0 %3402
      %3404 = vrot.lane.b32.xlu0 %v3346, 126
      %v3405 = vpop.permute.xlu0 %3404
      %3406 = vrot.lane.b32.xlu0 %v3347, 126
      %v3407 = vpop.permute.xlu0 %3406
      %3408 = vrot.lane.b32.xlu0 %v3348, 126
      %v3409 = vpop.permute.xlu0 %3408
      %3410 = vrot.lane.b32.xlu0 %v3349, 126
      %v3411 = vpop.permute.xlu0 %3410
      %3412 = vrot.lane.b32.xlu0 %v3350, 126
      %v3413 = vpop.permute.xlu0 %3412
      %3414 = vrot.lane.b32.xlu0 %v3351, 126
      %v3415 = vpop.permute.xlu0 %3414
      %3416 = vrot.lane.b32.xlu0 %v3352, 126
      %v3417 = vpop.permute.xlu0 %3416
      %3418 = vrot.lane.b32.xlu0 %v3353, 126
      %v3419 = vpop.permute.xlu0 %3418
      %3420 = vrot.lane.b32.xlu0 %v3354, 126
      %v3421 = vpop.permute.xlu0 %3420
      %3422 = vrot.lane.b32.xlu0 %v3355, 126
      %v3423 = vpop.permute.xlu0 %3422
      %3424 = vrot.lane.b32.xlu0 %v3356, 126
      %v3425 = vpop.permute.xlu0 %3424
      %3426 = vrot.lane.b32.xlu0 %v3357, 126
      %v3427 = vpop.permute.xlu0 %3426
      %3428 = vrot.lane.b32.xlu0 %v3358, 126
      %v3429 = vpop.permute.xlu0 %3428
      %3430 = vrot.lane.b32.xlu0 %v3359, 126
      %v3431 = vpop.permute.xlu0 %3430
      %v3456 = vadd.f32 %v3309, %v3385
      %v3457 = vadd.f32 %v3310, %v3387
      %v3458 = vadd.f32 %v3311, %v3389
      %v3459 = vadd.f32 %v3312, %v3391
      %v3460 = vadd.f32 %v3313, %v3393
      %v3461 = vadd.f32 %v3314, %v3395
      %v3462 = vadd.f32 %v3315, %v3397
      %v3463 = vadd.f32 %v3316, %v3399
      %v3464 = vadd.f32 %v3317, %v3401
      %v3465 = vadd.f32 %v3318, %v3403
      %v3466 = vadd.f32 %v3319, %v3405
      %v3467 = vadd.f32 %v3320, %v3407
      %v3468 = vadd.f32 %v3321, %v3409
      %v3469 = vadd.f32 %v3322, %v3411
      %v3470 = vadd.f32 %v3323, %v3413
      %v3471 = vadd.f32 %v3324, %v3415
      %v3472 = vadd.f32 %v3325, %v3417
      %v3473 = vadd.f32 %v3326, %v3419
      %v3474 = vadd.f32 %v3327, %v3421
      %v3475 = vadd.f32 %v3328, %v3423
      %v3476 = vadd.f32 %v3329, %v3425
      %v3477 = vadd.f32 %v3330, %v3427
      %v3478 = vadd.f32 %v3331, %v3429
      %v3479 = vadd.f32 %v3332, %v3431
      %s3480 = sadd.s32 %s1634, 15
      %s3481 = sld [smem:[#allocation8 + %s3480]]
      %v3482 = vld [vmem:[%s2743 + $0x2] sm:$0xff]
      %v3483 = vld [vmem:[%s2743 + $0xa] sm:$0xff]
      %v3484 = vld [vmem:[%s2743 + $0x12] sm:$0xff]
      %v3485 = vld [vmem:[%s2743 + $0x22] sm:$0xff]
      %v3486 = vld [vmem:[%s2743 + $0x2a] sm:$0xff]
      %v3487 = vld [vmem:[%s2743 + $0x32] sm:$0xff]
      %v3488 = vld [vmem:[%s2743 + $0x42] sm:$0xff]
      %v3489 = vld [vmem:[%s2743 + $0x4a] sm:$0xff]
      %v3490 = vld [vmem:[%s2743 + $0x52] sm:$0xff]
      %v3491 = vld [vmem:[%s2743 + $0x62] sm:$0xff]
      %v3492 = vld [vmem:[%s2743 + $0x6a] sm:$0xff]
      %v3493 = vld [vmem:[%s2743 + $0x72] sm:$0xff]
      %v3494 = vld [vmem:[%s2743 + $0x82] sm:$0xff]
      %v3495 = vld [vmem:[%s2743 + $0x8a] sm:$0xff]
      %v3496 = vld [vmem:[%s2743 + $0x92] sm:$0xff]
      %v3497 = vld [vmem:[%s2743 + $0xa2] sm:$0xff]
      %v3498 = vld [vmem:[%s2743 + $0xaa] sm:$0xff]
      %v3499 = vld [vmem:[%s2743 + $0xb2] sm:$0xff]
      %v3500 = vld [vmem:[%s2743 + $0xc2] sm:$0xff]
      %v3501 = vld [vmem:[%s2743 + $0xca] sm:$0xff]
      %v3502 = vld [vmem:[%s2743 + $0xd2] sm:$0xff]
      %v3503 = vld [vmem:[%s2743 + $0xe2] sm:$0xff]
      %v3504 = vld [vmem:[%s2743 + $0xea] sm:$0xff]
      %v3505 = vld [vmem:[%s2743 + $0xf2] sm:$0xff]
      %v3506 = vstv %s3481
      %v3507 = vmul.f32 %v3506, %v3482
      %v3508 = vmul.f32 %v3506, %v3483
      %v3509 = vmul.f32 %v3506, %v3484
      %v3510 = vmul.f32 %v3506, %v3485
      %v3511 = vmul.f32 %v3506, %v3486
      %v3512 = vmul.f32 %v3506, %v3487
      %v3513 = vmul.f32 %v3506, %v3488
      %v3514 = vmul.f32 %v3506, %v3489
      %v3515 = vmul.f32 %v3506, %v3490
      %v3516 = vmul.f32 %v3506, %v3491
      %v3517 = vmul.f32 %v3506, %v3492
      %v3518 = vmul.f32 %v3506, %v3493
      %v3519 = vmul.f32 %v3506, %v3494
      %v3520 = vmul.f32 %v3506, %v3495
      %v3521 = vmul.f32 %v3506, %v3496
      %v3522 = vmul.f32 %v3506, %v3497
      %v3523 = vmul.f32 %v3506, %v3498
      %v3524 = vmul.f32 %v3506, %v3499
      %v3525 = vmul.f32 %v3506, %v3500
      %v3526 = vmul.f32 %v3506, %v3501
      %v3527 = vmul.f32 %v3506, %v3502
      %v3528 = vmul.f32 %v3506, %v3503
      %v3529 = vmul.f32 %v3506, %v3504
      %v3530 = vmul.f32 %v3506, %v3505
      %v3531 = vadd.f32 %v3456, %v3507
      %v3532 = vadd.f32 %v3457, %v3508
      %v3533 = vadd.f32 %v3458, %v3509
      %v3534 = vadd.f32 %v3459, %v3510
      %v3535 = vadd.f32 %v3460, %v3511
      %v3536 = vadd.f32 %v3461, %v3512
      %v3537 = vadd.f32 %v3462, %v3513
      %v3538 = vadd.f32 %v3463, %v3514
      %v3539 = vadd.f32 %v3464, %v3515
      %v3540 = vadd.f32 %v3465, %v3516
      %v3541 = vadd.f32 %v3466, %v3517
      %v3542 = vadd.f32 %v3467, %v3518
      %v3543 = vadd.f32 %v3468, %v3519
      %v3544 = vadd.f32 %v3469, %v3520
      %v3545 = vadd.f32 %v3470, %v3521
      %v3546 = vadd.f32 %v3471, %v3522
      %v3547 = vadd.f32 %v3472, %v3523
      %v3548 = vadd.f32 %v3473, %v3524
      %v3549 = vadd.f32 %v3474, %v3525
      %v3550 = vadd.f32 %v3475, %v3526
      %v3551 = vadd.f32 %v3476, %v3527
      %v3552 = vadd.f32 %v3477, %v3528
      %v3553 = vadd.f32 %v3478, %v3529
      %v3554 = vadd.f32 %v3479, %v3530
      %s3555 = sadd.s32 %s1634, 16
      %s3556 = sld [smem:[#allocation8 + %s3555]]
      %v3557 = vstv %s3556
      %v3558 = vmul.f32 %v3557, %v3482
      %v3559 = vmul.f32 %v3557, %v3483
      %v3560 = vmul.f32 %v3557, %v3484
      %v3561 = vmul.f32 %v3557, %v3485
      %v3562 = vmul.f32 %v3557, %v3486
      %v3563 = vmul.f32 %v3557, %v3487
      %v3564 = vmul.f32 %v3557, %v3488
      %v3565 = vmul.f32 %v3557, %v3489
      %v3566 = vmul.f32 %v3557, %v3490
      %v3567 = vmul.f32 %v3557, %v3491
      %v3568 = vmul.f32 %v3557, %v3492
      %v3569 = vmul.f32 %v3557, %v3493
      %v3570 = vmul.f32 %v3557, %v3494
      %v3571 = vmul.f32 %v3557, %v3495
      %v3572 = vmul.f32 %v3557, %v3496
      %v3573 = vmul.f32 %v3557, %v3497
      %v3574 = vmul.f32 %v3557, %v3498
      %v3575 = vmul.f32 %v3557, %v3499
      %v3576 = vmul.f32 %v3557, %v3500
      %v3577 = vmul.f32 %v3557, %v3501
      %v3578 = vmul.f32 %v3557, %v3502
      %v3579 = vmul.f32 %v3557, %v3503
      %v3580 = vmul.f32 %v3557, %v3504
      %v3581 = vmul.f32 %v3557, %v3505
      %3606 = vrot.lane.b32.xlu0 %v3558, 127
      %v3607 = vpop.permute.xlu0 %3606
      %3608 = vrot.lane.b32.xlu0 %v3559, 127
      %v3609 = vpop.permute.xlu0 %3608
      %3610 = vrot.lane.b32.xlu0 %v3560, 127
      %v3611 = vpop.permute.xlu0 %3610
      %3612 = vrot.lane.b32.xlu0 %v3561, 127
      %v3613 = vpop.permute.xlu0 %3612
      %3614 = vrot.lane.b32.xlu0 %v3562, 127
      %v3615 = vpop.permute.xlu0 %3614
      %3616 = vrot.lane.b32.xlu0 %v3563, 127
      %v3617 = vpop.permute.xlu0 %3616
      %3618 = vrot.lane.b32.xlu0 %v3564, 127
      %v3619 = vpop.permute.xlu0 %3618
      %3620 = vrot.lane.b32.xlu0 %v3565, 127
      %v3621 = vpop.permute.xlu0 %3620
      %3622 = vrot.lane.b32.xlu0 %v3566, 127
      %v3623 = vpop.permute.xlu0 %3622
      %3624 = vrot.lane.b32.xlu0 %v3567, 127
      %v3625 = vpop.permute.xlu0 %3624
      %3626 = vrot.lane.b32.xlu0 %v3568, 127
      %v3627 = vpop.permute.xlu0 %3626
      %3628 = vrot.lane.b32.xlu0 %v3569, 127
      %v3629 = vpop.permute.xlu0 %3628
      %3630 = vrot.lane.b32.xlu0 %v3570, 127
      %v3631 = vpop.permute.xlu0 %3630
      %3632 = vrot.lane.b32.xlu0 %v3571, 127
      %v3633 = vpop.permute.xlu0 %3632
      %3634 = vrot.lane.b32.xlu0 %v3572, 127
      %v3635 = vpop.permute.xlu0 %3634
      %3636 = vrot.lane.b32.xlu0 %v3573, 127
      %v3637 = vpop.permute.xlu0 %3636
      %3638 = vrot.lane.b32.xlu0 %v3574, 127
      %v3639 = vpop.permute.xlu0 %3638
      %3640 = vrot.lane.b32.xlu0 %v3575, 127
      %v3641 = vpop.permute.xlu0 %3640
      %3642 = vrot.lane.b32.xlu0 %v3576, 127
      %v3643 = vpop.permute.xlu0 %3642
      %3644 = vrot.lane.b32.xlu0 %v3577, 127
      %v3645 = vpop.permute.xlu0 %3644
      %3646 = vrot.lane.b32.xlu0 %v3578, 127
      %v3647 = vpop.permute.xlu0 %3646
      %3648 = vrot.lane.b32.xlu0 %v3579, 127
      %v3649 = vpop.permute.xlu0 %3648
      %3650 = vrot.lane.b32.xlu0 %v3580, 127
      %v3651 = vpop.permute.xlu0 %3650
      %3652 = vrot.lane.b32.xlu0 %v3581, 127
      %v3653 = vpop.permute.xlu0 %3652
      %v3678 = vadd.f32 %v3531, %v3607
      %v3679 = vadd.f32 %v3532, %v3609
      %v3680 = vadd.f32 %v3533, %v3611
      %v3681 = vadd.f32 %v3534, %v3613
      %v3682 = vadd.f32 %v3535, %v3615
      %v3683 = vadd.f32 %v3536, %v3617
      %v3684 = vadd.f32 %v3537, %v3619
      %v3685 = vadd.f32 %v3538, %v3621
      %v3686 = vadd.f32 %v3539, %v3623
      %v3687 = vadd.f32 %v3540, %v3625
      %v3688 = vadd.f32 %v3541, %v3627
      %v3689 = vadd.f32 %v3542, %v3629
      %v3690 = vadd.f32 %v3543, %v3631
      %v3691 = vadd.f32 %v3544, %v3633
      %v3692 = vadd.f32 %v3545, %v3635
      %v3693 = vadd.f32 %v3546, %v3637
      %v3694 = vadd.f32 %v3547, %v3639
      %v3695 = vadd.f32 %v3548, %v3641
      %v3696 = vadd.f32 %v3549, %v3643
      %v3697 = vadd.f32 %v3550, %v3645
      %v3698 = vadd.f32 %v3551, %v3647
      %v3699 = vadd.f32 %v3552, %v3649
      %v3700 = vadd.f32 %v3553, %v3651
      %v3701 = vadd.f32 %v3554, %v3653
      %s3702 = sadd.s32 %s1634, 17
      %s3703 = sld [smem:[#allocation8 + %s3702]]
      %v3704 = vstv %s3703
      %v3705 = vmul.f32 %v3704, %v3482
      %v3706 = vmul.f32 %v3704, %v3483
      %v3707 = vmul.f32 %v3704, %v3484
      %v3708 = vmul.f32 %v3704, %v3485
      %v3709 = vmul.f32 %v3704, %v3486
      %v3710 = vmul.f32 %v3704, %v3487
      %v3711 = vmul.f32 %v3704, %v3488
      %v3712 = vmul.f32 %v3704, %v3489
      %v3713 = vmul.f32 %v3704, %v3490
      %v3714 = vmul.f32 %v3704, %v3491
      %v3715 = vmul.f32 %v3704, %v3492
      %v3716 = vmul.f32 %v3704, %v3493
      %v3717 = vmul.f32 %v3704, %v3494
      %v3718 = vmul.f32 %v3704, %v3495
      %v3719 = vmul.f32 %v3704, %v3496
      %v3720 = vmul.f32 %v3704, %v3497
      %v3721 = vmul.f32 %v3704, %v3498
      %v3722 = vmul.f32 %v3704, %v3499
      %v3723 = vmul.f32 %v3704, %v3500
      %v3724 = vmul.f32 %v3704, %v3501
      %v3725 = vmul.f32 %v3704, %v3502
      %v3726 = vmul.f32 %v3704, %v3503
      %v3727 = vmul.f32 %v3704, %v3504
      %v3728 = vmul.f32 %v3704, %v3505
      %3753 = vrot.lane.b32.xlu0 %v3705, 126
      %v3754 = vpop.permute.xlu0 %3753
      %3755 = vrot.lane.b32.xlu0 %v3706, 126
      %v3756 = vpop.permute.xlu0 %3755
      %3757 = vrot.lane.b32.xlu0 %v3707, 126
      %v3758 = vpop.permute.xlu0 %3757
      %3759 = vrot.lane.b32.xlu0 %v3708, 126
      %v3760 = vpop.permute.xlu0 %3759
      %3761 = vrot.lane.b32.xlu0 %v3709, 126
      %v3762 = vpop.permute.xlu0 %3761
      %3763 = vrot.lane.b32.xlu0 %v3710, 126
      %v3764 = vpop.permute.xlu0 %3763
      %3765 = vrot.lane.b32.xlu0 %v3711, 126
      %v3766 = vpop.permute.xlu0 %3765
      %3767 = vrot.lane.b32.xlu0 %v3712, 126
      %v3768 = vpop.permute.xlu0 %3767
      %3769 = vrot.lane.b32.xlu0 %v3713, 126
      %v3770 = vpop.permute.xlu0 %3769
      %3771 = vrot.lane.b32.xlu0 %v3714, 126
      %v3772 = vpop.permute.xlu0 %3771
      %3773 = vrot.lane.b32.xlu0 %v3715, 126
      %v3774 = vpop.permute.xlu0 %3773
      %3775 = vrot.lane.b32.xlu0 %v3716, 126
      %v3776 = vpop.permute.xlu0 %3775
      %3777 = vrot.lane.b32.xlu0 %v3717, 126
      %v3778 = vpop.permute.xlu0 %3777
      %3779 = vrot.lane.b32.xlu0 %v3718, 126
      %v3780 = vpop.permute.xlu0 %3779
      %3781 = vrot.lane.b32.xlu0 %v3719, 126
      %v3782 = vpop.permute.xlu0 %3781
      %3783 = vrot.lane.b32.xlu0 %v3720, 126
      %v3784 = vpop.permute.xlu0 %3783
      %3785 = vrot.lane.b32.xlu0 %v3721, 126
      %v3786 = vpop.permute.xlu0 %3785
      %3787 = vrot.lane.b32.xlu0 %v3722, 126
      %v3788 = vpop.permute.xlu0 %3787
      %3789 = vrot.lane.b32.xlu0 %v3723, 126
      %v3790 = vpop.permute.xlu0 %3789
      %3791 = vrot.lane.b32.xlu0 %v3724, 126
      %v3792 = vpop.permute.xlu0 %3791
      %3793 = vrot.lane.b32.xlu0 %v3725, 126
      %v3794 = vpop.permute.xlu0 %3793
      %3795 = vrot.lane.b32.xlu0 %v3726, 126
      %v3796 = vpop.permute.xlu0 %3795
      %3797 = vrot.lane.b32.xlu0 %v3727, 126
      %v3798 = vpop.permute.xlu0 %3797
      %3799 = vrot.lane.b32.xlu0 %v3728, 126
      %v3800 = vpop.permute.xlu0 %3799
      %v3825 = vadd.f32 %v3678, %v3754
      %v3826 = vadd.f32 %v3679, %v3756
      %v3827 = vadd.f32 %v3680, %v3758
      %v3828 = vadd.f32 %v3681, %v3760
      %v3829 = vadd.f32 %v3682, %v3762
      %v3830 = vadd.f32 %v3683, %v3764
      %v3831 = vadd.f32 %v3684, %v3766
      %v3832 = vadd.f32 %v3685, %v3768
      %v3833 = vadd.f32 %v3686, %v3770
      %v3834 = vadd.f32 %v3687, %v3772
      %v3835 = vadd.f32 %v3688, %v3774
      %v3836 = vadd.f32 %v3689, %v3776
      %v3837 = vadd.f32 %v3690, %v3778
      %v3838 = vadd.f32 %v3691, %v3780
      %v3839 = vadd.f32 %v3692, %v3782
      %v3840 = vadd.f32 %v3693, %v3784
      %v3841 = vadd.f32 %v3694, %v3786
      %v3842 = vadd.f32 %v3695, %v3788
      %v3843 = vadd.f32 %v3696, %v3790
      %v3844 = vadd.f32 %v3697, %v3792
      %v3845 = vadd.f32 %v3698, %v3794
      %v3846 = vadd.f32 %v3699, %v3796
      %v3847 = vadd.f32 %v3700, %v3798
      %v3848 = vadd.f32 %v3701, %v3800
      %s3849 = sadd.s32 %s1634, 18
      %s3850 = sld [smem:[#allocation8 + %s3849]]
      %s3851 = scalar_lea.vmem [#allocation2], 512
      %v3852 = vld [vmem:[%s3851] sm:$0xff]
      %v3853 = vld [vmem:[%s3851 + $0x8] sm:$0xff]
      %v3854 = vld [vmem:[%s3851 + $0x10] sm:$0xff]
      %v3855 = vld [vmem:[%s3851 + $0x20] sm:$0xff]
      %v3856 = vld [vmem:[%s3851 + $0x28] sm:$0xff]
      %v3857 = vld [vmem:[%s3851 + $0x30] sm:$0xff]
      %v3858 = vld [vmem:[%s3851 + $0x40] sm:$0xff]
      %v3859 = vld [vmem:[%s3851 + $0x48] sm:$0xff]
      %v3860 = vld [vmem:[%s3851 + $0x50] sm:$0xff]
      %v3861 = vld [vmem:[%s3851 + $0x60] sm:$0xff]
      %v3862 = vld [vmem:[%s3851 + $0x68] sm:$0xff]
      %v3863 = vld [vmem:[%s3851 + $0x70] sm:$0xff]
      %v3864 = vld [vmem:[%s3851 + $0x80] sm:$0xff]
      %v3865 = vld [vmem:[%s3851 + $0x88] sm:$0xff]
      %v3866 = vld [vmem:[%s3851 + $0x90] sm:$0xff]
      %v3867 = vld [vmem:[%s3851 + $0xa0] sm:$0xff]
      %v3868 = vld [vmem:[%s3851 + $0xa8] sm:$0xff]
      %v3869 = vld [vmem:[%s3851 + $0xb0] sm:$0xff]
      %v3870 = vld [vmem:[%s3851 + $0xc0] sm:$0xff]
      %v3871 = vld [vmem:[%s3851 + $0xc8] sm:$0xff]
      %v3872 = vld [vmem:[%s3851 + $0xd0] sm:$0xff]
      %v3873 = vld [vmem:[%s3851 + $0xe0] sm:$0xff]
      %v3874 = vld [vmem:[%s3851 + $0xe8] sm:$0xff]
      %v3875 = vld [vmem:[%s3851 + $0xf0] sm:$0xff]
      %v3876 = vstv %s3850
      %v3877 = vmul.f32 %v3876, %v3852
      %v3878 = vmul.f32 %v3876, %v3853
      %v3879 = vmul.f32 %v3876, %v3854
      %v3880 = vmul.f32 %v3876, %v3855
      %v3881 = vmul.f32 %v3876, %v3856
      %v3882 = vmul.f32 %v3876, %v3857
      %v3883 = vmul.f32 %v3876, %v3858
      %v3884 = vmul.f32 %v3876, %v3859
      %v3885 = vmul.f32 %v3876, %v3860
      %v3886 = vmul.f32 %v3876, %v3861
      %v3887 = vmul.f32 %v3876, %v3862
      %v3888 = vmul.f32 %v3876, %v3863
      %v3889 = vmul.f32 %v3876, %v3864
      %v3890 = vmul.f32 %v3876, %v3865
      %v3891 = vmul.f32 %v3876, %v3866
      %v3892 = vmul.f32 %v3876, %v3867
      %v3893 = vmul.f32 %v3876, %v3868
      %v3894 = vmul.f32 %v3876, %v3869
      %v3895 = vmul.f32 %v3876, %v3870
      %v3896 = vmul.f32 %v3876, %v3871
      %v3897 = vmul.f32 %v3876, %v3872
      %v3898 = vmul.f32 %v3876, %v3873
      %v3899 = vmul.f32 %v3876, %v3874
      %v3900 = vmul.f32 %v3876, %v3875
      %v3901 = vadd.f32 %v3825, %v3877
      %v3902 = vadd.f32 %v3826, %v3878
      %v3903 = vadd.f32 %v3827, %v3879
      %v3904 = vadd.f32 %v3828, %v3880
      %v3905 = vadd.f32 %v3829, %v3881
      %v3906 = vadd.f32 %v3830, %v3882
      %v3907 = vadd.f32 %v3831, %v3883
      %v3908 = vadd.f32 %v3832, %v3884
      %v3909 = vadd.f32 %v3833, %v3885
      %v3910 = vadd.f32 %v3834, %v3886
      %v3911 = vadd.f32 %v3835, %v3887
      %v3912 = vadd.f32 %v3836, %v3888
      %v3913 = vadd.f32 %v3837, %v3889
      %v3914 = vadd.f32 %v3838, %v3890
      %v3915 = vadd.f32 %v3839, %v3891
      %v3916 = vadd.f32 %v3840, %v3892
      %v3917 = vadd.f32 %v3841, %v3893
      %v3918 = vadd.f32 %v3842, %v3894
      %v3919 = vadd.f32 %v3843, %v3895
      %v3920 = vadd.f32 %v3844, %v3896
      %v3921 = vadd.f32 %v3845, %v3897
      %v3922 = vadd.f32 %v3846, %v3898
      %v3923 = vadd.f32 %v3847, %v3899
      %v3924 = vadd.f32 %v3848, %v3900
      %s3925 = sadd.s32 %s1634, 19
      %s3926 = sld [smem:[#allocation8 + %s3925]]
      %v3927 = vstv %s3926
      %v3928 = vmul.f32 %v3927, %v3852
      %v3929 = vmul.f32 %v3927, %v3853
      %v3930 = vmul.f32 %v3927, %v3854
      %v3931 = vmul.f32 %v3927, %v3855
      %v3932 = vmul.f32 %v3927, %v3856
      %v3933 = vmul.f32 %v3927, %v3857
      %v3934 = vmul.f32 %v3927, %v3858
      %v3935 = vmul.f32 %v3927, %v3859
      %v3936 = vmul.f32 %v3927, %v3860
      %v3937 = vmul.f32 %v3927, %v3861
      %v3938 = vmul.f32 %v3927, %v3862
      %v3939 = vmul.f32 %v3927, %v3863
      %v3940 = vmul.f32 %v3927, %v3864
      %v3941 = vmul.f32 %v3927, %v3865
      %v3942 = vmul.f32 %v3927, %v3866
      %v3943 = vmul.f32 %v3927, %v3867
      %v3944 = vmul.f32 %v3927, %v3868
      %v3945 = vmul.f32 %v3927, %v3869
      %v3946 = vmul.f32 %v3927, %v3870
      %v3947 = vmul.f32 %v3927, %v3871
      %v3948 = vmul.f32 %v3927, %v3872
      %v3949 = vmul.f32 %v3927, %v3873
      %v3950 = vmul.f32 %v3927, %v3874
      %v3951 = vmul.f32 %v3927, %v3875
      %3976 = vrot.lane.b32.xlu0 %v3928, 127
      %v3977 = vpop.permute.xlu0 %3976
      %3978 = vrot.lane.b32.xlu0 %v3929, 127
      %v3979 = vpop.permute.xlu0 %3978
      %3980 = vrot.lane.b32.xlu0 %v3930, 127
      %v3981 = vpop.permute.xlu0 %3980
      %3982 = vrot.lane.b32.xlu0 %v3931, 127
      %v3983 = vpop.permute.xlu0 %3982
      %3984 = vrot.lane.b32.xlu0 %v3932, 127
      %v3985 = vpop.permute.xlu0 %3984
      %3986 = vrot.lane.b32.xlu0 %v3933, 127
      %v3987 = vpop.permute.xlu0 %3986
      %3988 = vrot.lane.b32.xlu0 %v3934, 127
      %v3989 = vpop.permute.xlu0 %3988
      %3990 = vrot.lane.b32.xlu0 %v3935, 127
      %v3991 = vpop.permute.xlu0 %3990
      %3992 = vrot.lane.b32.xlu0 %v3936, 127
      %v3993 = vpop.permute.xlu0 %3992
      %3994 = vrot.lane.b32.xlu0 %v3937, 127
      %v3995 = vpop.permute.xlu0 %3994
      %3996 = vrot.lane.b32.xlu0 %v3938, 127
      %v3997 = vpop.permute.xlu0 %3996
      %3998 = vrot.lane.b32.xlu0 %v3939, 127
      %v3999 = vpop.permute.xlu0 %3998
      %4000 = vrot.lane.b32.xlu0 %v3940, 127
      %v4001 = vpop.permute.xlu0 %4000
      %4002 = vrot.lane.b32.xlu0 %v3941, 127
      %v4003 = vpop.permute.xlu0 %4002
      %4004 = vrot.lane.b32.xlu0 %v3942, 127
      %v4005 = vpop.permute.xlu0 %4004
      %4006 = vrot.lane.b32.xlu0 %v3943, 127
      %v4007 = vpop.permute.xlu0 %4006
      %4008 = vrot.lane.b32.xlu0 %v3944, 127
      %v4009 = vpop.permute.xlu0 %4008
      %4010 = vrot.lane.b32.xlu0 %v3945, 127
      %v4011 = vpop.permute.xlu0 %4010
      %4012 = vrot.lane.b32.xlu0 %v3946, 127
      %v4013 = vpop.permute.xlu0 %4012
      %4014 = vrot.lane.b32.xlu0 %v3947, 127
      %v4015 = vpop.permute.xlu0 %4014
      %4016 = vrot.lane.b32.xlu0 %v3948, 127
      %v4017 = vpop.permute.xlu0 %4016
      %4018 = vrot.lane.b32.xlu0 %v3949, 127
      %v4019 = vpop.permute.xlu0 %4018
      %4020 = vrot.lane.b32.xlu0 %v3950, 127
      %v4021 = vpop.permute.xlu0 %4020
      %4022 = vrot.lane.b32.xlu0 %v3951, 127
      %v4023 = vpop.permute.xlu0 %4022
      %v4048 = vadd.f32 %v3901, %v3977
      %v4049 = vadd.f32 %v3902, %v3979
      %v4050 = vadd.f32 %v3903, %v3981
      %v4051 = vadd.f32 %v3904, %v3983
      %v4052 = vadd.f32 %v3905, %v3985
      %v4053 = vadd.f32 %v3906, %v3987
      %v4054 = vadd.f32 %v3907, %v3989
      %v4055 = vadd.f32 %v3908, %v3991
      %v4056 = vadd.f32 %v3909, %v3993
      %v4057 = vadd.f32 %v3910, %v3995
      %v4058 = vadd.f32 %v3911, %v3997
      %v4059 = vadd.f32 %v3912, %v3999
      %v4060 = vadd.f32 %v3913, %v4001
      %v4061 = vadd.f32 %v3914, %v4003
      %v4062 = vadd.f32 %v3915, %v4005
      %v4063 = vadd.f32 %v3916, %v4007
      %v4064 = vadd.f32 %v3917, %v4009
      %v4065 = vadd.f32 %v3918, %v4011
      %v4066 = vadd.f32 %v3919, %v4013
      %v4067 = vadd.f32 %v3920, %v4015
      %v4068 = vadd.f32 %v3921, %v4017
      %v4069 = vadd.f32 %v3922, %v4019
      %v4070 = vadd.f32 %v3923, %v4021
      %v4071 = vadd.f32 %v3924, %v4023
      %s4072 = sadd.s32 %s1634, 20
      %s4073 = sld [smem:[#allocation8 + %s4072]]
      %v4074 = vstv %s4073
      %v4075 = vmul.f32 %v4074, %v3852
      %v4076 = vmul.f32 %v4074, %v3853
      %v4077 = vmul.f32 %v4074, %v3854
      %v4078 = vmul.f32 %v4074, %v3855
      %v4079 = vmul.f32 %v4074, %v3856
      %v4080 = vmul.f32 %v4074, %v3857
      %v4081 = vmul.f32 %v4074, %v3858
      %v4082 = vmul.f32 %v4074, %v3859
      %v4083 = vmul.f32 %v4074, %v3860
      %v4084 = vmul.f32 %v4074, %v3861
      %v4085 = vmul.f32 %v4074, %v3862
      %v4086 = vmul.f32 %v4074, %v3863
      %v4087 = vmul.f32 %v4074, %v3864
      %v4088 = vmul.f32 %v4074, %v3865
      %v4089 = vmul.f32 %v4074, %v3866
      %v4090 = vmul.f32 %v4074, %v3867
      %v4091 = vmul.f32 %v4074, %v3868
      %v4092 = vmul.f32 %v4074, %v3869
      %v4093 = vmul.f32 %v4074, %v3870
      %v4094 = vmul.f32 %v4074, %v3871
      %v4095 = vmul.f32 %v4074, %v3872
      %v4096 = vmul.f32 %v4074, %v3873
      %v4097 = vmul.f32 %v4074, %v3874
      %v4098 = vmul.f32 %v4074, %v3875
      %4123 = vrot.lane.b32.xlu0 %v4075, 126
      %v4124 = vpop.permute.xlu0 %4123
      %4125 = vrot.lane.b32.xlu0 %v4076, 126
      %v4126 = vpop.permute.xlu0 %4125
      %4127 = vrot.lane.b32.xlu0 %v4077, 126
      %v4128 = vpop.permute.xlu0 %4127
      %4129 = vrot.lane.b32.xlu0 %v4078, 126
      %v4130 = vpop.permute.xlu0 %4129
      %4131 = vrot.lane.b32.xlu0 %v4079, 126
      %v4132 = vpop.permute.xlu0 %4131
      %4133 = vrot.lane.b32.xlu0 %v4080, 126
      %v4134 = vpop.permute.xlu0 %4133
      %4135 = vrot.lane.b32.xlu0 %v4081, 126
      %v4136 = vpop.permute.xlu0 %4135
      %4137 = vrot.lane.b32.xlu0 %v4082, 126
      %v4138 = vpop.permute.xlu0 %4137
      %4139 = vrot.lane.b32.xlu0 %v4083, 126
      %v4140 = vpop.permute.xlu0 %4139
      %4141 = vrot.lane.b32.xlu0 %v4084, 126
      %v4142 = vpop.permute.xlu0 %4141
      %4143 = vrot.lane.b32.xlu0 %v4085, 126
      %v4144 = vpop.permute.xlu0 %4143
      %4145 = vrot.lane.b32.xlu0 %v4086, 126
      %v4146 = vpop.permute.xlu0 %4145
      %4147 = vrot.lane.b32.xlu0 %v4087, 126
      %v4148 = vpop.permute.xlu0 %4147
      %4149 = vrot.lane.b32.xlu0 %v4088, 126
      %v4150 = vpop.permute.xlu0 %4149
      %4151 = vrot.lane.b32.xlu0 %v4089, 126
      %v4152 = vpop.permute.xlu0 %4151
      %4153 = vrot.lane.b32.xlu0 %v4090, 126
      %v4154 = vpop.permute.xlu0 %4153
      %4155 = vrot.lane.b32.xlu0 %v4091, 126
      %v4156 = vpop.permute.xlu0 %4155
      %4157 = vrot.lane.b32.xlu0 %v4092, 126
      %v4158 = vpop.permute.xlu0 %4157
      %4159 = vrot.lane.b32.xlu0 %v4093, 126
      %v4160 = vpop.permute.xlu0 %4159
      %4161 = vrot.lane.b32.xlu0 %v4094, 126
      %v4162 = vpop.permute.xlu0 %4161
      %4163 = vrot.lane.b32.xlu0 %v4095, 126
      %v4164 = vpop.permute.xlu0 %4163
      %4165 = vrot.lane.b32.xlu0 %v4096, 126
      %v4166 = vpop.permute.xlu0 %4165
      %4167 = vrot.lane.b32.xlu0 %v4097, 126
      %v4168 = vpop.permute.xlu0 %4167
      %4169 = vrot.lane.b32.xlu0 %v4098, 126
      %v4170 = vpop.permute.xlu0 %4169
      %v4195 = vadd.f32 %v4048, %v4124
      %v4196 = vadd.f32 %v4049, %v4126
      %v4197 = vadd.f32 %v4050, %v4128
      %v4198 = vadd.f32 %v4051, %v4130
      %v4199 = vadd.f32 %v4052, %v4132
      %v4200 = vadd.f32 %v4053, %v4134
      %v4201 = vadd.f32 %v4054, %v4136
      %v4202 = vadd.f32 %v4055, %v4138
      %v4203 = vadd.f32 %v4056, %v4140
      %v4204 = vadd.f32 %v4057, %v4142
      %v4205 = vadd.f32 %v4058, %v4144
      %v4206 = vadd.f32 %v4059, %v4146
      %v4207 = vadd.f32 %v4060, %v4148
      %v4208 = vadd.f32 %v4061, %v4150
      %v4209 = vadd.f32 %v4062, %v4152
      %v4210 = vadd.f32 %v4063, %v4154
      %v4211 = vadd.f32 %v4064, %v4156
      %v4212 = vadd.f32 %v4065, %v4158
      %v4213 = vadd.f32 %v4066, %v4160
      %v4214 = vadd.f32 %v4067, %v4162
      %v4215 = vadd.f32 %v4068, %v4164
      %v4216 = vadd.f32 %v4069, %v4166
      %v4217 = vadd.f32 %v4070, %v4168
      %v4218 = vadd.f32 %v4071, %v4170
      %s4219 = sadd.s32 %s1634, 21
      %s4220 = sld [smem:[#allocation8 + %s4219]]
      %v4221 = vld [vmem:[%s3851 + $0x1] sm:$0xff]
      %v4222 = vld [vmem:[%s3851 + $0x9] sm:$0xff]
      %v4223 = vld [vmem:[%s3851 + $0x11] sm:$0xff]
      %v4224 = vld [vmem:[%s3851 + $0x21] sm:$0xff]
      %v4225 = vld [vmem:[%s3851 + $0x29] sm:$0xff]
      %v4226 = vld [vmem:[%s3851 + $0x31] sm:$0xff]
      %v4227 = vld [vmem:[%s3851 + $0x41] sm:$0xff]
      %v4228 = vld [vmem:[%s3851 + $0x49] sm:$0xff]
      %v4229 = vld [vmem:[%s3851 + $0x51] sm:$0xff]
      %v4230 = vld [vmem:[%s3851 + $0x61] sm:$0xff]
      %v4231 = vld [vmem:[%s3851 + $0x69] sm:$0xff]
      %v4232 = vld [vmem:[%s3851 + $0x71] sm:$0xff]
      %v4233 = vld [vmem:[%s3851 + $0x81] sm:$0xff]
      %v4234 = vld [vmem:[%s3851 + $0x89] sm:$0xff]
      %v4235 = vld [vmem:[%s3851 + $0x91] sm:$0xff]
      %v4236 = vld [vmem:[%s3851 + $0xa1] sm:$0xff]
      %v4237 = vld [vmem:[%s3851 + $0xa9] sm:$0xff]
      %v4238 = vld [vmem:[%s3851 + $0xb1] sm:$0xff]
      %v4239 = vld [vmem:[%s3851 + $0xc1] sm:$0xff]
      %v4240 = vld [vmem:[%s3851 + $0xc9] sm:$0xff]
      %v4241 = vld [vmem:[%s3851 + $0xd1] sm:$0xff]
      %v4242 = vld [vmem:[%s3851 + $0xe1] sm:$0xff]
      %v4243 = vld [vmem:[%s3851 + $0xe9] sm:$0xff]
      %v4244 = vld [vmem:[%s3851 + $0xf1] sm:$0xff]
      %v4245 = vstv %s4220
      %v4246 = vmul.f32 %v4245, %v4221
      %v4247 = vmul.f32 %v4245, %v4222
      %v4248 = vmul.f32 %v4245, %v4223
      %v4249 = vmul.f32 %v4245, %v4224
      %v4250 = vmul.f32 %v4245, %v4225
      %v4251 = vmul.f32 %v4245, %v4226
      %v4252 = vmul.f32 %v4245, %v4227
      %v4253 = vmul.f32 %v4245, %v4228
      %v4254 = vmul.f32 %v4245, %v4229
      %v4255 = vmul.f32 %v4245, %v4230
      %v4256 = vmul.f32 %v4245, %v4231
      %v4257 = vmul.f32 %v4245, %v4232
      %v4258 = vmul.f32 %v4245, %v4233
      %v4259 = vmul.f32 %v4245, %v4234
      %v4260 = vmul.f32 %v4245, %v4235
      %v4261 = vmul.f32 %v4245, %v4236
      %v4262 = vmul.f32 %v4245, %v4237
      %v4263 = vmul.f32 %v4245, %v4238
      %v4264 = vmul.f32 %v4245, %v4239
      %v4265 = vmul.f32 %v4245, %v4240
      %v4266 = vmul.f32 %v4245, %v4241
      %v4267 = vmul.f32 %v4245, %v4242
      %v4268 = vmul.f32 %v4245, %v4243
      %v4269 = vmul.f32 %v4245, %v4244
      %v4270 = vadd.f32 %v4195, %v4246
      %v4271 = vadd.f32 %v4196, %v4247
      %v4272 = vadd.f32 %v4197, %v4248
      %v4273 = vadd.f32 %v4198, %v4249
      %v4274 = vadd.f32 %v4199, %v4250
      %v4275 = vadd.f32 %v4200, %v4251
      %v4276 = vadd.f32 %v4201, %v4252
      %v4277 = vadd.f32 %v4202, %v4253
      %v4278 = vadd.f32 %v4203, %v4254
      %v4279 = vadd.f32 %v4204, %v4255
      %v4280 = vadd.f32 %v4205, %v4256
      %v4281 = vadd.f32 %v4206, %v4257
      %v4282 = vadd.f32 %v4207, %v4258
      %v4283 = vadd.f32 %v4208, %v4259
      %v4284 = vadd.f32 %v4209, %v4260
      %v4285 = vadd.f32 %v4210, %v4261
      %v4286 = vadd.f32 %v4211, %v4262
      %v4287 = vadd.f32 %v4212, %v4263
      %v4288 = vadd.f32 %v4213, %v4264
      %v4289 = vadd.f32 %v4214, %v4265
      %v4290 = vadd.f32 %v4215, %v4266
      %v4291 = vadd.f32 %v4216, %v4267
      %v4292 = vadd.f32 %v4217, %v4268
      %v4293 = vadd.f32 %v4218, %v4269
      %s4294 = sadd.s32 %s1634, 22
      %s4295 = sld [smem:[#allocation8 + %s4294]]
      %v4296 = vstv %s4295
      %v4297 = vmul.f32 %v4296, %v4221
      %v4298 = vmul.f32 %v4296, %v4222
      %v4299 = vmul.f32 %v4296, %v4223
      %v4300 = vmul.f32 %v4296, %v4224
      %v4301 = vmul.f32 %v4296, %v4225
      %v4302 = vmul.f32 %v4296, %v4226
      %v4303 = vmul.f32 %v4296, %v4227
      %v4304 = vmul.f32 %v4296, %v4228
      %v4305 = vmul.f32 %v4296, %v4229
      %v4306 = vmul.f32 %v4296, %v4230
      %v4307 = vmul.f32 %v4296, %v4231
      %v4308 = vmul.f32 %v4296, %v4232
      %v4309 = vmul.f32 %v4296, %v4233
      %v4310 = vmul.f32 %v4296, %v4234
      %v4311 = vmul.f32 %v4296, %v4235
      %v4312 = vmul.f32 %v4296, %v4236
      %v4313 = vmul.f32 %v4296, %v4237
      %v4314 = vmul.f32 %v4296, %v4238
      %v4315 = vmul.f32 %v4296, %v4239
      %v4316 = vmul.f32 %v4296, %v4240
      %v4317 = vmul.f32 %v4296, %v4241
      %v4318 = vmul.f32 %v4296, %v4242
      %v4319 = vmul.f32 %v4296, %v4243
      %v4320 = vmul.f32 %v4296, %v4244
      %4345 = vrot.lane.b32.xlu0 %v4297, 127
      %v4346 = vpop.permute.xlu0 %4345
      %4347 = vrot.lane.b32.xlu0 %v4298, 127
      %v4348 = vpop.permute.xlu0 %4347
      %4349 = vrot.lane.b32.xlu0 %v4299, 127
      %v4350 = vpop.permute.xlu0 %4349
      %4351 = vrot.lane.b32.xlu0 %v4300, 127
      %v4352 = vpop.permute.xlu0 %4351
      %4353 = vrot.lane.b32.xlu0 %v4301, 127
      %v4354 = vpop.permute.xlu0 %4353
      %4355 = vrot.lane.b32.xlu0 %v4302, 127
      %v4356 = vpop.permute.xlu0 %4355
      %4357 = vrot.lane.b32.xlu0 %v4303, 127
      %v4358 = vpop.permute.xlu0 %4357
      %4359 = vrot.lane.b32.xlu0 %v4304, 127
      %v4360 = vpop.permute.xlu0 %4359
      %4361 = vrot.lane.b32.xlu0 %v4305, 127
      %v4362 = vpop.permute.xlu0 %4361
      %4363 = vrot.lane.b32.xlu0 %v4306, 127
      %v4364 = vpop.permute.xlu0 %4363
      %4365 = vrot.lane.b32.xlu0 %v4307, 127
      %v4366 = vpop.permute.xlu0 %4365
      %4367 = vrot.lane.b32.xlu0 %v4308, 127
      %v4368 = vpop.permute.xlu0 %4367
      %4369 = vrot.lane.b32.xlu0 %v4309, 127
      %v4370 = vpop.permute.xlu0 %4369
      %4371 = vrot.lane.b32.xlu0 %v4310, 127
      %v4372 = vpop.permute.xlu0 %4371
      %4373 = vrot.lane.b32.xlu0 %v4311, 127
      %v4374 = vpop.permute.xlu0 %4373
      %4375 = vrot.lane.b32.xlu0 %v4312, 127
      %v4376 = vpop.permute.xlu0 %4375
      %4377 = vrot.lane.b32.xlu0 %v4313, 127
      %v4378 = vpop.permute.xlu0 %4377
      %4379 = vrot.lane.b32.xlu0 %v4314, 127
      %v4380 = vpop.permute.xlu0 %4379
      %4381 = vrot.lane.b32.xlu0 %v4315, 127
      %v4382 = vpop.permute.xlu0 %4381
      %4383 = vrot.lane.b32.xlu0 %v4316, 127
      %v4384 = vpop.permute.xlu0 %4383
      %4385 = vrot.lane.b32.xlu0 %v4317, 127
      %v4386 = vpop.permute.xlu0 %4385
      %4387 = vrot.lane.b32.xlu0 %v4318, 127
      %v4388 = vpop.permute.xlu0 %4387
      %4389 = vrot.lane.b32.xlu0 %v4319, 127
      %v4390 = vpop.permute.xlu0 %4389
      %4391 = vrot.lane.b32.xlu0 %v4320, 127
      %v4392 = vpop.permute.xlu0 %4391
      %v4417 = vadd.f32 %v4270, %v4346
      %v4418 = vadd.f32 %v4271, %v4348
      %v4419 = vadd.f32 %v4272, %v4350
      %v4420 = vadd.f32 %v4273, %v4352
      %v4421 = vadd.f32 %v4274, %v4354
      %v4422 = vadd.f32 %v4275, %v4356
      %v4423 = vadd.f32 %v4276, %v4358
      %v4424 = vadd.f32 %v4277, %v4360
      %v4425 = vadd.f32 %v4278, %v4362
      %v4426 = vadd.f32 %v4279, %v4364
      %v4427 = vadd.f32 %v4280, %v4366
      %v4428 = vadd.f32 %v4281, %v4368
      %v4429 = vadd.f32 %v4282, %v4370
      %v4430 = vadd.f32 %v4283, %v4372
      %v4431 = vadd.f32 %v4284, %v4374
      %v4432 = vadd.f32 %v4285, %v4376
      %v4433 = vadd.f32 %v4286, %v4378
      %v4434 = vadd.f32 %v4287, %v4380
      %v4435 = vadd.f32 %v4288, %v4382
      %v4436 = vadd.f32 %v4289, %v4384
      %v4437 = vadd.f32 %v4290, %v4386
      %v4438 = vadd.f32 %v4291, %v4388
      %v4439 = vadd.f32 %v4292, %v4390
      %v4440 = vadd.f32 %v4293, %v4392
      %s4441 = sadd.s32 %s1634, 23
      %s4442 = sld [smem:[#allocation8 + %s4441]]
      %v4443 = vstv %s4442
      %v4444 = vmul.f32 %v4443, %v4221
      %v4445 = vmul.f32 %v4443, %v4222
      %v4446 = vmul.f32 %v4443, %v4223
      %v4447 = vmul.f32 %v4443, %v4224
      %v4448 = vmul.f32 %v4443, %v4225
      %v4449 = vmul.f32 %v4443, %v4226
      %v4450 = vmul.f32 %v4443, %v4227
      %v4451 = vmul.f32 %v4443, %v4228
      %v4452 = vmul.f32 %v4443, %v4229
      %v4453 = vmul.f32 %v4443, %v4230
      %v4454 = vmul.f32 %v4443, %v4231
      %v4455 = vmul.f32 %v4443, %v4232
      %v4456 = vmul.f32 %v4443, %v4233
      %v4457 = vmul.f32 %v4443, %v4234
      %v4458 = vmul.f32 %v4443, %v4235
      %v4459 = vmul.f32 %v4443, %v4236
      %v4460 = vmul.f32 %v4443, %v4237
      %v4461 = vmul.f32 %v4443, %v4238
      %v4462 = vmul.f32 %v4443, %v4239
      %v4463 = vmul.f32 %v4443, %v4240
      %v4464 = vmul.f32 %v4443, %v4241
      %v4465 = vmul.f32 %v4443, %v4242
      %v4466 = vmul.f32 %v4443, %v4243
      %v4467 = vmul.f32 %v4443, %v4244
      %4492 = vrot.lane.b32.xlu0 %v4444, 126
      %v4493 = vpop.permute.xlu0 %4492
      %4494 = vrot.lane.b32.xlu0 %v4445, 126
      %v4495 = vpop.permute.xlu0 %4494
      %4496 = vrot.lane.b32.xlu0 %v4446, 126
      %v4497 = vpop.permute.xlu0 %4496
      %4498 = vrot.lane.b32.xlu0 %v4447, 126
      %v4499 = vpop.permute.xlu0 %4498
      %4500 = vrot.lane.b32.xlu0 %v4448, 126
      %v4501 = vpop.permute.xlu0 %4500
      %4502 = vrot.lane.b32.xlu0 %v4449, 126
      %v4503 = vpop.permute.xlu0 %4502
      %4504 = vrot.lane.b32.xlu0 %v4450, 126
      %v4505 = vpop.permute.xlu0 %4504
      %4506 = vrot.lane.b32.xlu0 %v4451, 126
      %v4507 = vpop.permute.xlu0 %4506
      %4508 = vrot.lane.b32.xlu0 %v4452, 126
      %v4509 = vpop.permute.xlu0 %4508
      %4510 = vrot.lane.b32.xlu0 %v4453, 126
      %v4511 = vpop.permute.xlu0 %4510
      %4512 = vrot.lane.b32.xlu0 %v4454, 126
      %v4513 = vpop.permute.xlu0 %4512
      %4514 = vrot.lane.b32.xlu0 %v4455, 126
      %v4515 = vpop.permute.xlu0 %4514
      %4516 = vrot.lane.b32.xlu0 %v4456, 126
      %v4517 = vpop.permute.xlu0 %4516
      %4518 = vrot.lane.b32.xlu0 %v4457, 126
      %v4519 = vpop.permute.xlu0 %4518
      %4520 = vrot.lane.b32.xlu0 %v4458, 126
      %v4521 = vpop.permute.xlu0 %4520
      %4522 = vrot.lane.b32.xlu0 %v4459, 126
      %v4523 = vpop.permute.xlu0 %4522
      %4524 = vrot.lane.b32.xlu0 %v4460, 126
      %v4525 = vpop.permute.xlu0 %4524
      %4526 = vrot.lane.b32.xlu0 %v4461, 126
      %v4527 = vpop.permute.xlu0 %4526
      %4528 = vrot.lane.b32.xlu0 %v4462, 126
      %v4529 = vpop.permute.xlu0 %4528
      %4530 = vrot.lane.b32.xlu0 %v4463, 126
      %v4531 = vpop.permute.xlu0 %4530
      %4532 = vrot.lane.b32.xlu0 %v4464, 126
      %v4533 = vpop.permute.xlu0 %4532
      %4534 = vrot.lane.b32.xlu0 %v4465, 126
      %v4535 = vpop.permute.xlu0 %4534
      %4536 = vrot.lane.b32.xlu0 %v4466, 126
      %v4537 = vpop.permute.xlu0 %4536
      %4538 = vrot.lane.b32.xlu0 %v4467, 126
      %v4539 = vpop.permute.xlu0 %4538
      %v4564 = vadd.f32 %v4417, %v4493
      %v4565 = vadd.f32 %v4418, %v4495
      %v4566 = vadd.f32 %v4419, %v4497
      %v4567 = vadd.f32 %v4420, %v4499
      %v4568 = vadd.f32 %v4421, %v4501
      %v4569 = vadd.f32 %v4422, %v4503
      %v4570 = vadd.f32 %v4423, %v4505
      %v4571 = vadd.f32 %v4424, %v4507
      %v4572 = vadd.f32 %v4425, %v4509
      %v4573 = vadd.f32 %v4426, %v4511
      %v4574 = vadd.f32 %v4427, %v4513
      %v4575 = vadd.f32 %v4428, %v4515
      %v4576 = vadd.f32 %v4429, %v4517
      %v4577 = vadd.f32 %v4430, %v4519
      %v4578 = vadd.f32 %v4431, %v4521
      %v4579 = vadd.f32 %v4432, %v4523
      %v4580 = vadd.f32 %v4433, %v4525
      %v4581 = vadd.f32 %v4434, %v4527
      %v4582 = vadd.f32 %v4435, %v4529
      %v4583 = vadd.f32 %v4436, %v4531
      %v4584 = vadd.f32 %v4437, %v4533
      %v4585 = vadd.f32 %v4438, %v4535
      %v4586 = vadd.f32 %v4439, %v4537
      %v4587 = vadd.f32 %v4440, %v4539
      %s4588 = sadd.s32 %s1634, 24
      %s4589 = sld [smem:[#allocation8 + %s4588]]
      %v4590 = vld [vmem:[%s3851 + $0x2] sm:$0xff]
      %v4591 = vld [vmem:[%s3851 + $0xa] sm:$0xff]
      %v4592 = vld [vmem:[%s3851 + $0x12] sm:$0xff]
      %v4593 = vld [vmem:[%s3851 + $0x22] sm:$0xff]
      %v4594 = vld [vmem:[%s3851 + $0x2a] sm:$0xff]
      %v4595 = vld [vmem:[%s3851 + $0x32] sm:$0xff]
      %v4596 = vld [vmem:[%s3851 + $0x42] sm:$0xff]
      %v4597 = vld [vmem:[%s3851 + $0x4a] sm:$0xff]
      %v4598 = vld [vmem:[%s3851 + $0x52] sm:$0xff]
      %v4599 = vld [vmem:[%s3851 + $0x62] sm:$0xff]
      %v4600 = vld [vmem:[%s3851 + $0x6a] sm:$0xff]
      %v4601 = vld [vmem:[%s3851 + $0x72] sm:$0xff]
      %v4602 = vld [vmem:[%s3851 + $0x82] sm:$0xff]
      %v4603 = vld [vmem:[%s3851 + $0x8a] sm:$0xff]
      %v4604 = vld [vmem:[%s3851 + $0x92] sm:$0xff]
      %v4605 = vld [vmem:[%s3851 + $0xa2] sm:$0xff]
      %v4606 = vld [vmem:[%s3851 + $0xaa] sm:$0xff]
      %v4607 = vld [vmem:[%s3851 + $0xb2] sm:$0xff]
      %v4608 = vld [vmem:[%s3851 + $0xc2] sm:$0xff]
      %v4609 = vld [vmem:[%s3851 + $0xca] sm:$0xff]
      %v4610 = vld [vmem:[%s3851 + $0xd2] sm:$0xff]
      %v4611 = vld [vmem:[%s3851 + $0xe2] sm:$0xff]
      %v4612 = vld [vmem:[%s3851 + $0xea] sm:$0xff]
      %v4613 = vld [vmem:[%s3851 + $0xf2] sm:$0xff]
      %v4614 = vstv %s4589
      %v4615 = vmul.f32 %v4614, %v4590
      %v4616 = vmul.f32 %v4614, %v4591
      %v4617 = vmul.f32 %v4614, %v4592
      %v4618 = vmul.f32 %v4614, %v4593
      %v4619 = vmul.f32 %v4614, %v4594
      %v4620 = vmul.f32 %v4614, %v4595
      %v4621 = vmul.f32 %v4614, %v4596
      %v4622 = vmul.f32 %v4614, %v4597
      %v4623 = vmul.f32 %v4614, %v4598
      %v4624 = vmul.f32 %v4614, %v4599
      %v4625 = vmul.f32 %v4614, %v4600
      %v4626 = vmul.f32 %v4614, %v4601
      %v4627 = vmul.f32 %v4614, %v4602
      %v4628 = vmul.f32 %v4614, %v4603
      %v4629 = vmul.f32 %v4614, %v4604
      %v4630 = vmul.f32 %v4614, %v4605
      %v4631 = vmul.f32 %v4614, %v4606
      %v4632 = vmul.f32 %v4614, %v4607
      %v4633 = vmul.f32 %v4614, %v4608
      %v4634 = vmul.f32 %v4614, %v4609
      %v4635 = vmul.f32 %v4614, %v4610
      %v4636 = vmul.f32 %v4614, %v4611
      %v4637 = vmul.f32 %v4614, %v4612
      %v4638 = vmul.f32 %v4614, %v4613
      %v4639 = vadd.f32 %v4564, %v4615
      %v4640 = vadd.f32 %v4565, %v4616
      %v4641 = vadd.f32 %v4566, %v4617
      %v4642 = vadd.f32 %v4567, %v4618
      %v4643 = vadd.f32 %v4568, %v4619
      %v4644 = vadd.f32 %v4569, %v4620
      %v4645 = vadd.f32 %v4570, %v4621
      %v4646 = vadd.f32 %v4571, %v4622
      %v4647 = vadd.f32 %v4572, %v4623
      %v4648 = vadd.f32 %v4573, %v4624
      %v4649 = vadd.f32 %v4574, %v4625
      %v4650 = vadd.f32 %v4575, %v4626
      %v4651 = vadd.f32 %v4576, %v4627
      %v4652 = vadd.f32 %v4577, %v4628
      %v4653 = vadd.f32 %v4578, %v4629
      %v4654 = vadd.f32 %v4579, %v4630
      %v4655 = vadd.f32 %v4580, %v4631
      %v4656 = vadd.f32 %v4581, %v4632
      %v4657 = vadd.f32 %v4582, %v4633
      %v4658 = vadd.f32 %v4583, %v4634
      %v4659 = vadd.f32 %v4584, %v4635
      %v4660 = vadd.f32 %v4585, %v4636
      %v4661 = vadd.f32 %v4586, %v4637
      %v4662 = vadd.f32 %v4587, %v4638
      %s4663 = sadd.s32 %s1634, 25
      %s4664 = sld [smem:[#allocation8 + %s4663]]
      %v4665 = vstv %s4664
      %v4666 = vmul.f32 %v4665, %v4590
      %v4667 = vmul.f32 %v4665, %v4591
      %v4668 = vmul.f32 %v4665, %v4592
      %v4669 = vmul.f32 %v4665, %v4593
      %v4670 = vmul.f32 %v4665, %v4594
      %v4671 = vmul.f32 %v4665, %v4595
      %v4672 = vmul.f32 %v4665, %v4596
      %v4673 = vmul.f32 %v4665, %v4597
      %v4674 = vmul.f32 %v4665, %v4598
      %v4675 = vmul.f32 %v4665, %v4599
      %v4676 = vmul.f32 %v4665, %v4600
      %v4677 = vmul.f32 %v4665, %v4601
      %v4678 = vmul.f32 %v4665, %v4602
      %v4679 = vmul.f32 %v4665, %v4603
      %v4680 = vmul.f32 %v4665, %v4604
      %v4681 = vmul.f32 %v4665, %v4605
      %v4682 = vmul.f32 %v4665, %v4606
      %v4683 = vmul.f32 %v4665, %v4607
      %v4684 = vmul.f32 %v4665, %v4608
      %v4685 = vmul.f32 %v4665, %v4609
      %v4686 = vmul.f32 %v4665, %v4610
      %v4687 = vmul.f32 %v4665, %v4611
      %v4688 = vmul.f32 %v4665, %v4612
      %v4689 = vmul.f32 %v4665, %v4613
      %4714 = vrot.lane.b32.xlu0 %v4666, 127
      %v4715 = vpop.permute.xlu0 %4714
      %4716 = vrot.lane.b32.xlu0 %v4667, 127
      %v4717 = vpop.permute.xlu0 %4716
      %4718 = vrot.lane.b32.xlu0 %v4668, 127
      %v4719 = vpop.permute.xlu0 %4718
      %4720 = vrot.lane.b32.xlu0 %v4669, 127
      %v4721 = vpop.permute.xlu0 %4720
      %4722 = vrot.lane.b32.xlu0 %v4670, 127
      %v4723 = vpop.permute.xlu0 %4722
      %4724 = vrot.lane.b32.xlu0 %v4671, 127
      %v4725 = vpop.permute.xlu0 %4724
      %4726 = vrot.lane.b32.xlu0 %v4672, 127
      %v4727 = vpop.permute.xlu0 %4726
      %4728 = vrot.lane.b32.xlu0 %v4673, 127
      %v4729 = vpop.permute.xlu0 %4728
      %4730 = vrot.lane.b32.xlu0 %v4674, 127
      %v4731 = vpop.permute.xlu0 %4730
      %4732 = vrot.lane.b32.xlu0 %v4675, 127
      %v4733 = vpop.permute.xlu0 %4732
      %4734 = vrot.lane.b32.xlu0 %v4676, 127
      %v4735 = vpop.permute.xlu0 %4734
      %4736 = vrot.lane.b32.xlu0 %v4677, 127
      %v4737 = vpop.permute.xlu0 %4736
      %4738 = vrot.lane.b32.xlu0 %v4678, 127
      %v4739 = vpop.permute.xlu0 %4738
      %4740 = vrot.lane.b32.xlu0 %v4679, 127
      %v4741 = vpop.permute.xlu0 %4740
      %4742 = vrot.lane.b32.xlu0 %v4680, 127
      %v4743 = vpop.permute.xlu0 %4742
      %4744 = vrot.lane.b32.xlu0 %v4681, 127
      %v4745 = vpop.permute.xlu0 %4744
      %4746 = vrot.lane.b32.xlu0 %v4682, 127
      %v4747 = vpop.permute.xlu0 %4746
      %4748 = vrot.lane.b32.xlu0 %v4683, 127
      %v4749 = vpop.permute.xlu0 %4748
      %4750 = vrot.lane.b32.xlu0 %v4684, 127
      %v4751 = vpop.permute.xlu0 %4750
      %4752 = vrot.lane.b32.xlu0 %v4685, 127
      %v4753 = vpop.permute.xlu0 %4752
      %4754 = vrot.lane.b32.xlu0 %v4686, 127
      %v4755 = vpop.permute.xlu0 %4754
      %4756 = vrot.lane.b32.xlu0 %v4687, 127
      %v4757 = vpop.permute.xlu0 %4756
      %4758 = vrot.lane.b32.xlu0 %v4688, 127
      %v4759 = vpop.permute.xlu0 %4758
      %4760 = vrot.lane.b32.xlu0 %v4689, 127
      %v4761 = vpop.permute.xlu0 %4760
      %v4786 = vadd.f32 %v4639, %v4715
      %v4787 = vadd.f32 %v4640, %v4717
      %v4788 = vadd.f32 %v4641, %v4719
      %v4789 = vadd.f32 %v4642, %v4721
      %v4790 = vadd.f32 %v4643, %v4723
      %v4791 = vadd.f32 %v4644, %v4725
      %v4792 = vadd.f32 %v4645, %v4727
      %v4793 = vadd.f32 %v4646, %v4729
      %v4794 = vadd.f32 %v4647, %v4731
      %v4795 = vadd.f32 %v4648, %v4733
      %v4796 = vadd.f32 %v4649, %v4735
      %v4797 = vadd.f32 %v4650, %v4737
      %v4798 = vadd.f32 %v4651, %v4739
      %v4799 = vadd.f32 %v4652, %v4741
      %v4800 = vadd.f32 %v4653, %v4743
      %v4801 = vadd.f32 %v4654, %v4745
      %v4802 = vadd.f32 %v4655, %v4747
      %v4803 = vadd.f32 %v4656, %v4749
      %v4804 = vadd.f32 %v4657, %v4751
      %v4805 = vadd.f32 %v4658, %v4753
      %v4806 = vadd.f32 %v4659, %v4755
      %v4807 = vadd.f32 %v4660, %v4757
      %v4808 = vadd.f32 %v4661, %v4759
      %v4809 = vadd.f32 %v4662, %v4761
      %s4810 = sadd.s32 %s1634, 26
      %s4811 = sld [smem:[#allocation8 + %s4810]]
      %v4812 = vstv %s4811
      %v4813 = vmul.f32 %v4812, %v4590
      %v4814 = vmul.f32 %v4812, %v4591
      %v4815 = vmul.f32 %v4812, %v4592
      %v4816 = vmul.f32 %v4812, %v4593
      %v4817 = vmul.f32 %v4812, %v4594
      %v4818 = vmul.f32 %v4812, %v4595
      %v4819 = vmul.f32 %v4812, %v4596
      %v4820 = vmul.f32 %v4812, %v4597
      %v4821 = vmul.f32 %v4812, %v4598
      %v4822 = vmul.f32 %v4812, %v4599
      %v4823 = vmul.f32 %v4812, %v4600
      %v4824 = vmul.f32 %v4812, %v4601
      %v4825 = vmul.f32 %v4812, %v4602
      %v4826 = vmul.f32 %v4812, %v4603
      %v4827 = vmul.f32 %v4812, %v4604
      %v4828 = vmul.f32 %v4812, %v4605
      %v4829 = vmul.f32 %v4812, %v4606
      %v4830 = vmul.f32 %v4812, %v4607
      %v4831 = vmul.f32 %v4812, %v4608
      %v4832 = vmul.f32 %v4812, %v4609
      %v4833 = vmul.f32 %v4812, %v4610
      %v4834 = vmul.f32 %v4812, %v4611
      %v4835 = vmul.f32 %v4812, %v4612
      %v4836 = vmul.f32 %v4812, %v4613
      %4861 = vrot.lane.b32.xlu0 %v4813, 126
      %v4862 = vpop.permute.xlu0 %4861
      %4863 = vrot.lane.b32.xlu0 %v4814, 126
      %v4864 = vpop.permute.xlu0 %4863
      %4865 = vrot.lane.b32.xlu0 %v4815, 126
      %v4866 = vpop.permute.xlu0 %4865
      %4867 = vrot.lane.b32.xlu0 %v4816, 126
      %v4868 = vpop.permute.xlu0 %4867
      %4869 = vrot.lane.b32.xlu0 %v4817, 126
      %v4870 = vpop.permute.xlu0 %4869
      %4871 = vrot.lane.b32.xlu0 %v4818, 126
      %v4872 = vpop.permute.xlu0 %4871
      %4873 = vrot.lane.b32.xlu0 %v4819, 126
      %v4874 = vpop.permute.xlu0 %4873
      %4875 = vrot.lane.b32.xlu0 %v4820, 126
      %v4876 = vpop.permute.xlu0 %4875
      %4877 = vrot.lane.b32.xlu0 %v4821, 126
      %v4878 = vpop.permute.xlu0 %4877
      %4879 = vrot.lane.b32.xlu0 %v4822, 126
      %v4880 = vpop.permute.xlu0 %4879
      %4881 = vrot.lane.b32.xlu0 %v4823, 126
      %v4882 = vpop.permute.xlu0 %4881
      %4883 = vrot.lane.b32.xlu0 %v4824, 126
      %v4884 = vpop.permute.xlu0 %4883
      %4885 = vrot.lane.b32.xlu0 %v4825, 126
      %v4886 = vpop.permute.xlu0 %4885
      %4887 = vrot.lane.b32.xlu0 %v4826, 126
      %v4888 = vpop.permute.xlu0 %4887
      %4889 = vrot.lane.b32.xlu0 %v4827, 126
      %v4890 = vpop.permute.xlu0 %4889
      %4891 = vrot.lane.b32.xlu0 %v4828, 126
      %v4892 = vpop.permute.xlu0 %4891
      %4893 = vrot.lane.b32.xlu0 %v4829, 126
      %v4894 = vpop.permute.xlu0 %4893
      %4895 = vrot.lane.b32.xlu0 %v4830, 126
      %v4896 = vpop.permute.xlu0 %4895
      %4897 = vrot.lane.b32.xlu0 %v4831, 126
      %v4898 = vpop.permute.xlu0 %4897
      %4899 = vrot.lane.b32.xlu0 %v4832, 126
      %v4900 = vpop.permute.xlu0 %4899
      %4901 = vrot.lane.b32.xlu0 %v4833, 126
      %v4902 = vpop.permute.xlu0 %4901
      %4903 = vrot.lane.b32.xlu0 %v4834, 126
      %v4904 = vpop.permute.xlu0 %4903
      %4905 = vrot.lane.b32.xlu0 %v4835, 126
      %v4906 = vpop.permute.xlu0 %4905
      %4907 = vrot.lane.b32.xlu0 %v4836, 126
      %v4908 = vpop.permute.xlu0 %4907
      %v4933 = vadd.f32 %v4786, %v4862
      %v4934 = vadd.f32 %v4787, %v4864
      %v4935 = vadd.f32 %v4788, %v4866
      %v4936 = vadd.f32 %v4789, %v4868
      %v4937 = vadd.f32 %v4790, %v4870
      %v4938 = vadd.f32 %v4791, %v4872
      %v4939 = vadd.f32 %v4792, %v4874
      %v4940 = vadd.f32 %v4793, %v4876
      %v4941 = vadd.f32 %v4794, %v4878
      %v4942 = vadd.f32 %v4795, %v4880
      %v4943 = vadd.f32 %v4796, %v4882
      %v4944 = vadd.f32 %v4797, %v4884
      %v4945 = vadd.f32 %v4798, %v4886
      %v4946 = vadd.f32 %v4799, %v4888
      %v4947 = vadd.f32 %v4800, %v4890
      %v4948 = vadd.f32 %v4801, %v4892
      %v4949 = vadd.f32 %v4802, %v4894
      %v4950 = vadd.f32 %v4803, %v4896
      %v4951 = vadd.f32 %v4804, %v4898
      %v4952 = vadd.f32 %v4805, %v4900
      %v4953 = vadd.f32 %v4806, %v4902
      %v4954 = vadd.f32 %v4807, %v4904
      %v4955 = vadd.f32 %v4808, %v4906
      %v4956 = vadd.f32 %v4809, %v4908
      %s4957 = sadd.s32 %s1634, 27
      %s4958 = sld [smem:[#allocation8 + %s4957]]
      %s4959 = scalar_lea.vmem [#allocation2], 768
      %v4960 = vld [vmem:[%s4959] sm:$0xff]
      %v4961 = vld [vmem:[%s4959 + $0x8] sm:$0xff]
      %v4962 = vld [vmem:[%s4959 + $0x10] sm:$0xff]
      %v4963 = vld [vmem:[%s4959 + $0x20] sm:$0xff]
      %v4964 = vld [vmem:[%s4959 + $0x28] sm:$0xff]
      %v4965 = vld [vmem:[%s4959 + $0x30] sm:$0xff]
      %v4966 = vld [vmem:[%s4959 + $0x40] sm:$0xff]
      %v4967 = vld [vmem:[%s4959 + $0x48] sm:$0xff]
      %v4968 = vld [vmem:[%s4959 + $0x50] sm:$0xff]
      %v4969 = vld [vmem:[%s4959 + $0x60] sm:$0xff]
      %v4970 = vld [vmem:[%s4959 + $0x68] sm:$0xff]
      %v4971 = vld [vmem:[%s4959 + $0x70] sm:$0xff]
      %v4972 = vld [vmem:[%s4959 + $0x80] sm:$0xff]
      %v4973 = vld [vmem:[%s4959 + $0x88] sm:$0xff]
      %v4974 = vld [vmem:[%s4959 + $0x90] sm:$0xff]
      %v4975 = vld [vmem:[%s4959 + $0xa0] sm:$0xff]
      %v4976 = vld [vmem:[%s4959 + $0xa8] sm:$0xff]
      %v4977 = vld [vmem:[%s4959 + $0xb0] sm:$0xff]
      %v4978 = vld [vmem:[%s4959 + $0xc0] sm:$0xff]
      %v4979 = vld [vmem:[%s4959 + $0xc8] sm:$0xff]
      %v4980 = vld [vmem:[%s4959 + $0xd0] sm:$0xff]
      %v4981 = vld [vmem:[%s4959 + $0xe0] sm:$0xff]
      %v4982 = vld [vmem:[%s4959 + $0xe8] sm:$0xff]
      %v4983 = vld [vmem:[%s4959 + $0xf0] sm:$0xff]
      %v4984 = vstv %s4958
      %v4985 = vmul.f32 %v4984, %v4960
      %v4986 = vmul.f32 %v4984, %v4961
      %v4987 = vmul.f32 %v4984, %v4962
      %v4988 = vmul.f32 %v4984, %v4963
      %v4989 = vmul.f32 %v4984, %v4964
      %v4990 = vmul.f32 %v4984, %v4965
      %v4991 = vmul.f32 %v4984, %v4966
      %v4992 = vmul.f32 %v4984, %v4967
      %v4993 = vmul.f32 %v4984, %v4968
      %v4994 = vmul.f32 %v4984, %v4969
      %v4995 = vmul.f32 %v4984, %v4970
      %v4996 = vmul.f32 %v4984, %v4971
      %v4997 = vmul.f32 %v4984, %v4972
      %v4998 = vmul.f32 %v4984, %v4973
      %v4999 = vmul.f32 %v4984, %v4974
      %v5000 = vmul.f32 %v4984, %v4975
      %v5001 = vmul.f32 %v4984, %v4976
      %v5002 = vmul.f32 %v4984, %v4977
      %v5003 = vmul.f32 %v4984, %v4978
      %v5004 = vmul.f32 %v4984, %v4979
      %v5005 = vmul.f32 %v4984, %v4980
      %v5006 = vmul.f32 %v4984, %v4981
      %v5007 = vmul.f32 %v4984, %v4982
      %v5008 = vmul.f32 %v4984, %v4983
      %v5009 = vadd.f32 %v4933, %v4985
      %v5010 = vadd.f32 %v4934, %v4986
      %v5011 = vadd.f32 %v4935, %v4987
      %v5012 = vadd.f32 %v4936, %v4988
      %v5013 = vadd.f32 %v4937, %v4989
      %v5014 = vadd.f32 %v4938, %v4990
      %v5015 = vadd.f32 %v4939, %v4991
      %v5016 = vadd.f32 %v4940, %v4992
      %v5017 = vadd.f32 %v4941, %v4993
      %v5018 = vadd.f32 %v4942, %v4994
      %v5019 = vadd.f32 %v4943, %v4995
      %v5020 = vadd.f32 %v4944, %v4996
      %v5021 = vadd.f32 %v4945, %v4997
      %v5022 = vadd.f32 %v4946, %v4998
      %v5023 = vadd.f32 %v4947, %v4999
      %v5024 = vadd.f32 %v4948, %v5000
      %v5025 = vadd.f32 %v4949, %v5001
      %v5026 = vadd.f32 %v4950, %v5002
      %v5027 = vadd.f32 %v4951, %v5003
      %v5028 = vadd.f32 %v4952, %v5004
      %v5029 = vadd.f32 %v4953, %v5005
      %v5030 = vadd.f32 %v4954, %v5006
      %v5031 = vadd.f32 %v4955, %v5007
      %v5032 = vadd.f32 %v4956, %v5008
      %s5033 = sadd.s32 %s1634, 28
      %s5034 = sld [smem:[#allocation8 + %s5033]]
      %v5035 = vstv %s5034
      %v5036 = vmul.f32 %v5035, %v4960
      %v5037 = vmul.f32 %v5035, %v4961
      %v5038 = vmul.f32 %v5035, %v4962
      %v5039 = vmul.f32 %v5035, %v4963
      %v5040 = vmul.f32 %v5035, %v4964
      %v5041 = vmul.f32 %v5035, %v4965
      %v5042 = vmul.f32 %v5035, %v4966
      %v5043 = vmul.f32 %v5035, %v4967
      %v5044 = vmul.f32 %v5035, %v4968
      %v5045 = vmul.f32 %v5035, %v4969
      %v5046 = vmul.f32 %v5035, %v4970
      %v5047 = vmul.f32 %v5035, %v4971
      %v5048 = vmul.f32 %v5035, %v4972
      %v5049 = vmul.f32 %v5035, %v4973
      %v5050 = vmul.f32 %v5035, %v4974
      %v5051 = vmul.f32 %v5035, %v4975
      %v5052 = vmul.f32 %v5035, %v4976
      %v5053 = vmul.f32 %v5035, %v4977
      %v5054 = vmul.f32 %v5035, %v4978
      %v5055 = vmul.f32 %v5035, %v4979
      %v5056 = vmul.f32 %v5035, %v4980
      %v5057 = vmul.f32 %v5035, %v4981
      %v5058 = vmul.f32 %v5035, %v4982
      %v5059 = vmul.f32 %v5035, %v4983
      %5084 = vrot.lane.b32.xlu0 %v5036, 127
      %v5085 = vpop.permute.xlu0 %5084
      %5086 = vrot.lane.b32.xlu0 %v5037, 127
      %v5087 = vpop.permute.xlu0 %5086
      %5088 = vrot.lane.b32.xlu0 %v5038, 127
      %v5089 = vpop.permute.xlu0 %5088
      %5090 = vrot.lane.b32.xlu0 %v5039, 127
      %v5091 = vpop.permute.xlu0 %5090
      %5092 = vrot.lane.b32.xlu0 %v5040, 127
      %v5093 = vpop.permute.xlu0 %5092
      %5094 = vrot.lane.b32.xlu0 %v5041, 127
      %v5095 = vpop.permute.xlu0 %5094
      %5096 = vrot.lane.b32.xlu0 %v5042, 127
      %v5097 = vpop.permute.xlu0 %5096
      %5098 = vrot.lane.b32.xlu0 %v5043, 127
      %v5099 = vpop.permute.xlu0 %5098
      %5100 = vrot.lane.b32.xlu0 %v5044, 127
      %v5101 = vpop.permute.xlu0 %5100
      %5102 = vrot.lane.b32.xlu0 %v5045, 127
      %v5103 = vpop.permute.xlu0 %5102
      %5104 = vrot.lane.b32.xlu0 %v5046, 127
      %v5105 = vpop.permute.xlu0 %5104
      %5106 = vrot.lane.b32.xlu0 %v5047, 127
      %v5107 = vpop.permute.xlu0 %5106
      %5108 = vrot.lane.b32.xlu0 %v5048, 127
      %v5109 = vpop.permute.xlu0 %5108
      %5110 = vrot.lane.b32.xlu0 %v5049, 127
      %v5111 = vpop.permute.xlu0 %5110
      %5112 = vrot.lane.b32.xlu0 %v5050, 127
      %v5113 = vpop.permute.xlu0 %5112
      %5114 = vrot.lane.b32.xlu0 %v5051, 127
      %v5115 = vpop.permute.xlu0 %5114
      %5116 = vrot.lane.b32.xlu0 %v5052, 127
      %v5117 = vpop.permute.xlu0 %5116
      %5118 = vrot.lane.b32.xlu0 %v5053, 127
      %v5119 = vpop.permute.xlu0 %5118
      %5120 = vrot.lane.b32.xlu0 %v5054, 127
      %v5121 = vpop.permute.xlu0 %5120
      %5122 = vrot.lane.b32.xlu0 %v5055, 127
      %v5123 = vpop.permute.xlu0 %5122
      %5124 = vrot.lane.b32.xlu0 %v5056, 127
      %v5125 = vpop.permute.xlu0 %5124
      %5126 = vrot.lane.b32.xlu0 %v5057, 127
      %v5127 = vpop.permute.xlu0 %5126
      %5128 = vrot.lane.b32.xlu0 %v5058, 127
      %v5129 = vpop.permute.xlu0 %5128
      %5130 = vrot.lane.b32.xlu0 %v5059, 127
      %v5131 = vpop.permute.xlu0 %5130
      %v5156 = vadd.f32 %v5009, %v5085
      %v5157 = vadd.f32 %v5010, %v5087
      %v5158 = vadd.f32 %v5011, %v5089
      %v5159 = vadd.f32 %v5012, %v5091
      %v5160 = vadd.f32 %v5013, %v5093
      %v5161 = vadd.f32 %v5014, %v5095
      %v5162 = vadd.f32 %v5015, %v5097
      %v5163 = vadd.f32 %v5016, %v5099
      %v5164 = vadd.f32 %v5017, %v5101
      %v5165 = vadd.f32 %v5018, %v5103
      %v5166 = vadd.f32 %v5019, %v5105
      %v5167 = vadd.f32 %v5020, %v5107
      %v5168 = vadd.f32 %v5021, %v5109
      %v5169 = vadd.f32 %v5022, %v5111
      %v5170 = vadd.f32 %v5023, %v5113
      %v5171 = vadd.f32 %v5024, %v5115
      %v5172 = vadd.f32 %v5025, %v5117
      %v5173 = vadd.f32 %v5026, %v5119
      %v5174 = vadd.f32 %v5027, %v5121
      %v5175 = vadd.f32 %v5028, %v5123
      %v5176 = vadd.f32 %v5029, %v5125
      %v5177 = vadd.f32 %v5030, %v5127
      %v5178 = vadd.f32 %v5031, %v5129
      %v5179 = vadd.f32 %v5032, %v5131
      %s5180 = sadd.s32 %s1634, 29
      %s5181 = sld [smem:[#allocation8 + %s5180]]
      %v5182 = vstv %s5181
      %v5183 = vmul.f32 %v5182, %v4960
      %v5184 = vmul.f32 %v5182, %v4961
      %v5185 = vmul.f32 %v5182, %v4962
      %v5186 = vmul.f32 %v5182, %v4963
      %v5187 = vmul.f32 %v5182, %v4964
      %v5188 = vmul.f32 %v5182, %v4965
      %v5189 = vmul.f32 %v5182, %v4966
      %v5190 = vmul.f32 %v5182, %v4967
      %v5191 = vmul.f32 %v5182, %v4968
      %v5192 = vmul.f32 %v5182, %v4969
      %v5193 = vmul.f32 %v5182, %v4970
      %v5194 = vmul.f32 %v5182, %v4971
      %v5195 = vmul.f32 %v5182, %v4972
      %v5196 = vmul.f32 %v5182, %v4973
      %v5197 = vmul.f32 %v5182, %v4974
      %v5198 = vmul.f32 %v5182, %v4975
      %v5199 = vmul.f32 %v5182, %v4976
      %v5200 = vmul.f32 %v5182, %v4977
      %v5201 = vmul.f32 %v5182, %v4978
      %v5202 = vmul.f32 %v5182, %v4979
      %v5203 = vmul.f32 %v5182, %v4980
      %v5204 = vmul.f32 %v5182, %v4981
      %v5205 = vmul.f32 %v5182, %v4982
      %v5206 = vmul.f32 %v5182, %v4983
      %5231 = vrot.lane.b32.xlu0 %v5183, 126
      %v5232 = vpop.permute.xlu0 %5231
      %5233 = vrot.lane.b32.xlu0 %v5184, 126
      %v5234 = vpop.permute.xlu0 %5233
      %5235 = vrot.lane.b32.xlu0 %v5185, 126
      %v5236 = vpop.permute.xlu0 %5235
      %5237 = vrot.lane.b32.xlu0 %v5186, 126
      %v5238 = vpop.permute.xlu0 %5237
      %5239 = vrot.lane.b32.xlu0 %v5187, 126
      %v5240 = vpop.permute.xlu0 %5239
      %5241 = vrot.lane.b32.xlu0 %v5188, 126
      %v5242 = vpop.permute.xlu0 %5241
      %5243 = vrot.lane.b32.xlu0 %v5189, 126
      %v5244 = vpop.permute.xlu0 %5243
      %5245 = vrot.lane.b32.xlu0 %v5190, 126
      %v5246 = vpop.permute.xlu0 %5245
      %5247 = vrot.lane.b32.xlu0 %v5191, 126
      %v5248 = vpop.permute.xlu0 %5247
      %5249 = vrot.lane.b32.xlu0 %v5192, 126
      %v5250 = vpop.permute.xlu0 %5249
      %5251 = vrot.lane.b32.xlu0 %v5193, 126
      %v5252 = vpop.permute.xlu0 %5251
      %5253 = vrot.lane.b32.xlu0 %v5194, 126
      %v5254 = vpop.permute.xlu0 %5253
      %5255 = vrot.lane.b32.xlu0 %v5195, 126
      %v5256 = vpop.permute.xlu0 %5255
      %5257 = vrot.lane.b32.xlu0 %v5196, 126
      %v5258 = vpop.permute.xlu0 %5257
      %5259 = vrot.lane.b32.xlu0 %v5197, 126
      %v5260 = vpop.permute.xlu0 %5259
      %5261 = vrot.lane.b32.xlu0 %v5198, 126
      %v5262 = vpop.permute.xlu0 %5261
      %5263 = vrot.lane.b32.xlu0 %v5199, 126
      %v5264 = vpop.permute.xlu0 %5263
      %5265 = vrot.lane.b32.xlu0 %v5200, 126
      %v5266 = vpop.permute.xlu0 %5265
      %5267 = vrot.lane.b32.xlu0 %v5201, 126
      %v5268 = vpop.permute.xlu0 %5267
      %5269 = vrot.lane.b32.xlu0 %v5202, 126
      %v5270 = vpop.permute.xlu0 %5269
      %5271 = vrot.lane.b32.xlu0 %v5203, 126
      %v5272 = vpop.permute.xlu0 %5271
      %5273 = vrot.lane.b32.xlu0 %v5204, 126
      %v5274 = vpop.permute.xlu0 %5273
      %5275 = vrot.lane.b32.xlu0 %v5205, 126
      %v5276 = vpop.permute.xlu0 %5275
      %5277 = vrot.lane.b32.xlu0 %v5206, 126
      %v5278 = vpop.permute.xlu0 %5277
      %v5303 = vadd.f32 %v5156, %v5232
      %v5304 = vadd.f32 %v5157, %v5234
      %v5305 = vadd.f32 %v5158, %v5236
      %v5306 = vadd.f32 %v5159, %v5238
      %v5307 = vadd.f32 %v5160, %v5240
      %v5308 = vadd.f32 %v5161, %v5242
      %v5309 = vadd.f32 %v5162, %v5244
      %v5310 = vadd.f32 %v5163, %v5246
      %v5311 = vadd.f32 %v5164, %v5248
      %v5312 = vadd.f32 %v5165, %v5250
      %v5313 = vadd.f32 %v5166, %v5252
      %v5314 = vadd.f32 %v5167, %v5254
      %v5315 = vadd.f32 %v5168, %v5256
      %v5316 = vadd.f32 %v5169, %v5258
      %v5317 = vadd.f32 %v5170, %v5260
      %v5318 = vadd.f32 %v5171, %v5262
      %v5319 = vadd.f32 %v5172, %v5264
      %v5320 = vadd.f32 %v5173, %v5266
      %v5321 = vadd.f32 %v5174, %v5268
      %v5322 = vadd.f32 %v5175, %v5270
      %v5323 = vadd.f32 %v5176, %v5272
      %v5324 = vadd.f32 %v5177, %v5274
      %v5325 = vadd.f32 %v5178, %v5276
      %v5326 = vadd.f32 %v5179, %v5278
      %s5327 = sadd.s32 %s1634, 30
      %s5328 = sld [smem:[#allocation8 + %s5327]]
      %v5329 = vld [vmem:[%s4959 + $0x1] sm:$0xff]
      %v5330 = vld [vmem:[%s4959 + $0x9] sm:$0xff]
      %v5331 = vld [vmem:[%s4959 + $0x11] sm:$0xff]
      %v5332 = vld [vmem:[%s4959 + $0x21] sm:$0xff]
      %v5333 = vld [vmem:[%s4959 + $0x29] sm:$0xff]
      %v5334 = vld [vmem:[%s4959 + $0x31] sm:$0xff]
      %v5335 = vld [vmem:[%s4959 + $0x41] sm:$0xff]
      %v5336 = vld [vmem:[%s4959 + $0x49] sm:$0xff]
      %v5337 = vld [vmem:[%s4959 + $0x51] sm:$0xff]
      %v5338 = vld [vmem:[%s4959 + $0x61] sm:$0xff]
      %v5339 = vld [vmem:[%s4959 + $0x69] sm:$0xff]
      %v5340 = vld [vmem:[%s4959 + $0x71] sm:$0xff]
      %v5341 = vld [vmem:[%s4959 + $0x81] sm:$0xff]
      %v5342 = vld [vmem:[%s4959 + $0x89] sm:$0xff]
      %v5343 = vld [vmem:[%s4959 + $0x91] sm:$0xff]
      %v5344 = vld [vmem:[%s4959 + $0xa1] sm:$0xff]
      %v5345 = vld [vmem:[%s4959 + $0xa9] sm:$0xff]
      %v5346 = vld [vmem:[%s4959 + $0xb1] sm:$0xff]
      %v5347 = vld [vmem:[%s4959 + $0xc1] sm:$0xff]
      %v5348 = vld [vmem:[%s4959 + $0xc9] sm:$0xff]
      %v5349 = vld [vmem:[%s4959 + $0xd1] sm:$0xff]
      %v5350 = vld [vmem:[%s4959 + $0xe1] sm:$0xff]
      %v5351 = vld [vmem:[%s4959 + $0xe9] sm:$0xff]
      %v5352 = vld [vmem:[%s4959 + $0xf1] sm:$0xff]
      %v5353 = vstv %s5328
      %v5354 = vmul.f32 %v5353, %v5329
      %v5355 = vmul.f32 %v5353, %v5330
      %v5356 = vmul.f32 %v5353, %v5331
      %v5357 = vmul.f32 %v5353, %v5332
      %v5358 = vmul.f32 %v5353, %v5333
      %v5359 = vmul.f32 %v5353, %v5334
      %v5360 = vmul.f32 %v5353, %v5335
      %v5361 = vmul.f32 %v5353, %v5336
      %v5362 = vmul.f32 %v5353, %v5337
      %v5363 = vmul.f32 %v5353, %v5338
      %v5364 = vmul.f32 %v5353, %v5339
      %v5365 = vmul.f32 %v5353, %v5340
      %v5366 = vmul.f32 %v5353, %v5341
      %v5367 = vmul.f32 %v5353, %v5342
      %v5368 = vmul.f32 %v5353, %v5343
      %v5369 = vmul.f32 %v5353, %v5344
      %v5370 = vmul.f32 %v5353, %v5345
      %v5371 = vmul.f32 %v5353, %v5346
      %v5372 = vmul.f32 %v5353, %v5347
      %v5373 = vmul.f32 %v5353, %v5348
      %v5374 = vmul.f32 %v5353, %v5349
      %v5375 = vmul.f32 %v5353, %v5350
      %v5376 = vmul.f32 %v5353, %v5351
      %v5377 = vmul.f32 %v5353, %v5352
      %v5378 = vadd.f32 %v5303, %v5354
      %v5379 = vadd.f32 %v5304, %v5355
      %v5380 = vadd.f32 %v5305, %v5356
      %v5381 = vadd.f32 %v5306, %v5357
      %v5382 = vadd.f32 %v5307, %v5358
      %v5383 = vadd.f32 %v5308, %v5359
      %v5384 = vadd.f32 %v5309, %v5360
      %v5385 = vadd.f32 %v5310, %v5361
      %v5386 = vadd.f32 %v5311, %v5362
      %v5387 = vadd.f32 %v5312, %v5363
      %v5388 = vadd.f32 %v5313, %v5364
      %v5389 = vadd.f32 %v5314, %v5365
      %v5390 = vadd.f32 %v5315, %v5366
      %v5391 = vadd.f32 %v5316, %v5367
      %v5392 = vadd.f32 %v5317, %v5368
      %v5393 = vadd.f32 %v5318, %v5369
      %v5394 = vadd.f32 %v5319, %v5370
      %v5395 = vadd.f32 %v5320, %v5371
      %v5396 = vadd.f32 %v5321, %v5372
      %v5397 = vadd.f32 %v5322, %v5373
      %v5398 = vadd.f32 %v5323, %v5374
      %v5399 = vadd.f32 %v5324, %v5375
      %v5400 = vadd.f32 %v5325, %v5376
      %v5401 = vadd.f32 %v5326, %v5377
      %s5402 = sadd.s32 %s1634, 31
      %s5403 = sld [smem:[#allocation8 + %s5402]]
      %v5404 = vstv %s5403
      %v5405 = vmul.f32 %v5404, %v5329
      %v5406 = vmul.f32 %v5404, %v5330
      %v5407 = vmul.f32 %v5404, %v5331
      %v5408 = vmul.f32 %v5404, %v5332
      %v5409 = vmul.f32 %v5404, %v5333
      %v5410 = vmul.f32 %v5404, %v5334
      %v5411 = vmul.f32 %v5404, %v5335
      %v5412 = vmul.f32 %v5404, %v5336
      %v5413 = vmul.f32 %v5404, %v5337
      %v5414 = vmul.f32 %v5404, %v5338
      %v5415 = vmul.f32 %v5404, %v5339
      %v5416 = vmul.f32 %v5404, %v5340
      %v5417 = vmul.f32 %v5404, %v5341
      %v5418 = vmul.f32 %v5404, %v5342
      %v5419 = vmul.f32 %v5404, %v5343
      %v5420 = vmul.f32 %v5404, %v5344
      %v5421 = vmul.f32 %v5404, %v5345
      %v5422 = vmul.f32 %v5404, %v5346
      %v5423 = vmul.f32 %v5404, %v5347
      %v5424 = vmul.f32 %v5404, %v5348
      %v5425 = vmul.f32 %v5404, %v5349
      %v5426 = vmul.f32 %v5404, %v5350
      %v5427 = vmul.f32 %v5404, %v5351
      %v5428 = vmul.f32 %v5404, %v5352
      %5453 = vrot.lane.b32.xlu0 %v5405, 127
      %v5454 = vpop.permute.xlu0 %5453
      %5455 = vrot.lane.b32.xlu0 %v5406, 127
      %v5456 = vpop.permute.xlu0 %5455
      %5457 = vrot.lane.b32.xlu0 %v5407, 127
      %v5458 = vpop.permute.xlu0 %5457
      %5459 = vrot.lane.b32.xlu0 %v5408, 127
      %v5460 = vpop.permute.xlu0 %5459
      %5461 = vrot.lane.b32.xlu0 %v5409, 127
      %v5462 = vpop.permute.xlu0 %5461
      %5463 = vrot.lane.b32.xlu0 %v5410, 127
      %v5464 = vpop.permute.xlu0 %5463
      %5465 = vrot.lane.b32.xlu0 %v5411, 127
      %v5466 = vpop.permute.xlu0 %5465
      %5467 = vrot.lane.b32.xlu0 %v5412, 127
      %v5468 = vpop.permute.xlu0 %5467
      %5469 = vrot.lane.b32.xlu0 %v5413, 127
      %v5470 = vpop.permute.xlu0 %5469
      %5471 = vrot.lane.b32.xlu0 %v5414, 127
      %v5472 = vpop.permute.xlu0 %5471
      %5473 = vrot.lane.b32.xlu0 %v5415, 127
      %v5474 = vpop.permute.xlu0 %5473
      %5475 = vrot.lane.b32.xlu0 %v5416, 127
      %v5476 = vpop.permute.xlu0 %5475
      %5477 = vrot.lane.b32.xlu0 %v5417, 127
      %v5478 = vpop.permute.xlu0 %5477
      %5479 = vrot.lane.b32.xlu0 %v5418, 127
      %v5480 = vpop.permute.xlu0 %5479
      %5481 = vrot.lane.b32.xlu0 %v5419, 127
      %v5482 = vpop.permute.xlu0 %5481
      %5483 = vrot.lane.b32.xlu0 %v5420, 127
      %v5484 = vpop.permute.xlu0 %5483
      %5485 = vrot.lane.b32.xlu0 %v5421, 127
      %v5486 = vpop.permute.xlu0 %5485
      %5487 = vrot.lane.b32.xlu0 %v5422, 127
      %v5488 = vpop.permute.xlu0 %5487
      %5489 = vrot.lane.b32.xlu0 %v5423, 127
      %v5490 = vpop.permute.xlu0 %5489
      %5491 = vrot.lane.b32.xlu0 %v5424, 127
      %v5492 = vpop.permute.xlu0 %5491
      %5493 = vrot.lane.b32.xlu0 %v5425, 127
      %v5494 = vpop.permute.xlu0 %5493
      %5495 = vrot.lane.b32.xlu0 %v5426, 127
      %v5496 = vpop.permute.xlu0 %5495
      %5497 = vrot.lane.b32.xlu0 %v5427, 127
      %v5498 = vpop.permute.xlu0 %5497
      %5499 = vrot.lane.b32.xlu0 %v5428, 127
      %v5500 = vpop.permute.xlu0 %5499
      %v5525 = vadd.f32 %v5378, %v5454
      %v5526 = vadd.f32 %v5379, %v5456
      %v5527 = vadd.f32 %v5380, %v5458
      %v5528 = vadd.f32 %v5381, %v5460
      %v5529 = vadd.f32 %v5382, %v5462
      %v5530 = vadd.f32 %v5383, %v5464
      %v5531 = vadd.f32 %v5384, %v5466
      %v5532 = vadd.f32 %v5385, %v5468
      %v5533 = vadd.f32 %v5386, %v5470
      %v5534 = vadd.f32 %v5387, %v5472
      %v5535 = vadd.f32 %v5388, %v5474
      %v5536 = vadd.f32 %v5389, %v5476
      %v5537 = vadd.f32 %v5390, %v5478
      %v5538 = vadd.f32 %v5391, %v5480
      %v5539 = vadd.f32 %v5392, %v5482
      %v5540 = vadd.f32 %v5393, %v5484
      %v5541 = vadd.f32 %v5394, %v5486
      %v5542 = vadd.f32 %v5395, %v5488
      %v5543 = vadd.f32 %v5396, %v5490
      %v5544 = vadd.f32 %v5397, %v5492
      %v5545 = vadd.f32 %v5398, %v5494
      %v5546 = vadd.f32 %v5399, %v5496
      %v5547 = vadd.f32 %v5400, %v5498
      %v5548 = vadd.f32 %v5401, %v5500
      %s5549 = sadd.s32 %s1634, 32
      %s5550 = sld [smem:[#allocation8 + %s5549]]
      %v5551 = vstv %s5550
      %v5552 = vmul.f32 %v5551, %v5329
      %v5553 = vmul.f32 %v5551, %v5330
      %v5554 = vmul.f32 %v5551, %v5331
      %v5555 = vmul.f32 %v5551, %v5332
      %v5556 = vmul.f32 %v5551, %v5333
      %v5557 = vmul.f32 %v5551, %v5334
      %v5558 = vmul.f32 %v5551, %v5335
      %v5559 = vmul.f32 %v5551, %v5336
      %v5560 = vmul.f32 %v5551, %v5337
      %v5561 = vmul.f32 %v5551, %v5338
      %v5562 = vmul.f32 %v5551, %v5339
      %v5563 = vmul.f32 %v5551, %v5340
      %v5564 = vmul.f32 %v5551, %v5341
      %v5565 = vmul.f32 %v5551, %v5342
      %v5566 = vmul.f32 %v5551, %v5343
      %v5567 = vmul.f32 %v5551, %v5344
      %v5568 = vmul.f32 %v5551, %v5345
      %v5569 = vmul.f32 %v5551, %v5346
      %v5570 = vmul.f32 %v5551, %v5347
      %v5571 = vmul.f32 %v5551, %v5348
      %v5572 = vmul.f32 %v5551, %v5349
      %v5573 = vmul.f32 %v5551, %v5350
      %v5574 = vmul.f32 %v5551, %v5351
      %v5575 = vmul.f32 %v5551, %v5352
      %5600 = vrot.lane.b32.xlu0 %v5552, 126
      %v5601 = vpop.permute.xlu0 %5600
      %5602 = vrot.lane.b32.xlu0 %v5553, 126
      %v5603 = vpop.permute.xlu0 %5602
      %5604 = vrot.lane.b32.xlu0 %v5554, 126
      %v5605 = vpop.permute.xlu0 %5604
      %5606 = vrot.lane.b32.xlu0 %v5555, 126
      %v5607 = vpop.permute.xlu0 %5606
      %5608 = vrot.lane.b32.xlu0 %v5556, 126
      %v5609 = vpop.permute.xlu0 %5608
      %5610 = vrot.lane.b32.xlu0 %v5557, 126
      %v5611 = vpop.permute.xlu0 %5610
      %5612 = vrot.lane.b32.xlu0 %v5558, 126
      %v5613 = vpop.permute.xlu0 %5612
      %5614 = vrot.lane.b32.xlu0 %v5559, 126
      %v5615 = vpop.permute.xlu0 %5614
      %5616 = vrot.lane.b32.xlu0 %v5560, 126
      %v5617 = vpop.permute.xlu0 %5616
      %5618 = vrot.lane.b32.xlu0 %v5561, 126
      %v5619 = vpop.permute.xlu0 %5618
      %5620 = vrot.lane.b32.xlu0 %v5562, 126
      %v5621 = vpop.permute.xlu0 %5620
      %5622 = vrot.lane.b32.xlu0 %v5563, 126
      %v5623 = vpop.permute.xlu0 %5622
      %5624 = vrot.lane.b32.xlu0 %v5564, 126
      %v5625 = vpop.permute.xlu0 %5624
      %5626 = vrot.lane.b32.xlu0 %v5565, 126
      %v5627 = vpop.permute.xlu0 %5626
      %5628 = vrot.lane.b32.xlu0 %v5566, 126
      %v5629 = vpop.permute.xlu0 %5628
      %5630 = vrot.lane.b32.xlu0 %v5567, 126
      %v5631 = vpop.permute.xlu0 %5630
      %5632 = vrot.lane.b32.xlu0 %v5568, 126
      %v5633 = vpop.permute.xlu0 %5632
      %5634 = vrot.lane.b32.xlu0 %v5569, 126
      %v5635 = vpop.permute.xlu0 %5634
      %5636 = vrot.lane.b32.xlu0 %v5570, 126
      %v5637 = vpop.permute.xlu0 %5636
      %5638 = vrot.lane.b32.xlu0 %v5571, 126
      %v5639 = vpop.permute.xlu0 %5638
      %5640 = vrot.lane.b32.xlu0 %v5572, 126
      %v5641 = vpop.permute.xlu0 %5640
      %5642 = vrot.lane.b32.xlu0 %v5573, 126
      %v5643 = vpop.permute.xlu0 %5642
      %5644 = vrot.lane.b32.xlu0 %v5574, 126
      %v5645 = vpop.permute.xlu0 %5644
      %5646 = vrot.lane.b32.xlu0 %v5575, 126
      %v5647 = vpop.permute.xlu0 %5646
      %v5672 = vadd.f32 %v5525, %v5601
      %v5673 = vadd.f32 %v5526, %v5603
      %v5674 = vadd.f32 %v5527, %v5605
      %v5675 = vadd.f32 %v5528, %v5607
      %v5676 = vadd.f32 %v5529, %v5609
      %v5677 = vadd.f32 %v5530, %v5611
      %v5678 = vadd.f32 %v5531, %v5613
      %v5679 = vadd.f32 %v5532, %v5615
      %v5680 = vadd.f32 %v5533, %v5617
      %v5681 = vadd.f32 %v5534, %v5619
      %v5682 = vadd.f32 %v5535, %v5621
      %v5683 = vadd.f32 %v5536, %v5623
      %v5684 = vadd.f32 %v5537, %v5625
      %v5685 = vadd.f32 %v5538, %v5627
      %v5686 = vadd.f32 %v5539, %v5629
      %v5687 = vadd.f32 %v5540, %v5631
      %v5688 = vadd.f32 %v5541, %v5633
      %v5689 = vadd.f32 %v5542, %v5635
      %v5690 = vadd.f32 %v5543, %v5637
      %v5691 = vadd.f32 %v5544, %v5639
      %v5692 = vadd.f32 %v5545, %v5641
      %v5693 = vadd.f32 %v5546, %v5643
      %v5694 = vadd.f32 %v5547, %v5645
      %v5695 = vadd.f32 %v5548, %v5647
      %s5696 = sadd.s32 %s1634, 33
      %s5697 = sld [smem:[#allocation8 + %s5696]]
      %v5698 = vld [vmem:[%s4959 + $0x2] sm:$0xff]
      %v5699 = vld [vmem:[%s4959 + $0xa] sm:$0xff]
      %v5700 = vld [vmem:[%s4959 + $0x12] sm:$0xff]
      %v5701 = vld [vmem:[%s4959 + $0x22] sm:$0xff]
      %v5702 = vld [vmem:[%s4959 + $0x2a] sm:$0xff]
      %v5703 = vld [vmem:[%s4959 + $0x32] sm:$0xff]
      %v5704 = vld [vmem:[%s4959 + $0x42] sm:$0xff]
      %v5705 = vld [vmem:[%s4959 + $0x4a] sm:$0xff]
      %v5706 = vld [vmem:[%s4959 + $0x52] sm:$0xff]
      %v5707 = vld [vmem:[%s4959 + $0x62] sm:$0xff]
      %v5708 = vld [vmem:[%s4959 + $0x6a] sm:$0xff]
      %v5709 = vld [vmem:[%s4959 + $0x72] sm:$0xff]
      %v5710 = vld [vmem:[%s4959 + $0x82] sm:$0xff]
      %v5711 = vld [vmem:[%s4959 + $0x8a] sm:$0xff]
      %v5712 = vld [vmem:[%s4959 + $0x92] sm:$0xff]
      %v5713 = vld [vmem:[%s4959 + $0xa2] sm:$0xff]
      %v5714 = vld [vmem:[%s4959 + $0xaa] sm:$0xff]
      %v5715 = vld [vmem:[%s4959 + $0xb2] sm:$0xff]
      %v5716 = vld [vmem:[%s4959 + $0xc2] sm:$0xff]
      %v5717 = vld [vmem:[%s4959 + $0xca] sm:$0xff]
      %v5718 = vld [vmem:[%s4959 + $0xd2] sm:$0xff]
      %v5719 = vld [vmem:[%s4959 + $0xe2] sm:$0xff]
      %v5720 = vld [vmem:[%s4959 + $0xea] sm:$0xff]
      %v5721 = vld [vmem:[%s4959 + $0xf2] sm:$0xff]
      %v5722 = vstv %s5697
      %v5723 = vmul.f32 %v5722, %v5698
      %v5724 = vmul.f32 %v5722, %v5699
      %v5725 = vmul.f32 %v5722, %v5700
      %v5726 = vmul.f32 %v5722, %v5701
      %v5727 = vmul.f32 %v5722, %v5702
      %v5728 = vmul.f32 %v5722, %v5703
      %v5729 = vmul.f32 %v5722, %v5704
      %v5730 = vmul.f32 %v5722, %v5705
      %v5731 = vmul.f32 %v5722, %v5706
      %v5732 = vmul.f32 %v5722, %v5707
      %v5733 = vmul.f32 %v5722, %v5708
      %v5734 = vmul.f32 %v5722, %v5709
      %v5735 = vmul.f32 %v5722, %v5710
      %v5736 = vmul.f32 %v5722, %v5711
      %v5737 = vmul.f32 %v5722, %v5712
      %v5738 = vmul.f32 %v5722, %v5713
      %v5739 = vmul.f32 %v5722, %v5714
      %v5740 = vmul.f32 %v5722, %v5715
      %v5741 = vmul.f32 %v5722, %v5716
      %v5742 = vmul.f32 %v5722, %v5717
      %v5743 = vmul.f32 %v5722, %v5718
      %v5744 = vmul.f32 %v5722, %v5719
      %v5745 = vmul.f32 %v5722, %v5720
      %v5746 = vmul.f32 %v5722, %v5721
      %v5747 = vadd.f32 %v5672, %v5723
      %v5748 = vadd.f32 %v5673, %v5724
      %v5749 = vadd.f32 %v5674, %v5725
      %v5750 = vadd.f32 %v5675, %v5726
      %v5751 = vadd.f32 %v5676, %v5727
      %v5752 = vadd.f32 %v5677, %v5728
      %v5753 = vadd.f32 %v5678, %v5729
      %v5754 = vadd.f32 %v5679, %v5730
      %v5755 = vadd.f32 %v5680, %v5731
      %v5756 = vadd.f32 %v5681, %v5732
      %v5757 = vadd.f32 %v5682, %v5733
      %v5758 = vadd.f32 %v5683, %v5734
      %v5759 = vadd.f32 %v5684, %v5735
      %v5760 = vadd.f32 %v5685, %v5736
      %v5761 = vadd.f32 %v5686, %v5737
      %v5762 = vadd.f32 %v5687, %v5738
      %v5763 = vadd.f32 %v5688, %v5739
      %v5764 = vadd.f32 %v5689, %v5740
      %v5765 = vadd.f32 %v5690, %v5741
      %v5766 = vadd.f32 %v5691, %v5742
      %v5767 = vadd.f32 %v5692, %v5743
      %v5768 = vadd.f32 %v5693, %v5744
      %v5769 = vadd.f32 %v5694, %v5745
      %v5770 = vadd.f32 %v5695, %v5746
      %s5771 = sadd.s32 %s1634, 34
      %s5772 = sld [smem:[#allocation8 + %s5771]]
      %v5773 = vstv %s5772
      %v5774 = vmul.f32 %v5773, %v5698
      %v5775 = vmul.f32 %v5773, %v5699
      %v5776 = vmul.f32 %v5773, %v5700
      %v5777 = vmul.f32 %v5773, %v5701
      %v5778 = vmul.f32 %v5773, %v5702
      %v5779 = vmul.f32 %v5773, %v5703
      %v5780 = vmul.f32 %v5773, %v5704
      %v5781 = vmul.f32 %v5773, %v5705
      %v5782 = vmul.f32 %v5773, %v5706
      %v5783 = vmul.f32 %v5773, %v5707
      %v5784 = vmul.f32 %v5773, %v5708
      %v5785 = vmul.f32 %v5773, %v5709
      %v5786 = vmul.f32 %v5773, %v5710
      %v5787 = vmul.f32 %v5773, %v5711
      %v5788 = vmul.f32 %v5773, %v5712
      %v5789 = vmul.f32 %v5773, %v5713
      %v5790 = vmul.f32 %v5773, %v5714
      %v5791 = vmul.f32 %v5773, %v5715
      %v5792 = vmul.f32 %v5773, %v5716
      %v5793 = vmul.f32 %v5773, %v5717
      %v5794 = vmul.f32 %v5773, %v5718
      %v5795 = vmul.f32 %v5773, %v5719
      %v5796 = vmul.f32 %v5773, %v5720
      %v5797 = vmul.f32 %v5773, %v5721
      %5822 = vrot.lane.b32.xlu0 %v5774, 127
      %v5823 = vpop.permute.xlu0 %5822
      %5824 = vrot.lane.b32.xlu0 %v5775, 127
      %v5825 = vpop.permute.xlu0 %5824
      %5826 = vrot.lane.b32.xlu0 %v5776, 127
      %v5827 = vpop.permute.xlu0 %5826
      %5828 = vrot.lane.b32.xlu0 %v5777, 127
      %v5829 = vpop.permute.xlu0 %5828
      %5830 = vrot.lane.b32.xlu0 %v5778, 127
      %v5831 = vpop.permute.xlu0 %5830
      %5832 = vrot.lane.b32.xlu0 %v5779, 127
      %v5833 = vpop.permute.xlu0 %5832
      %5834 = vrot.lane.b32.xlu0 %v5780, 127
      %v5835 = vpop.permute.xlu0 %5834
      %5836 = vrot.lane.b32.xlu0 %v5781, 127
      %v5837 = vpop.permute.xlu0 %5836
      %5838 = vrot.lane.b32.xlu0 %v5782, 127
      %v5839 = vpop.permute.xlu0 %5838
      %5840 = vrot.lane.b32.xlu0 %v5783, 127
      %v5841 = vpop.permute.xlu0 %5840
      %5842 = vrot.lane.b32.xlu0 %v5784, 127
      %v5843 = vpop.permute.xlu0 %5842
      %5844 = vrot.lane.b32.xlu0 %v5785, 127
      %v5845 = vpop.permute.xlu0 %5844
      %5846 = vrot.lane.b32.xlu0 %v5786, 127
      %v5847 = vpop.permute.xlu0 %5846
      %5848 = vrot.lane.b32.xlu0 %v5787, 127
      %v5849 = vpop.permute.xlu0 %5848
      %5850 = vrot.lane.b32.xlu0 %v5788, 127
      %v5851 = vpop.permute.xlu0 %5850
      %5852 = vrot.lane.b32.xlu0 %v5789, 127
      %v5853 = vpop.permute.xlu0 %5852
      %5854 = vrot.lane.b32.xlu0 %v5790, 127
      %v5855 = vpop.permute.xlu0 %5854
      %5856 = vrot.lane.b32.xlu0 %v5791, 127
      %v5857 = vpop.permute.xlu0 %5856
      %5858 = vrot.lane.b32.xlu0 %v5792, 127
      %v5859 = vpop.permute.xlu0 %5858
      %5860 = vrot.lane.b32.xlu0 %v5793, 127
      %v5861 = vpop.permute.xlu0 %5860
      %5862 = vrot.lane.b32.xlu0 %v5794, 127
      %v5863 = vpop.permute.xlu0 %5862
      %5864 = vrot.lane.b32.xlu0 %v5795, 127
      %v5865 = vpop.permute.xlu0 %5864
      %5866 = vrot.lane.b32.xlu0 %v5796, 127
      %v5867 = vpop.permute.xlu0 %5866
      %5868 = vrot.lane.b32.xlu0 %v5797, 127
      %v5869 = vpop.permute.xlu0 %5868
      %v5894 = vadd.f32 %v5747, %v5823
      %v5895 = vadd.f32 %v5748, %v5825
      %v5896 = vadd.f32 %v5749, %v5827
      %v5897 = vadd.f32 %v5750, %v5829
      %v5898 = vadd.f32 %v5751, %v5831
      %v5899 = vadd.f32 %v5752, %v5833
      %v5900 = vadd.f32 %v5753, %v5835
      %v5901 = vadd.f32 %v5754, %v5837
      %v5902 = vadd.f32 %v5755, %v5839
      %v5903 = vadd.f32 %v5756, %v5841
      %v5904 = vadd.f32 %v5757, %v5843
      %v5905 = vadd.f32 %v5758, %v5845
      %v5906 = vadd.f32 %v5759, %v5847
      %v5907 = vadd.f32 %v5760, %v5849
      %v5908 = vadd.f32 %v5761, %v5851
      %v5909 = vadd.f32 %v5762, %v5853
      %v5910 = vadd.f32 %v5763, %v5855
      %v5911 = vadd.f32 %v5764, %v5857
      %v5912 = vadd.f32 %v5765, %v5859
      %v5913 = vadd.f32 %v5766, %v5861
      %v5914 = vadd.f32 %v5767, %v5863
      %v5915 = vadd.f32 %v5768, %v5865
      %v5916 = vadd.f32 %v5769, %v5867
      %v5917 = vadd.f32 %v5770, %v5869
      %s5918 = sadd.s32 %s1634, 35
      %s5919 = sld [smem:[#allocation8 + %s5918]]
      %v5920 = vstv %s5919
      %v5921 = vmul.f32 %v5920, %v5698
      %v5922 = vmul.f32 %v5920, %v5699
      %v5923 = vmul.f32 %v5920, %v5700
      %v5924 = vmul.f32 %v5920, %v5701
      %v5925 = vmul.f32 %v5920, %v5702
      %v5926 = vmul.f32 %v5920, %v5703
      %v5927 = vmul.f32 %v5920, %v5704
      %v5928 = vmul.f32 %v5920, %v5705
      %v5929 = vmul.f32 %v5920, %v5706
      %v5930 = vmul.f32 %v5920, %v5707
      %v5931 = vmul.f32 %v5920, %v5708
      %v5932 = vmul.f32 %v5920, %v5709
      %v5933 = vmul.f32 %v5920, %v5710
      %v5934 = vmul.f32 %v5920, %v5711
      %v5935 = vmul.f32 %v5920, %v5712
      %v5936 = vmul.f32 %v5920, %v5713
      %v5937 = vmul.f32 %v5920, %v5714
      %v5938 = vmul.f32 %v5920, %v5715
      %v5939 = vmul.f32 %v5920, %v5716
      %v5940 = vmul.f32 %v5920, %v5717
      %v5941 = vmul.f32 %v5920, %v5718
      %v5942 = vmul.f32 %v5920, %v5719
      %v5943 = vmul.f32 %v5920, %v5720
      %v5944 = vmul.f32 %v5920, %v5721
      %5969 = vrot.lane.b32.xlu0 %v5921, 126
      %v5970 = vpop.permute.xlu0 %5969
      %5971 = vrot.lane.b32.xlu0 %v5922, 126
      %v5972 = vpop.permute.xlu0 %5971
      %5973 = vrot.lane.b32.xlu0 %v5923, 126
      %v5974 = vpop.permute.xlu0 %5973
      %5975 = vrot.lane.b32.xlu0 %v5924, 126
      %v5976 = vpop.permute.xlu0 %5975
      %5977 = vrot.lane.b32.xlu0 %v5925, 126
      %v5978 = vpop.permute.xlu0 %5977
      %5979 = vrot.lane.b32.xlu0 %v5926, 126
      %v5980 = vpop.permute.xlu0 %5979
      %5981 = vrot.lane.b32.xlu0 %v5927, 126
      %v5982 = vpop.permute.xlu0 %5981
      %5983 = vrot.lane.b32.xlu0 %v5928, 126
      %v5984 = vpop.permute.xlu0 %5983
      %5985 = vrot.lane.b32.xlu0 %v5929, 126
      %v5986 = vpop.permute.xlu0 %5985
      %5987 = vrot.lane.b32.xlu0 %v5930, 126
      %v5988 = vpop.permute.xlu0 %5987
      %5989 = vrot.lane.b32.xlu0 %v5931, 126
      %v5990 = vpop.permute.xlu0 %5989
      %5991 = vrot.lane.b32.xlu0 %v5932, 126
      %v5992 = vpop.permute.xlu0 %5991
      %5993 = vrot.lane.b32.xlu0 %v5933, 126
      %v5994 = vpop.permute.xlu0 %5993
      %5995 = vrot.lane.b32.xlu0 %v5934, 126
      %v5996 = vpop.permute.xlu0 %5995
      %5997 = vrot.lane.b32.xlu0 %v5935, 126
      %v5998 = vpop.permute.xlu0 %5997
      %5999 = vrot.lane.b32.xlu0 %v5936, 126
      %v6000 = vpop.permute.xlu0 %5999
      %6001 = vrot.lane.b32.xlu0 %v5937, 126
      %v6002 = vpop.permute.xlu0 %6001
      %6003 = vrot.lane.b32.xlu0 %v5938, 126
      %v6004 = vpop.permute.xlu0 %6003
      %6005 = vrot.lane.b32.xlu0 %v5939, 126
      %v6006 = vpop.permute.xlu0 %6005
      %6007 = vrot.lane.b32.xlu0 %v5940, 126
      %v6008 = vpop.permute.xlu0 %6007
      %6009 = vrot.lane.b32.xlu0 %v5941, 126
      %v6010 = vpop.permute.xlu0 %6009
      %6011 = vrot.lane.b32.xlu0 %v5942, 126
      %v6012 = vpop.permute.xlu0 %6011
      %6013 = vrot.lane.b32.xlu0 %v5943, 126
      %v6014 = vpop.permute.xlu0 %6013
      %6015 = vrot.lane.b32.xlu0 %v5944, 126
      %v6016 = vpop.permute.xlu0 %6015
      %v6041 = vadd.f32 %v5894, %v5970
      %v6042 = vadd.f32 %v5895, %v5972
      %v6043 = vadd.f32 %v5896, %v5974
      %v6044 = vadd.f32 %v5897, %v5976
      %v6045 = vadd.f32 %v5898, %v5978
      %v6046 = vadd.f32 %v5899, %v5980
      %v6047 = vadd.f32 %v5900, %v5982
      %v6048 = vadd.f32 %v5901, %v5984
      %v6049 = vadd.f32 %v5902, %v5986
      %v6050 = vadd.f32 %v5903, %v5988
      %v6051 = vadd.f32 %v5904, %v5990
      %v6052 = vadd.f32 %v5905, %v5992
      %v6053 = vadd.f32 %v5906, %v5994
      %v6054 = vadd.f32 %v5907, %v5996
      %v6055 = vadd.f32 %v5908, %v5998
      %v6056 = vadd.f32 %v5909, %v6000
      %v6057 = vadd.f32 %v5910, %v6002
      %v6058 = vadd.f32 %v5911, %v6004
      %v6059 = vadd.f32 %v5912, %v6006
      %v6060 = vadd.f32 %v5913, %v6008
      %v6061 = vadd.f32 %v5914, %v6010
      %v6062 = vadd.f32 %v5915, %v6012
      %v6063 = vadd.f32 %v5916, %v6014
      %v6064 = vadd.f32 %v5917, %v6016
      %s6065 = sadd.s32 %s1634, 36
      %s6066 = sld [smem:[#allocation8 + %s6065]]
      %s6067 = scalar_lea.vmem [#allocation2], 1024
      %v6068 = vld [vmem:[%s6067] sm:$0xff]
      %v6069 = vld [vmem:[%s6067 + $0x8] sm:$0xff]
      %v6070 = vld [vmem:[%s6067 + $0x10] sm:$0xff]
      %v6071 = vld [vmem:[%s6067 + $0x20] sm:$0xff]
      %v6072 = vld [vmem:[%s6067 + $0x28] sm:$0xff]
      %v6073 = vld [vmem:[%s6067 + $0x30] sm:$0xff]
      %v6074 = vld [vmem:[%s6067 + $0x40] sm:$0xff]
      %v6075 = vld [vmem:[%s6067 + $0x48] sm:$0xff]
      %v6076 = vld [vmem:[%s6067 + $0x50] sm:$0xff]
      %v6077 = vld [vmem:[%s6067 + $0x60] sm:$0xff]
      %v6078 = vld [vmem:[%s6067 + $0x68] sm:$0xff]
      %v6079 = vld [vmem:[%s6067 + $0x70] sm:$0xff]
      %v6080 = vld [vmem:[%s6067 + $0x80] sm:$0xff]
      %v6081 = vld [vmem:[%s6067 + $0x88] sm:$0xff]
      %v6082 = vld [vmem:[%s6067 + $0x90] sm:$0xff]
      %v6083 = vld [vmem:[%s6067 + $0xa0] sm:$0xff]
      %v6084 = vld [vmem:[%s6067 + $0xa8] sm:$0xff]
      %v6085 = vld [vmem:[%s6067 + $0xb0] sm:$0xff]
      %v6086 = vld [vmem:[%s6067 + $0xc0] sm:$0xff]
      %v6087 = vld [vmem:[%s6067 + $0xc8] sm:$0xff]
      %v6088 = vld [vmem:[%s6067 + $0xd0] sm:$0xff]
      %v6089 = vld [vmem:[%s6067 + $0xe0] sm:$0xff]
      %v6090 = vld [vmem:[%s6067 + $0xe8] sm:$0xff]
      %v6091 = vld [vmem:[%s6067 + $0xf0] sm:$0xff]
      %v6092 = vstv %s6066
      %v6093 = vmul.f32 %v6092, %v6068
      %v6094 = vmul.f32 %v6092, %v6069
      %v6095 = vmul.f32 %v6092, %v6070
      %v6096 = vmul.f32 %v6092, %v6071
      %v6097 = vmul.f32 %v6092, %v6072
      %v6098 = vmul.f32 %v6092, %v6073
      %v6099 = vmul.f32 %v6092, %v6074
      %v6100 = vmul.f32 %v6092, %v6075
      %v6101 = vmul.f32 %v6092, %v6076
      %v6102 = vmul.f32 %v6092, %v6077
      %v6103 = vmul.f32 %v6092, %v6078
      %v6104 = vmul.f32 %v6092, %v6079
      %v6105 = vmul.f32 %v6092, %v6080
      %v6106 = vmul.f32 %v6092, %v6081
      %v6107 = vmul.f32 %v6092, %v6082
      %v6108 = vmul.f32 %v6092, %v6083
      %v6109 = vmul.f32 %v6092, %v6084
      %v6110 = vmul.f32 %v6092, %v6085
      %v6111 = vmul.f32 %v6092, %v6086
      %v6112 = vmul.f32 %v6092, %v6087
      %v6113 = vmul.f32 %v6092, %v6088
      %v6114 = vmul.f32 %v6092, %v6089
      %v6115 = vmul.f32 %v6092, %v6090
      %v6116 = vmul.f32 %v6092, %v6091
      %v6117 = vadd.f32 %v6041, %v6093
      %v6118 = vadd.f32 %v6042, %v6094
      %v6119 = vadd.f32 %v6043, %v6095
      %v6120 = vadd.f32 %v6044, %v6096
      %v6121 = vadd.f32 %v6045, %v6097
      %v6122 = vadd.f32 %v6046, %v6098
      %v6123 = vadd.f32 %v6047, %v6099
      %v6124 = vadd.f32 %v6048, %v6100
      %v6125 = vadd.f32 %v6049, %v6101
      %v6126 = vadd.f32 %v6050, %v6102
      %v6127 = vadd.f32 %v6051, %v6103
      %v6128 = vadd.f32 %v6052, %v6104
      %v6129 = vadd.f32 %v6053, %v6105
      %v6130 = vadd.f32 %v6054, %v6106
      %v6131 = vadd.f32 %v6055, %v6107
      %v6132 = vadd.f32 %v6056, %v6108
      %v6133 = vadd.f32 %v6057, %v6109
      %v6134 = vadd.f32 %v6058, %v6110
      %v6135 = vadd.f32 %v6059, %v6111
      %v6136 = vadd.f32 %v6060, %v6112
      %v6137 = vadd.f32 %v6061, %v6113
      %v6138 = vadd.f32 %v6062, %v6114
      %v6139 = vadd.f32 %v6063, %v6115
      %v6140 = vadd.f32 %v6064, %v6116
      %s6141 = sadd.s32 %s1634, 37
      %s6142 = sld [smem:[#allocation8 + %s6141]]
      %v6143 = vstv %s6142
      %v6144 = vmul.f32 %v6143, %v6068
      %v6145 = vmul.f32 %v6143, %v6069
      %v6146 = vmul.f32 %v6143, %v6070
      %v6147 = vmul.f32 %v6143, %v6071
      %v6148 = vmul.f32 %v6143, %v6072
      %v6149 = vmul.f32 %v6143, %v6073
      %v6150 = vmul.f32 %v6143, %v6074
      %v6151 = vmul.f32 %v6143, %v6075
      %v6152 = vmul.f32 %v6143, %v6076
      %v6153 = vmul.f32 %v6143, %v6077
      %v6154 = vmul.f32 %v6143, %v6078
      %v6155 = vmul.f32 %v6143, %v6079
      %v6156 = vmul.f32 %v6143, %v6080
      %v6157 = vmul.f32 %v6143, %v6081
      %v6158 = vmul.f32 %v6143, %v6082
      %v6159 = vmul.f32 %v6143, %v6083
      %v6160 = vmul.f32 %v6143, %v6084
      %v6161 = vmul.f32 %v6143, %v6085
      %v6162 = vmul.f32 %v6143, %v6086
      %v6163 = vmul.f32 %v6143, %v6087
      %v6164 = vmul.f32 %v6143, %v6088
      %v6165 = vmul.f32 %v6143, %v6089
      %v6166 = vmul.f32 %v6143, %v6090
      %v6167 = vmul.f32 %v6143, %v6091
      %6192 = vrot.lane.b32.xlu0 %v6144, 127
      %v6193 = vpop.permute.xlu0 %6192
      %6194 = vrot.lane.b32.xlu0 %v6145, 127
      %v6195 = vpop.permute.xlu0 %6194
      %6196 = vrot.lane.b32.xlu0 %v6146, 127
      %v6197 = vpop.permute.xlu0 %6196
      %6198 = vrot.lane.b32.xlu0 %v6147, 127
      %v6199 = vpop.permute.xlu0 %6198
      %6200 = vrot.lane.b32.xlu0 %v6148, 127
      %v6201 = vpop.permute.xlu0 %6200
      %6202 = vrot.lane.b32.xlu0 %v6149, 127
      %v6203 = vpop.permute.xlu0 %6202
      %6204 = vrot.lane.b32.xlu0 %v6150, 127
      %v6205 = vpop.permute.xlu0 %6204
      %6206 = vrot.lane.b32.xlu0 %v6151, 127
      %v6207 = vpop.permute.xlu0 %6206
      %6208 = vrot.lane.b32.xlu0 %v6152, 127
      %v6209 = vpop.permute.xlu0 %6208
      %6210 = vrot.lane.b32.xlu0 %v6153, 127
      %v6211 = vpop.permute.xlu0 %6210
      %6212 = vrot.lane.b32.xlu0 %v6154, 127
      %v6213 = vpop.permute.xlu0 %6212
      %6214 = vrot.lane.b32.xlu0 %v6155, 127
      %v6215 = vpop.permute.xlu0 %6214
      %6216 = vrot.lane.b32.xlu0 %v6156, 127
      %v6217 = vpop.permute.xlu0 %6216
      %6218 = vrot.lane.b32.xlu0 %v6157, 127
      %v6219 = vpop.permute.xlu0 %6218
      %6220 = vrot.lane.b32.xlu0 %v6158, 127
      %v6221 = vpop.permute.xlu0 %6220
      %6222 = vrot.lane.b32.xlu0 %v6159, 127
      %v6223 = vpop.permute.xlu0 %6222
      %6224 = vrot.lane.b32.xlu0 %v6160, 127
      %v6225 = vpop.permute.xlu0 %6224
      %6226 = vrot.lane.b32.xlu0 %v6161, 127
      %v6227 = vpop.permute.xlu0 %6226
      %6228 = vrot.lane.b32.xlu0 %v6162, 127
      %v6229 = vpop.permute.xlu0 %6228
      %6230 = vrot.lane.b32.xlu0 %v6163, 127
      %v6231 = vpop.permute.xlu0 %6230
      %6232 = vrot.lane.b32.xlu0 %v6164, 127
      %v6233 = vpop.permute.xlu0 %6232
      %6234 = vrot.lane.b32.xlu0 %v6165, 127
      %v6235 = vpop.permute.xlu0 %6234
      %6236 = vrot.lane.b32.xlu0 %v6166, 127
      %v6237 = vpop.permute.xlu0 %6236
      %6238 = vrot.lane.b32.xlu0 %v6167, 127
      %v6239 = vpop.permute.xlu0 %6238
      %v6264 = vadd.f32 %v6117, %v6193
      %v6265 = vadd.f32 %v6118, %v6195
      %v6266 = vadd.f32 %v6119, %v6197
      %v6267 = vadd.f32 %v6120, %v6199
      %v6268 = vadd.f32 %v6121, %v6201
      %v6269 = vadd.f32 %v6122, %v6203
      %v6270 = vadd.f32 %v6123, %v6205
      %v6271 = vadd.f32 %v6124, %v6207
      %v6272 = vadd.f32 %v6125, %v6209
      %v6273 = vadd.f32 %v6126, %v6211
      %v6274 = vadd.f32 %v6127, %v6213
      %v6275 = vadd.f32 %v6128, %v6215
      %v6276 = vadd.f32 %v6129, %v6217
      %v6277 = vadd.f32 %v6130, %v6219
      %v6278 = vadd.f32 %v6131, %v6221
      %v6279 = vadd.f32 %v6132, %v6223
      %v6280 = vadd.f32 %v6133, %v6225
      %v6281 = vadd.f32 %v6134, %v6227
      %v6282 = vadd.f32 %v6135, %v6229
      %v6283 = vadd.f32 %v6136, %v6231
      %v6284 = vadd.f32 %v6137, %v6233
      %v6285 = vadd.f32 %v6138, %v6235
      %v6286 = vadd.f32 %v6139, %v6237
      %v6287 = vadd.f32 %v6140, %v6239
      %s6288 = sadd.s32 %s1634, 38
      %s6289 = sld [smem:[#allocation8 + %s6288]]
      %v6290 = vstv %s6289
      %v6291 = vmul.f32 %v6290, %v6068
      %v6292 = vmul.f32 %v6290, %v6069
      %v6293 = vmul.f32 %v6290, %v6070
      %v6294 = vmul.f32 %v6290, %v6071
      %v6295 = vmul.f32 %v6290, %v6072
      %v6296 = vmul.f32 %v6290, %v6073
      %v6297 = vmul.f32 %v6290, %v6074
      %v6298 = vmul.f32 %v6290, %v6075
      %v6299 = vmul.f32 %v6290, %v6076
      %v6300 = vmul.f32 %v6290, %v6077
      %v6301 = vmul.f32 %v6290, %v6078
      %v6302 = vmul.f32 %v6290, %v6079
      %v6303 = vmul.f32 %v6290, %v6080
      %v6304 = vmul.f32 %v6290, %v6081
      %v6305 = vmul.f32 %v6290, %v6082
      %v6306 = vmul.f32 %v6290, %v6083
      %v6307 = vmul.f32 %v6290, %v6084
      %v6308 = vmul.f32 %v6290, %v6085
      %v6309 = vmul.f32 %v6290, %v6086
      %v6310 = vmul.f32 %v6290, %v6087
      %v6311 = vmul.f32 %v6290, %v6088
      %v6312 = vmul.f32 %v6290, %v6089
      %v6313 = vmul.f32 %v6290, %v6090
      %v6314 = vmul.f32 %v6290, %v6091
      %6339 = vrot.lane.b32.xlu0 %v6291, 126
      %v6340 = vpop.permute.xlu0 %6339
      %6341 = vrot.lane.b32.xlu0 %v6292, 126
      %v6342 = vpop.permute.xlu0 %6341
      %6343 = vrot.lane.b32.xlu0 %v6293, 126
      %v6344 = vpop.permute.xlu0 %6343
      %6345 = vrot.lane.b32.xlu0 %v6294, 126
      %v6346 = vpop.permute.xlu0 %6345
      %6347 = vrot.lane.b32.xlu0 %v6295, 126
      %v6348 = vpop.permute.xlu0 %6347
      %6349 = vrot.lane.b32.xlu0 %v6296, 126
      %v6350 = vpop.permute.xlu0 %6349
      %6351 = vrot.lane.b32.xlu0 %v6297, 126
      %v6352 = vpop.permute.xlu0 %6351
      %6353 = vrot.lane.b32.xlu0 %v6298, 126
      %v6354 = vpop.permute.xlu0 %6353
      %6355 = vrot.lane.b32.xlu0 %v6299, 126
      %v6356 = vpop.permute.xlu0 %6355
      %6357 = vrot.lane.b32.xlu0 %v6300, 126
      %v6358 = vpop.permute.xlu0 %6357
      %6359 = vrot.lane.b32.xlu0 %v6301, 126
      %v6360 = vpop.permute.xlu0 %6359
      %6361 = vrot.lane.b32.xlu0 %v6302, 126
      %v6362 = vpop.permute.xlu0 %6361
      %6363 = vrot.lane.b32.xlu0 %v6303, 126
      %v6364 = vpop.permute.xlu0 %6363
      %6365 = vrot.lane.b32.xlu0 %v6304, 126
      %v6366 = vpop.permute.xlu0 %6365
      %6367 = vrot.lane.b32.xlu0 %v6305, 126
      %v6368 = vpop.permute.xlu0 %6367
      %6369 = vrot.lane.b32.xlu0 %v6306, 126
      %v6370 = vpop.permute.xlu0 %6369
      %6371 = vrot.lane.b32.xlu0 %v6307, 126
      %v6372 = vpop.permute.xlu0 %6371
      %6373 = vrot.lane.b32.xlu0 %v6308, 126
      %v6374 = vpop.permute.xlu0 %6373
      %6375 = vrot.lane.b32.xlu0 %v6309, 126
      %v6376 = vpop.permute.xlu0 %6375
      %6377 = vrot.lane.b32.xlu0 %v6310, 126
      %v6378 = vpop.permute.xlu0 %6377
      %6379 = vrot.lane.b32.xlu0 %v6311, 126
      %v6380 = vpop.permute.xlu0 %6379
      %6381 = vrot.lane.b32.xlu0 %v6312, 126
      %v6382 = vpop.permute.xlu0 %6381
      %6383 = vrot.lane.b32.xlu0 %v6313, 126
      %v6384 = vpop.permute.xlu0 %6383
      %6385 = vrot.lane.b32.xlu0 %v6314, 126
      %v6386 = vpop.permute.xlu0 %6385
      %v6411 = vadd.f32 %v6264, %v6340
      %v6412 = vadd.f32 %v6265, %v6342
      %v6413 = vadd.f32 %v6266, %v6344
      %v6414 = vadd.f32 %v6267, %v6346
      %v6415 = vadd.f32 %v6268, %v6348
      %v6416 = vadd.f32 %v6269, %v6350
      %v6417 = vadd.f32 %v6270, %v6352
      %v6418 = vadd.f32 %v6271, %v6354
      %v6419 = vadd.f32 %v6272, %v6356
      %v6420 = vadd.f32 %v6273, %v6358
      %v6421 = vadd.f32 %v6274, %v6360
      %v6422 = vadd.f32 %v6275, %v6362
      %v6423 = vadd.f32 %v6276, %v6364
      %v6424 = vadd.f32 %v6277, %v6366
      %v6425 = vadd.f32 %v6278, %v6368
      %v6426 = vadd.f32 %v6279, %v6370
      %v6427 = vadd.f32 %v6280, %v6372
      %v6428 = vadd.f32 %v6281, %v6374
      %v6429 = vadd.f32 %v6282, %v6376
      %v6430 = vadd.f32 %v6283, %v6378
      %v6431 = vadd.f32 %v6284, %v6380
      %v6432 = vadd.f32 %v6285, %v6382
      %v6433 = vadd.f32 %v6286, %v6384
      %v6434 = vadd.f32 %v6287, %v6386
      %s6435 = sadd.s32 %s1634, 39
      %s6436 = sld [smem:[#allocation8 + %s6435]]
      %v6437 = vld [vmem:[%s6067 + $0x1] sm:$0xff]
      %v6438 = vld [vmem:[%s6067 + $0x9] sm:$0xff]
      %v6439 = vld [vmem:[%s6067 + $0x11] sm:$0xff]
      %v6440 = vld [vmem:[%s6067 + $0x21] sm:$0xff]
      %v6441 = vld [vmem:[%s6067 + $0x29] sm:$0xff]
      %v6442 = vld [vmem:[%s6067 + $0x31] sm:$0xff]
      %v6443 = vld [vmem:[%s6067 + $0x41] sm:$0xff]
      %v6444 = vld [vmem:[%s6067 + $0x49] sm:$0xff]
      %v6445 = vld [vmem:[%s6067 + $0x51] sm:$0xff]
      %v6446 = vld [vmem:[%s6067 + $0x61] sm:$0xff]
      %v6447 = vld [vmem:[%s6067 + $0x69] sm:$0xff]
      %v6448 = vld [vmem:[%s6067 + $0x71] sm:$0xff]
      %v6449 = vld [vmem:[%s6067 + $0x81] sm:$0xff]
      %v6450 = vld [vmem:[%s6067 + $0x89] sm:$0xff]
      %v6451 = vld [vmem:[%s6067 + $0x91] sm:$0xff]
      %v6452 = vld [vmem:[%s6067 + $0xa1] sm:$0xff]
      %v6453 = vld [vmem:[%s6067 + $0xa9] sm:$0xff]
      %v6454 = vld [vmem:[%s6067 + $0xb1] sm:$0xff]
      %v6455 = vld [vmem:[%s6067 + $0xc1] sm:$0xff]
      %v6456 = vld [vmem:[%s6067 + $0xc9] sm:$0xff]
      %v6457 = vld [vmem:[%s6067 + $0xd1] sm:$0xff]
      %v6458 = vld [vmem:[%s6067 + $0xe1] sm:$0xff]
      %v6459 = vld [vmem:[%s6067 + $0xe9] sm:$0xff]
      %v6460 = vld [vmem:[%s6067 + $0xf1] sm:$0xff]
      %v6461 = vstv %s6436
      %v6462 = vmul.f32 %v6461, %v6437
      %v6463 = vmul.f32 %v6461, %v6438
      %v6464 = vmul.f32 %v6461, %v6439
      %v6465 = vmul.f32 %v6461, %v6440
      %v6466 = vmul.f32 %v6461, %v6441
      %v6467 = vmul.f32 %v6461, %v6442
      %v6468 = vmul.f32 %v6461, %v6443
      %v6469 = vmul.f32 %v6461, %v6444
      %v6470 = vmul.f32 %v6461, %v6445
      %v6471 = vmul.f32 %v6461, %v6446
      %v6472 = vmul.f32 %v6461, %v6447
      %v6473 = vmul.f32 %v6461, %v6448
      %v6474 = vmul.f32 %v6461, %v6449
      %v6475 = vmul.f32 %v6461, %v6450
      %v6476 = vmul.f32 %v6461, %v6451
      %v6477 = vmul.f32 %v6461, %v6452
      %v6478 = vmul.f32 %v6461, %v6453
      %v6479 = vmul.f32 %v6461, %v6454
      %v6480 = vmul.f32 %v6461, %v6455
      %v6481 = vmul.f32 %v6461, %v6456
      %v6482 = vmul.f32 %v6461, %v6457
      %v6483 = vmul.f32 %v6461, %v6458
      %v6484 = vmul.f32 %v6461, %v6459
      %v6485 = vmul.f32 %v6461, %v6460
      %v6486 = vadd.f32 %v6411, %v6462
      %v6487 = vadd.f32 %v6412, %v6463
      %v6488 = vadd.f32 %v6413, %v6464
      %v6489 = vadd.f32 %v6414, %v6465
      %v6490 = vadd.f32 %v6415, %v6466
      %v6491 = vadd.f32 %v6416, %v6467
      %v6492 = vadd.f32 %v6417, %v6468
      %v6493 = vadd.f32 %v6418, %v6469
      %v6494 = vadd.f32 %v6419, %v6470
      %v6495 = vadd.f32 %v6420, %v6471
      %v6496 = vadd.f32 %v6421, %v6472
      %v6497 = vadd.f32 %v6422, %v6473
      %v6498 = vadd.f32 %v6423, %v6474
      %v6499 = vadd.f32 %v6424, %v6475
      %v6500 = vadd.f32 %v6425, %v6476
      %v6501 = vadd.f32 %v6426, %v6477
      %v6502 = vadd.f32 %v6427, %v6478
      %v6503 = vadd.f32 %v6428, %v6479
      %v6504 = vadd.f32 %v6429, %v6480
      %v6505 = vadd.f32 %v6430, %v6481
      %v6506 = vadd.f32 %v6431, %v6482
      %v6507 = vadd.f32 %v6432, %v6483
      %v6508 = vadd.f32 %v6433, %v6484
      %v6509 = vadd.f32 %v6434, %v6485
      %s6510 = sadd.s32 %s1634, 40
      %s6511 = sld [smem:[#allocation8 + %s6510]]
      %v6512 = vstv %s6511
      %v6513 = vmul.f32 %v6512, %v6437
      %v6514 = vmul.f32 %v6512, %v6438
      %v6515 = vmul.f32 %v6512, %v6439
      %v6516 = vmul.f32 %v6512, %v6440
      %v6517 = vmul.f32 %v6512, %v6441
      %v6518 = vmul.f32 %v6512, %v6442
      %v6519 = vmul.f32 %v6512, %v6443
      %v6520 = vmul.f32 %v6512, %v6444
      %v6521 = vmul.f32 %v6512, %v6445
      %v6522 = vmul.f32 %v6512, %v6446
      %v6523 = vmul.f32 %v6512, %v6447
      %v6524 = vmul.f32 %v6512, %v6448
      %v6525 = vmul.f32 %v6512, %v6449
      %v6526 = vmul.f32 %v6512, %v6450
      %v6527 = vmul.f32 %v6512, %v6451
      %v6528 = vmul.f32 %v6512, %v6452
      %v6529 = vmul.f32 %v6512, %v6453
      %v6530 = vmul.f32 %v6512, %v6454
      %v6531 = vmul.f32 %v6512, %v6455
      %v6532 = vmul.f32 %v6512, %v6456
      %v6533 = vmul.f32 %v6512, %v6457
      %v6534 = vmul.f32 %v6512, %v6458
      %v6535 = vmul.f32 %v6512, %v6459
      %v6536 = vmul.f32 %v6512, %v6460
      %6561 = vrot.lane.b32.xlu0 %v6513, 127
      %v6562 = vpop.permute.xlu0 %6561
      %6563 = vrot.lane.b32.xlu0 %v6514, 127
      %v6564 = vpop.permute.xlu0 %6563
      %6565 = vrot.lane.b32.xlu0 %v6515, 127
      %v6566 = vpop.permute.xlu0 %6565
      %6567 = vrot.lane.b32.xlu0 %v6516, 127
      %v6568 = vpop.permute.xlu0 %6567
      %6569 = vrot.lane.b32.xlu0 %v6517, 127
      %v6570 = vpop.permute.xlu0 %6569
      %6571 = vrot.lane.b32.xlu0 %v6518, 127
      %v6572 = vpop.permute.xlu0 %6571
      %6573 = vrot.lane.b32.xlu0 %v6519, 127
      %v6574 = vpop.permute.xlu0 %6573
      %6575 = vrot.lane.b32.xlu0 %v6520, 127
      %v6576 = vpop.permute.xlu0 %6575
      %6577 = vrot.lane.b32.xlu0 %v6521, 127
      %v6578 = vpop.permute.xlu0 %6577
      %6579 = vrot.lane.b32.xlu0 %v6522, 127
      %v6580 = vpop.permute.xlu0 %6579
      %6581 = vrot.lane.b32.xlu0 %v6523, 127
      %v6582 = vpop.permute.xlu0 %6581
      %6583 = vrot.lane.b32.xlu0 %v6524, 127
      %v6584 = vpop.permute.xlu0 %6583
      %6585 = vrot.lane.b32.xlu0 %v6525, 127
      %v6586 = vpop.permute.xlu0 %6585
      %6587 = vrot.lane.b32.xlu0 %v6526, 127
      %v6588 = vpop.permute.xlu0 %6587
      %6589 = vrot.lane.b32.xlu0 %v6527, 127
      %v6590 = vpop.permute.xlu0 %6589
      %6591 = vrot.lane.b32.xlu0 %v6528, 127
      %v6592 = vpop.permute.xlu0 %6591
      %6593 = vrot.lane.b32.xlu0 %v6529, 127
      %v6594 = vpop.permute.xlu0 %6593
      %6595 = vrot.lane.b32.xlu0 %v6530, 127
      %v6596 = vpop.permute.xlu0 %6595
      %6597 = vrot.lane.b32.xlu0 %v6531, 127
      %v6598 = vpop.permute.xlu0 %6597
      %6599 = vrot.lane.b32.xlu0 %v6532, 127
      %v6600 = vpop.permute.xlu0 %6599
      %6601 = vrot.lane.b32.xlu0 %v6533, 127
      %v6602 = vpop.permute.xlu0 %6601
      %6603 = vrot.lane.b32.xlu0 %v6534, 127
      %v6604 = vpop.permute.xlu0 %6603
      %6605 = vrot.lane.b32.xlu0 %v6535, 127
      %v6606 = vpop.permute.xlu0 %6605
      %6607 = vrot.lane.b32.xlu0 %v6536, 127
      %v6608 = vpop.permute.xlu0 %6607
      %v6633 = vadd.f32 %v6486, %v6562
      %v6634 = vadd.f32 %v6487, %v6564
      %v6635 = vadd.f32 %v6488, %v6566
      %v6636 = vadd.f32 %v6489, %v6568
      %v6637 = vadd.f32 %v6490, %v6570
      %v6638 = vadd.f32 %v6491, %v6572
      %v6639 = vadd.f32 %v6492, %v6574
      %v6640 = vadd.f32 %v6493, %v6576
      %v6641 = vadd.f32 %v6494, %v6578
      %v6642 = vadd.f32 %v6495, %v6580
      %v6643 = vadd.f32 %v6496, %v6582
      %v6644 = vadd.f32 %v6497, %v6584
      %v6645 = vadd.f32 %v6498, %v6586
      %v6646 = vadd.f32 %v6499, %v6588
      %v6647 = vadd.f32 %v6500, %v6590
      %v6648 = vadd.f32 %v6501, %v6592
      %v6649 = vadd.f32 %v6502, %v6594
      %v6650 = vadd.f32 %v6503, %v6596
      %v6651 = vadd.f32 %v6504, %v6598
      %v6652 = vadd.f32 %v6505, %v6600
      %v6653 = vadd.f32 %v6506, %v6602
      %v6654 = vadd.f32 %v6507, %v6604
      %v6655 = vadd.f32 %v6508, %v6606
      %v6656 = vadd.f32 %v6509, %v6608
      %s6657 = sadd.s32 %s1634, 41
      %s6658 = sld [smem:[#allocation8 + %s6657]]
      %v6659 = vstv %s6658
      %v6660 = vmul.f32 %v6659, %v6437
      %v6661 = vmul.f32 %v6659, %v6438
      %v6662 = vmul.f32 %v6659, %v6439
      %v6663 = vmul.f32 %v6659, %v6440
      %v6664 = vmul.f32 %v6659, %v6441
      %v6665 = vmul.f32 %v6659, %v6442
      %v6666 = vmul.f32 %v6659, %v6443
      %v6667 = vmul.f32 %v6659, %v6444
      %v6668 = vmul.f32 %v6659, %v6445
      %v6669 = vmul.f32 %v6659, %v6446
      %v6670 = vmul.f32 %v6659, %v6447
      %v6671 = vmul.f32 %v6659, %v6448
      %v6672 = vmul.f32 %v6659, %v6449
      %v6673 = vmul.f32 %v6659, %v6450
      %v6674 = vmul.f32 %v6659, %v6451
      %v6675 = vmul.f32 %v6659, %v6452
      %v6676 = vmul.f32 %v6659, %v6453
      %v6677 = vmul.f32 %v6659, %v6454
      %v6678 = vmul.f32 %v6659, %v6455
      %v6679 = vmul.f32 %v6659, %v6456
      %v6680 = vmul.f32 %v6659, %v6457
      %v6681 = vmul.f32 %v6659, %v6458
      %v6682 = vmul.f32 %v6659, %v6459
      %v6683 = vmul.f32 %v6659, %v6460
      %6708 = vrot.lane.b32.xlu0 %v6660, 126
      %v6709 = vpop.permute.xlu0 %6708
      %6710 = vrot.lane.b32.xlu0 %v6661, 126
      %v6711 = vpop.permute.xlu0 %6710
      %6712 = vrot.lane.b32.xlu0 %v6662, 126
      %v6713 = vpop.permute.xlu0 %6712
      %6714 = vrot.lane.b32.xlu0 %v6663, 126
      %v6715 = vpop.permute.xlu0 %6714
      %6716 = vrot.lane.b32.xlu0 %v6664, 126
      %v6717 = vpop.permute.xlu0 %6716
      %6718 = vrot.lane.b32.xlu0 %v6665, 126
      %v6719 = vpop.permute.xlu0 %6718
      %6720 = vrot.lane.b32.xlu0 %v6666, 126
      %v6721 = vpop.permute.xlu0 %6720
      %6722 = vrot.lane.b32.xlu0 %v6667, 126
      %v6723 = vpop.permute.xlu0 %6722
      %6724 = vrot.lane.b32.xlu0 %v6668, 126
      %v6725 = vpop.permute.xlu0 %6724
      %6726 = vrot.lane.b32.xlu0 %v6669, 126
      %v6727 = vpop.permute.xlu0 %6726
      %6728 = vrot.lane.b32.xlu0 %v6670, 126
      %v6729 = vpop.permute.xlu0 %6728
      %6730 = vrot.lane.b32.xlu0 %v6671, 126
      %v6731 = vpop.permute.xlu0 %6730
      %6732 = vrot.lane.b32.xlu0 %v6672, 126
      %v6733 = vpop.permute.xlu0 %6732
      %6734 = vrot.lane.b32.xlu0 %v6673, 126
      %v6735 = vpop.permute.xlu0 %6734
      %6736 = vrot.lane.b32.xlu0 %v6674, 126
      %v6737 = vpop.permute.xlu0 %6736
      %6738 = vrot.lane.b32.xlu0 %v6675, 126
      %v6739 = vpop.permute.xlu0 %6738
      %6740 = vrot.lane.b32.xlu0 %v6676, 126
      %v6741 = vpop.permute.xlu0 %6740
      %6742 = vrot.lane.b32.xlu0 %v6677, 126
      %v6743 = vpop.permute.xlu0 %6742
      %6744 = vrot.lane.b32.xlu0 %v6678, 126
      %v6745 = vpop.permute.xlu0 %6744
      %6746 = vrot.lane.b32.xlu0 %v6679, 126
      %v6747 = vpop.permute.xlu0 %6746
      %6748 = vrot.lane.b32.xlu0 %v6680, 126
      %v6749 = vpop.permute.xlu0 %6748
      %6750 = vrot.lane.b32.xlu0 %v6681, 126
      %v6751 = vpop.permute.xlu0 %6750
      %6752 = vrot.lane.b32.xlu0 %v6682, 126
      %v6753 = vpop.permute.xlu0 %6752
      %6754 = vrot.lane.b32.xlu0 %v6683, 126
      %v6755 = vpop.permute.xlu0 %6754
      %v6780 = vadd.f32 %v6633, %v6709
      %v6781 = vadd.f32 %v6634, %v6711
      %v6782 = vadd.f32 %v6635, %v6713
      %v6783 = vadd.f32 %v6636, %v6715
      %v6784 = vadd.f32 %v6637, %v6717
      %v6785 = vadd.f32 %v6638, %v6719
      %v6786 = vadd.f32 %v6639, %v6721
      %v6787 = vadd.f32 %v6640, %v6723
      %v6788 = vadd.f32 %v6641, %v6725
      %v6789 = vadd.f32 %v6642, %v6727
      %v6790 = vadd.f32 %v6643, %v6729
      %v6791 = vadd.f32 %v6644, %v6731
      %v6792 = vadd.f32 %v6645, %v6733
      %v6793 = vadd.f32 %v6646, %v6735
      %v6794 = vadd.f32 %v6647, %v6737
      %v6795 = vadd.f32 %v6648, %v6739
      %v6796 = vadd.f32 %v6649, %v6741
      %v6797 = vadd.f32 %v6650, %v6743
      %v6798 = vadd.f32 %v6651, %v6745
      %v6799 = vadd.f32 %v6652, %v6747
      %v6800 = vadd.f32 %v6653, %v6749
      %v6801 = vadd.f32 %v6654, %v6751
      %v6802 = vadd.f32 %v6655, %v6753
      %v6803 = vadd.f32 %v6656, %v6755
      %s6804 = sadd.s32 %s1634, 42
      %s6805 = sld [smem:[#allocation8 + %s6804]]
      %v6806 = vld [vmem:[%s6067 + $0x2] sm:$0xff]
      %v6807 = vld [vmem:[%s6067 + $0xa] sm:$0xff]
      %v6808 = vld [vmem:[%s6067 + $0x12] sm:$0xff]
      %v6809 = vld [vmem:[%s6067 + $0x22] sm:$0xff]
      %v6810 = vld [vmem:[%s6067 + $0x2a] sm:$0xff]
      %v6811 = vld [vmem:[%s6067 + $0x32] sm:$0xff]
      %v6812 = vld [vmem:[%s6067 + $0x42] sm:$0xff]
      %v6813 = vld [vmem:[%s6067 + $0x4a] sm:$0xff]
      %v6814 = vld [vmem:[%s6067 + $0x52] sm:$0xff]
      %v6815 = vld [vmem:[%s6067 + $0x62] sm:$0xff]
      %v6816 = vld [vmem:[%s6067 + $0x6a] sm:$0xff]
      %v6817 = vld [vmem:[%s6067 + $0x72] sm:$0xff]
      %v6818 = vld [vmem:[%s6067 + $0x82] sm:$0xff]
      %v6819 = vld [vmem:[%s6067 + $0x8a] sm:$0xff]
      %v6820 = vld [vmem:[%s6067 + $0x92] sm:$0xff]
      %v6821 = vld [vmem:[%s6067 + $0xa2] sm:$0xff]
      %v6822 = vld [vmem:[%s6067 + $0xaa] sm:$0xff]
      %v6823 = vld [vmem:[%s6067 + $0xb2] sm:$0xff]
      %v6824 = vld [vmem:[%s6067 + $0xc2] sm:$0xff]
      %v6825 = vld [vmem:[%s6067 + $0xca] sm:$0xff]
      %v6826 = vld [vmem:[%s6067 + $0xd2] sm:$0xff]
      %v6827 = vld [vmem:[%s6067 + $0xe2] sm:$0xff]
      %v6828 = vld [vmem:[%s6067 + $0xea] sm:$0xff]
      %v6829 = vld [vmem:[%s6067 + $0xf2] sm:$0xff]
      %v6830 = vstv %s6805
      %v6831 = vmul.f32 %v6830, %v6806
      %v6832 = vmul.f32 %v6830, %v6807
      %v6833 = vmul.f32 %v6830, %v6808
      %v6834 = vmul.f32 %v6830, %v6809
      %v6835 = vmul.f32 %v6830, %v6810
      %v6836 = vmul.f32 %v6830, %v6811
      %v6837 = vmul.f32 %v6830, %v6812
      %v6838 = vmul.f32 %v6830, %v6813
      %v6839 = vmul.f32 %v6830, %v6814
      %v6840 = vmul.f32 %v6830, %v6815
      %v6841 = vmul.f32 %v6830, %v6816
      %v6842 = vmul.f32 %v6830, %v6817
      %v6843 = vmul.f32 %v6830, %v6818
      %v6844 = vmul.f32 %v6830, %v6819
      %v6845 = vmul.f32 %v6830, %v6820
      %v6846 = vmul.f32 %v6830, %v6821
      %v6847 = vmul.f32 %v6830, %v6822
      %v6848 = vmul.f32 %v6830, %v6823
      %v6849 = vmul.f32 %v6830, %v6824
      %v6850 = vmul.f32 %v6830, %v6825
      %v6851 = vmul.f32 %v6830, %v6826
      %v6852 = vmul.f32 %v6830, %v6827
      %v6853 = vmul.f32 %v6830, %v6828
      %v6854 = vmul.f32 %v6830, %v6829
      %v6855 = vadd.f32 %v6780, %v6831
      %v6856 = vadd.f32 %v6781, %v6832
      %v6857 = vadd.f32 %v6782, %v6833
      %v6858 = vadd.f32 %v6783, %v6834
      %v6859 = vadd.f32 %v6784, %v6835
      %v6860 = vadd.f32 %v6785, %v6836
      %v6861 = vadd.f32 %v6786, %v6837
      %v6862 = vadd.f32 %v6787, %v6838
      %v6863 = vadd.f32 %v6788, %v6839
      %v6864 = vadd.f32 %v6789, %v6840
      %v6865 = vadd.f32 %v6790, %v6841
      %v6866 = vadd.f32 %v6791, %v6842
      %v6867 = vadd.f32 %v6792, %v6843
      %v6868 = vadd.f32 %v6793, %v6844
      %v6869 = vadd.f32 %v6794, %v6845
      %v6870 = vadd.f32 %v6795, %v6846
      %v6871 = vadd.f32 %v6796, %v6847
      %v6872 = vadd.f32 %v6797, %v6848
      %v6873 = vadd.f32 %v6798, %v6849
      %v6874 = vadd.f32 %v6799, %v6850
      %v6875 = vadd.f32 %v6800, %v6851
      %v6876 = vadd.f32 %v6801, %v6852
      %v6877 = vadd.f32 %v6802, %v6853
      %v6878 = vadd.f32 %v6803, %v6854
      %s6879 = sadd.s32 %s1634, 43
      %s6880 = sld [smem:[#allocation8 + %s6879]]
      %v6881 = vstv %s6880
      %v6882 = vmul.f32 %v6881, %v6806
      %v6883 = vmul.f32 %v6881, %v6807
      %v6884 = vmul.f32 %v6881, %v6808
      %v6885 = vmul.f32 %v6881, %v6809
      %v6886 = vmul.f32 %v6881, %v6810
      %v6887 = vmul.f32 %v6881, %v6811
      %v6888 = vmul.f32 %v6881, %v6812
      %v6889 = vmul.f32 %v6881, %v6813
      %v6890 = vmul.f32 %v6881, %v6814
      %v6891 = vmul.f32 %v6881, %v6815
      %v6892 = vmul.f32 %v6881, %v6816
      %v6893 = vmul.f32 %v6881, %v6817
      %v6894 = vmul.f32 %v6881, %v6818
      %v6895 = vmul.f32 %v6881, %v6819
      %v6896 = vmul.f32 %v6881, %v6820
      %v6897 = vmul.f32 %v6881, %v6821
      %v6898 = vmul.f32 %v6881, %v6822
      %v6899 = vmul.f32 %v6881, %v6823
      %v6900 = vmul.f32 %v6881, %v6824
      %v6901 = vmul.f32 %v6881, %v6825
      %v6902 = vmul.f32 %v6881, %v6826
      %v6903 = vmul.f32 %v6881, %v6827
      %v6904 = vmul.f32 %v6881, %v6828
      %v6905 = vmul.f32 %v6881, %v6829
      %6930 = vrot.lane.b32.xlu0 %v6882, 127
      %v6931 = vpop.permute.xlu0 %6930
      %6932 = vrot.lane.b32.xlu0 %v6883, 127
      %v6933 = vpop.permute.xlu0 %6932
      %6934 = vrot.lane.b32.xlu0 %v6884, 127
      %v6935 = vpop.permute.xlu0 %6934
      %6936 = vrot.lane.b32.xlu0 %v6885, 127
      %v6937 = vpop.permute.xlu0 %6936
      %6938 = vrot.lane.b32.xlu0 %v6886, 127
      %v6939 = vpop.permute.xlu0 %6938
      %6940 = vrot.lane.b32.xlu0 %v6887, 127
      %v6941 = vpop.permute.xlu0 %6940
      %6942 = vrot.lane.b32.xlu0 %v6888, 127
      %v6943 = vpop.permute.xlu0 %6942
      %6944 = vrot.lane.b32.xlu0 %v6889, 127
      %v6945 = vpop.permute.xlu0 %6944
      %6946 = vrot.lane.b32.xlu0 %v6890, 127
      %v6947 = vpop.permute.xlu0 %6946
      %6948 = vrot.lane.b32.xlu0 %v6891, 127
      %v6949 = vpop.permute.xlu0 %6948
      %6950 = vrot.lane.b32.xlu0 %v6892, 127
      %v6951 = vpop.permute.xlu0 %6950
      %6952 = vrot.lane.b32.xlu0 %v6893, 127
      %v6953 = vpop.permute.xlu0 %6952
      %6954 = vrot.lane.b32.xlu0 %v6894, 127
      %v6955 = vpop.permute.xlu0 %6954
      %6956 = vrot.lane.b32.xlu0 %v6895, 127
      %v6957 = vpop.permute.xlu0 %6956
      %6958 = vrot.lane.b32.xlu0 %v6896, 127
      %v6959 = vpop.permute.xlu0 %6958
      %6960 = vrot.lane.b32.xlu0 %v6897, 127
      %v6961 = vpop.permute.xlu0 %6960
      %6962 = vrot.lane.b32.xlu0 %v6898, 127
      %v6963 = vpop.permute.xlu0 %6962
      %6964 = vrot.lane.b32.xlu0 %v6899, 127
      %v6965 = vpop.permute.xlu0 %6964
      %6966 = vrot.lane.b32.xlu0 %v6900, 127
      %v6967 = vpop.permute.xlu0 %6966
      %6968 = vrot.lane.b32.xlu0 %v6901, 127
      %v6969 = vpop.permute.xlu0 %6968
      %6970 = vrot.lane.b32.xlu0 %v6902, 127
      %v6971 = vpop.permute.xlu0 %6970
      %6972 = vrot.lane.b32.xlu0 %v6903, 127
      %v6973 = vpop.permute.xlu0 %6972
      %6974 = vrot.lane.b32.xlu0 %v6904, 127
      %v6975 = vpop.permute.xlu0 %6974
      %6976 = vrot.lane.b32.xlu0 %v6905, 127
      %v6977 = vpop.permute.xlu0 %6976
      %v7002 = vadd.f32 %v6855, %v6931
      %v7003 = vadd.f32 %v6856, %v6933
      %v7004 = vadd.f32 %v6857, %v6935
      %v7005 = vadd.f32 %v6858, %v6937
      %v7006 = vadd.f32 %v6859, %v6939
      %v7007 = vadd.f32 %v6860, %v6941
      %v7008 = vadd.f32 %v6861, %v6943
      %v7009 = vadd.f32 %v6862, %v6945
      %v7010 = vadd.f32 %v6863, %v6947
      %v7011 = vadd.f32 %v6864, %v6949
      %v7012 = vadd.f32 %v6865, %v6951
      %v7013 = vadd.f32 %v6866, %v6953
      %v7014 = vadd.f32 %v6867, %v6955
      %v7015 = vadd.f32 %v6868, %v6957
      %v7016 = vadd.f32 %v6869, %v6959
      %v7017 = vadd.f32 %v6870, %v6961
      %v7018 = vadd.f32 %v6871, %v6963
      %v7019 = vadd.f32 %v6872, %v6965
      %v7020 = vadd.f32 %v6873, %v6967
      %v7021 = vadd.f32 %v6874, %v6969
      %v7022 = vadd.f32 %v6875, %v6971
      %v7023 = vadd.f32 %v6876, %v6973
      %v7024 = vadd.f32 %v6877, %v6975
      %v7025 = vadd.f32 %v6878, %v6977
      %s7026 = sadd.s32 %s1634, 44
      %s7027 = sld [smem:[#allocation8 + %s7026]]
      %v7028 = vstv %s7027
      %v7029 = vmul.f32 %v7028, %v6806
      %v7030 = vmul.f32 %v7028, %v6807
      %v7031 = vmul.f32 %v7028, %v6808
      %v7032 = vmul.f32 %v7028, %v6809
      %v7033 = vmul.f32 %v7028, %v6810
      %v7034 = vmul.f32 %v7028, %v6811
      %v7035 = vmul.f32 %v7028, %v6812
      %v7036 = vmul.f32 %v7028, %v6813
      %v7037 = vmul.f32 %v7028, %v6814
      %v7038 = vmul.f32 %v7028, %v6815
      %v7039 = vmul.f32 %v7028, %v6816
      %v7040 = vmul.f32 %v7028, %v6817
      %v7041 = vmul.f32 %v7028, %v6818
      %v7042 = vmul.f32 %v7028, %v6819
      %v7043 = vmul.f32 %v7028, %v6820
      %v7044 = vmul.f32 %v7028, %v6821
      %v7045 = vmul.f32 %v7028, %v6822
      %v7046 = vmul.f32 %v7028, %v6823
      %v7047 = vmul.f32 %v7028, %v6824
      %v7048 = vmul.f32 %v7028, %v6825
      %v7049 = vmul.f32 %v7028, %v6826
      %v7050 = vmul.f32 %v7028, %v6827
      %v7051 = vmul.f32 %v7028, %v6828
      %v7052 = vmul.f32 %v7028, %v6829
      %7077 = vrot.lane.b32.xlu0 %v7029, 126
      %v7078 = vpop.permute.xlu0 %7077
      %7079 = vrot.lane.b32.xlu0 %v7030, 126
      %v7080 = vpop.permute.xlu0 %7079
      %7081 = vrot.lane.b32.xlu0 %v7031, 126
      %v7082 = vpop.permute.xlu0 %7081
      %7083 = vrot.lane.b32.xlu0 %v7032, 126
      %v7084 = vpop.permute.xlu0 %7083
      %7085 = vrot.lane.b32.xlu0 %v7033, 126
      %v7086 = vpop.permute.xlu0 %7085
      %7087 = vrot.lane.b32.xlu0 %v7034, 126
      %v7088 = vpop.permute.xlu0 %7087
      %7089 = vrot.lane.b32.xlu0 %v7035, 126
      %v7090 = vpop.permute.xlu0 %7089
      %7091 = vrot.lane.b32.xlu0 %v7036, 126
      %v7092 = vpop.permute.xlu0 %7091
      %7093 = vrot.lane.b32.xlu0 %v7037, 126
      %v7094 = vpop.permute.xlu0 %7093
      %7095 = vrot.lane.b32.xlu0 %v7038, 126
      %v7096 = vpop.permute.xlu0 %7095
      %7097 = vrot.lane.b32.xlu0 %v7039, 126
      %v7098 = vpop.permute.xlu0 %7097
      %7099 = vrot.lane.b32.xlu0 %v7040, 126
      %v7100 = vpop.permute.xlu0 %7099
      %7101 = vrot.lane.b32.xlu0 %v7041, 126
      %v7102 = vpop.permute.xlu0 %7101
      %7103 = vrot.lane.b32.xlu0 %v7042, 126
      %v7104 = vpop.permute.xlu0 %7103
      %7105 = vrot.lane.b32.xlu0 %v7043, 126
      %v7106 = vpop.permute.xlu0 %7105
      %7107 = vrot.lane.b32.xlu0 %v7044, 126
      %v7108 = vpop.permute.xlu0 %7107
      %7109 = vrot.lane.b32.xlu0 %v7045, 126
      %v7110 = vpop.permute.xlu0 %7109
      %7111 = vrot.lane.b32.xlu0 %v7046, 126
      %v7112 = vpop.permute.xlu0 %7111
      %7113 = vrot.lane.b32.xlu0 %v7047, 126
      %v7114 = vpop.permute.xlu0 %7113
      %7115 = vrot.lane.b32.xlu0 %v7048, 126
      %v7116 = vpop.permute.xlu0 %7115
      %7117 = vrot.lane.b32.xlu0 %v7049, 126
      %v7118 = vpop.permute.xlu0 %7117
      %7119 = vrot.lane.b32.xlu0 %v7050, 126
      %v7120 = vpop.permute.xlu0 %7119
      %7121 = vrot.lane.b32.xlu0 %v7051, 126
      %v7122 = vpop.permute.xlu0 %7121
      %7123 = vrot.lane.b32.xlu0 %v7052, 126
      %v7124 = vpop.permute.xlu0 %7123
      %v7149 = vadd.f32 %v7002, %v7078
      %v7150 = vadd.f32 %v7003, %v7080
      %v7151 = vadd.f32 %v7004, %v7082
      %v7152 = vadd.f32 %v7005, %v7084
      %v7153 = vadd.f32 %v7006, %v7086
      %v7154 = vadd.f32 %v7007, %v7088
      %v7155 = vadd.f32 %v7008, %v7090
      %v7156 = vadd.f32 %v7009, %v7092
      %v7157 = vadd.f32 %v7010, %v7094
      %v7158 = vadd.f32 %v7011, %v7096
      %v7159 = vadd.f32 %v7012, %v7098
      %v7160 = vadd.f32 %v7013, %v7100
      %v7161 = vadd.f32 %v7014, %v7102
      %v7162 = vadd.f32 %v7015, %v7104
      %v7163 = vadd.f32 %v7016, %v7106
      %v7164 = vadd.f32 %v7017, %v7108
      %v7165 = vadd.f32 %v7018, %v7110
      %v7166 = vadd.f32 %v7019, %v7112
      %v7167 = vadd.f32 %v7020, %v7114
      %v7168 = vadd.f32 %v7021, %v7116
      %v7169 = vadd.f32 %v7022, %v7118
      %v7170 = vadd.f32 %v7023, %v7120
      %v7171 = vadd.f32 %v7024, %v7122
      %v7172 = vadd.f32 %v7025, %v7124
      %v7173 = vmax.f32 %v7149, 0.0
      %v7174 = vmax.f32 %v7150, 0.0
      %v7175 = vmax.f32 %v7151, 0.0
      %v7176 = vmax.f32 %v7152, 0.0
      %v7177 = vmax.f32 %v7153, 0.0
      %v7178 = vmax.f32 %v7154, 0.0
      %v7179 = vmax.f32 %v7155, 0.0
      %v7180 = vmax.f32 %v7156, 0.0
      %v7181 = vmax.f32 %v7157, 0.0
      %v7182 = vmax.f32 %v7158, 0.0
      %v7183 = vmax.f32 %v7159, 0.0
      %v7184 = vmax.f32 %v7160, 0.0
      %v7185 = vmax.f32 %v7161, 0.0
      %v7186 = vmax.f32 %v7162, 0.0
      %v7187 = vmax.f32 %v7163, 0.0
      %v7188 = vmax.f32 %v7164, 0.0
      %v7189 = vmax.f32 %v7165, 0.0
      %v7190 = vmax.f32 %v7166, 0.0
      %v7191 = vmax.f32 %v7167, 0.0
      %v7192 = vmax.f32 %v7168, 0.0
      %v7193 = vmax.f32 %v7169, 0.0
      %v7194 = vmax.f32 %v7170, 0.0
      %v7195 = vmax.f32 %v7171, 0.0
      %v7196 = vmax.f32 %v7172, 0.0
      %s7197 = smul.u32 %s1627, 192
      %s7198 = scalar_lea.vmem [#allocation3], %s7197
      %vm7199 = vcmask 195584
      %7200 = vst.msk [vmem:[%s7198] sm:$0xff] %vm7199, %v7173
      %7201 = vst.msk [vmem:[%s7198 + $0x8] sm:$0xff] %vm7199, %v7174
      %7202 = vst.msk [vmem:[%s7198 + $0x10] sm:$0xff] %vm7199, %v7175
      %7203 = vst.msk [vmem:[%s7198 + $0x18] sm:$0xff] %vm7199, %v7176
      %7204 = vst.msk [vmem:[%s7198 + $0x20] sm:$0xff] %vm7199, %v7177
      %7205 = vst.msk [vmem:[%s7198 + $0x28] sm:$0xff] %vm7199, %v7178
      %7206 = vst.msk [vmem:[%s7198 + $0x30] sm:$0xff] %vm7199, %v7179
      %7207 = vst.msk [vmem:[%s7198 + $0x38] sm:$0xff] %vm7199, %v7180
      %7208 = vst.msk [vmem:[%s7198 + $0x40] sm:$0xff] %vm7199, %v7181
      %7209 = vst.msk [vmem:[%s7198 + $0x48] sm:$0xff] %vm7199, %v7182
      %7210 = vst.msk [vmem:[%s7198 + $0x50] sm:$0xff] %vm7199, %v7183
      %7211 = vst.msk [vmem:[%s7198 + $0x58] sm:$0xff] %vm7199, %v7184
      %7212 = vst.msk [vmem:[%s7198 + $0x60] sm:$0xff] %vm7199, %v7185
      %7213 = vst.msk [vmem:[%s7198 + $0x68] sm:$0xff] %vm7199, %v7186
      %7214 = vst.msk [vmem:[%s7198 + $0x70] sm:$0xff] %vm7199, %v7187
      %7215 = vst.msk [vmem:[%s7198 + $0x78] sm:$0xff] %vm7199, %v7188
      %7216 = vst.msk [vmem:[%s7198 + $0x80] sm:$0xff] %vm7199, %v7189
      %7217 = vst.msk [vmem:[%s7198 + $0x88] sm:$0xff] %vm7199, %v7190
      %7218 = vst.msk [vmem:[%s7198 + $0x90] sm:$0xff] %vm7199, %v7191
      %7219 = vst.msk [vmem:[%s7198 + $0x98] sm:$0xff] %vm7199, %v7192
      %7220 = vst.msk [vmem:[%s7198 + $0xa0] sm:$0xff] %vm7199, %v7193
      %7221 = vst.msk [vmem:[%s7198 + $0xa8] sm:$0xff] %vm7199, %v7194
      %7222 = vst.msk [vmem:[%s7198 + $0xb0] sm:$0xff] %vm7199, %v7195
      %7223 = vst.msk [vmem:[%s7198 + $0xb8] sm:$0xff] %vm7199, %v7196
    $region65: #{conv_nn_forward.1} parent=1 // loop_footer
      %s1631 = sadd.s32 1, %s1627
    $region66: #{conv_nn_forward.1} parent=1 // loop_footer_branch
      %1626 = sbr.rel target = $region62
    $region67: #{conv_nn_forward.1} parent=1 // loop_exit
      _
    loop: start=0, step=1, limit=10
    $region68: #{conv_nn_forward.1} parent=1 // loop_pre_header
      _
    $region69: #{conv_nn_forward.1} parent=1 // loop_header
      %s7225 = sphi 0, %s7229
      %p7226 = scmp.ge.s32.totalorder %s7225, 10
      %v7230 = vphi 0.0, %v9704
    $region70: #{conv_nn_forward.1} parent=1 // loop_header_branch
      %7228 = sbr.rel (%p7226) target = $region74
    $region71: #{conv_nn_forward.1} parent=1 // loop_body
      %s7231 = smul.u32 %s7225, 192
      %s7232 = scalar_lea.vmem [#allocation3], %s7231
      %v7233 = vld [vmem:[%s7232] sm:$0x1]
      %v7234 = vld [vmem:[%s7232 + $0x18] sm:$0x1]
      %v7235 = vld [vmem:[%s7232 + $0x30] sm:$0x1]
      %v7236 = vld [vmem:[%s7232 + $0x48] sm:$0x1]
      %v7237 = vld [vmem:[%s7232 + $0x60] sm:$0x1]
      %v7238 = vld [vmem:[%s7232 + $0x78] sm:$0x1]
      %v7239 = vld [vmem:[%s7232 + $0x90] sm:$0x1]
      %v7240 = vld [vmem:[%s7232 + $0xa8] sm:$0x1]
      %v7241 = vld [vmem:[%s7232 + $0x1] sm:$0x1]
      %v7242 = vld [vmem:[%s7232 + $0x19] sm:$0x1]
      %v7243 = vld [vmem:[%s7232 + $0x31] sm:$0x1]
      %v7244 = vld [vmem:[%s7232 + $0x49] sm:$0x1]
      %v7245 = vld [vmem:[%s7232 + $0x61] sm:$0x1]
      %v7246 = vld [vmem:[%s7232 + $0x79] sm:$0x1]
      %v7247 = vld [vmem:[%s7232 + $0x91] sm:$0x1]
      %v7248 = vld [vmem:[%s7232 + $0xa9] sm:$0x1]
      %7257 = vrot.lane.b32.xlu0 %v7233, 127
      %v7258 = vpop.permute.xlu0 %7257
      %7259 = vrot.lane.b32.xlu0 %v7234, 127
      %v7260 = vpop.permute.xlu0 %7259
      %7261 = vrot.lane.b32.xlu0 %v7235, 127
      %v7262 = vpop.permute.xlu0 %7261
      %7263 = vrot.lane.b32.xlu0 %v7236, 127
      %v7264 = vpop.permute.xlu0 %7263
      %7265 = vrot.lane.b32.xlu0 %v7237, 127
      %v7266 = vpop.permute.xlu0 %7265
      %7267 = vrot.lane.b32.xlu0 %v7238, 127
      %v7268 = vpop.permute.xlu0 %7267
      %7269 = vrot.lane.b32.xlu0 %v7239, 127
      %v7270 = vpop.permute.xlu0 %7269
      %7271 = vrot.lane.b32.xlu0 %v7240, 127
      %v7272 = vpop.permute.xlu0 %7271
      %v7281 = vmax.f32 %v7233, %v7258
      %v7282 = vmax.f32 %v7234, %v7260
      %v7283 = vmax.f32 %v7235, %v7262
      %v7284 = vmax.f32 %v7236, %v7264
      %v7285 = vmax.f32 %v7237, %v7266
      %v7286 = vmax.f32 %v7238, %v7268
      %v7287 = vmax.f32 %v7239, %v7270
      %v7288 = vmax.f32 %v7240, %v7272
      %7297 = vrot.lane.b32.xlu0 %v7241, 127
      %v7298 = vpop.permute.xlu0 %7297
      %7299 = vrot.lane.b32.xlu0 %v7242, 127
      %v7300 = vpop.permute.xlu0 %7299
      %7301 = vrot.lane.b32.xlu0 %v7243, 127
      %v7302 = vpop.permute.xlu0 %7301
      %7303 = vrot.lane.b32.xlu0 %v7244, 127
      %v7304 = vpop.permute.xlu0 %7303
      %7305 = vrot.lane.b32.xlu0 %v7245, 127
      %v7306 = vpop.permute.xlu0 %7305
      %7307 = vrot.lane.b32.xlu0 %v7246, 127
      %v7308 = vpop.permute.xlu0 %7307
      %7309 = vrot.lane.b32.xlu0 %v7247, 127
      %v7310 = vpop.permute.xlu0 %7309
      %7311 = vrot.lane.b32.xlu0 %v7248, 127
      %v7312 = vpop.permute.xlu0 %7311
      %v7321 = vmax.f32 %v7241, %v7298
      %v7322 = vmax.f32 %v7242, %v7300
      %v7323 = vmax.f32 %v7243, %v7302
      %v7324 = vmax.f32 %v7244, %v7304
      %v7325 = vmax.f32 %v7245, %v7306
      %v7326 = vmax.f32 %v7246, %v7308
      %v7327 = vmax.f32 %v7247, %v7310
      %v7328 = vmax.f32 %v7248, %v7312
      %v7329 = vmax.f32 %v7281, %v7321
      %v7330 = vmax.f32 %v7282, %v7322
      %v7331 = vmax.f32 %v7283, %v7323
      %v7332 = vmax.f32 %v7284, %v7324
      %v7333 = vmax.f32 %v7285, %v7325
      %v7334 = vmax.f32 %v7286, %v7326
      %v7335 = vmax.f32 %v7287, %v7327
      %v7336 = vmax.f32 %v7288, %v7328
      %v7337 = vpack.c.bf16 %v7329, %v7329
      %v7338 = vpack.c.bf16 %v7330, %v7330
      %v7339 = vpack.c.bf16 %v7331, %v7331
      %v7340 = vpack.c.bf16 %v7332, %v7332
      %v7341 = vpack.c.bf16 %v7333, %v7333
      %v7342 = vpack.c.bf16 %v7334, %v7334
      %v7343 = vpack.c.bf16 %v7335, %v7335
      %v7344 = vpack.c.bf16 %v7336, %v7336
      %s7345 = smul.u32 %s7225, 36
      %s7346 = smul.addr %s7345, 4
      %s7347 = scalar_lea.vmem %s5, %s7346
      %v7348 = vld [vmem:[%s7347] sm:$0xf]
      %v7349 = vld [vmem:[%s7347 + $0x4] sm:$0xf]
      %v7350 = vld [vmem:[%s7347 + $0x8] sm:$0xf]
      %v7359 = vunpack.c.l.b16 %v7337
      %v7360 = vunpack.c.l.b16 %v7338
      %v7361 = vunpack.c.l.b16 %v7339
      %v7362 = vunpack.c.l.b16 %v7340
      %v7363 = vunpack.c.l.b16 %v7341
      %v7364 = vunpack.c.l.b16 %v7342
      %v7365 = vunpack.c.l.b16 %v7343
      %v7366 = vunpack.c.l.b16 %v7344
      %v7367 = vrot.slane %v7360, 7
      %vm7368 = vcmask 1041409
      %v7369 = vsel %vm7368, %v7367, %v7359
      %v7370 = vrot.slane %v7361, 6
      %vm7371 = vcmask 1042434
      %v7372 = vsel %vm7371, %v7370, %v7369
      %v7373 = vrot.slane %v7362, 5
      %vm7374 = vcmask 1043459
      %v7375 = vsel %vm7374, %v7373, %v7372
      %v7376 = vrot.slane %v7363, 4
      %vm7377 = vcmask 1044484
      %v7378 = vsel %vm7377, %v7376, %v7375
      %v7379 = vrot.slane %v7364, 3
      %vm7380 = vcmask 1045509
      %v7381 = vsel %vm7380, %v7379, %v7378
      %v7382 = vrot.slane %v7365, 2
      %vm7383 = vcmask 1046534
      %v7384 = vsel %vm7383, %v7382, %v7381
      %v7385 = vrot.slane %v7366, 1
      %vm7386 = vcmask 1047559
      %v7387 = vsel %vm7386, %v7385, %v7384
      %v7388 = vpack.c.b16 %v7387, %v7387
      %v7392 = vunpack.c.l.b16 %v7348
      %v7393 = vunpack.c.l.b16 %v7349
      %v7394 = vunpack.c.l.b16 %v7350
      %v7395 = vpack.c.b16 %v7393, %v7392
      %v7396 = vpack.c.b16 %v7394, %v7394
      %vm7398 = vcmask 187392
      %v7400 = vsel %vm7398, %v7388, 0
      %vm7402 = vcmask 1042432
      %vm7403 = vcmask 1043456
      %v7404 = vsel %vm7402, 4294967295, 65535
      %v7405 = vsel %vm7403, %v7404, 0
      %v7407 = vand.u32 %v7396, %v7405
      %7409 = vmatprep.subr.bf16.mxu0 0
      %7410 = vmatpush1.bf16.msra.mxu0 0
      %7411 = vmatprep.subr.bf16.mxu0 0
      %7412 = vmatpush1.bf16.msra.mxu0 0
      %7413 = vmatprep.subr.bf16.mxu0 0
      %7414 = vmatpush1.bf16.msra.mxu0 0
      %7415 = vmatprep.subr.bf16.mxu0 0
      %7416 = vmatpush1.bf16.msra.mxu0 0
      %7417 = vmatprep.subr.bf16.mxu0 0
      %7418 = vmatpush1.bf16.msra.mxu0 0
      %7419 = vmatprep.subr.bf16.mxu0 0
      %7420 = vmatpush1.bf16.msra.mxu0 0
      %7421 = vmatprep.subr.bf16.mxu0 0
      %7422 = vmatpush1.bf16.msra.mxu0 %v7407
      %7423 = vmatprep.subr.bf16.mxu0 0
      %7424 = vmatpush1.bf16.msra.mxu0 %v7395
      %7425 = vmatprep.subr.bf16.mxu0 0
      %7426 = vmatpush2.bf16.msra.mxu0 0
      %7427 = vmatprep.subr.bf16.mxu0 0
      %7428 = vmatpush2.bf16.msra.mxu0 0
      %7429 = vmatprep.subr.bf16.mxu0 0
      %7430 = vmatpush2.bf16.msra.mxu0 0
      %7431 = vmatprep.subr.bf16.mxu0 0
      %7432 = vmatpush2.bf16.msra.mxu0 0
      %7433 = vmatprep.subr.bf16.mxu0 0
      %7434 = vmatpush2.bf16.msra.mxu0 0
      %7435 = vmatprep.subr.bf16.mxu0 0
      %7436 = vmatpush2.bf16.msra.mxu0 0
      %7437 = vmatprep.subr.bf16.mxu0 0
      %7438 = vmatpush2.bf16.msra.mxu0 0
      %7439 = vmatprep.subr.bf16.mxu0 0
      %7440 = vmatpush2.bf16.msra.mxu0 0
      %7441 = vmatprep.mubr.bf16.mxu0 0
      %7442 = vmatmul.mubr.bf16.gmra.mxu0 %v7400
      %v7443 = vpop.f32.mrf.mxu0
      %v7444 = vadd.f32 0.0, %v7443
      %v7445 = vpop.f32.mrf.mxu0
      %v7446 = vpop.f32.mrf.mxu0
      %v7447 = vpop.f32.mrf.mxu0
      %7448 = vdwg.mxu0
      %v7449 = vadd.f32 %v7230, %v7444
      %v7450 = vld [vmem:[%s7232 + $0x2] sm:$0x1]
      %v7451 = vld [vmem:[%s7232 + $0x1a] sm:$0x1]
      %v7452 = vld [vmem:[%s7232 + $0x32] sm:$0x1]
      %v7453 = vld [vmem:[%s7232 + $0x4a] sm:$0x1]
      %v7454 = vld [vmem:[%s7232 + $0x62] sm:$0x1]
      %v7455 = vld [vmem:[%s7232 + $0x7a] sm:$0x1]
      %v7456 = vld [vmem:[%s7232 + $0x92] sm:$0x1]
      %v7457 = vld [vmem:[%s7232 + $0xaa] sm:$0x1]
      %v7458 = vld [vmem:[%s7232 + $0x3] sm:$0x1]
      %v7459 = vld [vmem:[%s7232 + $0x1b] sm:$0x1]
      %v7460 = vld [vmem:[%s7232 + $0x33] sm:$0x1]
      %v7461 = vld [vmem:[%s7232 + $0x4b] sm:$0x1]
      %v7462 = vld [vmem:[%s7232 + $0x63] sm:$0x1]
      %v7463 = vld [vmem:[%s7232 + $0x7b] sm:$0x1]
      %v7464 = vld [vmem:[%s7232 + $0x93] sm:$0x1]
      %v7465 = vld [vmem:[%s7232 + $0xab] sm:$0x1]
      %7474 = vrot.lane.b32.xlu0 %v7450, 127
      %v7475 = vpop.permute.xlu0 %7474
      %7476 = vrot.lane.b32.xlu0 %v7451, 127
      %v7477 = vpop.permute.xlu0 %7476
      %7478 = vrot.lane.b32.xlu0 %v7452, 127
      %v7479 = vpop.permute.xlu0 %7478
      %7480 = vrot.lane.b32.xlu0 %v7453, 127
      %v7481 = vpop.permute.xlu0 %7480
      %7482 = vrot.lane.b32.xlu0 %v7454, 127
      %v7483 = vpop.permute.xlu0 %7482
      %7484 = vrot.lane.b32.xlu0 %v7455, 127
      %v7485 = vpop.permute.xlu0 %7484
      %7486 = vrot.lane.b32.xlu0 %v7456, 127
      %v7487 = vpop.permute.xlu0 %7486
      %7488 = vrot.lane.b32.xlu0 %v7457, 127
      %v7489 = vpop.permute.xlu0 %7488
      %v7498 = vmax.f32 %v7450, %v7475
      %v7499 = vmax.f32 %v7451, %v7477
      %v7500 = vmax.f32 %v7452, %v7479
      %v7501 = vmax.f32 %v7453, %v7481
      %v7502 = vmax.f32 %v7454, %v7483
      %v7503 = vmax.f32 %v7455, %v7485
      %v7504 = vmax.f32 %v7456, %v7487
      %v7505 = vmax.f32 %v7457, %v7489
      %7514 = vrot.lane.b32.xlu0 %v7458, 127
      %v7515 = vpop.permute.xlu0 %7514
      %7516 = vrot.lane.b32.xlu0 %v7459, 127
      %v7517 = vpop.permute.xlu0 %7516
      %7518 = vrot.lane.b32.xlu0 %v7460, 127
      %v7519 = vpop.permute.xlu0 %7518
      %7520 = vrot.lane.b32.xlu0 %v7461, 127
      %v7521 = vpop.permute.xlu0 %7520
      %7522 = vrot.lane.b32.xlu0 %v7462, 127
      %v7523 = vpop.permute.xlu0 %7522
      %7524 = vrot.lane.b32.xlu0 %v7463, 127
      %v7525 = vpop.permute.xlu0 %7524
      %7526 = vrot.lane.b32.xlu0 %v7464, 127
      %v7527 = vpop.permute.xlu0 %7526
      %7528 = vrot.lane.b32.xlu0 %v7465, 127
      %v7529 = vpop.permute.xlu0 %7528
      %v7538 = vmax.f32 %v7458, %v7515
      %v7539 = vmax.f32 %v7459, %v7517
      %v7540 = vmax.f32 %v7460, %v7519
      %v7541 = vmax.f32 %v7461, %v7521
      %v7542 = vmax.f32 %v7462, %v7523
      %v7543 = vmax.f32 %v7463, %v7525
      %v7544 = vmax.f32 %v7464, %v7527
      %v7545 = vmax.f32 %v7465, %v7529
      %v7546 = vmax.f32 %v7498, %v7538
      %v7547 = vmax.f32 %v7499, %v7539
      %v7548 = vmax.f32 %v7500, %v7540
      %v7549 = vmax.f32 %v7501, %v7541
      %v7550 = vmax.f32 %v7502, %v7542
      %v7551 = vmax.f32 %v7503, %v7543
      %v7552 = vmax.f32 %v7504, %v7544
      %v7553 = vmax.f32 %v7505, %v7545
      %v7554 = vpack.c.bf16 %v7546, %v7546
      %v7555 = vpack.c.bf16 %v7547, %v7547
      %v7556 = vpack.c.bf16 %v7548, %v7548
      %v7557 = vpack.c.bf16 %v7549, %v7549
      %v7558 = vpack.c.bf16 %v7550, %v7550
      %v7559 = vpack.c.bf16 %v7551, %v7551
      %v7560 = vpack.c.bf16 %v7552, %v7552
      %v7561 = vpack.c.bf16 %v7553, %v7553
      %s7562 = sadd.s32 3, %s7345
      %s7563 = smul.addr %s7562, 4
      %s7564 = scalar_lea.vmem %s5, %s7563
      %v7565 = vld [vmem:[%s7564] sm:$0xf]
      %v7566 = vld [vmem:[%s7564 + $0x4] sm:$0xf]
      %v7567 = vld [vmem:[%s7564 + $0x8] sm:$0xf]
      %v7576 = vunpack.c.l.b16 %v7554
      %v7577 = vunpack.c.l.b16 %v7555
      %v7578 = vunpack.c.l.b16 %v7556
      %v7579 = vunpack.c.l.b16 %v7557
      %v7580 = vunpack.c.l.b16 %v7558
      %v7581 = vunpack.c.l.b16 %v7559
      %v7582 = vunpack.c.l.b16 %v7560
      %v7583 = vunpack.c.l.b16 %v7561
      %v7584 = vrot.slane %v7577, 7
      %v7585 = vsel %vm7368, %v7584, %v7576
      %v7586 = vrot.slane %v7578, 6
      %v7587 = vsel %vm7371, %v7586, %v7585
      %v7588 = vrot.slane %v7579, 5
      %v7589 = vsel %vm7374, %v7588, %v7587
      %v7590 = vrot.slane %v7580, 4
      %v7591 = vsel %vm7377, %v7590, %v7589
      %v7592 = vrot.slane %v7581, 3
      %v7593 = vsel %vm7380, %v7592, %v7591
      %v7594 = vrot.slane %v7582, 2
      %v7595 = vsel %vm7383, %v7594, %v7593
      %v7596 = vrot.slane %v7583, 1
      %v7597 = vsel %vm7386, %v7596, %v7595
      %v7598 = vpack.c.b16 %v7597, %v7597
      %v7602 = vunpack.c.l.b16 %v7565
      %v7603 = vunpack.c.l.b16 %v7566
      %v7604 = vunpack.c.l.b16 %v7567
      %v7605 = vpack.c.b16 %v7603, %v7602
      %v7606 = vpack.c.b16 %v7604, %v7604
      %v7609 = vsel %vm7398, %v7598, 0
      %v7612 = vand.u32 %v7606, %v7405
      %7614 = vmatprep.subr.bf16.mxu0 0
      %7615 = vmatpush1.bf16.msra.mxu0 0
      %7616 = vmatprep.subr.bf16.mxu0 0
      %7617 = vmatpush1.bf16.msra.mxu0 0
      %7618 = vmatprep.subr.bf16.mxu0 0
      %7619 = vmatpush1.bf16.msra.mxu0 0
      %7620 = vmatprep.subr.bf16.mxu0 0
      %7621 = vmatpush1.bf16.msra.mxu0 0
      %7622 = vmatprep.subr.bf16.mxu0 0
      %7623 = vmatpush1.bf16.msra.mxu0 0
      %7624 = vmatprep.subr.bf16.mxu0 0
      %7625 = vmatpush1.bf16.msra.mxu0 0
      %7626 = vmatprep.subr.bf16.mxu0 0
      %7627 = vmatpush1.bf16.msra.mxu0 %v7612
      %7628 = vmatprep.subr.bf16.mxu0 0
      %7629 = vmatpush1.bf16.msra.mxu0 %v7605
      %7630 = vmatprep.subr.bf16.mxu0 0
      %7631 = vmatpush2.bf16.msra.mxu0 0
      %7632 = vmatprep.subr.bf16.mxu0 0
      %7633 = vmatpush2.bf16.msra.mxu0 0
      %7634 = vmatprep.subr.bf16.mxu0 0
      %7635 = vmatpush2.bf16.msra.mxu0 0
      %7636 = vmatprep.subr.bf16.mxu0 0
      %7637 = vmatpush2.bf16.msra.mxu0 0
      %7638 = vmatprep.subr.bf16.mxu0 0
      %7639 = vmatpush2.bf16.msra.mxu0 0
      %7640 = vmatprep.subr.bf16.mxu0 0
      %7641 = vmatpush2.bf16.msra.mxu0 0
      %7642 = vmatprep.subr.bf16.mxu0 0
      %7643 = vmatpush2.bf16.msra.mxu0 0
      %7644 = vmatprep.subr.bf16.mxu0 0
      %7645 = vmatpush2.bf16.msra.mxu0 0
      %7646 = vmatprep.mubr.bf16.mxu0 0
      %7647 = vmatmul.mubr.bf16.gmra.mxu0 %v7609
      %v7648 = vpop.f32.mrf.mxu0
      %v7649 = vadd.f32 0.0, %v7648
      %v7650 = vpop.f32.mrf.mxu0
      %v7651 = vpop.f32.mrf.mxu0
      %v7652 = vpop.f32.mrf.mxu0
      %7653 = vdwg.mxu0
      %v7654 = vadd.f32 %v7449, %v7649
      %v7655 = vld [vmem:[%s7232 + $0x4] sm:$0x1]
      %v7656 = vld [vmem:[%s7232 + $0x1c] sm:$0x1]
      %v7657 = vld [vmem:[%s7232 + $0x34] sm:$0x1]
      %v7658 = vld [vmem:[%s7232 + $0x4c] sm:$0x1]
      %v7659 = vld [vmem:[%s7232 + $0x64] sm:$0x1]
      %v7660 = vld [vmem:[%s7232 + $0x7c] sm:$0x1]
      %v7661 = vld [vmem:[%s7232 + $0x94] sm:$0x1]
      %v7662 = vld [vmem:[%s7232 + $0xac] sm:$0x1]
      %v7663 = vld [vmem:[%s7232 + $0x5] sm:$0x1]
      %v7664 = vld [vmem:[%s7232 + $0x1d] sm:$0x1]
      %v7665 = vld [vmem:[%s7232 + $0x35] sm:$0x1]
      %v7666 = vld [vmem:[%s7232 + $0x4d] sm:$0x1]
      %v7667 = vld [vmem:[%s7232 + $0x65] sm:$0x1]
      %v7668 = vld [vmem:[%s7232 + $0x7d] sm:$0x1]
      %v7669 = vld [vmem:[%s7232 + $0x95] sm:$0x1]
      %v7670 = vld [vmem:[%s7232 + $0xad] sm:$0x1]
      %7679 = vrot.lane.b32.xlu0 %v7655, 127
      %v7680 = vpop.permute.xlu0 %7679
      %7681 = vrot.lane.b32.xlu0 %v7656, 127
      %v7682 = vpop.permute.xlu0 %7681
      %7683 = vrot.lane.b32.xlu0 %v7657, 127
      %v7684 = vpop.permute.xlu0 %7683
      %7685 = vrot.lane.b32.xlu0 %v7658, 127
      %v7686 = vpop.permute.xlu0 %7685
      %7687 = vrot.lane.b32.xlu0 %v7659, 127
      %v7688 = vpop.permute.xlu0 %7687
      %7689 = vrot.lane.b32.xlu0 %v7660, 127
      %v7690 = vpop.permute.xlu0 %7689
      %7691 = vrot.lane.b32.xlu0 %v7661, 127
      %v7692 = vpop.permute.xlu0 %7691
      %7693 = vrot.lane.b32.xlu0 %v7662, 127
      %v7694 = vpop.permute.xlu0 %7693
      %v7703 = vmax.f32 %v7655, %v7680
      %v7704 = vmax.f32 %v7656, %v7682
      %v7705 = vmax.f32 %v7657, %v7684
      %v7706 = vmax.f32 %v7658, %v7686
      %v7707 = vmax.f32 %v7659, %v7688
      %v7708 = vmax.f32 %v7660, %v7690
      %v7709 = vmax.f32 %v7661, %v7692
      %v7710 = vmax.f32 %v7662, %v7694
      %7719 = vrot.lane.b32.xlu0 %v7663, 127
      %v7720 = vpop.permute.xlu0 %7719
      %7721 = vrot.lane.b32.xlu0 %v7664, 127
      %v7722 = vpop.permute.xlu0 %7721
      %7723 = vrot.lane.b32.xlu0 %v7665, 127
      %v7724 = vpop.permute.xlu0 %7723
      %7725 = vrot.lane.b32.xlu0 %v7666, 127
      %v7726 = vpop.permute.xlu0 %7725
      %7727 = vrot.lane.b32.xlu0 %v7667, 127
      %v7728 = vpop.permute.xlu0 %7727
      %7729 = vrot.lane.b32.xlu0 %v7668, 127
      %v7730 = vpop.permute.xlu0 %7729
      %7731 = vrot.lane.b32.xlu0 %v7669, 127
      %v7732 = vpop.permute.xlu0 %7731
      %7733 = vrot.lane.b32.xlu0 %v7670, 127
      %v7734 = vpop.permute.xlu0 %7733
      %v7743 = vmax.f32 %v7663, %v7720
      %v7744 = vmax.f32 %v7664, %v7722
      %v7745 = vmax.f32 %v7665, %v7724
      %v7746 = vmax.f32 %v7666, %v7726
      %v7747 = vmax.f32 %v7667, %v7728
      %v7748 = vmax.f32 %v7668, %v7730
      %v7749 = vmax.f32 %v7669, %v7732
      %v7750 = vmax.f32 %v7670, %v7734
      %v7751 = vmax.f32 %v7703, %v7743
      %v7752 = vmax.f32 %v7704, %v7744
      %v7753 = vmax.f32 %v7705, %v7745
      %v7754 = vmax.f32 %v7706, %v7746
      %v7755 = vmax.f32 %v7707, %v7747
      %v7756 = vmax.f32 %v7708, %v7748
      %v7757 = vmax.f32 %v7709, %v7749
      %v7758 = vmax.f32 %v7710, %v7750
      %v7759 = vpack.c.bf16 %v7751, %v7751
      %v7760 = vpack.c.bf16 %v7752, %v7752
      %v7761 = vpack.c.bf16 %v7753, %v7753
      %v7762 = vpack.c.bf16 %v7754, %v7754
      %v7763 = vpack.c.bf16 %v7755, %v7755
      %v7764 = vpack.c.bf16 %v7756, %v7756
      %v7765 = vpack.c.bf16 %v7757, %v7757
      %v7766 = vpack.c.bf16 %v7758, %v7758
      %s7767 = sadd.s32 6, %s7345
      %s7768 = smul.addr %s7767, 4
      %s7769 = scalar_lea.vmem %s5, %s7768
      %v7770 = vld [vmem:[%s7769] sm:$0xf]
      %v7771 = vld [vmem:[%s7769 + $0x4] sm:$0xf]
      %v7772 = vld [vmem:[%s7769 + $0x8] sm:$0xf]
      %v7781 = vunpack.c.l.b16 %v7759
      %v7782 = vunpack.c.l.b16 %v7760
      %v7783 = vunpack.c.l.b16 %v7761
      %v7784 = vunpack.c.l.b16 %v7762
      %v7785 = vunpack.c.l.b16 %v7763
      %v7786 = vunpack.c.l.b16 %v7764
      %v7787 = vunpack.c.l.b16 %v7765
      %v7788 = vunpack.c.l.b16 %v7766
      %v7789 = vrot.slane %v7782, 7
      %v7790 = vsel %vm7368, %v7789, %v7781
      %v7791 = vrot.slane %v7783, 6
      %v7792 = vsel %vm7371, %v7791, %v7790
      %v7793 = vrot.slane %v7784, 5
      %v7794 = vsel %vm7374, %v7793, %v7792
      %v7795 = vrot.slane %v7785, 4
      %v7796 = vsel %vm7377, %v7795, %v7794
      %v7797 = vrot.slane %v7786, 3
      %v7798 = vsel %vm7380, %v7797, %v7796
      %v7799 = vrot.slane %v7787, 2
      %v7800 = vsel %vm7383, %v7799, %v7798
      %v7801 = vrot.slane %v7788, 1
      %v7802 = vsel %vm7386, %v7801, %v7800
      %v7803 = vpack.c.b16 %v7802, %v7802
      %v7807 = vunpack.c.l.b16 %v7770
      %v7808 = vunpack.c.l.b16 %v7771
      %v7809 = vunpack.c.l.b16 %v7772
      %v7810 = vpack.c.b16 %v7808, %v7807
      %v7811 = vpack.c.b16 %v7809, %v7809
      %v7814 = vsel %vm7398, %v7803, 0
      %v7817 = vand.u32 %v7811, %v7405
      %7819 = vmatprep.subr.bf16.mxu0 0
      %7820 = vmatpush1.bf16.msra.mxu0 0
      %7821 = vmatprep.subr.bf16.mxu0 0
      %7822 = vmatpush1.bf16.msra.mxu0 0
      %7823 = vmatprep.subr.bf16.mxu0 0
      %7824 = vmatpush1.bf16.msra.mxu0 0
      %7825 = vmatprep.subr.bf16.mxu0 0
      %7826 = vmatpush1.bf16.msra.mxu0 0
      %7827 = vmatprep.subr.bf16.mxu0 0
      %7828 = vmatpush1.bf16.msra.mxu0 0
      %7829 = vmatprep.subr.bf16.mxu0 0
      %7830 = vmatpush1.bf16.msra.mxu0 0
      %7831 = vmatprep.subr.bf16.mxu0 0
      %7832 = vmatpush1.bf16.msra.mxu0 %v7817
      %7833 = vmatprep.subr.bf16.mxu0 0
      %7834 = vmatpush1.bf16.msra.mxu0 %v7810
      %7835 = vmatprep.subr.bf16.mxu0 0
      %7836 = vmatpush2.bf16.msra.mxu0 0
      %7837 = vmatprep.subr.bf16.mxu0 0
      %7838 = vmatpush2.bf16.msra.mxu0 0
      %7839 = vmatprep.subr.bf16.mxu0 0
      %7840 = vmatpush2.bf16.msra.mxu0 0
      %7841 = vmatprep.subr.bf16.mxu0 0
      %7842 = vmatpush2.bf16.msra.mxu0 0
      %7843 = vmatprep.subr.bf16.mxu0 0
      %7844 = vmatpush2.bf16.msra.mxu0 0
      %7845 = vmatprep.subr.bf16.mxu0 0
      %7846 = vmatpush2.bf16.msra.mxu0 0
      %7847 = vmatprep.subr.bf16.mxu0 0
      %7848 = vmatpush2.bf16.msra.mxu0 0
      %7849 = vmatprep.subr.bf16.mxu0 0
      %7850 = vmatpush2.bf16.msra.mxu0 0
      %7851 = vmatprep.mubr.bf16.mxu0 0
      %7852 = vmatmul.mubr.bf16.gmra.mxu0 %v7814
      %v7853 = vpop.f32.mrf.mxu0
      %v7854 = vadd.f32 0.0, %v7853
      %v7855 = vpop.f32.mrf.mxu0
      %v7856 = vpop.f32.mrf.mxu0
      %v7857 = vpop.f32.mrf.mxu0
      %7858 = vdwg.mxu0
      %v7859 = vadd.f32 %v7654, %v7854
      %v7860 = vld [vmem:[%s7232 + $0x6] sm:$0x1]
      %v7861 = vld [vmem:[%s7232 + $0x1e] sm:$0x1]
      %v7862 = vld [vmem:[%s7232 + $0x36] sm:$0x1]
      %v7863 = vld [vmem:[%s7232 + $0x4e] sm:$0x1]
      %v7864 = vld [vmem:[%s7232 + $0x66] sm:$0x1]
      %v7865 = vld [vmem:[%s7232 + $0x7e] sm:$0x1]
      %v7866 = vld [vmem:[%s7232 + $0x96] sm:$0x1]
      %v7867 = vld [vmem:[%s7232 + $0xae] sm:$0x1]
      %v7868 = vld [vmem:[%s7232 + $0x7] sm:$0x1]
      %v7869 = vld [vmem:[%s7232 + $0x1f] sm:$0x1]
      %v7870 = vld [vmem:[%s7232 + $0x37] sm:$0x1]
      %v7871 = vld [vmem:[%s7232 + $0x4f] sm:$0x1]
      %v7872 = vld [vmem:[%s7232 + $0x67] sm:$0x1]
      %v7873 = vld [vmem:[%s7232 + $0x7f] sm:$0x1]
      %v7874 = vld [vmem:[%s7232 + $0x97] sm:$0x1]
      %v7875 = vld [vmem:[%s7232 + $0xaf] sm:$0x1]
      %7884 = vrot.lane.b32.xlu0 %v7860, 127
      %v7885 = vpop.permute.xlu0 %7884
      %7886 = vrot.lane.b32.xlu0 %v7861, 127
      %v7887 = vpop.permute.xlu0 %7886
      %7888 = vrot.lane.b32.xlu0 %v7862, 127
      %v7889 = vpop.permute.xlu0 %7888
      %7890 = vrot.lane.b32.xlu0 %v7863, 127
      %v7891 = vpop.permute.xlu0 %7890
      %7892 = vrot.lane.b32.xlu0 %v7864, 127
      %v7893 = vpop.permute.xlu0 %7892
      %7894 = vrot.lane.b32.xlu0 %v7865, 127
      %v7895 = vpop.permute.xlu0 %7894
      %7896 = vrot.lane.b32.xlu0 %v7866, 127
      %v7897 = vpop.permute.xlu0 %7896
      %7898 = vrot.lane.b32.xlu0 %v7867, 127
      %v7899 = vpop.permute.xlu0 %7898
      %v7908 = vmax.f32 %v7860, %v7885
      %v7909 = vmax.f32 %v7861, %v7887
      %v7910 = vmax.f32 %v7862, %v7889
      %v7911 = vmax.f32 %v7863, %v7891
      %v7912 = vmax.f32 %v7864, %v7893
      %v7913 = vmax.f32 %v7865, %v7895
      %v7914 = vmax.f32 %v7866, %v7897
      %v7915 = vmax.f32 %v7867, %v7899
      %7924 = vrot.lane.b32.xlu0 %v7868, 127
      %v7925 = vpop.permute.xlu0 %7924
      %7926 = vrot.lane.b32.xlu0 %v7869, 127
      %v7927 = vpop.permute.xlu0 %7926
      %7928 = vrot.lane.b32.xlu0 %v7870, 127
      %v7929 = vpop.permute.xlu0 %7928
      %7930 = vrot.lane.b32.xlu0 %v7871, 127
      %v7931 = vpop.permute.xlu0 %7930
      %7932 = vrot.lane.b32.xlu0 %v7872, 127
      %v7933 = vpop.permute.xlu0 %7932
      %7934 = vrot.lane.b32.xlu0 %v7873, 127
      %v7935 = vpop.permute.xlu0 %7934
      %7936 = vrot.lane.b32.xlu0 %v7874, 127
      %v7937 = vpop.permute.xlu0 %7936
      %7938 = vrot.lane.b32.xlu0 %v7875, 127
      %v7939 = vpop.permute.xlu0 %7938
      %v7948 = vmax.f32 %v7868, %v7925
      %v7949 = vmax.f32 %v7869, %v7927
      %v7950 = vmax.f32 %v7870, %v7929
      %v7951 = vmax.f32 %v7871, %v7931
      %v7952 = vmax.f32 %v7872, %v7933
      %v7953 = vmax.f32 %v7873, %v7935
      %v7954 = vmax.f32 %v7874, %v7937
      %v7955 = vmax.f32 %v7875, %v7939
      %v7956 = vmax.f32 %v7908, %v7948
      %v7957 = vmax.f32 %v7909, %v7949
      %v7958 = vmax.f32 %v7910, %v7950
      %v7959 = vmax.f32 %v7911, %v7951
      %v7960 = vmax.f32 %v7912, %v7952
      %v7961 = vmax.f32 %v7913, %v7953
      %v7962 = vmax.f32 %v7914, %v7954
      %v7963 = vmax.f32 %v7915, %v7955
      %v7964 = vpack.c.bf16 %v7956, %v7956
      %v7965 = vpack.c.bf16 %v7957, %v7957
      %v7966 = vpack.c.bf16 %v7958, %v7958
      %v7967 = vpack.c.bf16 %v7959, %v7959
      %v7968 = vpack.c.bf16 %v7960, %v7960
      %v7969 = vpack.c.bf16 %v7961, %v7961
      %v7970 = vpack.c.bf16 %v7962, %v7962
      %v7971 = vpack.c.bf16 %v7963, %v7963
      %s7972 = sadd.s32 9, %s7345
      %s7973 = smul.addr %s7972, 4
      %s7974 = scalar_lea.vmem %s5, %s7973
      %v7975 = vld [vmem:[%s7974] sm:$0xf]
      %v7976 = vld [vmem:[%s7974 + $0x4] sm:$0xf]
      %v7977 = vld [vmem:[%s7974 + $0x8] sm:$0xf]
      %v7986 = vunpack.c.l.b16 %v7964
      %v7987 = vunpack.c.l.b16 %v7965
      %v7988 = vunpack.c.l.b16 %v7966
      %v7989 = vunpack.c.l.b16 %v7967
      %v7990 = vunpack.c.l.b16 %v7968
      %v7991 = vunpack.c.l.b16 %v7969
      %v7992 = vunpack.c.l.b16 %v7970
      %v7993 = vunpack.c.l.b16 %v7971
      %v7994 = vrot.slane %v7987, 7
      %v7995 = vsel %vm7368, %v7994, %v7986
      %v7996 = vrot.slane %v7988, 6
      %v7997 = vsel %vm7371, %v7996, %v7995
      %v7998 = vrot.slane %v7989, 5
      %v7999 = vsel %vm7374, %v7998, %v7997
      %v8000 = vrot.slane %v7990, 4
      %v8001 = vsel %vm7377, %v8000, %v7999
      %v8002 = vrot.slane %v7991, 3
      %v8003 = vsel %vm7380, %v8002, %v8001
      %v8004 = vrot.slane %v7992, 2
      %v8005 = vsel %vm7383, %v8004, %v8003
      %v8006 = vrot.slane %v7993, 1
      %v8007 = vsel %vm7386, %v8006, %v8005
      %v8008 = vpack.c.b16 %v8007, %v8007
      %v8012 = vunpack.c.l.b16 %v7975
      %v8013 = vunpack.c.l.b16 %v7976
      %v8014 = vunpack.c.l.b16 %v7977
      %v8015 = vpack.c.b16 %v8013, %v8012
      %v8016 = vpack.c.b16 %v8014, %v8014
      %v8019 = vsel %vm7398, %v8008, 0
      %v8022 = vand.u32 %v8016, %v7405
      %8024 = vmatprep.subr.bf16.mxu0 0
      %8025 = vmatpush1.bf16.msra.mxu0 0
      %8026 = vmatprep.subr.bf16.mxu0 0
      %8027 = vmatpush1.bf16.msra.mxu0 0
      %8028 = vmatprep.subr.bf16.mxu0 0
      %8029 = vmatpush1.bf16.msra.mxu0 0
      %8030 = vmatprep.subr.bf16.mxu0 0
      %8031 = vmatpush1.bf16.msra.mxu0 0
      %8032 = vmatprep.subr.bf16.mxu0 0
      %8033 = vmatpush1.bf16.msra.mxu0 0
      %8034 = vmatprep.subr.bf16.mxu0 0
      %8035 = vmatpush1.bf16.msra.mxu0 0
      %8036 = vmatprep.subr.bf16.mxu0 0
      %8037 = vmatpush1.bf16.msra.mxu0 %v8022
      %8038 = vmatprep.subr.bf16.mxu0 0
      %8039 = vmatpush1.bf16.msra.mxu0 %v8015
      %8040 = vmatprep.subr.bf16.mxu0 0
      %8041 = vmatpush2.bf16.msra.mxu0 0
      %8042 = vmatprep.subr.bf16.mxu0 0
      %8043 = vmatpush2.bf16.msra.mxu0 0
      %8044 = vmatprep.subr.bf16.mxu0 0
      %8045 = vmatpush2.bf16.msra.mxu0 0
      %8046 = vmatprep.subr.bf16.mxu0 0
      %8047 = vmatpush2.bf16.msra.mxu0 0
      %8048 = vmatprep.subr.bf16.mxu0 0
      %8049 = vmatpush2.bf16.msra.mxu0 0
      %8050 = vmatprep.subr.bf16.mxu0 0
      %8051 = vmatpush2.bf16.msra.mxu0 0
      %8052 = vmatprep.subr.bf16.mxu0 0
      %8053 = vmatpush2.bf16.msra.mxu0 0
      %8054 = vmatprep.subr.bf16.mxu0 0
      %8055 = vmatpush2.bf16.msra.mxu0 0
      %8056 = vmatprep.mubr.bf16.mxu0 0
      %8057 = vmatmul.mubr.bf16.gmra.mxu0 %v8019
      %v8058 = vpop.f32.mrf.mxu0
      %v8059 = vadd.f32 0.0, %v8058
      %v8060 = vpop.f32.mrf.mxu0
      %v8061 = vpop.f32.mrf.mxu0
      %v8062 = vpop.f32.mrf.mxu0
      %8063 = vdwg.mxu0
      %v8064 = vadd.f32 %v7859, %v8059
      %v8065 = vld [vmem:[%s7232 + $0x8] sm:$0x1]
      %v8066 = vld [vmem:[%s7232 + $0x20] sm:$0x1]
      %v8067 = vld [vmem:[%s7232 + $0x38] sm:$0x1]
      %v8068 = vld [vmem:[%s7232 + $0x50] sm:$0x1]
      %v8069 = vld [vmem:[%s7232 + $0x68] sm:$0x1]
      %v8070 = vld [vmem:[%s7232 + $0x80] sm:$0x1]
      %v8071 = vld [vmem:[%s7232 + $0x98] sm:$0x1]
      %v8072 = vld [vmem:[%s7232 + $0xb0] sm:$0x1]
      %v8073 = vld [vmem:[%s7232 + $0x9] sm:$0x1]
      %v8074 = vld [vmem:[%s7232 + $0x21] sm:$0x1]
      %v8075 = vld [vmem:[%s7232 + $0x39] sm:$0x1]
      %v8076 = vld [vmem:[%s7232 + $0x51] sm:$0x1]
      %v8077 = vld [vmem:[%s7232 + $0x69] sm:$0x1]
      %v8078 = vld [vmem:[%s7232 + $0x81] sm:$0x1]
      %v8079 = vld [vmem:[%s7232 + $0x99] sm:$0x1]
      %v8080 = vld [vmem:[%s7232 + $0xb1] sm:$0x1]
      %8089 = vrot.lane.b32.xlu0 %v8065, 127
      %v8090 = vpop.permute.xlu0 %8089
      %8091 = vrot.lane.b32.xlu0 %v8066, 127
      %v8092 = vpop.permute.xlu0 %8091
      %8093 = vrot.lane.b32.xlu0 %v8067, 127
      %v8094 = vpop.permute.xlu0 %8093
      %8095 = vrot.lane.b32.xlu0 %v8068, 127
      %v8096 = vpop.permute.xlu0 %8095
      %8097 = vrot.lane.b32.xlu0 %v8069, 127
      %v8098 = vpop.permute.xlu0 %8097
      %8099 = vrot.lane.b32.xlu0 %v8070, 127
      %v8100 = vpop.permute.xlu0 %8099
      %8101 = vrot.lane.b32.xlu0 %v8071, 127
      %v8102 = vpop.permute.xlu0 %8101
      %8103 = vrot.lane.b32.xlu0 %v8072, 127
      %v8104 = vpop.permute.xlu0 %8103
      %v8113 = vmax.f32 %v8065, %v8090
      %v8114 = vmax.f32 %v8066, %v8092
      %v8115 = vmax.f32 %v8067, %v8094
      %v8116 = vmax.f32 %v8068, %v8096
      %v8117 = vmax.f32 %v8069, %v8098
      %v8118 = vmax.f32 %v8070, %v8100
      %v8119 = vmax.f32 %v8071, %v8102
      %v8120 = vmax.f32 %v8072, %v8104
      %8129 = vrot.lane.b32.xlu0 %v8073, 127
      %v8130 = vpop.permute.xlu0 %8129
      %8131 = vrot.lane.b32.xlu0 %v8074, 127
      %v8132 = vpop.permute.xlu0 %8131
      %8133 = vrot.lane.b32.xlu0 %v8075, 127
      %v8134 = vpop.permute.xlu0 %8133
      %8135 = vrot.lane.b32.xlu0 %v8076, 127
      %v8136 = vpop.permute.xlu0 %8135
      %8137 = vrot.lane.b32.xlu0 %v8077, 127
      %v8138 = vpop.permute.xlu0 %8137
      %8139 = vrot.lane.b32.xlu0 %v8078, 127
      %v8140 = vpop.permute.xlu0 %8139
      %8141 = vrot.lane.b32.xlu0 %v8079, 127
      %v8142 = vpop.permute.xlu0 %8141
      %8143 = vrot.lane.b32.xlu0 %v8080, 127
      %v8144 = vpop.permute.xlu0 %8143
      %v8153 = vmax.f32 %v8073, %v8130
      %v8154 = vmax.f32 %v8074, %v8132
      %v8155 = vmax.f32 %v8075, %v8134
      %v8156 = vmax.f32 %v8076, %v8136
      %v8157 = vmax.f32 %v8077, %v8138
      %v8158 = vmax.f32 %v8078, %v8140
      %v8159 = vmax.f32 %v8079, %v8142
      %v8160 = vmax.f32 %v8080, %v8144
      %v8161 = vmax.f32 %v8113, %v8153
      %v8162 = vmax.f32 %v8114, %v8154
      %v8163 = vmax.f32 %v8115, %v8155
      %v8164 = vmax.f32 %v8116, %v8156
      %v8165 = vmax.f32 %v8117, %v8157
      %v8166 = vmax.f32 %v8118, %v8158
      %v8167 = vmax.f32 %v8119, %v8159
      %v8168 = vmax.f32 %v8120, %v8160
      %v8169 = vpack.c.bf16 %v8161, %v8161
      %v8170 = vpack.c.bf16 %v8162, %v8162
      %v8171 = vpack.c.bf16 %v8163, %v8163
      %v8172 = vpack.c.bf16 %v8164, %v8164
      %v8173 = vpack.c.bf16 %v8165, %v8165
      %v8174 = vpack.c.bf16 %v8166, %v8166
      %v8175 = vpack.c.bf16 %v8167, %v8167
      %v8176 = vpack.c.bf16 %v8168, %v8168
      %s8177 = sadd.s32 12, %s7345
      %s8178 = smul.addr %s8177, 4
      %s8179 = scalar_lea.vmem %s5, %s8178
      %v8180 = vld [vmem:[%s8179] sm:$0xf]
      %v8181 = vld [vmem:[%s8179 + $0x4] sm:$0xf]
      %v8182 = vld [vmem:[%s8179 + $0x8] sm:$0xf]
      %v8191 = vunpack.c.l.b16 %v8169
      %v8192 = vunpack.c.l.b16 %v8170
      %v8193 = vunpack.c.l.b16 %v8171
      %v8194 = vunpack.c.l.b16 %v8172
      %v8195 = vunpack.c.l.b16 %v8173
      %v8196 = vunpack.c.l.b16 %v8174
      %v8197 = vunpack.c.l.b16 %v8175
      %v8198 = vunpack.c.l.b16 %v8176
      %v8199 = vrot.slane %v8192, 7
      %v8200 = vsel %vm7368, %v8199, %v8191
      %v8201 = vrot.slane %v8193, 6
      %v8202 = vsel %vm7371, %v8201, %v8200
      %v8203 = vrot.slane %v8194, 5
      %v8204 = vsel %vm7374, %v8203, %v8202
      %v8205 = vrot.slane %v8195, 4
      %v8206 = vsel %vm7377, %v8205, %v8204
      %v8207 = vrot.slane %v8196, 3
      %v8208 = vsel %vm7380, %v8207, %v8206
      %v8209 = vrot.slane %v8197, 2
      %v8210 = vsel %vm7383, %v8209, %v8208
      %v8211 = vrot.slane %v8198, 1
      %v8212 = vsel %vm7386, %v8211, %v8210
      %v8213 = vpack.c.b16 %v8212, %v8212
      %v8217 = vunpack.c.l.b16 %v8180
      %v8218 = vunpack.c.l.b16 %v8181
      %v8219 = vunpack.c.l.b16 %v8182
      %v8220 = vpack.c.b16 %v8218, %v8217
      %v8221 = vpack.c.b16 %v8219, %v8219
      %v8224 = vsel %vm7398, %v8213, 0
      %v8227 = vand.u32 %v8221, %v7405
      %8229 = vmatprep.subr.bf16.mxu0 0
      %8230 = vmatpush1.bf16.msra.mxu0 0
      %8231 = vmatprep.subr.bf16.mxu0 0
      %8232 = vmatpush1.bf16.msra.mxu0 0
      %8233 = vmatprep.subr.bf16.mxu0 0
      %8234 = vmatpush1.bf16.msra.mxu0 0
      %8235 = vmatprep.subr.bf16.mxu0 0
      %8236 = vmatpush1.bf16.msra.mxu0 0
      %8237 = vmatprep.subr.bf16.mxu0 0
      %8238 = vmatpush1.bf16.msra.mxu0 0
      %8239 = vmatprep.subr.bf16.mxu0 0
      %8240 = vmatpush1.bf16.msra.mxu0 0
      %8241 = vmatprep.subr.bf16.mxu0 0
      %8242 = vmatpush1.bf16.msra.mxu0 %v8227
      %8243 = vmatprep.subr.bf16.mxu0 0
      %8244 = vmatpush1.bf16.msra.mxu0 %v8220
      %8245 = vmatprep.subr.bf16.mxu0 0
      %8246 = vmatpush2.bf16.msra.mxu0 0
      %8247 = vmatprep.subr.bf16.mxu0 0
      %8248 = vmatpush2.bf16.msra.mxu0 0
      %8249 = vmatprep.subr.bf16.mxu0 0
      %8250 = vmatpush2.bf16.msra.mxu0 0
      %8251 = vmatprep.subr.bf16.mxu0 0
      %8252 = vmatpush2.bf16.msra.mxu0 0
      %8253 = vmatprep.subr.bf16.mxu0 0
      %8254 = vmatpush2.bf16.msra.mxu0 0
      %8255 = vmatprep.subr.bf16.mxu0 0
      %8256 = vmatpush2.bf16.msra.mxu0 0
      %8257 = vmatprep.subr.bf16.mxu0 0
      %8258 = vmatpush2.bf16.msra.mxu0 0
      %8259 = vmatprep.subr.bf16.mxu0 0
      %8260 = vmatpush2.bf16.msra.mxu0 0
      %8261 = vmatprep.mubr.bf16.mxu0 0
      %8262 = vmatmul.mubr.bf16.gmra.mxu0 %v8224
      %v8263 = vpop.f32.mrf.mxu0
      %v8264 = vadd.f32 0.0, %v8263
      %v8265 = vpop.f32.mrf.mxu0
      %v8266 = vpop.f32.mrf.mxu0
      %v8267 = vpop.f32.mrf.mxu0
      %8268 = vdwg.mxu0
      %v8269 = vadd.f32 %v8064, %v8264
      %v8270 = vld [vmem:[%s7232 + $0xa] sm:$0x1]
      %v8271 = vld [vmem:[%s7232 + $0x22] sm:$0x1]
      %v8272 = vld [vmem:[%s7232 + $0x3a] sm:$0x1]
      %v8273 = vld [vmem:[%s7232 + $0x52] sm:$0x1]
      %v8274 = vld [vmem:[%s7232 + $0x6a] sm:$0x1]
      %v8275 = vld [vmem:[%s7232 + $0x82] sm:$0x1]
      %v8276 = vld [vmem:[%s7232 + $0x9a] sm:$0x1]
      %v8277 = vld [vmem:[%s7232 + $0xb2] sm:$0x1]
      %v8278 = vld [vmem:[%s7232 + $0xb] sm:$0x1]
      %v8279 = vld [vmem:[%s7232 + $0x23] sm:$0x1]
      %v8280 = vld [vmem:[%s7232 + $0x3b] sm:$0x1]
      %v8281 = vld [vmem:[%s7232 + $0x53] sm:$0x1]
      %v8282 = vld [vmem:[%s7232 + $0x6b] sm:$0x1]
      %v8283 = vld [vmem:[%s7232 + $0x83] sm:$0x1]
      %v8284 = vld [vmem:[%s7232 + $0x9b] sm:$0x1]
      %v8285 = vld [vmem:[%s7232 + $0xb3] sm:$0x1]
      %8294 = vrot.lane.b32.xlu0 %v8270, 127
      %v8295 = vpop.permute.xlu0 %8294
      %8296 = vrot.lane.b32.xlu0 %v8271, 127
      %v8297 = vpop.permute.xlu0 %8296
      %8298 = vrot.lane.b32.xlu0 %v8272, 127
      %v8299 = vpop.permute.xlu0 %8298
      %8300 = vrot.lane.b32.xlu0 %v8273, 127
      %v8301 = vpop.permute.xlu0 %8300
      %8302 = vrot.lane.b32.xlu0 %v8274, 127
      %v8303 = vpop.permute.xlu0 %8302
      %8304 = vrot.lane.b32.xlu0 %v8275, 127
      %v8305 = vpop.permute.xlu0 %8304
      %8306 = vrot.lane.b32.xlu0 %v8276, 127
      %v8307 = vpop.permute.xlu0 %8306
      %8308 = vrot.lane.b32.xlu0 %v8277, 127
      %v8309 = vpop.permute.xlu0 %8308
      %v8318 = vmax.f32 %v8270, %v8295
      %v8319 = vmax.f32 %v8271, %v8297
      %v8320 = vmax.f32 %v8272, %v8299
      %v8321 = vmax.f32 %v8273, %v8301
      %v8322 = vmax.f32 %v8274, %v8303
      %v8323 = vmax.f32 %v8275, %v8305
      %v8324 = vmax.f32 %v8276, %v8307
      %v8325 = vmax.f32 %v8277, %v8309
      %8334 = vrot.lane.b32.xlu0 %v8278, 127
      %v8335 = vpop.permute.xlu0 %8334
      %8336 = vrot.lane.b32.xlu0 %v8279, 127
      %v8337 = vpop.permute.xlu0 %8336
      %8338 = vrot.lane.b32.xlu0 %v8280, 127
      %v8339 = vpop.permute.xlu0 %8338
      %8340 = vrot.lane.b32.xlu0 %v8281, 127
      %v8341 = vpop.permute.xlu0 %8340
      %8342 = vrot.lane.b32.xlu0 %v8282, 127
      %v8343 = vpop.permute.xlu0 %8342
      %8344 = vrot.lane.b32.xlu0 %v8283, 127
      %v8345 = vpop.permute.xlu0 %8344
      %8346 = vrot.lane.b32.xlu0 %v8284, 127
      %v8347 = vpop.permute.xlu0 %8346
      %8348 = vrot.lane.b32.xlu0 %v8285, 127
      %v8349 = vpop.permute.xlu0 %8348
      %v8358 = vmax.f32 %v8278, %v8335
      %v8359 = vmax.f32 %v8279, %v8337
      %v8360 = vmax.f32 %v8280, %v8339
      %v8361 = vmax.f32 %v8281, %v8341
      %v8362 = vmax.f32 %v8282, %v8343
      %v8363 = vmax.f32 %v8283, %v8345
      %v8364 = vmax.f32 %v8284, %v8347
      %v8365 = vmax.f32 %v8285, %v8349
      %v8366 = vmax.f32 %v8318, %v8358
      %v8367 = vmax.f32 %v8319, %v8359
      %v8368 = vmax.f32 %v8320, %v8360
      %v8369 = vmax.f32 %v8321, %v8361
      %v8370 = vmax.f32 %v8322, %v8362
      %v8371 = vmax.f32 %v8323, %v8363
      %v8372 = vmax.f32 %v8324, %v8364
      %v8373 = vmax.f32 %v8325, %v8365
      %v8374 = vpack.c.bf16 %v8366, %v8366
      %v8375 = vpack.c.bf16 %v8367, %v8367
      %v8376 = vpack.c.bf16 %v8368, %v8368
      %v8377 = vpack.c.bf16 %v8369, %v8369
      %v8378 = vpack.c.bf16 %v8370, %v8370
      %v8379 = vpack.c.bf16 %v8371, %v8371
      %v8380 = vpack.c.bf16 %v8372, %v8372
      %v8381 = vpack.c.bf16 %v8373, %v8373
      %s8382 = sadd.s32 15, %s7345
      %s8383 = smul.addr %s8382, 4
      %s8384 = scalar_lea.vmem %s5, %s8383
      %v8385 = vld [vmem:[%s8384] sm:$0xf]
      %v8386 = vld [vmem:[%s8384 + $0x4] sm:$0xf]
      %v8387 = vld [vmem:[%s8384 + $0x8] sm:$0xf]
      %v8396 = vunpack.c.l.b16 %v8374
      %v8397 = vunpack.c.l.b16 %v8375
      %v8398 = vunpack.c.l.b16 %v8376
      %v8399 = vunpack.c.l.b16 %v8377
      %v8400 = vunpack.c.l.b16 %v8378
      %v8401 = vunpack.c.l.b16 %v8379
      %v8402 = vunpack.c.l.b16 %v8380
      %v8403 = vunpack.c.l.b16 %v8381
      %v8404 = vrot.slane %v8397, 7
      %v8405 = vsel %vm7368, %v8404, %v8396
      %v8406 = vrot.slane %v8398, 6
      %v8407 = vsel %vm7371, %v8406, %v8405
      %v8408 = vrot.slane %v8399, 5
      %v8409 = vsel %vm7374, %v8408, %v8407
      %v8410 = vrot.slane %v8400, 4
      %v8411 = vsel %vm7377, %v8410, %v8409
      %v8412 = vrot.slane %v8401, 3
      %v8413 = vsel %vm7380, %v8412, %v8411
      %v8414 = vrot.slane %v8402, 2
      %v8415 = vsel %vm7383, %v8414, %v8413
      %v8416 = vrot.slane %v8403, 1
      %v8417 = vsel %vm7386, %v8416, %v8415
      %v8418 = vpack.c.b16 %v8417, %v8417
      %v8422 = vunpack.c.l.b16 %v8385
      %v8423 = vunpack.c.l.b16 %v8386
      %v8424 = vunpack.c.l.b16 %v8387
      %v8425 = vpack.c.b16 %v8423, %v8422
      %v8426 = vpack.c.b16 %v8424, %v8424
      %v8429 = vsel %vm7398, %v8418, 0
      %v8432 = vand.u32 %v8426, %v7405
      %8434 = vmatprep.subr.bf16.mxu0 0
      %8435 = vmatpush1.bf16.msra.mxu0 0
      %8436 = vmatprep.subr.bf16.mxu0 0
      %8437 = vmatpush1.bf16.msra.mxu0 0
      %8438 = vmatprep.subr.bf16.mxu0 0
      %8439 = vmatpush1.bf16.msra.mxu0 0
      %8440 = vmatprep.subr.bf16.mxu0 0
      %8441 = vmatpush1.bf16.msra.mxu0 0
      %8442 = vmatprep.subr.bf16.mxu0 0
      %8443 = vmatpush1.bf16.msra.mxu0 0
      %8444 = vmatprep.subr.bf16.mxu0 0
      %8445 = vmatpush1.bf16.msra.mxu0 0
      %8446 = vmatprep.subr.bf16.mxu0 0
      %8447 = vmatpush1.bf16.msra.mxu0 %v8432
      %8448 = vmatprep.subr.bf16.mxu0 0
      %8449 = vmatpush1.bf16.msra.mxu0 %v8425
      %8450 = vmatprep.subr.bf16.mxu0 0
      %8451 = vmatpush2.bf16.msra.mxu0 0
      %8452 = vmatprep.subr.bf16.mxu0 0
      %8453 = vmatpush2.bf16.msra.mxu0 0
      %8454 = vmatprep.subr.bf16.mxu0 0
      %8455 = vmatpush2.bf16.msra.mxu0 0
      %8456 = vmatprep.subr.bf16.mxu0 0
      %8457 = vmatpush2.bf16.msra.mxu0 0
      %8458 = vmatprep.subr.bf16.mxu0 0
      %8459 = vmatpush2.bf16.msra.mxu0 0
      %8460 = vmatprep.subr.bf16.mxu0 0
      %8461 = vmatpush2.bf16.msra.mxu0 0
      %8462 = vmatprep.subr.bf16.mxu0 0
      %8463 = vmatpush2.bf16.msra.mxu0 0
      %8464 = vmatprep.subr.bf16.mxu0 0
      %8465 = vmatpush2.bf16.msra.mxu0 0
      %8466 = vmatprep.mubr.bf16.mxu0 0
      %8467 = vmatmul.mubr.bf16.gmra.mxu0 %v8429
      %v8468 = vpop.f32.mrf.mxu0
      %v8469 = vadd.f32 0.0, %v8468
      %v8470 = vpop.f32.mrf.mxu0
      %v8471 = vpop.f32.mrf.mxu0
      %v8472 = vpop.f32.mrf.mxu0
      %8473 = vdwg.mxu0
      %v8474 = vadd.f32 %v8269, %v8469
      %v8475 = vld [vmem:[%s7232 + $0xc] sm:$0x1]
      %v8476 = vld [vmem:[%s7232 + $0x24] sm:$0x1]
      %v8477 = vld [vmem:[%s7232 + $0x3c] sm:$0x1]
      %v8478 = vld [vmem:[%s7232 + $0x54] sm:$0x1]
      %v8479 = vld [vmem:[%s7232 + $0x6c] sm:$0x1]
      %v8480 = vld [vmem:[%s7232 + $0x84] sm:$0x1]
      %v8481 = vld [vmem:[%s7232 + $0x9c] sm:$0x1]
      %v8482 = vld [vmem:[%s7232 + $0xb4] sm:$0x1]
      %v8483 = vld [vmem:[%s7232 + $0xd] sm:$0x1]
      %v8484 = vld [vmem:[%s7232 + $0x25] sm:$0x1]
      %v8485 = vld [vmem:[%s7232 + $0x3d] sm:$0x1]
      %v8486 = vld [vmem:[%s7232 + $0x55] sm:$0x1]
      %v8487 = vld [vmem:[%s7232 + $0x6d] sm:$0x1]
      %v8488 = vld [vmem:[%s7232 + $0x85] sm:$0x1]
      %v8489 = vld [vmem:[%s7232 + $0x9d] sm:$0x1]
      %v8490 = vld [vmem:[%s7232 + $0xb5] sm:$0x1]
      %8499 = vrot.lane.b32.xlu0 %v8475, 127
      %v8500 = vpop.permute.xlu0 %8499
      %8501 = vrot.lane.b32.xlu0 %v8476, 127
      %v8502 = vpop.permute.xlu0 %8501
      %8503 = vrot.lane.b32.xlu0 %v8477, 127
      %v8504 = vpop.permute.xlu0 %8503
      %8505 = vrot.lane.b32.xlu0 %v8478, 127
      %v8506 = vpop.permute.xlu0 %8505
      %8507 = vrot.lane.b32.xlu0 %v8479, 127
      %v8508 = vpop.permute.xlu0 %8507
      %8509 = vrot.lane.b32.xlu0 %v8480, 127
      %v8510 = vpop.permute.xlu0 %8509
      %8511 = vrot.lane.b32.xlu0 %v8481, 127
      %v8512 = vpop.permute.xlu0 %8511
      %8513 = vrot.lane.b32.xlu0 %v8482, 127
      %v8514 = vpop.permute.xlu0 %8513
      %v8523 = vmax.f32 %v8475, %v8500
      %v8524 = vmax.f32 %v8476, %v8502
      %v8525 = vmax.f32 %v8477, %v8504
      %v8526 = vmax.f32 %v8478, %v8506
      %v8527 = vmax.f32 %v8479, %v8508
      %v8528 = vmax.f32 %v8480, %v8510
      %v8529 = vmax.f32 %v8481, %v8512
      %v8530 = vmax.f32 %v8482, %v8514
      %8539 = vrot.lane.b32.xlu0 %v8483, 127
      %v8540 = vpop.permute.xlu0 %8539
      %8541 = vrot.lane.b32.xlu0 %v8484, 127
      %v8542 = vpop.permute.xlu0 %8541
      %8543 = vrot.lane.b32.xlu0 %v8485, 127
      %v8544 = vpop.permute.xlu0 %8543
      %8545 = vrot.lane.b32.xlu0 %v8486, 127
      %v8546 = vpop.permute.xlu0 %8545
      %8547 = vrot.lane.b32.xlu0 %v8487, 127
      %v8548 = vpop.permute.xlu0 %8547
      %8549 = vrot.lane.b32.xlu0 %v8488, 127
      %v8550 = vpop.permute.xlu0 %8549
      %8551 = vrot.lane.b32.xlu0 %v8489, 127
      %v8552 = vpop.permute.xlu0 %8551
      %8553 = vrot.lane.b32.xlu0 %v8490, 127
      %v8554 = vpop.permute.xlu0 %8553
      %v8563 = vmax.f32 %v8483, %v8540
      %v8564 = vmax.f32 %v8484, %v8542
      %v8565 = vmax.f32 %v8485, %v8544
      %v8566 = vmax.f32 %v8486, %v8546
      %v8567 = vmax.f32 %v8487, %v8548
      %v8568 = vmax.f32 %v8488, %v8550
      %v8569 = vmax.f32 %v8489, %v8552
      %v8570 = vmax.f32 %v8490, %v8554
      %v8571 = vmax.f32 %v8523, %v8563
      %v8572 = vmax.f32 %v8524, %v8564
      %v8573 = vmax.f32 %v8525, %v8565
      %v8574 = vmax.f32 %v8526, %v8566
      %v8575 = vmax.f32 %v8527, %v8567
      %v8576 = vmax.f32 %v8528, %v8568
      %v8577 = vmax.f32 %v8529, %v8569
      %v8578 = vmax.f32 %v8530, %v8570
      %v8579 = vpack.c.bf16 %v8571, %v8571
      %v8580 = vpack.c.bf16 %v8572, %v8572
      %v8581 = vpack.c.bf16 %v8573, %v8573
      %v8582 = vpack.c.bf16 %v8574, %v8574
      %v8583 = vpack.c.bf16 %v8575, %v8575
      %v8584 = vpack.c.bf16 %v8576, %v8576
      %v8585 = vpack.c.bf16 %v8577, %v8577
      %v8586 = vpack.c.bf16 %v8578, %v8578
      %s8587 = sadd.s32 18, %s7345
      %s8588 = smul.addr %s8587, 4
      %s8589 = scalar_lea.vmem %s5, %s8588
      %v8590 = vld [vmem:[%s8589] sm:$0xf]
      %v8591 = vld [vmem:[%s8589 + $0x4] sm:$0xf]
      %v8592 = vld [vmem:[%s8589 + $0x8] sm:$0xf]
      %v8601 = vunpack.c.l.b16 %v8579
      %v8602 = vunpack.c.l.b16 %v8580
      %v8603 = vunpack.c.l.b16 %v8581
      %v8604 = vunpack.c.l.b16 %v8582
      %v8605 = vunpack.c.l.b16 %v8583
      %v8606 = vunpack.c.l.b16 %v8584
      %v8607 = vunpack.c.l.b16 %v8585
      %v8608 = vunpack.c.l.b16 %v8586
      %v8609 = vrot.slane %v8602, 7
      %v8610 = vsel %vm7368, %v8609, %v8601
      %v8611 = vrot.slane %v8603, 6
      %v8612 = vsel %vm7371, %v8611, %v8610
      %v8613 = vrot.slane %v8604, 5
      %v8614 = vsel %vm7374, %v8613, %v8612
      %v8615 = vrot.slane %v8605, 4
      %v8616 = vsel %vm7377, %v8615, %v8614
      %v8617 = vrot.slane %v8606, 3
      %v8618 = vsel %vm7380, %v8617, %v8616
      %v8619 = vrot.slane %v8607, 2
      %v8620 = vsel %vm7383, %v8619, %v8618
      %v8621 = vrot.slane %v8608, 1
      %v8622 = vsel %vm7386, %v8621, %v8620
      %v8623 = vpack.c.b16 %v8622, %v8622
      %v8627 = vunpack.c.l.b16 %v8590
      %v8628 = vunpack.c.l.b16 %v8591
      %v8629 = vunpack.c.l.b16 %v8592
      %v8630 = vpack.c.b16 %v8628, %v8627
      %v8631 = vpack.c.b16 %v8629, %v8629
      %v8634 = vsel %vm7398, %v8623, 0
      %v8637 = vand.u32 %v8631, %v7405
      %8639 = vmatprep.subr.bf16.mxu0 0
      %8640 = vmatpush1.bf16.msra.mxu0 0
      %8641 = vmatprep.subr.bf16.mxu0 0
      %8642 = vmatpush1.bf16.msra.mxu0 0
      %8643 = vmatprep.subr.bf16.mxu0 0
      %8644 = vmatpush1.bf16.msra.mxu0 0
      %8645 = vmatprep.subr.bf16.mxu0 0
      %8646 = vmatpush1.bf16.msra.mxu0 0
      %8647 = vmatprep.subr.bf16.mxu0 0
      %8648 = vmatpush1.bf16.msra.mxu0 0
      %8649 = vmatprep.subr.bf16.mxu0 0
      %8650 = vmatpush1.bf16.msra.mxu0 0
      %8651 = vmatprep.subr.bf16.mxu0 0
      %8652 = vmatpush1.bf16.msra.mxu0 %v8637
      %8653 = vmatprep.subr.bf16.mxu0 0
      %8654 = vmatpush1.bf16.msra.mxu0 %v8630
      %8655 = vmatprep.subr.bf16.mxu0 0
      %8656 = vmatpush2.bf16.msra.mxu0 0
      %8657 = vmatprep.subr.bf16.mxu0 0
      %8658 = vmatpush2.bf16.msra.mxu0 0
      %8659 = vmatprep.subr.bf16.mxu0 0
      %8660 = vmatpush2.bf16.msra.mxu0 0
      %8661 = vmatprep.subr.bf16.mxu0 0
      %8662 = vmatpush2.bf16.msra.mxu0 0
      %8663 = vmatprep.subr.bf16.mxu0 0
      %8664 = vmatpush2.bf16.msra.mxu0 0
      %8665 = vmatprep.subr.bf16.mxu0 0
      %8666 = vmatpush2.bf16.msra.mxu0 0
      %8667 = vmatprep.subr.bf16.mxu0 0
      %8668 = vmatpush2.bf16.msra.mxu0 0
      %8669 = vmatprep.subr.bf16.mxu0 0
      %8670 = vmatpush2.bf16.msra.mxu0 0
      %8671 = vmatprep.mubr.bf16.mxu0 0
      %8672 = vmatmul.mubr.bf16.gmra.mxu0 %v8634
      %v8673 = vpop.f32.mrf.mxu0
      %v8674 = vadd.f32 0.0, %v8673
      %v8675 = vpop.f32.mrf.mxu0
      %v8676 = vpop.f32.mrf.mxu0
      %v8677 = vpop.f32.mrf.mxu0
      %8678 = vdwg.mxu0
      %v8679 = vadd.f32 %v8474, %v8674
      %v8680 = vld [vmem:[%s7232 + $0xe] sm:$0x1]
      %v8681 = vld [vmem:[%s7232 + $0x26] sm:$0x1]
      %v8682 = vld [vmem:[%s7232 + $0x3e] sm:$0x1]
      %v8683 = vld [vmem:[%s7232 + $0x56] sm:$0x1]
      %v8684 = vld [vmem:[%s7232 + $0x6e] sm:$0x1]
      %v8685 = vld [vmem:[%s7232 + $0x86] sm:$0x1]
      %v8686 = vld [vmem:[%s7232 + $0x9e] sm:$0x1]
      %v8687 = vld [vmem:[%s7232 + $0xb6] sm:$0x1]
      %v8688 = vld [vmem:[%s7232 + $0xf] sm:$0x1]
      %v8689 = vld [vmem:[%s7232 + $0x27] sm:$0x1]
      %v8690 = vld [vmem:[%s7232 + $0x3f] sm:$0x1]
      %v8691 = vld [vmem:[%s7232 + $0x57] sm:$0x1]
      %v8692 = vld [vmem:[%s7232 + $0x6f] sm:$0x1]
      %v8693 = vld [vmem:[%s7232 + $0x87] sm:$0x1]
      %v8694 = vld [vmem:[%s7232 + $0x9f] sm:$0x1]
      %v8695 = vld [vmem:[%s7232 + $0xb7] sm:$0x1]
      %8704 = vrot.lane.b32.xlu0 %v8680, 127
      %v8705 = vpop.permute.xlu0 %8704
      %8706 = vrot.lane.b32.xlu0 %v8681, 127
      %v8707 = vpop.permute.xlu0 %8706
      %8708 = vrot.lane.b32.xlu0 %v8682, 127
      %v8709 = vpop.permute.xlu0 %8708
      %8710 = vrot.lane.b32.xlu0 %v8683, 127
      %v8711 = vpop.permute.xlu0 %8710
      %8712 = vrot.lane.b32.xlu0 %v8684, 127
      %v8713 = vpop.permute.xlu0 %8712
      %8714 = vrot.lane.b32.xlu0 %v8685, 127
      %v8715 = vpop.permute.xlu0 %8714
      %8716 = vrot.lane.b32.xlu0 %v8686, 127
      %v8717 = vpop.permute.xlu0 %8716
      %8718 = vrot.lane.b32.xlu0 %v8687, 127
      %v8719 = vpop.permute.xlu0 %8718
      %v8728 = vmax.f32 %v8680, %v8705
      %v8729 = vmax.f32 %v8681, %v8707
      %v8730 = vmax.f32 %v8682, %v8709
      %v8731 = vmax.f32 %v8683, %v8711
      %v8732 = vmax.f32 %v8684, %v8713
      %v8733 = vmax.f32 %v8685, %v8715
      %v8734 = vmax.f32 %v8686, %v8717
      %v8735 = vmax.f32 %v8687, %v8719
      %8744 = vrot.lane.b32.xlu0 %v8688, 127
      %v8745 = vpop.permute.xlu0 %8744
      %8746 = vrot.lane.b32.xlu0 %v8689, 127
      %v8747 = vpop.permute.xlu0 %8746
      %8748 = vrot.lane.b32.xlu0 %v8690, 127
      %v8749 = vpop.permute.xlu0 %8748
      %8750 = vrot.lane.b32.xlu0 %v8691, 127
      %v8751 = vpop.permute.xlu0 %8750
      %8752 = vrot.lane.b32.xlu0 %v8692, 127
      %v8753 = vpop.permute.xlu0 %8752
      %8754 = vrot.lane.b32.xlu0 %v8693, 127
      %v8755 = vpop.permute.xlu0 %8754
      %8756 = vrot.lane.b32.xlu0 %v8694, 127
      %v8757 = vpop.permute.xlu0 %8756
      %8758 = vrot.lane.b32.xlu0 %v8695, 127
      %v8759 = vpop.permute.xlu0 %8758
      %v8768 = vmax.f32 %v8688, %v8745
      %v8769 = vmax.f32 %v8689, %v8747
      %v8770 = vmax.f32 %v8690, %v8749
      %v8771 = vmax.f32 %v8691, %v8751
      %v8772 = vmax.f32 %v8692, %v8753
      %v8773 = vmax.f32 %v8693, %v8755
      %v8774 = vmax.f32 %v8694, %v8757
      %v8775 = vmax.f32 %v8695, %v8759
      %v8776 = vmax.f32 %v8728, %v8768
      %v8777 = vmax.f32 %v8729, %v8769
      %v8778 = vmax.f32 %v8730, %v8770
      %v8779 = vmax.f32 %v8731, %v8771
      %v8780 = vmax.f32 %v8732, %v8772
      %v8781 = vmax.f32 %v8733, %v8773
      %v8782 = vmax.f32 %v8734, %v8774
      %v8783 = vmax.f32 %v8735, %v8775
      %v8784 = vpack.c.bf16 %v8776, %v8776
      %v8785 = vpack.c.bf16 %v8777, %v8777
      %v8786 = vpack.c.bf16 %v8778, %v8778
      %v8787 = vpack.c.bf16 %v8779, %v8779
      %v8788 = vpack.c.bf16 %v8780, %v8780
      %v8789 = vpack.c.bf16 %v8781, %v8781
      %v8790 = vpack.c.bf16 %v8782, %v8782
      %v8791 = vpack.c.bf16 %v8783, %v8783
      %s8792 = sadd.s32 21, %s7345
      %s8793 = smul.addr %s8792, 4
      %s8794 = scalar_lea.vmem %s5, %s8793
      %v8795 = vld [vmem:[%s8794] sm:$0xf]
      %v8796 = vld [vmem:[%s8794 + $0x4] sm:$0xf]
      %v8797 = vld [vmem:[%s8794 + $0x8] sm:$0xf]
      %v8806 = vunpack.c.l.b16 %v8784
      %v8807 = vunpack.c.l.b16 %v8785
      %v8808 = vunpack.c.l.b16 %v8786
      %v8809 = vunpack.c.l.b16 %v8787
      %v8810 = vunpack.c.l.b16 %v8788
      %v8811 = vunpack.c.l.b16 %v8789
      %v8812 = vunpack.c.l.b16 %v8790
      %v8813 = vunpack.c.l.b16 %v8791
      %v8814 = vrot.slane %v8807, 7
      %v8815 = vsel %vm7368, %v8814, %v8806
      %v8816 = vrot.slane %v8808, 6
      %v8817 = vsel %vm7371, %v8816, %v8815
      %v8818 = vrot.slane %v8809, 5
      %v8819 = vsel %vm7374, %v8818, %v8817
      %v8820 = vrot.slane %v8810, 4
      %v8821 = vsel %vm7377, %v8820, %v8819
      %v8822 = vrot.slane %v8811, 3
      %v8823 = vsel %vm7380, %v8822, %v8821
      %v8824 = vrot.slane %v8812, 2
      %v8825 = vsel %vm7383, %v8824, %v8823
      %v8826 = vrot.slane %v8813, 1
      %v8827 = vsel %vm7386, %v8826, %v8825
      %v8828 = vpack.c.b16 %v8827, %v8827
      %v8832 = vunpack.c.l.b16 %v8795
      %v8833 = vunpack.c.l.b16 %v8796
      %v8834 = vunpack.c.l.b16 %v8797
      %v8835 = vpack.c.b16 %v8833, %v8832
      %v8836 = vpack.c.b16 %v8834, %v8834
      %v8839 = vsel %vm7398, %v8828, 0
      %v8842 = vand.u32 %v8836, %v7405
      %8844 = vmatprep.subr.bf16.mxu0 0
      %8845 = vmatpush1.bf16.msra.mxu0 0
      %8846 = vmatprep.subr.bf16.mxu0 0
      %8847 = vmatpush1.bf16.msra.mxu0 0
      %8848 = vmatprep.subr.bf16.mxu0 0
      %8849 = vmatpush1.bf16.msra.mxu0 0
      %8850 = vmatprep.subr.bf16.mxu0 0
      %8851 = vmatpush1.bf16.msra.mxu0 0
      %8852 = vmatprep.subr.bf16.mxu0 0
      %8853 = vmatpush1.bf16.msra.mxu0 0
      %8854 = vmatprep.subr.bf16.mxu0 0
      %8855 = vmatpush1.bf16.msra.mxu0 0
      %8856 = vmatprep.subr.bf16.mxu0 0
      %8857 = vmatpush1.bf16.msra.mxu0 %v8842
      %8858 = vmatprep.subr.bf16.mxu0 0
      %8859 = vmatpush1.bf16.msra.mxu0 %v8835
      %8860 = vmatprep.subr.bf16.mxu0 0
      %8861 = vmatpush2.bf16.msra.mxu0 0
      %8862 = vmatprep.subr.bf16.mxu0 0
      %8863 = vmatpush2.bf16.msra.mxu0 0
      %8864 = vmatprep.subr.bf16.mxu0 0
      %8865 = vmatpush2.bf16.msra.mxu0 0
      %8866 = vmatprep.subr.bf16.mxu0 0
      %8867 = vmatpush2.bf16.msra.mxu0 0
      %8868 = vmatprep.subr.bf16.mxu0 0
      %8869 = vmatpush2.bf16.msra.mxu0 0
      %8870 = vmatprep.subr.bf16.mxu0 0
      %8871 = vmatpush2.bf16.msra.mxu0 0
      %8872 = vmatprep.subr.bf16.mxu0 0
      %8873 = vmatpush2.bf16.msra.mxu0 0
      %8874 = vmatprep.subr.bf16.mxu0 0
      %8875 = vmatpush2.bf16.msra.mxu0 0
      %8876 = vmatprep.mubr.bf16.mxu0 0
      %8877 = vmatmul.mubr.bf16.gmra.mxu0 %v8839
      %v8878 = vpop.f32.mrf.mxu0
      %v8879 = vadd.f32 0.0, %v8878
      %v8880 = vpop.f32.mrf.mxu0
      %v8881 = vpop.f32.mrf.mxu0
      %v8882 = vpop.f32.mrf.mxu0
      %8883 = vdwg.mxu0
      %v8884 = vadd.f32 %v8679, %v8879
      %v8885 = vld [vmem:[%s7232 + $0x10] sm:$0x1]
      %v8886 = vld [vmem:[%s7232 + $0x28] sm:$0x1]
      %v8887 = vld [vmem:[%s7232 + $0x40] sm:$0x1]
      %v8888 = vld [vmem:[%s7232 + $0x58] sm:$0x1]
      %v8889 = vld [vmem:[%s7232 + $0x70] sm:$0x1]
      %v8890 = vld [vmem:[%s7232 + $0x88] sm:$0x1]
      %v8891 = vld [vmem:[%s7232 + $0xa0] sm:$0x1]
      %v8892 = vld [vmem:[%s7232 + $0xb8] sm:$0x1]
      %v8893 = vld [vmem:[%s7232 + $0x11] sm:$0x1]
      %v8894 = vld [vmem:[%s7232 + $0x29] sm:$0x1]
      %v8895 = vld [vmem:[%s7232 + $0x41] sm:$0x1]
      %v8896 = vld [vmem:[%s7232 + $0x59] sm:$0x1]
      %v8897 = vld [vmem:[%s7232 + $0x71] sm:$0x1]
      %v8898 = vld [vmem:[%s7232 + $0x89] sm:$0x1]
      %v8899 = vld [vmem:[%s7232 + $0xa1] sm:$0x1]
      %v8900 = vld [vmem:[%s7232 + $0xb9] sm:$0x1]
      %8909 = vrot.lane.b32.xlu0 %v8885, 127
      %v8910 = vpop.permute.xlu0 %8909
      %8911 = vrot.lane.b32.xlu0 %v8886, 127
      %v8912 = vpop.permute.xlu0 %8911
      %8913 = vrot.lane.b32.xlu0 %v8887, 127
      %v8914 = vpop.permute.xlu0 %8913
      %8915 = vrot.lane.b32.xlu0 %v8888, 127
      %v8916 = vpop.permute.xlu0 %8915
      %8917 = vrot.lane.b32.xlu0 %v8889, 127
      %v8918 = vpop.permute.xlu0 %8917
      %8919 = vrot.lane.b32.xlu0 %v8890, 127
      %v8920 = vpop.permute.xlu0 %8919
      %8921 = vrot.lane.b32.xlu0 %v8891, 127
      %v8922 = vpop.permute.xlu0 %8921
      %8923 = vrot.lane.b32.xlu0 %v8892, 127
      %v8924 = vpop.permute.xlu0 %8923
      %v8933 = vmax.f32 %v8885, %v8910
      %v8934 = vmax.f32 %v8886, %v8912
      %v8935 = vmax.f32 %v8887, %v8914
      %v8936 = vmax.f32 %v8888, %v8916
      %v8937 = vmax.f32 %v8889, %v8918
      %v8938 = vmax.f32 %v8890, %v8920
      %v8939 = vmax.f32 %v8891, %v8922
      %v8940 = vmax.f32 %v8892, %v8924
      %8949 = vrot.lane.b32.xlu0 %v8893, 127
      %v8950 = vpop.permute.xlu0 %8949
      %8951 = vrot.lane.b32.xlu0 %v8894, 127
      %v8952 = vpop.permute.xlu0 %8951
      %8953 = vrot.lane.b32.xlu0 %v8895, 127
      %v8954 = vpop.permute.xlu0 %8953
      %8955 = vrot.lane.b32.xlu0 %v8896, 127
      %v8956 = vpop.permute.xlu0 %8955
      %8957 = vrot.lane.b32.xlu0 %v8897, 127
      %v8958 = vpop.permute.xlu0 %8957
      %8959 = vrot.lane.b32.xlu0 %v8898, 127
      %v8960 = vpop.permute.xlu0 %8959
      %8961 = vrot.lane.b32.xlu0 %v8899, 127
      %v8962 = vpop.permute.xlu0 %8961
      %8963 = vrot.lane.b32.xlu0 %v8900, 127
      %v8964 = vpop.permute.xlu0 %8963
      %v8973 = vmax.f32 %v8893, %v8950
      %v8974 = vmax.f32 %v8894, %v8952
      %v8975 = vmax.f32 %v8895, %v8954
      %v8976 = vmax.f32 %v8896, %v8956
      %v8977 = vmax.f32 %v8897, %v8958
      %v8978 = vmax.f32 %v8898, %v8960
      %v8979 = vmax.f32 %v8899, %v8962
      %v8980 = vmax.f32 %v8900, %v8964
      %v8981 = vmax.f32 %v8933, %v8973
      %v8982 = vmax.f32 %v8934, %v8974
      %v8983 = vmax.f32 %v8935, %v8975
      %v8984 = vmax.f32 %v8936, %v8976
      %v8985 = vmax.f32 %v8937, %v8977
      %v8986 = vmax.f32 %v8938, %v8978
      %v8987 = vmax.f32 %v8939, %v8979
      %v8988 = vmax.f32 %v8940, %v8980
      %v8989 = vpack.c.bf16 %v8981, %v8981
      %v8990 = vpack.c.bf16 %v8982, %v8982
      %v8991 = vpack.c.bf16 %v8983, %v8983
      %v8992 = vpack.c.bf16 %v8984, %v8984
      %v8993 = vpack.c.bf16 %v8985, %v8985
      %v8994 = vpack.c.bf16 %v8986, %v8986
      %v8995 = vpack.c.bf16 %v8987, %v8987
      %v8996 = vpack.c.bf16 %v8988, %v8988
      %s8997 = sadd.s32 24, %s7345
      %s8998 = smul.addr %s8997, 4
      %s8999 = scalar_lea.vmem %s5, %s8998
      %v9000 = vld [vmem:[%s8999] sm:$0xf]
      %v9001 = vld [vmem:[%s8999 + $0x4] sm:$0xf]
      %v9002 = vld [vmem:[%s8999 + $0x8] sm:$0xf]
      %v9011 = vunpack.c.l.b16 %v8989
      %v9012 = vunpack.c.l.b16 %v8990
      %v9013 = vunpack.c.l.b16 %v8991
      %v9014 = vunpack.c.l.b16 %v8992
      %v9015 = vunpack.c.l.b16 %v8993
      %v9016 = vunpack.c.l.b16 %v8994
      %v9017 = vunpack.c.l.b16 %v8995
      %v9018 = vunpack.c.l.b16 %v8996
      %v9019 = vrot.slane %v9012, 7
      %v9020 = vsel %vm7368, %v9019, %v9011
      %v9021 = vrot.slane %v9013, 6
      %v9022 = vsel %vm7371, %v9021, %v9020
      %v9023 = vrot.slane %v9014, 5
      %v9024 = vsel %vm7374, %v9023, %v9022
      %v9025 = vrot.slane %v9015, 4
      %v9026 = vsel %vm7377, %v9025, %v9024
      %v9027 = vrot.slane %v9016, 3
      %v9028 = vsel %vm7380, %v9027, %v9026
      %v9029 = vrot.slane %v9017, 2
      %v9030 = vsel %vm7383, %v9029, %v9028
      %v9031 = vrot.slane %v9018, 1
      %v9032 = vsel %vm7386, %v9031, %v9030
      %v9033 = vpack.c.b16 %v9032, %v9032
      %v9037 = vunpack.c.l.b16 %v9000
      %v9038 = vunpack.c.l.b16 %v9001
      %v9039 = vunpack.c.l.b16 %v9002
      %v9040 = vpack.c.b16 %v9038, %v9037
      %v9041 = vpack.c.b16 %v9039, %v9039
      %v9044 = vsel %vm7398, %v9033, 0
      %v9047 = vand.u32 %v9041, %v7405
      %9049 = vmatprep.subr.bf16.mxu0 0
      %9050 = vmatpush1.bf16.msra.mxu0 0
      %9051 = vmatprep.subr.bf16.mxu0 0
      %9052 = vmatpush1.bf16.msra.mxu0 0
      %9053 = vmatprep.subr.bf16.mxu0 0
      %9054 = vmatpush1.bf16.msra.mxu0 0
      %9055 = vmatprep.subr.bf16.mxu0 0
      %9056 = vmatpush1.bf16.msra.mxu0 0
      %9057 = vmatprep.subr.bf16.mxu0 0
      %9058 = vmatpush1.bf16.msra.mxu0 0
      %9059 = vmatprep.subr.bf16.mxu0 0
      %9060 = vmatpush1.bf16.msra.mxu0 0
      %9061 = vmatprep.subr.bf16.mxu0 0
      %9062 = vmatpush1.bf16.msra.mxu0 %v9047
      %9063 = vmatprep.subr.bf16.mxu0 0
      %9064 = vmatpush1.bf16.msra.mxu0 %v9040
      %9065 = vmatprep.subr.bf16.mxu0 0
      %9066 = vmatpush2.bf16.msra.mxu0 0
      %9067 = vmatprep.subr.bf16.mxu0 0
      %9068 = vmatpush2.bf16.msra.mxu0 0
      %9069 = vmatprep.subr.bf16.mxu0 0
      %9070 = vmatpush2.bf16.msra.mxu0 0
      %9071 = vmatprep.subr.bf16.mxu0 0
      %9072 = vmatpush2.bf16.msra.mxu0 0
      %9073 = vmatprep.subr.bf16.mxu0 0
      %9074 = vmatpush2.bf16.msra.mxu0 0
      %9075 = vmatprep.subr.bf16.mxu0 0
      %9076 = vmatpush2.bf16.msra.mxu0 0
      %9077 = vmatprep.subr.bf16.mxu0 0
      %9078 = vmatpush2.bf16.msra.mxu0 0
      %9079 = vmatprep.subr.bf16.mxu0 0
      %9080 = vmatpush2.bf16.msra.mxu0 0
      %9081 = vmatprep.mubr.bf16.mxu0 0
      %9082 = vmatmul.mubr.bf16.gmra.mxu0 %v9044
      %v9083 = vpop.f32.mrf.mxu0
      %v9084 = vadd.f32 0.0, %v9083
      %v9085 = vpop.f32.mrf.mxu0
      %v9086 = vpop.f32.mrf.mxu0
      %v9087 = vpop.f32.mrf.mxu0
      %9088 = vdwg.mxu0
      %v9089 = vadd.f32 %v8884, %v9084
      %v9090 = vld [vmem:[%s7232 + $0x12] sm:$0x1]
      %v9091 = vld [vmem:[%s7232 + $0x2a] sm:$0x1]
      %v9092 = vld [vmem:[%s7232 + $0x42] sm:$0x1]
      %v9093 = vld [vmem:[%s7232 + $0x5a] sm:$0x1]
      %v9094 = vld [vmem:[%s7232 + $0x72] sm:$0x1]
      %v9095 = vld [vmem:[%s7232 + $0x8a] sm:$0x1]
      %v9096 = vld [vmem:[%s7232 + $0xa2] sm:$0x1]
      %v9097 = vld [vmem:[%s7232 + $0xba] sm:$0x1]
      %v9098 = vld [vmem:[%s7232 + $0x13] sm:$0x1]
      %v9099 = vld [vmem:[%s7232 + $0x2b] sm:$0x1]
      %v9100 = vld [vmem:[%s7232 + $0x43] sm:$0x1]
      %v9101 = vld [vmem:[%s7232 + $0x5b] sm:$0x1]
      %v9102 = vld [vmem:[%s7232 + $0x73] sm:$0x1]
      %v9103 = vld [vmem:[%s7232 + $0x8b] sm:$0x1]
      %v9104 = vld [vmem:[%s7232 + $0xa3] sm:$0x1]
      %v9105 = vld [vmem:[%s7232 + $0xbb] sm:$0x1]
      %9114 = vrot.lane.b32.xlu0 %v9090, 127
      %v9115 = vpop.permute.xlu0 %9114
      %9116 = vrot.lane.b32.xlu0 %v9091, 127
      %v9117 = vpop.permute.xlu0 %9116
      %9118 = vrot.lane.b32.xlu0 %v9092, 127
      %v9119 = vpop.permute.xlu0 %9118
      %9120 = vrot.lane.b32.xlu0 %v9093, 127
      %v9121 = vpop.permute.xlu0 %9120
      %9122 = vrot.lane.b32.xlu0 %v9094, 127
      %v9123 = vpop.permute.xlu0 %9122
      %9124 = vrot.lane.b32.xlu0 %v9095, 127
      %v9125 = vpop.permute.xlu0 %9124
      %9126 = vrot.lane.b32.xlu0 %v9096, 127
      %v9127 = vpop.permute.xlu0 %9126
      %9128 = vrot.lane.b32.xlu0 %v9097, 127
      %v9129 = vpop.permute.xlu0 %9128
      %v9138 = vmax.f32 %v9090, %v9115
      %v9139 = vmax.f32 %v9091, %v9117
      %v9140 = vmax.f32 %v9092, %v9119
      %v9141 = vmax.f32 %v9093, %v9121
      %v9142 = vmax.f32 %v9094, %v9123
      %v9143 = vmax.f32 %v9095, %v9125
      %v9144 = vmax.f32 %v9096, %v9127
      %v9145 = vmax.f32 %v9097, %v9129
      %9154 = vrot.lane.b32.xlu0 %v9098, 127
      %v9155 = vpop.permute.xlu0 %9154
      %9156 = vrot.lane.b32.xlu0 %v9099, 127
      %v9157 = vpop.permute.xlu0 %9156
      %9158 = vrot.lane.b32.xlu0 %v9100, 127
      %v9159 = vpop.permute.xlu0 %9158
      %9160 = vrot.lane.b32.xlu0 %v9101, 127
      %v9161 = vpop.permute.xlu0 %9160
      %9162 = vrot.lane.b32.xlu0 %v9102, 127
      %v9163 = vpop.permute.xlu0 %9162
      %9164 = vrot.lane.b32.xlu0 %v9103, 127
      %v9165 = vpop.permute.xlu0 %9164
      %9166 = vrot.lane.b32.xlu0 %v9104, 127
      %v9167 = vpop.permute.xlu0 %9166
      %9168 = vrot.lane.b32.xlu0 %v9105, 127
      %v9169 = vpop.permute.xlu0 %9168
      %v9178 = vmax.f32 %v9098, %v9155
      %v9179 = vmax.f32 %v9099, %v9157
      %v9180 = vmax.f32 %v9100, %v9159
      %v9181 = vmax.f32 %v9101, %v9161
      %v9182 = vmax.f32 %v9102, %v9163
      %v9183 = vmax.f32 %v9103, %v9165
      %v9184 = vmax.f32 %v9104, %v9167
      %v9185 = vmax.f32 %v9105, %v9169
      %v9186 = vmax.f32 %v9138, %v9178
      %v9187 = vmax.f32 %v9139, %v9179
      %v9188 = vmax.f32 %v9140, %v9180
      %v9189 = vmax.f32 %v9141, %v9181
      %v9190 = vmax.f32 %v9142, %v9182
      %v9191 = vmax.f32 %v9143, %v9183
      %v9192 = vmax.f32 %v9144, %v9184
      %v9193 = vmax.f32 %v9145, %v9185
      %v9194 = vpack.c.bf16 %v9186, %v9186
      %v9195 = vpack.c.bf16 %v9187, %v9187
      %v9196 = vpack.c.bf16 %v9188, %v9188
      %v9197 = vpack.c.bf16 %v9189, %v9189
      %v9198 = vpack.c.bf16 %v9190, %v9190
      %v9199 = vpack.c.bf16 %v9191, %v9191
      %v9200 = vpack.c.bf16 %v9192, %v9192
      %v9201 = vpack.c.bf16 %v9193, %v9193
      %s9202 = sadd.s32 27, %s7345
      %s9203 = smul.addr %s9202, 4
      %s9204 = scalar_lea.vmem %s5, %s9203
      %v9205 = vld [vmem:[%s9204] sm:$0xf]
      %v9206 = vld [vmem:[%s9204 + $0x4] sm:$0xf]
      %v9207 = vld [vmem:[%s9204 + $0x8] sm:$0xf]
      %v9216 = vunpack.c.l.b16 %v9194
      %v9217 = vunpack.c.l.b16 %v9195
      %v9218 = vunpack.c.l.b16 %v9196
      %v9219 = vunpack.c.l.b16 %v9197
      %v9220 = vunpack.c.l.b16 %v9198
      %v9221 = vunpack.c.l.b16 %v9199
      %v9222 = vunpack.c.l.b16 %v9200
      %v9223 = vunpack.c.l.b16 %v9201
      %v9224 = vrot.slane %v9217, 7
      %v9225 = vsel %vm7368, %v9224, %v9216
      %v9226 = vrot.slane %v9218, 6
      %v9227 = vsel %vm7371, %v9226, %v9225
      %v9228 = vrot.slane %v9219, 5
      %v9229 = vsel %vm7374, %v9228, %v9227
      %v9230 = vrot.slane %v9220, 4
      %v9231 = vsel %vm7377, %v9230, %v9229
      %v9232 = vrot.slane %v9221, 3
      %v9233 = vsel %vm7380, %v9232, %v9231
      %v9234 = vrot.slane %v9222, 2
      %v9235 = vsel %vm7383, %v9234, %v9233
      %v9236 = vrot.slane %v9223, 1
      %v9237 = vsel %vm7386, %v9236, %v9235
      %v9238 = vpack.c.b16 %v9237, %v9237
      %v9242 = vunpack.c.l.b16 %v9205
      %v9243 = vunpack.c.l.b16 %v9206
      %v9244 = vunpack.c.l.b16 %v9207
      %v9245 = vpack.c.b16 %v9243, %v9242
      %v9246 = vpack.c.b16 %v9244, %v9244
      %v9249 = vsel %vm7398, %v9238, 0
      %v9252 = vand.u32 %v9246, %v7405
      %9254 = vmatprep.subr.bf16.mxu0 0
      %9255 = vmatpush1.bf16.msra.mxu0 0
      %9256 = vmatprep.subr.bf16.mxu0 0
      %9257 = vmatpush1.bf16.msra.mxu0 0
      %9258 = vmatprep.subr.bf16.mxu0 0
      %9259 = vmatpush1.bf16.msra.mxu0 0
      %9260 = vmatprep.subr.bf16.mxu0 0
      %9261 = vmatpush1.bf16.msra.mxu0 0
      %9262 = vmatprep.subr.bf16.mxu0 0
      %9263 = vmatpush1.bf16.msra.mxu0 0
      %9264 = vmatprep.subr.bf16.mxu0 0
      %9265 = vmatpush1.bf16.msra.mxu0 0
      %9266 = vmatprep.subr.bf16.mxu0 0
      %9267 = vmatpush1.bf16.msra.mxu0 %v9252
      %9268 = vmatprep.subr.bf16.mxu0 0
      %9269 = vmatpush1.bf16.msra.mxu0 %v9245
      %9270 = vmatprep.subr.bf16.mxu0 0
      %9271 = vmatpush2.bf16.msra.mxu0 0
      %9272 = vmatprep.subr.bf16.mxu0 0
      %9273 = vmatpush2.bf16.msra.mxu0 0
      %9274 = vmatprep.subr.bf16.mxu0 0
      %9275 = vmatpush2.bf16.msra.mxu0 0
      %9276 = vmatprep.subr.bf16.mxu0 0
      %9277 = vmatpush2.bf16.msra.mxu0 0
      %9278 = vmatprep.subr.bf16.mxu0 0
      %9279 = vmatpush2.bf16.msra.mxu0 0
      %9280 = vmatprep.subr.bf16.mxu0 0
      %9281 = vmatpush2.bf16.msra.mxu0 0
      %9282 = vmatprep.subr.bf16.mxu0 0
      %9283 = vmatpush2.bf16.msra.mxu0 0
      %9284 = vmatprep.subr.bf16.mxu0 0
      %9285 = vmatpush2.bf16.msra.mxu0 0
      %9286 = vmatprep.mubr.bf16.mxu0 0
      %9287 = vmatmul.mubr.bf16.gmra.mxu0 %v9249
      %v9288 = vpop.f32.mrf.mxu0
      %v9289 = vadd.f32 0.0, %v9288
      %v9290 = vpop.f32.mrf.mxu0
      %v9291 = vpop.f32.mrf.mxu0
      %v9292 = vpop.f32.mrf.mxu0
      %9293 = vdwg.mxu0
      %v9294 = vadd.f32 %v9089, %v9289
      %v9295 = vld [vmem:[%s7232 + $0x14] sm:$0x1]
      %v9296 = vld [vmem:[%s7232 + $0x2c] sm:$0x1]
      %v9297 = vld [vmem:[%s7232 + $0x44] sm:$0x1]
      %v9298 = vld [vmem:[%s7232 + $0x5c] sm:$0x1]
      %v9299 = vld [vmem:[%s7232 + $0x74] sm:$0x1]
      %v9300 = vld [vmem:[%s7232 + $0x8c] sm:$0x1]
      %v9301 = vld [vmem:[%s7232 + $0xa4] sm:$0x1]
      %v9302 = vld [vmem:[%s7232 + $0xbc] sm:$0x1]
      %v9303 = vld [vmem:[%s7232 + $0x15] sm:$0x1]
      %v9304 = vld [vmem:[%s7232 + $0x2d] sm:$0x1]
      %v9305 = vld [vmem:[%s7232 + $0x45] sm:$0x1]
      %v9306 = vld [vmem:[%s7232 + $0x5d] sm:$0x1]
      %v9307 = vld [vmem:[%s7232 + $0x75] sm:$0x1]
      %v9308 = vld [vmem:[%s7232 + $0x8d] sm:$0x1]
      %v9309 = vld [vmem:[%s7232 + $0xa5] sm:$0x1]
      %v9310 = vld [vmem:[%s7232 + $0xbd] sm:$0x1]
      %9319 = vrot.lane.b32.xlu0 %v9295, 127
      %v9320 = vpop.permute.xlu0 %9319
      %9321 = vrot.lane.b32.xlu0 %v9296, 127
      %v9322 = vpop.permute.xlu0 %9321
      %9323 = vrot.lane.b32.xlu0 %v9297, 127
      %v9324 = vpop.permute.xlu0 %9323
      %9325 = vrot.lane.b32.xlu0 %v9298, 127
      %v9326 = vpop.permute.xlu0 %9325
      %9327 = vrot.lane.b32.xlu0 %v9299, 127
      %v9328 = vpop.permute.xlu0 %9327
      %9329 = vrot.lane.b32.xlu0 %v9300, 127
      %v9330 = vpop.permute.xlu0 %9329
      %9331 = vrot.lane.b32.xlu0 %v9301, 127
      %v9332 = vpop.permute.xlu0 %9331
      %9333 = vrot.lane.b32.xlu0 %v9302, 127
      %v9334 = vpop.permute.xlu0 %9333
      %v9343 = vmax.f32 %v9295, %v9320
      %v9344 = vmax.f32 %v9296, %v9322
      %v9345 = vmax.f32 %v9297, %v9324
      %v9346 = vmax.f32 %v9298, %v9326
      %v9347 = vmax.f32 %v9299, %v9328
      %v9348 = vmax.f32 %v9300, %v9330
      %v9349 = vmax.f32 %v9301, %v9332
      %v9350 = vmax.f32 %v9302, %v9334
      %9359 = vrot.lane.b32.xlu0 %v9303, 127
      %v9360 = vpop.permute.xlu0 %9359
      %9361 = vrot.lane.b32.xlu0 %v9304, 127
      %v9362 = vpop.permute.xlu0 %9361
      %9363 = vrot.lane.b32.xlu0 %v9305, 127
      %v9364 = vpop.permute.xlu0 %9363
      %9365 = vrot.lane.b32.xlu0 %v9306, 127
      %v9366 = vpop.permute.xlu0 %9365
      %9367 = vrot.lane.b32.xlu0 %v9307, 127
      %v9368 = vpop.permute.xlu0 %9367
      %9369 = vrot.lane.b32.xlu0 %v9308, 127
      %v9370 = vpop.permute.xlu0 %9369
      %9371 = vrot.lane.b32.xlu0 %v9309, 127
      %v9372 = vpop.permute.xlu0 %9371
      %9373 = vrot.lane.b32.xlu0 %v9310, 127
      %v9374 = vpop.permute.xlu0 %9373
      %v9383 = vmax.f32 %v9303, %v9360
      %v9384 = vmax.f32 %v9304, %v9362
      %v9385 = vmax.f32 %v9305, %v9364
      %v9386 = vmax.f32 %v9306, %v9366
      %v9387 = vmax.f32 %v9307, %v9368
      %v9388 = vmax.f32 %v9308, %v9370
      %v9389 = vmax.f32 %v9309, %v9372
      %v9390 = vmax.f32 %v9310, %v9374
      %v9391 = vmax.f32 %v9343, %v9383
      %v9392 = vmax.f32 %v9344, %v9384
      %v9393 = vmax.f32 %v9345, %v9385
      %v9394 = vmax.f32 %v9346, %v9386
      %v9395 = vmax.f32 %v9347, %v9387
      %v9396 = vmax.f32 %v9348, %v9388
      %v9397 = vmax.f32 %v9349, %v9389
      %v9398 = vmax.f32 %v9350, %v9390
      %v9399 = vpack.c.bf16 %v9391, %v9391
      %v9400 = vpack.c.bf16 %v9392, %v9392
      %v9401 = vpack.c.bf16 %v9393, %v9393
      %v9402 = vpack.c.bf16 %v9394, %v9394
      %v9403 = vpack.c.bf16 %v9395, %v9395
      %v9404 = vpack.c.bf16 %v9396, %v9396
      %v9405 = vpack.c.bf16 %v9397, %v9397
      %v9406 = vpack.c.bf16 %v9398, %v9398
      %s9407 = sadd.s32 30, %s7345
      %s9408 = smul.addr %s9407, 4
      %s9409 = scalar_lea.vmem %s5, %s9408
      %v9410 = vld [vmem:[%s9409] sm:$0xf]
      %v9411 = vld [vmem:[%s9409 + $0x4] sm:$0xf]
      %v9412 = vld [vmem:[%s9409 + $0x8] sm:$0xf]
      %v9421 = vunpack.c.l.b16 %v9399
      %v9422 = vunpack.c.l.b16 %v9400
      %v9423 = vunpack.c.l.b16 %v9401
      %v9424 = vunpack.c.l.b16 %v9402
      %v9425 = vunpack.c.l.b16 %v9403
      %v9426 = vunpack.c.l.b16 %v9404
      %v9427 = vunpack.c.l.b16 %v9405
      %v9428 = vunpack.c.l.b16 %v9406
      %v9429 = vrot.slane %v9422, 7
      %v9430 = vsel %vm7368, %v9429, %v9421
      %v9431 = vrot.slane %v9423, 6
      %v9432 = vsel %vm7371, %v9431, %v9430
      %v9433 = vrot.slane %v9424, 5
      %v9434 = vsel %vm7374, %v9433, %v9432
      %v9435 = vrot.slane %v9425, 4
      %v9436 = vsel %vm7377, %v9435, %v9434
      %v9437 = vrot.slane %v9426, 3
      %v9438 = vsel %vm7380, %v9437, %v9436
      %v9439 = vrot.slane %v9427, 2
      %v9440 = vsel %vm7383, %v9439, %v9438
      %v9441 = vrot.slane %v9428, 1
      %v9442 = vsel %vm7386, %v9441, %v9440
      %v9443 = vpack.c.b16 %v9442, %v9442
      %v9447 = vunpack.c.l.b16 %v9410
      %v9448 = vunpack.c.l.b16 %v9411
      %v9449 = vunpack.c.l.b16 %v9412
      %v9450 = vpack.c.b16 %v9448, %v9447
      %v9451 = vpack.c.b16 %v9449, %v9449
      %v9454 = vsel %vm7398, %v9443, 0
      %v9457 = vand.u32 %v9451, %v7405
      %9459 = vmatprep.subr.bf16.mxu0 0
      %9460 = vmatpush1.bf16.msra.mxu0 0
      %9461 = vmatprep.subr.bf16.mxu0 0
      %9462 = vmatpush1.bf16.msra.mxu0 0
      %9463 = vmatprep.subr.bf16.mxu0 0
      %9464 = vmatpush1.bf16.msra.mxu0 0
      %9465 = vmatprep.subr.bf16.mxu0 0
      %9466 = vmatpush1.bf16.msra.mxu0 0
      %9467 = vmatprep.subr.bf16.mxu0 0
      %9468 = vmatpush1.bf16.msra.mxu0 0
      %9469 = vmatprep.subr.bf16.mxu0 0
      %9470 = vmatpush1.bf16.msra.mxu0 0
      %9471 = vmatprep.subr.bf16.mxu0 0
      %9472 = vmatpush1.bf16.msra.mxu0 %v9457
      %9473 = vmatprep.subr.bf16.mxu0 0
      %9474 = vmatpush1.bf16.msra.mxu0 %v9450
      %9475 = vmatprep.subr.bf16.mxu0 0
      %9476 = vmatpush2.bf16.msra.mxu0 0
      %9477 = vmatprep.subr.bf16.mxu0 0
      %9478 = vmatpush2.bf16.msra.mxu0 0
      %9479 = vmatprep.subr.bf16.mxu0 0
      %9480 = vmatpush2.bf16.msra.mxu0 0
      %9481 = vmatprep.subr.bf16.mxu0 0
      %9482 = vmatpush2.bf16.msra.mxu0 0
      %9483 = vmatprep.subr.bf16.mxu0 0
      %9484 = vmatpush2.bf16.msra.mxu0 0
      %9485 = vmatprep.subr.bf16.mxu0 0
      %9486 = vmatpush2.bf16.msra.mxu0 0
      %9487 = vmatprep.subr.bf16.mxu0 0
      %9488 = vmatpush2.bf16.msra.mxu0 0
      %9489 = vmatprep.subr.bf16.mxu0 0
      %9490 = vmatpush2.bf16.msra.mxu0 0
      %9491 = vmatprep.mubr.bf16.mxu0 0
      %9492 = vmatmul.mubr.bf16.gmra.mxu0 %v9454
      %v9493 = vpop.f32.mrf.mxu0
      %v9494 = vadd.f32 0.0, %v9493
      %v9495 = vpop.f32.mrf.mxu0
      %v9496 = vpop.f32.mrf.mxu0
      %v9497 = vpop.f32.mrf.mxu0
      %9498 = vdwg.mxu0
      %v9499 = vadd.f32 %v9294, %v9494
      %v9500 = vld [vmem:[%s7232 + $0x16] sm:$0x1]
      %v9501 = vld [vmem:[%s7232 + $0x2e] sm:$0x1]
      %v9502 = vld [vmem:[%s7232 + $0x46] sm:$0x1]
      %v9503 = vld [vmem:[%s7232 + $0x5e] sm:$0x1]
      %v9504 = vld [vmem:[%s7232 + $0x76] sm:$0x1]
      %v9505 = vld [vmem:[%s7232 + $0x8e] sm:$0x1]
      %v9506 = vld [vmem:[%s7232 + $0xa6] sm:$0x1]
      %v9507 = vld [vmem:[%s7232 + $0xbe] sm:$0x1]
      %v9508 = vld [vmem:[%s7232 + $0x17] sm:$0x1]
      %v9509 = vld [vmem:[%s7232 + $0x2f] sm:$0x1]
      %v9510 = vld [vmem:[%s7232 + $0x47] sm:$0x1]
      %v9511 = vld [vmem:[%s7232 + $0x5f] sm:$0x1]
      %v9512 = vld [vmem:[%s7232 + $0x77] sm:$0x1]
      %v9513 = vld [vmem:[%s7232 + $0x8f] sm:$0x1]
      %v9514 = vld [vmem:[%s7232 + $0xa7] sm:$0x1]
      %v9515 = vld [vmem:[%s7232 + $0xbf] sm:$0x1]
      %9524 = vrot.lane.b32.xlu0 %v9500, 127
      %v9525 = vpop.permute.xlu0 %9524
      %9526 = vrot.lane.b32.xlu0 %v9501, 127
      %v9527 = vpop.permute.xlu0 %9526
      %9528 = vrot.lane.b32.xlu0 %v9502, 127
      %v9529 = vpop.permute.xlu0 %9528
      %9530 = vrot.lane.b32.xlu0 %v9503, 127
      %v9531 = vpop.permute.xlu0 %9530
      %9532 = vrot.lane.b32.xlu0 %v9504, 127
      %v9533 = vpop.permute.xlu0 %9532
      %9534 = vrot.lane.b32.xlu0 %v9505, 127
      %v9535 = vpop.permute.xlu0 %9534
      %9536 = vrot.lane.b32.xlu0 %v9506, 127
      %v9537 = vpop.permute.xlu0 %9536
      %9538 = vrot.lane.b32.xlu0 %v9507, 127
      %v9539 = vpop.permute.xlu0 %9538
      %v9548 = vmax.f32 %v9500, %v9525
      %v9549 = vmax.f32 %v9501, %v9527
      %v9550 = vmax.f32 %v9502, %v9529
      %v9551 = vmax.f32 %v9503, %v9531
      %v9552 = vmax.f32 %v9504, %v9533
      %v9553 = vmax.f32 %v9505, %v9535
      %v9554 = vmax.f32 %v9506, %v9537
      %v9555 = vmax.f32 %v9507, %v9539
      %9564 = vrot.lane.b32.xlu0 %v9508, 127
      %v9565 = vpop.permute.xlu0 %9564
      %9566 = vrot.lane.b32.xlu0 %v9509, 127
      %v9567 = vpop.permute.xlu0 %9566
      %9568 = vrot.lane.b32.xlu0 %v9510, 127
      %v9569 = vpop.permute.xlu0 %9568
      %9570 = vrot.lane.b32.xlu0 %v9511, 127
      %v9571 = vpop.permute.xlu0 %9570
      %9572 = vrot.lane.b32.xlu0 %v9512, 127
      %v9573 = vpop.permute.xlu0 %9572
      %9574 = vrot.lane.b32.xlu0 %v9513, 127
      %v9575 = vpop.permute.xlu0 %9574
      %9576 = vrot.lane.b32.xlu0 %v9514, 127
      %v9577 = vpop.permute.xlu0 %9576
      %9578 = vrot.lane.b32.xlu0 %v9515, 127
      %v9579 = vpop.permute.xlu0 %9578
      %v9588 = vmax.f32 %v9508, %v9565
      %v9589 = vmax.f32 %v9509, %v9567
      %v9590 = vmax.f32 %v9510, %v9569
      %v9591 = vmax.f32 %v9511, %v9571
      %v9592 = vmax.f32 %v9512, %v9573
      %v9593 = vmax.f32 %v9513, %v9575
      %v9594 = vmax.f32 %v9514, %v9577
      %v9595 = vmax.f32 %v9515, %v9579
      %v9596 = vmax.f32 %v9548, %v9588
      %v9597 = vmax.f32 %v9549, %v9589
      %v9598 = vmax.f32 %v9550, %v9590
      %v9599 = vmax.f32 %v9551, %v9591
      %v9600 = vmax.f32 %v9552, %v9592
      %v9601 = vmax.f32 %v9553, %v9593
      %v9602 = vmax.f32 %v9554, %v9594
      %v9603 = vmax.f32 %v9555, %v9595
      %v9604 = vpack.c.bf16 %v9596, %v9596
      %v9605 = vpack.c.bf16 %v9597, %v9597
      %v9606 = vpack.c.bf16 %v9598, %v9598
      %v9607 = vpack.c.bf16 %v9599, %v9599
      %v9608 = vpack.c.bf16 %v9600, %v9600
      %v9609 = vpack.c.bf16 %v9601, %v9601
      %v9610 = vpack.c.bf16 %v9602, %v9602
      %v9611 = vpack.c.bf16 %v9603, %v9603
      %s9612 = sadd.s32 33, %s7345
      %s9613 = smul.addr %s9612, 4
      %s9614 = scalar_lea.vmem %s5, %s9613
      %v9615 = vld [vmem:[%s9614] sm:$0xf]
      %v9616 = vld [vmem:[%s9614 + $0x4] sm:$0xf]
      %v9617 = vld [vmem:[%s9614 + $0x8] sm:$0xf]
      %v9626 = vunpack.c.l.b16 %v9604
      %v9627 = vunpack.c.l.b16 %v9605
      %v9628 = vunpack.c.l.b16 %v9606
      %v9629 = vunpack.c.l.b16 %v9607
      %v9630 = vunpack.c.l.b16 %v9608
      %v9631 = vunpack.c.l.b16 %v9609
      %v9632 = vunpack.c.l.b16 %v9610
      %v9633 = vunpack.c.l.b16 %v9611
      %v9634 = vrot.slane %v9627, 7
      %v9635 = vsel %vm7368, %v9634, %v9626
      %v9636 = vrot.slane %v9628, 6
      %v9637 = vsel %vm7371, %v9636, %v9635
      %v9638 = vrot.slane %v9629, 5
      %v9639 = vsel %vm7374, %v9638, %v9637
      %v9640 = vrot.slane %v9630, 4
      %v9641 = vsel %vm7377, %v9640, %v9639
      %v9642 = vrot.slane %v9631, 3
      %v9643 = vsel %vm7380, %v9642, %v9641
      %v9644 = vrot.slane %v9632, 2
      %v9645 = vsel %vm7383, %v9644, %v9643
      %v9646 = vrot.slane %v9633, 1
      %v9647 = vsel %vm7386, %v9646, %v9645
      %v9648 = vpack.c.b16 %v9647, %v9647
      %v9652 = vunpack.c.l.b16 %v9615
      %v9653 = vunpack.c.l.b16 %v9616
      %v9654 = vunpack.c.l.b16 %v9617
      %v9655 = vpack.c.b16 %v9653, %v9652
      %v9656 = vpack.c.b16 %v9654, %v9654
      %v9659 = vsel %vm7398, %v9648, 0
      %v9662 = vand.u32 %v9656, %v7405
      %9664 = vmatprep.subr.bf16.mxu0 0
      %9665 = vmatpush1.bf16.msra.mxu0 0
      %9666 = vmatprep.subr.bf16.mxu0 0
      %9667 = vmatpush1.bf16.msra.mxu0 0
      %9668 = vmatprep.subr.bf16.mxu0 0
      %9669 = vmatpush1.bf16.msra.mxu0 0
      %9670 = vmatprep.subr.bf16.mxu0 0
      %9671 = vmatpush1.bf16.msra.mxu0 0
      %9672 = vmatprep.subr.bf16.mxu0 0
      %9673 = vmatpush1.bf16.msra.mxu0 0
      %9674 = vmatprep.subr.bf16.mxu0 0
      %9675 = vmatpush1.bf16.msra.mxu0 0
      %9676 = vmatprep.subr.bf16.mxu0 0
      %9677 = vmatpush1.bf16.msra.mxu0 %v9662
      %9678 = vmatprep.subr.bf16.mxu0 0
      %9679 = vmatpush1.bf16.msra.mxu0 %v9655
      %9680 = vmatprep.subr.bf16.mxu0 0
      %9681 = vmatpush2.bf16.msra.mxu0 0
      %9682 = vmatprep.subr.bf16.mxu0 0
      %9683 = vmatpush2.bf16.msra.mxu0 0
      %9684 = vmatprep.subr.bf16.mxu0 0
      %9685 = vmatpush2.bf16.msra.mxu0 0
      %9686 = vmatprep.subr.bf16.mxu0 0
      %9687 = vmatpush2.bf16.msra.mxu0 0
      %9688 = vmatprep.subr.bf16.mxu0 0
      %9689 = vmatpush2.bf16.msra.mxu0 0
      %9690 = vmatprep.subr.bf16.mxu0 0
      %9691 = vmatpush2.bf16.msra.mxu0 0
      %9692 = vmatprep.subr.bf16.mxu0 0
      %9693 = vmatpush2.bf16.msra.mxu0 0
      %9694 = vmatprep.subr.bf16.mxu0 0
      %9695 = vmatpush2.bf16.msra.mxu0 0
      %9696 = vmatprep.mubr.bf16.mxu0 0
      %9697 = vmatmul.mubr.bf16.gmra.mxu0 %v9659
      %v9698 = vpop.f32.mrf.mxu0
      %v9699 = vadd.f32 0.0, %v9698
      %v9700 = vpop.f32.mrf.mxu0
      %v9701 = vpop.f32.mrf.mxu0
      %v9702 = vpop.f32.mrf.mxu0
      %9703 = vdwg.mxu0
      %v9704 = vadd.f32 %v9499, %v9699
    $region72: #{conv_nn_forward.1} parent=1 // loop_footer
      %s7229 = sadd.s32 1, %s7225
    $region73: #{conv_nn_forward.1} parent=1 // loop_footer_branch
      %7224 = sbr.rel target = $region69
    $region74: #{conv_nn_forward.1} parent=1 // loop_exit
      _
    %v9705 = vld [vmem:[%s6] sm:$0x1]
    %v9707 = vlaneseq
    %v9708 = vshrl.u32 %v9707, 7
    %v9709 = vsub.s32 0, %v9708
    %v9710 = vrot.slane %v9705, %v9709
    %v9712 = vadd.f32 %v7230, %v9710
    %v9713 = vmax.f32 %v9712, 0.0
    %v9714 = vpack.c.bf16 %v9713, %v9713
    %v9715 = vld [vmem:[%s7] sm:$0xf]
    %v9716 = vld [vmem:[%s7 + $0x4] sm:$0xf]
    %v9717 = vld [vmem:[%s7 + $0x8] sm:$0xf]
    %v9718 = vld [vmem:[%s7 + $0xc] sm:$0xf]
    %v9719 = vld [vmem:[%s7 + $0x10] sm:$0xf]
    %v9720 = vld [vmem:[%s7 + $0x14] sm:$0xf]
    %v9721 = vld [vmem:[%s7 + $0x18] sm:$0xf]
    %v9722 = vld [vmem:[%s7 + $0x1c] sm:$0xf]
    %v9723 = vld [vmem:[%s7 + $0x20] sm:$0xf]
    %v9724 = vld [vmem:[%s7 + $0x24] sm:$0xf]
    %v9725 = vld [vmem:[%s7 + $0x28] sm:$0xf]
    %v9726 = vld [vmem:[%s7 + $0x2c] sm:$0xf]
    %v9727 = vld [vmem:[%s7 + $0x30] sm:$0xf]
    %v9728 = vld [vmem:[%s7 + $0x34] sm:$0xf]
    %v9729 = vld [vmem:[%s7 + $0x38] sm:$0xf]
    %v9730 = vld [vmem:[%s7 + $0x3c] sm:$0xf]
    %v9731 = vld [vmem:[%s8] sm:$0x1]
    %v9733 = vlaneseq
    %v9734 = vshrl.u32 %v9733, 7
    %v9735 = vsub.s32 0, %v9734
    %v9736 = vrot.slane %v9731, %v9735
    %v9754 = vunpack.c.l.b16 %v9715
    %v9755 = vunpack.c.l.b16 %v9716
    %v9756 = vunpack.c.l.b16 %v9717
    %v9757 = vunpack.c.l.b16 %v9718
    %v9758 = vunpack.c.l.b16 %v9719
    %v9759 = vunpack.c.l.b16 %v9720
    %v9760 = vunpack.c.l.b16 %v9721
    %v9761 = vunpack.c.l.b16 %v9722
    %v9762 = vunpack.c.l.b16 %v9723
    %v9763 = vunpack.c.l.b16 %v9724
    %v9764 = vunpack.c.l.b16 %v9725
    %v9765 = vunpack.c.l.b16 %v9726
    %v9766 = vunpack.c.l.b16 %v9727
    %v9767 = vunpack.c.l.b16 %v9728
    %v9768 = vunpack.c.l.b16 %v9729
    %v9769 = vunpack.c.l.b16 %v9730
    %v9770 = vpack.c.b16 %v9755, %v9754
    %v9771 = vpack.c.b16 %v9757, %v9756
    %v9772 = vpack.c.b16 %v9759, %v9758
    %v9773 = vpack.c.b16 %v9761, %v9760
    %v9774 = vpack.c.b16 %v9763, %v9762
    %v9775 = vpack.c.b16 %v9765, %v9764
    %v9776 = vpack.c.b16 %v9767, %v9766
    %v9777 = vpack.c.b16 %v9769, %v9768
    %9786 = vmatprep.subr.bf16.mxu0 0
    %9787 = vmatpush1.bf16.msra.mxu0 %v9777
    %9788 = vmatprep.subr.bf16.mxu0 0
    %9789 = vmatpush1.bf16.msra.mxu0 %v9776
    %9790 = vmatprep.subr.bf16.mxu0 0
    %9791 = vmatpush1.bf16.msra.mxu0 %v9775
    %9792 = vmatprep.subr.bf16.mxu0 0
    %9793 = vmatpush1.bf16.msra.mxu0 %v9774
    %9794 = vmatprep.subr.bf16.mxu0 0
    %9795 = vmatpush1.bf16.msra.mxu0 %v9773
    %9796 = vmatprep.subr.bf16.mxu0 0
    %9797 = vmatpush1.bf16.msra.mxu0 %v9772
    %9798 = vmatprep.subr.bf16.mxu0 0
    %9799 = vmatpush1.bf16.msra.mxu0 %v9771
    %9800 = vmatprep.subr.bf16.mxu0 0
    %9801 = vmatpush1.bf16.msra.mxu0 %v9770
    %9802 = vmatprep.subr.bf16.mxu0 0
    %9803 = vmatpush2.bf16.msra.mxu0 0
    %9804 = vmatprep.subr.bf16.mxu0 0
    %9805 = vmatpush2.bf16.msra.mxu0 0
    %9806 = vmatprep.subr.bf16.mxu0 0
    %9807 = vmatpush2.bf16.msra.mxu0 0
    %9808 = vmatprep.subr.bf16.mxu0 0
    %9809 = vmatpush2.bf16.msra.mxu0 0
    %9810 = vmatprep.subr.bf16.mxu0 0
    %9811 = vmatpush2.bf16.msra.mxu0 0
    %9812 = vmatprep.subr.bf16.mxu0 0
    %9813 = vmatpush2.bf16.msra.mxu0 0
    %9814 = vmatprep.subr.bf16.mxu0 0
    %9815 = vmatpush2.bf16.msra.mxu0 0
    %9816 = vmatprep.subr.bf16.mxu0 0
    %9817 = vmatpush2.bf16.msra.mxu0 0
    %9818 = vmatprep.mubr.bf16.mxu0 0
    %9819 = vmatmul.mubr.bf16.gmra.mxu0 %v9714
    %v9820 = vpop.f32.mrf.mxu0
    %v9821 = vadd.f32 %v9736, %v9820
    %v9822 = vpop.f32.mrf.mxu0
    %v9823 = vpop.f32.mrf.mxu0
    %v9824 = vpop.f32.mrf.mxu0
    %9825 = vdwg.mxu0
    %9826 = vst [vmem:[%s9] sm:$0xff] %v9821
    // Predicated region
    $region75: #{conv_nn_forward.1} parent=1 // pred_check
      _
    $region76: #{conv_nn_forward.1} parent=1 // pred_check_branch
      %9828 = sbr.rel (0) target = $region78
    $region77: #{conv_nn_forward.1} parent=1 // pred_region
      _
    $region78: #{conv_nn_forward.1} parent=1 // pred_fallthru
      _
    // Predicated region
    $region79: #{conv_nn_forward.1} parent=1 // pred_check
      _
    $region80: #{conv_nn_forward.1} parent=1 // pred_check_branch
      %9830 = sbr.rel (0) target = $region82
    $region81: #{conv_nn_forward.1} parent=1 // pred_region
      _
    $region82: #{conv_nn_forward.1} parent=1 // pred_fallthru
      _
    %9831 = vsyncpa [#allocation5], 1
    %9832 = vsyncpa [#allocation7], 1
    %9833 = vsyncpa [#allocation10], 1

</llo_original>
